<compile_context>
chip_gen: v7x
topology: tpu7x:2x2x1
jax: 0.10.0
libtpu: 0.0.40
codegen_flags: <defaults>
</compile_context>

<pallas_src>
import jax
import jax.numpy as jnp
from jax import lax
from jax.experimental import pallas as pl
from jax.experimental.pallas import tpu as pltpu

GP = 128        # per-gate lane padding (keeps every gate slice 128-lane aligned)
HP = 128        # hidden-state lane padding
BP = 8          # padded batch (sublane) size
IN1 = 8         # padded feature dim for the raw 6-feature input (was 128)

# Packed gate order is [i, f, o, g]: the three sigmoid gates are contiguous.
# _PT_GATE_SRC[dst] = source gate index in PyTorch's (i, f, g, o) layout.
_PT_GATE_SRC = (0, 1, 3, 2)


# ---------------------------------------------------------------------------
# Pallas kernel: whole forward pass in one grid step.
# ---------------------------------------------------------------------------
def _disk_lstm_kernel(
    # --- early-use inputs, auto-DMA'd to VMEM by Pallas (BlockSpec) ---------
    x_ref,                       # (T*BP, IN1) f32   time-major padded input
    w1i, w1h, b1,                # layer 1: (IN1,4GP) bf16, (HP,4GP) bf16, (1,4GP) f32
    b2, b3,                      # layer 2/3 biases, pre-replicated: (BP,4GP) f32
    bl1, bl2, bl3,               # MLP-head biases, pre-replicated: (BP,128) f32
    # --- late-use weights, left in HBM (memory_space=pl.ANY) ----------------
    w2i_hbm, w2h_hbm,            # (HP,4GP) bf16 each
    w3i_hbm, w3h_hbm,            # (HP,4GP) bf16 each
    wl1_hbm, wl2_hbm, wl3_hbm,   # (HP,HP) bf16 each
    # --- output --------------------------------------------------------------
    out_ref,                     # (BP, 128) f32   lane 0 of rows [:B] = prediction
    # --- scratch --------------------------------------------------------------
    xp_ref,                      # (T*BP, 4GP) f32: x @ W1_ih + b1, all steps
    w2i_v, w2h_v, w3i_v, w3h_v,  # VMEM landing buffers for the deferred weights
    wl1_v, wl2_v, wl3_v,
    dma_sem,                     # 7 DMA semaphores
):
    n_steps = x_ref.shape[0] // BP   # static at trace time

    # ---- kick off manual DMAs for all late-use weights (overlap w/ compute) --
    deferred = (
        (w2i_hbm, w2i_v), (w2h_hbm, w2h_v),
        (w3i_hbm, w3i_v), (w3h_hbm, w3h_v),
        (wl1_hbm, wl1_v), (wl2_hbm, wl2_v), (wl3_hbm, wl3_v),
    )

    def _copy(idx):
        src, dst = deferred[idx]
        return pltpu.make_async_copy(src, dst, dma_sem.at[idx])

    for idx in range(len(deferred)):
        _copy(idx).start()

    def sigmoid(v):
        # Exact identity: 1/(1+exp(-v)) == 0.5*tanh(0.5*v)+0.5 -> single EUP tanh.
        return 0.5 * jnp.tanh(0.5 * v) + 0.5

    def bf16(v):
        return v.astype(jnp.bfloat16)

    # ---- pre-loop: layer-1 input projection for ALL timesteps, one MXU pass --
    xp_ref[...] = (
        jnp.dot(bf16(x_ref[...]), w1i[...], preferred_element_type=jnp.float32)
        + b1[...]
    )

    def cell(gates, c):
        # Packed gate order [i, f, o, g]; sigmoid block is one contiguous slice.
        sig = sigmoid(gates[:, : 3 * GP])
        i_g = sig[:, 0 * GP:1 * GP]
        f_g = sig[:, 1 * GP:2 * GP]
        o_g = sig[:, 2 * GP:3 * GP]
        g_g = jnp.tanh(gates[:, 3 * GP:4 * GP])
        c_new = f_g * c + i_g * g_g
        h_new = o_g * jnp.tanh(c_new)
        return h_new, c_new

    # Layer-2/3 recurrent weights must be resident before the first loop step
    # (their DMA overlapped with the hoisted projection above).
    # TODO(synk): the layer-3 wait could be pushed inside pl.when(t == 0) to
    #             also hide it under step-0 layers 1/2; kept here for simplicity.
    for idx in (0, 1, 2, 3):
        _copy(idx).wait()

    def body(t, carry):
        h1, c1, h2, c2, h3, c3 = carry
        row = pl.multiple_of(t * BP, BP)

        # Layer 1: input projection precomputed; only the recurrent dot here.
        g1 = xp_ref[pl.ds(row, BP), :] + jnp.dot(
            bf16(h1), w1h[...], preferred_element_type=jnp.float32)
        h1, c1 = cell(g1, c1)

        # Layers 2/3: de-fused — two K=128 bf16 dots + add (no lane concat).
        g2 = (jnp.dot(bf16(h1), w2i_v[...], preferred_element_type=jnp.float32)
              + jnp.dot(bf16(h2), w2h_v[...], preferred_element_type=jnp.float32)
              + b2[...])
        h2, c2 = cell(g2, c2)

        g3 = (jnp.dot(bf16(h2), w3i_v[...], preferred_element_type=jnp.float32)
              + jnp.dot(bf16(h3), w3h_v[...], preferred_element_type=jnp.float32)
              + b3[...])
        h3, c3 = cell(g3, c3)
        return (h1, c1, h2, c2, h3, c3)

    z = jnp.zeros((BP, HP), jnp.float32)
    carry = (z, z, z, z, z, z)
    # NOTE: n_steps == 0 would leave out_ref undefined; wrapper enforces T >= 1.
    unroll = True if n_steps <= 32 else 8   # never a fully rolled (opaque) loop
    carry = lax.fori_loop(0, n_steps, body, carry, unroll=unroll)
    h3 = carry[4]

    # MLP-head weights: their DMA was hidden under the whole recurrence.
    for idx in (4, 5, 6):
        _copy(idx).wait()

    y = jnp.tanh(jnp.dot(bf16(h3), wl1_v[...],
                         preferred_element_type=jnp.float32) + bl1[...])
    y = jnp.tanh(jnp.dot(bf16(y), wl2_v[...],
                         preferred_element_type=jnp.float32) + bl2[...])
    y = sigmoid(jnp.dot(bf16(y), wl3_v[...],
                        preferred_element_type=jnp.float32) + bl3[...])
    out_ref[...] = y


# ---------------------------------------------------------------------------
# Parameter packing (plain JAX glue, runs once).  Weights -> bf16, biases f32.
# ---------------------------------------------------------------------------
def pack_lstm_l1(w_ih, w_hh, b_ih, b_hh, in_dim, hidden):
    """Layer 1: input & recurrent weights kept separate (input proj is hoisted)."""
    wi = jnp.zeros((IN1, 4 * GP), jnp.float32)
    wh = jnp.zeros((HP, 4 * GP), jnp.float32)
    b = jnp.zeros((1, 4 * GP), jnp.float32)
    for dst, src in enumerate(_PT_GATE_SRC):
        rows = slice(src * hidden, (src + 1) * hidden)
        cols = slice(dst * GP, dst * GP + hidden)
        wi = wi.at[:in_dim, cols].set(w_ih[rows, :].T)
        wh = wh.at[:hidden, cols].set(w_hh[rows, :].T)
        b = b.at[0, cols].set(b_ih[rows] + b_hh[rows])
    return wi.astype(jnp.bfloat16), wh.astype(jnp.bfloat16), b


def pack_lstm_split(w_ih, w_hh, b_ih, b_hh, in_dim, hidden):
    """Layers 2/3: separate W_ih / W_hh (de-fused); bias pre-replicated to BP rows."""
    wi = jnp.zeros((HP, 4 * GP), jnp.float32)
    wh = jnp.zeros((HP, 4 * GP), jnp.float32)
    b = jnp.zeros((1, 4 * GP), jnp.float32)
    for dst, src in enumerate(_PT_GATE_SRC):
        rows = slice(src * hidden, (src + 1) * hidden)
        cols = slice(dst * GP, dst * GP + hidden)
        wi = wi.at[:in_dim, cols].set(w_ih[rows, :].T)
        wh = wh.at[:hidden, cols].set(w_hh[rows, :].T)
        b = b.at[0, cols].set(b_ih[rows] + b_hh[rows])
    return (wi.astype(jnp.bfloat16), wh.astype(jnp.bfloat16),
            jnp.tile(b, (BP, 1)))


def pack_linear(w, b, in_dim, out_dim):
    wp = jnp.zeros((HP, HP), jnp.float32)
    bp = jnp.zeros((1, HP), jnp.float32)
    wp = wp.at[:in_dim, :out_dim].set(w.T)
    bp = bp.at[0, :out_dim].set(b)
    return wp.astype(jnp.bfloat16), jnp.tile(bp, (BP, 1))


def init_params(key):
    """Deterministic PyTorch-default-style init (U(-1/sqrt(H), 1/sqrt(H)))."""
    keys = iter(jax.random.split(key, 32))

    def unif(shape, bound):
        return jax.random.uniform(next(keys), shape, jnp.float32, -bound, bound)

    params = {}
    for name, in_d, hid in (("l1", 6, 32), ("l2", 32, 64), ("l3", 64, 128)):
        k = 1.0 / jnp.sqrt(hid)
        params[name] = dict(
            w_ih=unif((4 * hid, in_d), k), w_hh=unif((4 * hid, hid), k),
            b_ih=unif((4 * hid,), k), b_hh=unif((4 * hid,), k))
    for name, in_d, out_d in (("fc1", 128, 128), ("fc2", 128, 64), ("fc3", 64, 1)):
        k = 1.0 / jnp.sqrt(in_d)
        params[name] = dict(w=unif((out_d, in_d), k), b=unif((out_d,), k))
    return params


def pack_params(p):
    w1i, w1h, b1 = pack_lstm_l1(**p["l1"], in_dim=6, hidden=32)
    w2i, w2h, b2 = pack_lstm_split(**p["l2"], in_dim=32, hidden=64)
    w3i, w3h, b3 = pack_lstm_split(**p["l3"], in_dim=64, hidden=128)
    wl1, bl1 = pack_linear(p["fc1"]["w"], p["fc1"]["b"], 128, 128)
    wl2, bl2 = pack_linear(p["fc2"]["w"], p["fc2"]["b"], 128, 64)
    wl3, bl3 = pack_linear(p["fc3"]["w"], p["fc3"]["b"], 64, 1)
    return dict(w1i=w1i, w1h=w1h, b1=b1, w2i=w2i, w2h=w2h, b2=b2,
                w3i=w3i, w3h=w3h, b3=b3,
                wl1=wl1, bl1=bl1, wl2=wl2, bl2=bl2, wl3=wl3, bl3=bl3)


# ---------------------------------------------------------------------------
# Wrapper: pad/transpose input, call the kernel once, un-pad output.
# ---------------------------------------------------------------------------
@jax.jit
def disk_lstm_forward(x, packed):
    B, T, F = x.shape
    assert B <= BP, f"batch {B} exceeds padded batch {BP}"
    assert T >= 1, "need at least one timestep"
    assert F <= IN1, f"feature dim {F} exceeds padded feature dim {IN1}"

    # Whole-sequence-in-VMEM guard (xp scratch grows ~16 KiB/step in f32);
    # smallest default scoped-VMEM budget is v5e's 16 MiB -> stay well under it.
    xp_bytes = T * BP * 4 * GP * 4
    x_bytes = 2 * T * BP * IN1 * 4               # Pallas double-buffers the input
    weight_bytes = 2 * 1024 * 1024               # resident + deferred weights (upper bound)
    assert xp_bytes + x_bytes + weight_bytes < 12 * 1024 * 1024, (
        "sequence too long for whole-sequence-in-VMEM design; chunk T (see TODO)")

    x_pad = jnp.zeros((T, BP, IN1), jnp.float32)
    x_pad = x_pad.at[:, :B, :F].set(jnp.transpose(x, (1, 0, 2)).astype(jnp.float32))
    x2d = x_pad.reshape(T * BP, IN1)

    vmem_inputs = (x2d, packed["w1i"], packed["w1h"], packed["b1"],
                   packed["b2"], packed["b3"],
                   packed["bl1"], packed["bl2"], packed["bl3"])
    any_inputs = (packed["w2i"], packed["w2h"], packed["w3i"], packed["w3h"],
                  packed["wl1"], packed["wl2"], packed["wl3"])

    def full_spec(arr):
        nd = arr.ndim
        return pl.BlockSpec(arr.shape, lambda i, _nd=nd: (0,) * _nd)

    in_specs = ([full_spec(a) for a in vmem_inputs]
                + [pl.BlockSpec(memory_space=pl.ANY) for _ in any_inputs])

    scratch_shapes = [
        pltpu.VMEM((T * BP, 4 * GP), jnp.float32),     # xp: hoisted layer-1 proj
        pltpu.VMEM((HP, 4 * GP), jnp.bfloat16),        # w2i landing buffer
        pltpu.VMEM((HP, 4 * GP), jnp.bfloat16),        # w2h
        pltpu.VMEM((HP, 4 * GP), jnp.bfloat16),        # w3i
        pltpu.VMEM((HP, 4 * GP), jnp.bfloat16),        # w3h
        pltpu.VMEM((HP, HP), jnp.bfloat16),            # wl1
        pltpu.VMEM((HP, HP), jnp.bfloat16),            # wl2
        pltpu.VMEM((HP, HP), jnp.bfloat16),            # wl3
        pltpu.SemaphoreType.DMA((7,)),
    ]

    out = pl.pallas_call(
        _disk_lstm_kernel,
        out_shape=jax.ShapeDtypeStruct((BP, 128), jnp.float32),
        grid_spec=pltpu.PrefetchScalarGridSpec(
            num_scalar_prefetch=0,
            grid=(1,),                        # single grid step; T runs in-kernel
            in_specs=in_specs,
            out_specs=pl.BlockSpec((BP, 128), lambda i: (0, 0)),
            scratch_shapes=scratch_shapes,
        ),
        compiler_params=pltpu.CompilerParams(
            dimension_semantics=("arbitrary",)),
    )(*vmem_inputs, *any_inputs)

    return out[:B, :1]  # (B, 1) — matches torch.sigmoid(linear_3(...)) output


# ---------------------------------------------------------------------------
# Pure-JAX f32 reference (correctness check only).
# ---------------------------------------------------------------------------
def _lstm_ref(x, w_ih, w_hh, b_ih, b_hh, hidden):
    B, T, _ = x.shape
    h = jnp.zeros((B, hidden), jnp.float32)
    c = jnp.zeros((B, hidden), jnp.float32)
    outs = []
    for t in range(T):
        gates = x[:, t] @ w_ih.T + b_ih + h @ w_hh.T + b_hh
        i, f, g, o = jnp.split(gates, 4, axis=-1)
        i, f, g, o = jax.nn.sigmoid(i), jax.nn.sigmoid(f), jnp.tanh(g), jax.nn.sigmoid(o)
        c = f * c + i * g
        h = o * jnp.tanh(c)
        outs.append(h)
    return jnp.stack(outs, axis=1)


def disk_lstm_ref(x, p):
    h = _lstm_ref(x, **p["l1"], hidden=32)
    h = _lstm_ref(h, **p["l2"], hidden=64)
    h = _lstm_ref(h, **p["l3"], hidden=128)
    h = h[:, -1, :]
    h = jnp.tanh(h @ p["fc1"]["w"].T + p["fc1"]["b"])
    h = jnp.tanh(h @ p["fc2"]["w"].T + p["fc2"]["b"])
    return jax.nn.sigmoid(h @ p["fc3"]["w"].T + p["fc3"]["b"])


if __name__ == "__main__":
    key = jax.random.PRNGKey(0)
    k_param, k_x = jax.random.split(key)

    params = init_params(k_param)
    packed = pack_params(params)

    B, T, F = 2, 8, 6                       # small shapes consistent with the module
    x = jax.random.normal(k_x, (B, T, F), jnp.float32)

    out = disk_lstm_forward(x, packed)
    out = jax.block_until_ready(out)

    ref = disk_lstm_ref(x, params)
    assert out.shape == (B, 1), out.shape
    # bf16 matmul operands -> tolerance loosened vs the f32-weight variant
    # (review: "re-validate against the f32 reference; may need loosening").
    assert jnp.allclose(out, ref, atol=1e-2, rtol=1e-2), (out, ref)

    print("KERNEL_OK")
</pallas_src>

<mosaic_0001>
module attributes {stable_mosaic.version = 11 : i64} {
  func.func @_disk_lstm_kernel(%arg0: i32, %arg1: memref<64x8xf32, #tpu.memory_space<vmem>>, %arg2: memref<8x512xbf16, #tpu.memory_space<vmem>>, %arg3: memref<128x512xbf16, #tpu.memory_space<vmem>>, %arg4: memref<1x512xf32, #tpu.memory_space<vmem>>, %arg5: memref<8x512xf32, #tpu.memory_space<vmem>>, %arg6: memref<8x512xf32, #tpu.memory_space<vmem>>, %arg7: memref<8x128xf32, #tpu.memory_space<vmem>>, %arg8: memref<8x128xf32, #tpu.memory_space<vmem>>, %arg9: memref<8x128xf32, #tpu.memory_space<vmem>>, %arg10: memref<128x512xbf16, #tpu.memory_space<any>>, %arg11: memref<128x512xbf16, #tpu.memory_space<any>>, %arg12: memref<128x512xbf16, #tpu.memory_space<any>>, %arg13: memref<128x512xbf16, #tpu.memory_space<any>>, %arg14: memref<128x128xbf16, #tpu.memory_space<any>>, %arg15: memref<128x128xbf16, #tpu.memory_space<any>>, %arg16: memref<128x128xbf16, #tpu.memory_space<any>>, %arg17: memref<8x128xf32, #tpu.memory_space<vmem>>, %arg18: memref<64x512xf32, #tpu.memory_space<vmem>>, %arg19: memref<128x512xbf16, #tpu.memory_space<vmem>>, %arg20: memref<128x512xbf16, #tpu.memory_space<vmem>>, %arg21: memref<128x512xbf16, #tpu.memory_space<vmem>>, %arg22: memref<128x512xbf16, #tpu.memory_space<vmem>>, %arg23: memref<128x128xbf16, #tpu.memory_space<vmem>>, %arg24: memref<128x128xbf16, #tpu.memory_space<vmem>>, %arg25: memref<128x128xbf16, #tpu.memory_space<vmem>>, %arg26: memref<7x!tpu.dma_semaphore, #tpu.memory_space<semaphore_mem>>) attributes {dimension_semantics = [#tpu.dimension_semantics<arbitrary>], iteration_bounds = array<i64: 1>, scalar_prefetch = 0 : i64, scratch_operands = 9 : i64, tpu.core_type = #tpu.core_type<tc>, window_params = [{pipeline_mode = #tpu.pipeline_mode<synchronous>, transform_indices = @transform_0, window_bounds = array<i64: 64, 8>}, {pipeline_mode = #tpu.pipeline_mode<synchronous>, transform_indices = @transform_1, window_bounds = array<i64: 8, 512>}, {pipeline_mode = #tpu.pipeline_mode<synchronous>, transform_indices = @transform_2, window_bounds = array<i64: 128, 512>}, {pipeline_mode = #tpu.pipeline_mode<synchronous>, transform_indices = @transform_3, window_bounds = array<i64: 1, 512>}, {pipeline_mode = #tpu.pipeline_mode<synchronous>, transform_indices = @transform_4, window_bounds = array<i64: 8, 512>}, {pipeline_mode = #tpu.pipeline_mode<synchronous>, transform_indices = @transform_5, window_bounds = array<i64: 8, 512>}, {pipeline_mode = #tpu.pipeline_mode<synchronous>, transform_indices = @transform_6, window_bounds = array<i64: 8, 128>}, {pipeline_mode = #tpu.pipeline_mode<synchronous>, transform_indices = @transform_7, window_bounds = array<i64: 8, 128>}, {pipeline_mode = #tpu.pipeline_mode<synchronous>, transform_indices = @transform_8, window_bounds = array<i64: 8, 128>}, {}, {}, {}, {}, {}, {}, {}, {pipeline_mode = #tpu.pipeline_mode<synchronous>, transform_indices = @transform_16, window_bounds = array<i64: 8, 128>}]} {
    %c0_i32 = arith.constant 0 : i32
    %0 = tpu.memref_slice %arg26[%c0_i32] : memref<7x!tpu.dma_semaphore, #tpu.memory_space<semaphore_mem>> -> memref<1x!tpu.dma_semaphore, #tpu.memory_space<semaphore_mem>>
    %1 = tpu.memref_squeeze %0 : memref<1x!tpu.dma_semaphore, #tpu.memory_space<semaphore_mem>> -> memref<!tpu.dma_semaphore, #tpu.memory_space<semaphore_mem>>
    tpu.enqueue_dma source(%arg10 : memref<128x512xbf16, #tpu.memory_space<any>>) target(%arg19 : memref<128x512xbf16, #tpu.memory_space<vmem>>) target_semaphore(%1 : memref<!tpu.dma_semaphore, #tpu.memory_space<semaphore_mem>>)
    %c1_i32 = arith.constant 1 : i32
    %2 = tpu.memref_slice %arg26[%c1_i32] : memref<7x!tpu.dma_semaphore, #tpu.memory_space<semaphore_mem>> -> memref<1x!tpu.dma_semaphore, #tpu.memory_space<semaphore_mem>>
    %3 = tpu.memref_squeeze %2 : memref<1x!tpu.dma_semaphore, #tpu.memory_space<semaphore_mem>> -> memref<!tpu.dma_semaphore, #tpu.memory_space<semaphore_mem>>
    tpu.enqueue_dma source(%arg11 : memref<128x512xbf16, #tpu.memory_space<any>>) target(%arg20 : memref<128x512xbf16, #tpu.memory_space<vmem>>) target_semaphore(%3 : memref<!tpu.dma_semaphore, #tpu.memory_space<semaphore_mem>>)
    %c2_i32 = arith.constant 2 : i32
    %4 = tpu.memref_slice %arg26[%c2_i32] : memref<7x!tpu.dma_semaphore, #tpu.memory_space<semaphore_mem>> -> memref<1x!tpu.dma_semaphore, #tpu.memory_space<semaphore_mem>>
    %5 = tpu.memref_squeeze %4 : memref<1x!tpu.dma_semaphore, #tpu.memory_space<semaphore_mem>> -> memref<!tpu.dma_semaphore, #tpu.memory_space<semaphore_mem>>
    tpu.enqueue_dma source(%arg12 : memref<128x512xbf16, #tpu.memory_space<any>>) target(%arg21 : memref<128x512xbf16, #tpu.memory_space<vmem>>) target_semaphore(%5 : memref<!tpu.dma_semaphore, #tpu.memory_space<semaphore_mem>>)
    %c3_i32 = arith.constant 3 : i32
    %6 = tpu.memref_slice %arg26[%c3_i32] : memref<7x!tpu.dma_semaphore, #tpu.memory_space<semaphore_mem>> -> memref<1x!tpu.dma_semaphore, #tpu.memory_space<semaphore_mem>>
    %7 = tpu.memref_squeeze %6 : memref<1x!tpu.dma_semaphore, #tpu.memory_space<semaphore_mem>> -> memref<!tpu.dma_semaphore, #tpu.memory_space<semaphore_mem>>
    tpu.enqueue_dma source(%arg13 : memref<128x512xbf16, #tpu.memory_space<any>>) target(%arg22 : memref<128x512xbf16, #tpu.memory_space<vmem>>) target_semaphore(%7 : memref<!tpu.dma_semaphore, #tpu.memory_space<semaphore_mem>>)
    %c4_i32 = arith.constant 4 : i32
    %8 = tpu.memref_slice %arg26[%c4_i32] : memref<7x!tpu.dma_semaphore, #tpu.memory_space<semaphore_mem>> -> memref<1x!tpu.dma_semaphore, #tpu.memory_space<semaphore_mem>>
    %9 = tpu.memref_squeeze %8 : memref<1x!tpu.dma_semaphore, #tpu.memory_space<semaphore_mem>> -> memref<!tpu.dma_semaphore, #tpu.memory_space<semaphore_mem>>
    tpu.enqueue_dma source(%arg14 : memref<128x128xbf16, #tpu.memory_space<any>>) target(%arg23 : memref<128x128xbf16, #tpu.memory_space<vmem>>) target_semaphore(%9 : memref<!tpu.dma_semaphore, #tpu.memory_space<semaphore_mem>>)
    %c5_i32 = arith.constant 5 : i32
    %10 = tpu.memref_slice %arg26[%c5_i32] : memref<7x!tpu.dma_semaphore, #tpu.memory_space<semaphore_mem>> -> memref<1x!tpu.dma_semaphore, #tpu.memory_space<semaphore_mem>>
    %11 = tpu.memref_squeeze %10 : memref<1x!tpu.dma_semaphore, #tpu.memory_space<semaphore_mem>> -> memref<!tpu.dma_semaphore, #tpu.memory_space<semaphore_mem>>
    tpu.enqueue_dma source(%arg15 : memref<128x128xbf16, #tpu.memory_space<any>>) target(%arg24 : memref<128x128xbf16, #tpu.memory_space<vmem>>) target_semaphore(%11 : memref<!tpu.dma_semaphore, #tpu.memory_space<semaphore_mem>>)
    %c6_i32 = arith.constant 6 : i32
    %12 = tpu.memref_slice %arg26[%c6_i32] : memref<7x!tpu.dma_semaphore, #tpu.memory_space<semaphore_mem>> -> memref<1x!tpu.dma_semaphore, #tpu.memory_space<semaphore_mem>>
    %13 = tpu.memref_squeeze %12 : memref<1x!tpu.dma_semaphore, #tpu.memory_space<semaphore_mem>> -> memref<!tpu.dma_semaphore, #tpu.memory_space<semaphore_mem>>
    tpu.enqueue_dma source(%arg16 : memref<128x128xbf16, #tpu.memory_space<any>>) target(%arg25 : memref<128x128xbf16, #tpu.memory_space<vmem>>) target_semaphore(%13 : memref<!tpu.dma_semaphore, #tpu.memory_space<semaphore_mem>>)
    %c0 = arith.constant 0 : index
    %c0_0 = arith.constant 0 : index
    %14 = vector.load %arg1[%c0, %c0_0] : memref<64x8xf32, #tpu.memory_space<vmem>>, vector<64x8xf32>
    %15 = arith.truncf %14 : vector<64x8xf32> to vector<64x8xbf16>
    %c0_1 = arith.constant 0 : index
    %c0_2 = arith.constant 0 : index
    %16 = vector.load %arg2[%c0_1, %c0_2] : memref<8x512xbf16, #tpu.memory_space<vmem>>, vector<8x512xbf16>
    %cst = arith.constant dense<0.000000e+00> : vector<64x512xf32>
    %17 = tpu.matmul %15, %16, %cst {dimension_numbers = #tpu.dot_dimension_numbers<[1], [0], [0], [1], [0, 0, 1, 1], [], []>} : vector<64x8xbf16>, vector<8x512xbf16>, vector<64x512xf32> -> vector<64x512xf32>
    %c0_3 = arith.constant 0 : index
    %c0_4 = arith.constant 0 : index
    %18 = vector.load %arg4[%c0_3, %c0_4] : memref<1x512xf32, #tpu.memory_space<vmem>>, vector<1x512xf32>
    %19 = vector.broadcast %18 : vector<1x512xf32> to vector<64x512xf32>
    %20 = arith.addf %17, %19 : vector<64x512xf32>
    %c0_5 = arith.constant 0 : index
    %c0_6 = arith.constant 0 : index
    %21 = vector.load %arg18[%c0_5, %c0_6] : memref<64x512xf32, #tpu.memory_space<vmem>>, vector<64x512xf32>
    tpu.vector_store %arg18[%c0_5, %c0_6], %20 {strides = array<i32>} : memref<64x512xf32, #tpu.memory_space<vmem>>, vector<64x512xf32>,
    %c0_i32_7 = arith.constant 0 : i32
    %22 = tpu.memref_slice %arg26[%c0_i32_7] : memref<7x!tpu.dma_semaphore, #tpu.memory_space<semaphore_mem>> -> memref<1x!tpu.dma_semaphore, #tpu.memory_space<semaphore_mem>>
    %23 = tpu.memref_squeeze %22 : memref<1x!tpu.dma_semaphore, #tpu.memory_space<semaphore_mem>> -> memref<!tpu.dma_semaphore, #tpu.memory_space<semaphore_mem>>
    tpu.wait_dma2 semaphore(%23 : memref<!tpu.dma_semaphore, #tpu.memory_space<semaphore_mem>>) src(%arg10 : memref<128x512xbf16, #tpu.memory_space<any>>) dst(%arg19 : memref<128x512xbf16, #tpu.memory_space<vmem>>)
    %c1_i32_8 = arith.constant 1 : i32
    %24 = tpu.memref_slice %arg26[%c1_i32_8] : memref<7x!tpu.dma_semaphore, #tpu.memory_space<semaphore_mem>> -> memref<1x!tpu.dma_semaphore, #tpu.memory_space<semaphore_mem>>
    %25 = tpu.memref_squeeze %24 : memref<1x!tpu.dma_semaphore, #tpu.memory_space<semaphore_mem>> -> memref<!tpu.dma_semaphore, #tpu.memory_space<semaphore_mem>>
    tpu.wait_dma2 semaphore(%25 : memref<!tpu.dma_semaphore, #tpu.memory_space<semaphore_mem>>) src(%arg11 : memref<128x512xbf16, #tpu.memory_space<any>>) dst(%arg20 : memref<128x512xbf16, #tpu.memory_space<vmem>>)
    %c2_i32_9 = arith.constant 2 : i32
    %26 = tpu.memref_slice %arg26[%c2_i32_9] : memref<7x!tpu.dma_semaphore, #tpu.memory_space<semaphore_mem>> -> memref<1x!tpu.dma_semaphore, #tpu.memory_space<semaphore_mem>>
    %27 = tpu.memref_squeeze %26 : memref<1x!tpu.dma_semaphore, #tpu.memory_space<semaphore_mem>> -> memref<!tpu.dma_semaphore, #tpu.memory_space<semaphore_mem>>
    tpu.wait_dma2 semaphore(%27 : memref<!tpu.dma_semaphore, #tpu.memory_space<semaphore_mem>>) src(%arg12 : memref<128x512xbf16, #tpu.memory_space<any>>) dst(%arg21 : memref<128x512xbf16, #tpu.memory_space<vmem>>)
    %c3_i32_10 = arith.constant 3 : i32
    %28 = tpu.memref_slice %arg26[%c3_i32_10] : memref<7x!tpu.dma_semaphore, #tpu.memory_space<semaphore_mem>> -> memref<1x!tpu.dma_semaphore, #tpu.memory_space<semaphore_mem>>
    %29 = tpu.memref_squeeze %28 : memref<1x!tpu.dma_semaphore, #tpu.memory_space<semaphore_mem>> -> memref<!tpu.dma_semaphore, #tpu.memory_space<semaphore_mem>>
    tpu.wait_dma2 semaphore(%29 : memref<!tpu.dma_semaphore, #tpu.memory_space<semaphore_mem>>) src(%arg13 : memref<128x512xbf16, #tpu.memory_space<any>>) dst(%arg22 : memref<128x512xbf16, #tpu.memory_space<vmem>>)
    %cst_11 = arith.constant 0.000000e+00 : f32
    %30 = vector.broadcast %cst_11 : f32 to vector<8x128xf32>
    %c0_i32_12 = arith.constant 0 : i32
    %c8_i32 = arith.constant 8 : i32
    %31 = arith.muli %c0_i32_12, %c8_i32 : i32
    %32 = tpu.assume_multiple %31, 8 : i32
    %33 = arith.index_cast %32 : i32 to index
    %c0_13 = arith.constant 0 : index
    %34 = vector.load %arg18[%33, %c0_13] : memref<64x512xf32, #tpu.memory_space<vmem>>, vector<8x512xf32>
    %35 = arith.truncf %30 : vector<8x128xf32> to vector<8x128xbf16>
    %c0_14 = arith.constant 0 : index
    %c0_15 = arith.constant 0 : index
    %36 = vector.load %arg3[%c0_14, %c0_15] : memref<128x512xbf16, #tpu.memory_space<vmem>>, vector<128x512xbf16>
    %cst_16 = arith.constant dense<0.000000e+00> : vector<8x512xf32>
    %37 = tpu.matmul %35, %36, %cst_16 {dimension_numbers = #tpu.dot_dimension_numbers<[1], [0], [0], [1], [0, 0, 1, 1], [], []>} : vector<8x128xbf16>, vector<128x512xbf16>, vector<8x512xf32> -> vector<8x512xf32>
    %38 = arith.addf %34, %37 : vector<8x512xf32>
    %39 = vector.extract_strided_slice %38 {offsets = [0, 0], sizes = [8, 384], strides = [1, 1]} : vector<8x512xf32> to vector<8x384xf32>
    %cst_17 = arith.constant 5.000000e-01 : f32
    %40 = vector.broadcast %cst_17 : f32 to vector<8x384xf32>
    %41 = arith.mulf %40, %39 : vector<8x384xf32>
    %42 = math.tanh %41 : vector<8x384xf32>
    %cst_18 = arith.constant 5.000000e-01 : f32
    %43 = vector.broadcast %cst_18 : f32 to vector<8x384xf32>
    %44 = arith.mulf %43, %42 : vector<8x384xf32>
    %cst_19 = arith.constant 5.000000e-01 : f32
    %45 = vector.broadcast %cst_19 : f32 to vector<8x384xf32>
    %46 = arith.addf %44, %45 : vector<8x384xf32>
    %47 = vector.extract_strided_slice %46 {offsets = [0, 0], sizes = [8, 128], strides = [1, 1]} : vector<8x384xf32> to vector<8x128xf32>
    %48 = vector.extract_strided_slice %46 {offsets = [0, 128], sizes = [8, 128], strides = [1, 1]} : vector<8x384xf32> to vector<8x128xf32>
    %49 = vector.extract_strided_slice %46 {offsets = [0, 256], sizes = [8, 128], strides = [1, 1]} : vector<8x384xf32> to vector<8x128xf32>
    %50 = vector.extract_strided_slice %38 {offsets = [0, 384], sizes = [8, 128], strides = [1, 1]} : vector<8x512xf32> to vector<8x128xf32>
    %51 = math.tanh %50 : vector<8x128xf32>
    %52 = arith.mulf %48, %30 : vector<8x128xf32>
    %53 = arith.mulf %47, %51 : vector<8x128xf32>
    %54 = arith.addf %52, %53 : vector<8x128xf32>
    %55 = math.tanh %54 : vector<8x128xf32>
    %56 = arith.mulf %49, %55 : vector<8x128xf32>
    %57 = arith.truncf %56 : vector<8x128xf32> to vector<8x128xbf16>
    %c0_20 = arith.constant 0 : index
    %c0_21 = arith.constant 0 : index
    %58 = vector.load %arg19[%c0_20, %c0_21] : memref<128x512xbf16, #tpu.memory_space<vmem>>, vector<128x512xbf16>
    %cst_22 = arith.constant dense<0.000000e+00> : vector<8x512xf32>
    %59 = tpu.matmul %57, %58, %cst_22 {dimension_numbers = #tpu.dot_dimension_numbers<[1], [0], [0], [1], [0, 0, 1, 1], [], []>} : vector<8x128xbf16>, vector<128x512xbf16>, vector<8x512xf32> -> vector<8x512xf32>
    %60 = arith.truncf %30 : vector<8x128xf32> to vector<8x128xbf16>
    %c0_23 = arith.constant 0 : index
    %c0_24 = arith.constant 0 : index
    %61 = vector.load %arg20[%c0_23, %c0_24] : memref<128x512xbf16, #tpu.memory_space<vmem>>, vector<128x512xbf16>
    %cst_25 = arith.constant dense<0.000000e+00> : vector<8x512xf32>
    %62 = tpu.matmul %60, %61, %cst_25 {dimension_numbers = #tpu.dot_dimension_numbers<[1], [0], [0], [1], [0, 0, 1, 1], [], []>} : vector<8x128xbf16>, vector<128x512xbf16>, vector<8x512xf32> -> vector<8x512xf32>
    %63 = arith.addf %59, %62 : vector<8x512xf32>
    %c0_26 = arith.constant 0 : index
    %c0_27 = arith.constant 0 : index
    %64 = vector.load %arg5[%c0_26, %c0_27] : memref<8x512xf32, #tpu.memory_space<vmem>>, vector<8x512xf32>
    %65 = arith.addf %63, %64 : vector<8x512xf32>
    %66 = vector.extract_strided_slice %65 {offsets = [0, 0], sizes = [8, 384], strides = [1, 1]} : vector<8x512xf32> to vector<8x384xf32>
    %cst_28 = arith.constant 5.000000e-01 : f32
    %67 = vector.broadcast %cst_28 : f32 to vector<8x384xf32>
    %68 = arith.mulf %67, %66 : vector<8x384xf32>
    %69 = math.tanh %68 : vector<8x384xf32>
    %cst_29 = arith.constant 5.000000e-01 : f32
    %70 = vector.broadcast %cst_29 : f32 to vector<8x384xf32>
    %71 = arith.mulf %70, %69 : vector<8x384xf32>
    %cst_30 = arith.constant 5.000000e-01 : f32
    %72 = vector.broadcast %cst_30 : f32 to vector<8x384xf32>
    %73 = arith.addf %71, %72 : vector<8x384xf32>
    %74 = vector.extract_strided_slice %73 {offsets = [0, 0], sizes = [8, 128], strides = [1, 1]} : vector<8x384xf32> to vector<8x128xf32>
    %75 = vector.extract_strided_slice %73 {offsets = [0, 128], sizes = [8, 128], strides = [1, 1]} : vector<8x384xf32> to vector<8x128xf32>
    %76 = vector.extract_strided_slice %73 {offsets = [0, 256], sizes = [8, 128], strides = [1, 1]} : vector<8x384xf32> to vector<8x128xf32>
    %77 = vector.extract_strided_slice %65 {offsets = [0, 384], sizes = [8, 128], strides = [1, 1]} : vector<8x512xf32> to vector<8x128xf32>
    %78 = math.tanh %77 : vector<8x128xf32>
    %79 = arith.mulf %75, %30 : vector<8x128xf32>
    %80 = arith.mulf %74, %78 : vector<8x128xf32>
    %81 = arith.addf %79, %80 : vector<8x128xf32>
    %82 = math.tanh %81 : vector<8x128xf32>
    %83 = arith.mulf %76, %82 : vector<8x128xf32>
    %84 = arith.truncf %83 : vector<8x128xf32> to vector<8x128xbf16>
    %c0_31 = arith.constant 0 : index
    %c0_32 = arith.constant 0 : index
    %85 = vector.load %arg21[%c0_31, %c0_32] : memref<128x512xbf16, #tpu.memory_space<vmem>>, vector<128x512xbf16>
    %cst_33 = arith.constant dense<0.000000e+00> : vector<8x512xf32>
    %86 = tpu.matmul %84, %85, %cst_33 {dimension_numbers = #tpu.dot_dimension_numbers<[1], [0], [0], [1], [0, 0, 1, 1], [], []>} : vector<8x128xbf16>, vector<128x512xbf16>, vector<8x512xf32> -> vector<8x512xf32>
    %87 = arith.truncf %30 : vector<8x128xf32> to vector<8x128xbf16>
    %c0_34 = arith.constant 0 : index
    %c0_35 = arith.constant 0 : index
    %88 = vector.load %arg22[%c0_34, %c0_35] : memref<128x512xbf16, #tpu.memory_space<vmem>>, vector<128x512xbf16>
    %cst_36 = arith.constant dense<0.000000e+00> : vector<8x512xf32>
    %89 = tpu.matmul %87, %88, %cst_36 {dimension_numbers = #tpu.dot_dimension_numbers<[1], [0], [0], [1], [0, 0, 1, 1], [], []>} : vector<8x128xbf16>, vector<128x512xbf16>, vector<8x512xf32> -> vector<8x512xf32>
    %90 = arith.addf %86, %89 : vector<8x512xf32>
    %c0_37 = arith.constant 0 : index
    %c0_38 = arith.constant 0 : index
    %91 = vector.load %arg6[%c0_37, %c0_38] : memref<8x512xf32, #tpu.memory_space<vmem>>, vector<8x512xf32>
    %92 = arith.addf %90, %91 : vector<8x512xf32>
    %93 = vector.extract_strided_slice %92 {offsets = [0, 0], sizes = [8, 384], strides = [1, 1]} : vector<8x512xf32> to vector<8x384xf32>
    %cst_39 = arith.constant 5.000000e-01 : f32
    %94 = vector.broadcast %cst_39 : f32 to vector<8x384xf32>
    %95 = arith.mulf %94, %93 : vector<8x384xf32>
    %96 = math.tanh %95 : vector<8x384xf32>
    %cst_40 = arith.constant 5.000000e-01 : f32
    %97 = vector.broadcast %cst_40 : f32 to vector<8x384xf32>
    %98 = arith.mulf %97, %96 : vector<8x384xf32>
    %cst_41 = arith.constant 5.000000e-01 : f32
    %99 = vector.broadcast %cst_41 : f32 to vector<8x384xf32>
    %100 = arith.addf %98, %99 : vector<8x384xf32>
    %101 = vector.extract_strided_slice %100 {offsets = [0, 0], sizes = [8, 128], strides = [1, 1]} : vector<8x384xf32> to vector<8x128xf32>
    %102 = vector.extract_strided_slice %100 {offsets = [0, 128], sizes = [8, 128], strides = [1, 1]} : vector<8x384xf32> to vector<8x128xf32>
    %103 = vector.extract_strided_slice %100 {offsets = [0, 256], sizes = [8, 128], strides = [1, 1]} : vector<8x384xf32> to vector<8x128xf32>
    %104 = vector.extract_strided_slice %92 {offsets = [0, 384], sizes = [8, 128], strides = [1, 1]} : vector<8x512xf32> to vector<8x128xf32>
    %105 = math.tanh %104 : vector<8x128xf32>
    %106 = arith.mulf %102, %30 : vector<8x128xf32>
    %107 = arith.mulf %101, %105 : vector<8x128xf32>
    %108 = arith.addf %106, %107 : vector<8x128xf32>
    %109 = math.tanh %108 : vector<8x128xf32>
    %110 = arith.mulf %103, %109 : vector<8x128xf32>
    %c1_i32_42 = arith.constant 1 : i32
    %c8_i32_43 = arith.constant 8 : i32
    %111 = arith.muli %c1_i32_42, %c8_i32_43 : i32
    %112 = tpu.assume_multiple %111, 8 : i32
    %113 = arith.index_cast %112 : i32 to index
    %c0_44 = arith.constant 0 : index
    %114 = vector.load %arg18[%113, %c0_44] : memref<64x512xf32, #tpu.memory_space<vmem>>, vector<8x512xf32>
    %115 = arith.truncf %56 : vector<8x128xf32> to vector<8x128xbf16>
    %c0_45 = arith.constant 0 : index
    %c0_46 = arith.constant 0 : index
    %116 = vector.load %arg3[%c0_45, %c0_46] : memref<128x512xbf16, #tpu.memory_space<vmem>>, vector<128x512xbf16>
    %cst_47 = arith.constant dense<0.000000e+00> : vector<8x512xf32>
    %117 = tpu.matmul %115, %116, %cst_47 {dimension_numbers = #tpu.dot_dimension_numbers<[1], [0], [0], [1], [0, 0, 1, 1], [], []>} : vector<8x128xbf16>, vector<128x512xbf16>, vector<8x512xf32> -> vector<8x512xf32>
    %118 = arith.addf %114, %117 : vector<8x512xf32>
    %119 = vector.extract_strided_slice %118 {offsets = [0, 0], sizes = [8, 384], strides = [1, 1]} : vector<8x512xf32> to vector<8x384xf32>
    %cst_48 = arith.constant 5.000000e-01 : f32
    %120 = vector.broadcast %cst_48 : f32 to vector<8x384xf32>
    %121 = arith.mulf %120, %119 : vector<8x384xf32>
    %122 = math.tanh %121 : vector<8x384xf32>
    %cst_49 = arith.constant 5.000000e-01 : f32
    %123 = vector.broadcast %cst_49 : f32 to vector<8x384xf32>
    %124 = arith.mulf %123, %122 : vector<8x384xf32>
    %cst_50 = arith.constant 5.000000e-01 : f32
    %125 = vector.broadcast %cst_50 : f32 to vector<8x384xf32>
    %126 = arith.addf %124, %125 : vector<8x384xf32>
    %127 = vector.extract_strided_slice %126 {offsets = [0, 0], sizes = [8, 128], strides = [1, 1]} : vector<8x384xf32> to vector<8x128xf32>
    %128 = vector.extract_strided_slice %126 {offsets = [0, 128], sizes = [8, 128], strides = [1, 1]} : vector<8x384xf32> to vector<8x128xf32>
    %129 = vector.extract_strided_slice %126 {offsets = [0, 256], sizes = [8, 128], strides = [1, 1]} : vector<8x384xf32> to vector<8x128xf32>
    %130 = vector.extract_strided_slice %118 {offsets = [0, 384], sizes = [8, 128], strides = [1, 1]} : vector<8x512xf32> to vector<8x128xf32>
    %131 = math.tanh %130 : vector<8x128xf32>
    %132 = arith.mulf %128, %54 : vector<8x128xf32>
    %133 = arith.mulf %127, %131 : vector<8x128xf32>
    %134 = arith.addf %132, %133 : vector<8x128xf32>
    %135 = math.tanh %134 : vector<8x128xf32>
    %136 = arith.mulf %129, %135 : vector<8x128xf32>
    %137 = arith.truncf %136 : vector<8x128xf32> to vector<8x128xbf16>
    %c0_51 = arith.constant 0 : index
    %c0_52 = arith.constant 0 : index
    %138 = vector.load %arg19[%c0_51, %c0_52] : memref<128x512xbf16, #tpu.memory_space<vmem>>, vector<128x512xbf16>
    %cst_53 = arith.constant dense<0.000000e+00> : vector<8x512xf32>
    %139 = tpu.matmul %137, %138, %cst_53 {dimension_numbers = #tpu.dot_dimension_numbers<[1], [0], [0], [1], [0, 0, 1, 1], [], []>} : vector<8x128xbf16>, vector<128x512xbf16>, vector<8x512xf32> -> vector<8x512xf32>
    %140 = arith.truncf %83 : vector<8x128xf32> to vector<8x128xbf16>
    %c0_54 = arith.constant 0 : index
    %c0_55 = arith.constant 0 : index
    %141 = vector.load %arg20[%c0_54, %c0_55] : memref<128x512xbf16, #tpu.memory_space<vmem>>, vector<128x512xbf16>
    %cst_56 = arith.constant dense<0.000000e+00> : vector<8x512xf32>
    %142 = tpu.matmul %140, %141, %cst_56 {dimension_numbers = #tpu.dot_dimension_numbers<[1], [0], [0], [1], [0, 0, 1, 1], [], []>} : vector<8x128xbf16>, vector<128x512xbf16>, vector<8x512xf32> -> vector<8x512xf32>
    %143 = arith.addf %139, %142 : vector<8x512xf32>
    %c0_57 = arith.constant 0 : index
    %c0_58 = arith.constant 0 : index
    %144 = vector.load %arg5[%c0_57, %c0_58] : memref<8x512xf32, #tpu.memory_space<vmem>>, vector<8x512xf32>
    %145 = arith.addf %143, %144 : vector<8x512xf32>
    %146 = vector.extract_strided_slice %145 {offsets = [0, 0], sizes = [8, 384], strides = [1, 1]} : vector<8x512xf32> to vector<8x384xf32>
    %cst_59 = arith.constant 5.000000e-01 : f32
    %147 = vector.broadcast %cst_59 : f32 to vector<8x384xf32>
    %148 = arith.mulf %147, %146 : vector<8x384xf32>
    %149 = math.tanh %148 : vector<8x384xf32>
    %cst_60 = arith.constant 5.000000e-01 : f32
    %150 = vector.broadcast %cst_60 : f32 to vector<8x384xf32>
    %151 = arith.mulf %150, %149 : vector<8x384xf32>
    %cst_61 = arith.constant 5.000000e-01 : f32
    %152 = vector.broadcast %cst_61 : f32 to vector<8x384xf32>
    %153 = arith.addf %151, %152 : vector<8x384xf32>
    %154 = vector.extract_strided_slice %153 {offsets = [0, 0], sizes = [8, 128], strides = [1, 1]} : vector<8x384xf32> to vector<8x128xf32>
    %155 = vector.extract_strided_slice %153 {offsets = [0, 128], sizes = [8, 128], strides = [1, 1]} : vector<8x384xf32> to vector<8x128xf32>
    %156 = vector.extract_strided_slice %153 {offsets = [0, 256], sizes = [8, 128], strides = [1, 1]} : vector<8x384xf32> to vector<8x128xf32>
    %157 = vector.extract_strided_slice %145 {offsets = [0, 384], sizes = [8, 128], strides = [1, 1]} : vector<8x512xf32> to vector<8x128xf32>
    %158 = math.tanh %157 : vector<8x128xf32>
    %159 = arith.mulf %155, %81 : vector<8x128xf32>
    %160 = arith.mulf %154, %158 : vector<8x128xf32>
    %161 = arith.addf %159, %160 : vector<8x128xf32>
    %162 = math.tanh %161 : vector<8x128xf32>
    %163 = arith.mulf %156, %162 : vector<8x128xf32>
    %164 = arith.truncf %163 : vector<8x128xf32> to vector<8x128xbf16>
    %c0_62 = arith.constant 0 : index
    %c0_63 = arith.constant 0 : index
    %165 = vector.load %arg21[%c0_62, %c0_63] : memref<128x512xbf16, #tpu.memory_space<vmem>>, vector<128x512xbf16>
    %cst_64 = arith.constant dense<0.000000e+00> : vector<8x512xf32>
    %166 = tpu.matmul %164, %165, %cst_64 {dimension_numbers = #tpu.dot_dimension_numbers<[1], [0], [0], [1], [0, 0, 1, 1], [], []>} : vector<8x128xbf16>, vector<128x512xbf16>, vector<8x512xf32> -> vector<8x512xf32>
    %167 = arith.truncf %110 : vector<8x128xf32> to vector<8x128xbf16>
    %c0_65 = arith.constant 0 : index
    %c0_66 = arith.constant 0 : index
    %168 = vector.load %arg22[%c0_65, %c0_66] : memref<128x512xbf16, #tpu.memory_space<vmem>>, vector<128x512xbf16>
    %cst_67 = arith.constant dense<0.000000e+00> : vector<8x512xf32>
    %169 = tpu.matmul %167, %168, %cst_67 {dimension_numbers = #tpu.dot_dimension_numbers<[1], [0], [0], [1], [0, 0, 1, 1], [], []>} : vector<8x128xbf16>, vector<128x512xbf16>, vector<8x512xf32> -> vector<8x512xf32>
    %170 = arith.addf %166, %169 : vector<8x512xf32>
    %c0_68 = arith.constant 0 : index
    %c0_69 = arith.constant 0 : index
    %171 = vector.load %arg6[%c0_68, %c0_69] : memref<8x512xf32, #tpu.memory_space<vmem>>, vector<8x512xf32>
    %172 = arith.addf %170, %171 : vector<8x512xf32>
    %173 = vector.extract_strided_slice %172 {offsets = [0, 0], sizes = [8, 384], strides = [1, 1]} : vector<8x512xf32> to vector<8x384xf32>
    %cst_70 = arith.constant 5.000000e-01 : f32
    %174 = vector.broadcast %cst_70 : f32 to vector<8x384xf32>
    %175 = arith.mulf %174, %173 : vector<8x384xf32>
    %176 = math.tanh %175 : vector<8x384xf32>
    %cst_71 = arith.constant 5.000000e-01 : f32
    %177 = vector.broadcast %cst_71 : f32 to vector<8x384xf32>
    %178 = arith.mulf %177, %176 : vector<8x384xf32>
    %cst_72 = arith.constant 5.000000e-01 : f32
    %179 = vector.broadcast %cst_72 : f32 to vector<8x384xf32>
    %180 = arith.addf %178, %179 : vector<8x384xf32>
    %181 = vector.extract_strided_slice %180 {offsets = [0, 0], sizes = [8, 128], strides = [1, 1]} : vector<8x384xf32> to vector<8x128xf32>
    %182 = vector.extract_strided_slice %180 {offsets = [0, 128], sizes = [8, 128], strides = [1, 1]} : vector<8x384xf32> to vector<8x128xf32>
    %183 = vector.extract_strided_slice %180 {offsets = [0, 256], sizes = [8, 128], strides = [1, 1]} : vector<8x384xf32> to vector<8x128xf32>
    %184 = vector.extract_strided_slice %172 {offsets = [0, 384], sizes = [8, 128], strides = [1, 1]} : vector<8x512xf32> to vector<8x128xf32>
    %185 = math.tanh %184 : vector<8x128xf32>
    %186 = arith.mulf %182, %108 : vector<8x128xf32>
    %187 = arith.mulf %181, %185 : vector<8x128xf32>
    %188 = arith.addf %186, %187 : vector<8x128xf32>
    %189 = math.tanh %188 : vector<8x128xf32>
    %190 = arith.mulf %183, %189 : vector<8x128xf32>
    %c2_i32_73 = arith.constant 2 : i32
    %c8_i32_74 = arith.constant 8 : i32
    %191 = arith.muli %c2_i32_73, %c8_i32_74 : i32
    %192 = tpu.assume_multiple %191, 8 : i32
    %193 = arith.index_cast %192 : i32 to index
    %c0_75 = arith.constant 0 : index
    %194 = vector.load %arg18[%193, %c0_75] : memref<64x512xf32, #tpu.memory_space<vmem>>, vector<8x512xf32>
    %195 = arith.truncf %136 : vector<8x128xf32> to vector<8x128xbf16>
    %c0_76 = arith.constant 0 : index
    %c0_77 = arith.constant 0 : index
    %196 = vector.load %arg3[%c0_76, %c0_77] : memref<128x512xbf16, #tpu.memory_space<vmem>>, vector<128x512xbf16>
    %cst_78 = arith.constant dense<0.000000e+00> : vector<8x512xf32>
    %197 = tpu.matmul %195, %196, %cst_78 {dimension_numbers = #tpu.dot_dimension_numbers<[1], [0], [0], [1], [0, 0, 1, 1], [], []>} : vector<8x128xbf16>, vector<128x512xbf16>, vector<8x512xf32> -> vector<8x512xf32>
    %198 = arith.addf %194, %197 : vector<8x512xf32>
    %199 = vector.extract_strided_slice %198 {offsets = [0, 0], sizes = [8, 384], strides = [1, 1]} : vector<8x512xf32> to vector<8x384xf32>
    %cst_79 = arith.constant 5.000000e-01 : f32
    %200 = vector.broadcast %cst_79 : f32 to vector<8x384xf32>
    %201 = arith.mulf %200, %199 : vector<8x384xf32>
    %202 = math.tanh %201 : vector<8x384xf32>
    %cst_80 = arith.constant 5.000000e-01 : f32
    %203 = vector.broadcast %cst_80 : f32 to vector<8x384xf32>
    %204 = arith.mulf %203, %202 : vector<8x384xf32>
    %cst_81 = arith.constant 5.000000e-01 : f32
    %205 = vector.broadcast %cst_81 : f32 to vector<8x384xf32>
    %206 = arith.addf %204, %205 : vector<8x384xf32>
    %207 = vector.extract_strided_slice %206 {offsets = [0, 0], sizes = [8, 128], strides = [1, 1]} : vector<8x384xf32> to vector<8x128xf32>
    %208 = vector.extract_strided_slice %206 {offsets = [0, 128], sizes = [8, 128], strides = [1, 1]} : vector<8x384xf32> to vector<8x128xf32>
    %209 = vector.extract_strided_slice %206 {offsets = [0, 256], sizes = [8, 128], strides = [1, 1]} : vector<8x384xf32> to vector<8x128xf32>
    %210 = vector.extract_strided_slice %198 {offsets = [0, 384], sizes = [8, 128], strides = [1, 1]} : vector<8x512xf32> to vector<8x128xf32>
    %211 = math.tanh %210 : vector<8x128xf32>
    %212 = arith.mulf %208, %134 : vector<8x128xf32>
    %213 = arith.mulf %207, %211 : vector<8x128xf32>
    %214 = arith.addf %212, %213 : vector<8x128xf32>
    %215 = math.tanh %214 : vector<8x128xf32>
    %216 = arith.mulf %209, %215 : vector<8x128xf32>
    %217 = arith.truncf %216 : vector<8x128xf32> to vector<8x128xbf16>
    %c0_82 = arith.constant 0 : index
    %c0_83 = arith.constant 0 : index
    %218 = vector.load %arg19[%c0_82, %c0_83] : memref<128x512xbf16, #tpu.memory_space<vmem>>, vector<128x512xbf16>
    %cst_84 = arith.constant dense<0.000000e+00> : vector<8x512xf32>
    %219 = tpu.matmul %217, %218, %cst_84 {dimension_numbers = #tpu.dot_dimension_numbers<[1], [0], [0], [1], [0, 0, 1, 1], [], []>} : vector<8x128xbf16>, vector<128x512xbf16>, vector<8x512xf32> -> vector<8x512xf32>
    %220 = arith.truncf %163 : vector<8x128xf32> to vector<8x128xbf16>
    %c0_85 = arith.constant 0 : index
    %c0_86 = arith.constant 0 : index
    %221 = vector.load %arg20[%c0_85, %c0_86] : memref<128x512xbf16, #tpu.memory_space<vmem>>, vector<128x512xbf16>
    %cst_87 = arith.constant dense<0.000000e+00> : vector<8x512xf32>
    %222 = tpu.matmul %220, %221, %cst_87 {dimension_numbers = #tpu.dot_dimension_numbers<[1], [0], [0], [1], [0, 0, 1, 1], [], []>} : vector<8x128xbf16>, vector<128x512xbf16>, vector<8x512xf32> -> vector<8x512xf32>
    %223 = arith.addf %219, %222 : vector<8x512xf32>
    %c0_88 = arith.constant 0 : index
    %c0_89 = arith.constant 0 : index
    %224 = vector.load %arg5[%c0_88, %c0_89] : memref<8x512xf32, #tpu.memory_space<vmem>>, vector<8x512xf32>
    %225 = arith.addf %223, %224 : vector<8x512xf32>
    %226 = vector.extract_strided_slice %225 {offsets = [0, 0], sizes = [8, 384], strides = [1, 1]} : vector<8x512xf32> to vector<8x384xf32>
    %cst_90 = arith.constant 5.000000e-01 : f32
    %227 = vector.broadcast %cst_90 : f32 to vector<8x384xf32>
    %228 = arith.mulf %227, %226 : vector<8x384xf32>
    %229 = math.tanh %228 : vector<8x384xf32>
    %cst_91 = arith.constant 5.000000e-01 : f32
    %230 = vector.broadcast %cst_91 : f32 to vector<8x384xf32>
    %231 = arith.mulf %230, %229 : vector<8x384xf32>
    %cst_92 = arith.constant 5.000000e-01 : f32
    %232 = vector.broadcast %cst_92 : f32 to vector<8x384xf32>
    %233 = arith.addf %231, %232 : vector<8x384xf32>
    %234 = vector.extract_strided_slice %233 {offsets = [0, 0], sizes = [8, 128], strides = [1, 1]} : vector<8x384xf32> to vector<8x128xf32>
    %235 = vector.extract_strided_slice %233 {offsets = [0, 128], sizes = [8, 128], strides = [1, 1]} : vector<8x384xf32> to vector<8x128xf32>
    %236 = vector.extract_strided_slice %233 {offsets = [0, 256], sizes = [8, 128], strides = [1, 1]} : vector<8x384xf32> to vector<8x128xf32>
    %237 = vector.extract_strided_slice %225 {offsets = [0, 384], sizes = [8, 128], strides = [1, 1]} : vector<8x512xf32> to vector<8x128xf32>
    %238 = math.tanh %237 : vector<8x128xf32>
    %239 = arith.mulf %235, %161 : vector<8x128xf32>
    %240 = arith.mulf %234, %238 : vector<8x128xf32>
    %241 = arith.addf %239, %240 : vector<8x128xf32>
    %242 = math.tanh %241 : vector<8x128xf32>
    %243 = arith.mulf %236, %242 : vector<8x128xf32>
    %244 = arith.truncf %243 : vector<8x128xf32> to vector<8x128xbf16>
    %c0_93 = arith.constant 0 : index
    %c0_94 = arith.constant 0 : index
    %245 = vector.load %arg21[%c0_93, %c0_94] : memref<128x512xbf16, #tpu.memory_space<vmem>>, vector<128x512xbf16>
    %cst_95 = arith.constant dense<0.000000e+00> : vector<8x512xf32>
    %246 = tpu.matmul %244, %245, %cst_95 {dimension_numbers = #tpu.dot_dimension_numbers<[1], [0], [0], [1], [0, 0, 1, 1], [], []>} : vector<8x128xbf16>, vector<128x512xbf16>, vector<8x512xf32> -> vector<8x512xf32>
    %247 = arith.truncf %190 : vector<8x128xf32> to vector<8x128xbf16>
    %c0_96 = arith.constant 0 : index
    %c0_97 = arith.constant 0 : index
    %248 = vector.load %arg22[%c0_96, %c0_97] : memref<128x512xbf16, #tpu.memory_space<vmem>>, vector<128x512xbf16>
    %cst_98 = arith.constant dense<0.000000e+00> : vector<8x512xf32>
    %249 = tpu.matmul %247, %248, %cst_98 {dimension_numbers = #tpu.dot_dimension_numbers<[1], [0], [0], [1], [0, 0, 1, 1], [], []>} : vector<8x128xbf16>, vector<128x512xbf16>, vector<8x512xf32> -> vector<8x512xf32>
    %250 = arith.addf %246, %249 : vector<8x512xf32>
    %c0_99 = arith.constant 0 : index
    %c0_100 = arith.constant 0 : index
    %251 = vector.load %arg6[%c0_99, %c0_100] : memref<8x512xf32, #tpu.memory_space<vmem>>, vector<8x512xf32>
    %252 = arith.addf %250, %251 : vector<8x512xf32>
    %253 = vector.extract_strided_slice %252 {offsets = [0, 0], sizes = [8, 384], strides = [1, 1]} : vector<8x512xf32> to vector<8x384xf32>
    %cst_101 = arith.constant 5.000000e-01 : f32
    %254 = vector.broadcast %cst_101 : f32 to vector<8x384xf32>
    %255 = arith.mulf %254, %253 : vector<8x384xf32>
    %256 = math.tanh %255 : vector<8x384xf32>
    %cst_102 = arith.constant 5.000000e-01 : f32
    %257 = vector.broadcast %cst_102 : f32 to vector<8x384xf32>
    %258 = arith.mulf %257, %256 : vector<8x384xf32>
    %cst_103 = arith.constant 5.000000e-01 : f32
    %259 = vector.broadcast %cst_103 : f32 to vector<8x384xf32>
    %260 = arith.addf %258, %259 : vector<8x384xf32>
    %261 = vector.extract_strided_slice %260 {offsets = [0, 0], sizes = [8, 128], strides = [1, 1]} : vector<8x384xf32> to vector<8x128xf32>
    %262 = vector.extract_strided_slice %260 {offsets = [0, 128], sizes = [8, 128], strides = [1, 1]} : vector<8x384xf32> to vector<8x128xf32>
    %263 = vector.extract_strided_slice %260 {offsets = [0, 256], sizes = [8, 128], strides = [1, 1]} : vector<8x384xf32> to vector<8x128xf32>
    %264 = vector.extract_strided_slice %252 {offsets = [0, 384], sizes = [8, 128], strides = [1, 1]} : vector<8x512xf32> to vector<8x128xf32>
    %265 = math.tanh %264 : vector<8x128xf32>
    %266 = arith.mulf %262, %188 : vector<8x128xf32>
    %267 = arith.mulf %261, %265 : vector<8x128xf32>
    %268 = arith.addf %266, %267 : vector<8x128xf32>
    %269 = math.tanh %268 : vector<8x128xf32>
    %270 = arith.mulf %263, %269 : vector<8x128xf32>
    %c3_i32_104 = arith.constant 3 : i32
    %c8_i32_105 = arith.constant 8 : i32
    %271 = arith.muli %c3_i32_104, %c8_i32_105 : i32
    %272 = tpu.assume_multiple %271, 8 : i32
    %273 = arith.index_cast %272 : i32 to index
    %c0_106 = arith.constant 0 : index
    %274 = vector.load %arg18[%273, %c0_106] : memref<64x512xf32, #tpu.memory_space<vmem>>, vector<8x512xf32>
    %275 = arith.truncf %216 : vector<8x128xf32> to vector<8x128xbf16>
    %c0_107 = arith.constant 0 : index
    %c0_108 = arith.constant 0 : index
    %276 = vector.load %arg3[%c0_107, %c0_108] : memref<128x512xbf16, #tpu.memory_space<vmem>>, vector<128x512xbf16>
    %cst_109 = arith.constant dense<0.000000e+00> : vector<8x512xf32>
    %277 = tpu.matmul %275, %276, %cst_109 {dimension_numbers = #tpu.dot_dimension_numbers<[1], [0], [0], [1], [0, 0, 1, 1], [], []>} : vector<8x128xbf16>, vector<128x512xbf16>, vector<8x512xf32> -> vector<8x512xf32>
    %278 = arith.addf %274, %277 : vector<8x512xf32>
    %279 = vector.extract_strided_slice %278 {offsets = [0, 0], sizes = [8, 384], strides = [1, 1]} : vector<8x512xf32> to vector<8x384xf32>
    %cst_110 = arith.constant 5.000000e-01 : f32
    %280 = vector.broadcast %cst_110 : f32 to vector<8x384xf32>
    %281 = arith.mulf %280, %279 : vector<8x384xf32>
    %282 = math.tanh %281 : vector<8x384xf32>
    %cst_111 = arith.constant 5.000000e-01 : f32
    %283 = vector.broadcast %cst_111 : f32 to vector<8x384xf32>
    %284 = arith.mulf %283, %282 : vector<8x384xf32>
    %cst_112 = arith.constant 5.000000e-01 : f32
    %285 = vector.broadcast %cst_112 : f32 to vector<8x384xf32>
    %286 = arith.addf %284, %285 : vector<8x384xf32>
    %287 = vector.extract_strided_slice %286 {offsets = [0, 0], sizes = [8, 128], strides = [1, 1]} : vector<8x384xf32> to vector<8x128xf32>
    %288 = vector.extract_strided_slice %286 {offsets = [0, 128], sizes = [8, 128], strides = [1, 1]} : vector<8x384xf32> to vector<8x128xf32>
    %289 = vector.extract_strided_slice %286 {offsets = [0, 256], sizes = [8, 128], strides = [1, 1]} : vector<8x384xf32> to vector<8x128xf32>
    %290 = vector.extract_strided_slice %278 {offsets = [0, 384], sizes = [8, 128], strides = [1, 1]} : vector<8x512xf32> to vector<8x128xf32>
    %291 = math.tanh %290 : vector<8x128xf32>
    %292 = arith.mulf %288, %214 : vector<8x128xf32>
    %293 = arith.mulf %287, %291 : vector<8x128xf32>
    %294 = arith.addf %292, %293 : vector<8x128xf32>
    %295 = math.tanh %294 : vector<8x128xf32>
    %296 = arith.mulf %289, %295 : vector<8x128xf32>
    %297 = arith.truncf %296 : vector<8x128xf32> to vector<8x128xbf16>
    %c0_113 = arith.constant 0 : index
    %c0_114 = arith.constant 0 : index
    %298 = vector.load %arg19[%c0_113, %c0_114] : memref<128x512xbf16, #tpu.memory_space<vmem>>, vector<128x512xbf16>
    %cst_115 = arith.constant dense<0.000000e+00> : vector<8x512xf32>
    %299 = tpu.matmul %297, %298, %cst_115 {dimension_numbers = #tpu.dot_dimension_numbers<[1], [0], [0], [1], [0, 0, 1, 1], [], []>} : vector<8x128xbf16>, vector<128x512xbf16>, vector<8x512xf32> -> vector<8x512xf32>
    %300 = arith.truncf %243 : vector<8x128xf32> to vector<8x128xbf16>
    %c0_116 = arith.constant 0 : index
    %c0_117 = arith.constant 0 : index
    %301 = vector.load %arg20[%c0_116, %c0_117] : memref<128x512xbf16, #tpu.memory_space<vmem>>, vector<128x512xbf16>
    %cst_118 = arith.constant dense<0.000000e+00> : vector<8x512xf32>
    %302 = tpu.matmul %300, %301, %cst_118 {dimension_numbers = #tpu.dot_dimension_numbers<[1], [0], [0], [1], [0, 0, 1, 1], [], []>} : vector<8x128xbf16>, vector<128x512xbf16>, vector<8x512xf32> -> vector<8x512xf32>
    %303 = arith.addf %299, %302 : vector<8x512xf32>
    %c0_119 = arith.constant 0 : index
    %c0_120 = arith.constant 0 : index
    %304 = vector.load %arg5[%c0_119, %c0_120] : memref<8x512xf32, #tpu.memory_space<vmem>>, vector<8x512xf32>
    %305 = arith.addf %303, %304 : vector<8x512xf32>
    %306 = vector.extract_strided_slice %305 {offsets = [0, 0], sizes = [8, 384], strides = [1, 1]} : vector<8x512xf32> to vector<8x384xf32>
    %cst_121 = arith.constant 5.000000e-01 : f32
    %307 = vector.broadcast %cst_121 : f32 to vector<8x384xf32>
    %308 = arith.mulf %307, %306 : vector<8x384xf32>
    %309 = math.tanh %308 : vector<8x384xf32>
    %cst_122 = arith.constant 5.000000e-01 : f32
    %310 = vector.broadcast %cst_122 : f32 to vector<8x384xf32>
    %311 = arith.mulf %310, %309 : vector<8x384xf32>
    %cst_123 = arith.constant 5.000000e-01 : f32
    %312 = vector.broadcast %cst_123 : f32 to vector<8x384xf32>
    %313 = arith.addf %311, %312 : vector<8x384xf32>
    %314 = vector.extract_strided_slice %313 {offsets = [0, 0], sizes = [8, 128], strides = [1, 1]} : vector<8x384xf32> to vector<8x128xf32>
    %315 = vector.extract_strided_slice %313 {offsets = [0, 128], sizes = [8, 128], strides = [1, 1]} : vector<8x384xf32> to vector<8x128xf32>
    %316 = vector.extract_strided_slice %313 {offsets = [0, 256], sizes = [8, 128], strides = [1, 1]} : vector<8x384xf32> to vector<8x128xf32>
    %317 = vector.extract_strided_slice %305 {offsets = [0, 384], sizes = [8, 128], strides = [1, 1]} : vector<8x512xf32> to vector<8x128xf32>
    %318 = math.tanh %317 : vector<8x128xf32>
    %319 = arith.mulf %315, %241 : vector<8x128xf32>
    %320 = arith.mulf %314, %318 : vector<8x128xf32>
    %321 = arith.addf %319, %320 : vector<8x128xf32>
    %322 = math.tanh %321 : vector<8x128xf32>
    %323 = arith.mulf %316, %322 : vector<8x128xf32>
    %324 = arith.truncf %323 : vector<8x128xf32> to vector<8x128xbf16>
    %c0_124 = arith.constant 0 : index
    %c0_125 = arith.constant 0 : index
    %325 = vector.load %arg21[%c0_124, %c0_125] : memref<128x512xbf16, #tpu.memory_space<vmem>>, vector<128x512xbf16>
    %cst_126 = arith.constant dense<0.000000e+00> : vector<8x512xf32>
    %326 = tpu.matmul %324, %325, %cst_126 {dimension_numbers = #tpu.dot_dimension_numbers<[1], [0], [0], [1], [0, 0, 1, 1], [], []>} : vector<8x128xbf16>, vector<128x512xbf16>, vector<8x512xf32> -> vector<8x512xf32>
    %327 = arith.truncf %270 : vector<8x128xf32> to vector<8x128xbf16>
    %c0_127 = arith.constant 0 : index
    %c0_128 = arith.constant 0 : index
    %328 = vector.load %arg22[%c0_127, %c0_128] : memref<128x512xbf16, #tpu.memory_space<vmem>>, vector<128x512xbf16>
    %cst_129 = arith.constant dense<0.000000e+00> : vector<8x512xf32>
    %329 = tpu.matmul %327, %328, %cst_129 {dimension_numbers = #tpu.dot_dimension_numbers<[1], [0], [0], [1], [0, 0, 1, 1], [], []>} : vector<8x128xbf16>, vector<128x512xbf16>, vector<8x512xf32> -> vector<8x512xf32>
    %330 = arith.addf %326, %329 : vector<8x512xf32>
    %c0_130 = arith.constant 0 : index
    %c0_131 = arith.constant 0 : index
    %331 = vector.load %arg6[%c0_130, %c0_131] : memref<8x512xf32, #tpu.memory_space<vmem>>, vector<8x512xf32>
    %332 = arith.addf %330, %331 : vector<8x512xf32>
    %333 = vector.extract_strided_slice %332 {offsets = [0, 0], sizes = [8, 384], strides = [1, 1]} : vector<8x512xf32> to vector<8x384xf32>
    %cst_132 = arith.constant 5.000000e-01 : f32
    %334 = vector.broadcast %cst_132 : f32 to vector<8x384xf32>
    %335 = arith.mulf %334, %333 : vector<8x384xf32>
    %336 = math.tanh %335 : vector<8x384xf32>
    %cst_133 = arith.constant 5.000000e-01 : f32
    %337 = vector.broadcast %cst_133 : f32 to vector<8x384xf32>
    %338 = arith.mulf %337, %336 : vector<8x384xf32>
    %cst_134 = arith.constant 5.000000e-01 : f32
    %339 = vector.broadcast %cst_134 : f32 to vector<8x384xf32>
    %340 = arith.addf %338, %339 : vector<8x384xf32>
    %341 = vector.extract_strided_slice %340 {offsets = [0, 0], sizes = [8, 128], strides = [1, 1]} : vector<8x384xf32> to vector<8x128xf32>
    %342 = vector.extract_strided_slice %340 {offsets = [0, 128], sizes = [8, 128], strides = [1, 1]} : vector<8x384xf32> to vector<8x128xf32>
    %343 = vector.extract_strided_slice %340 {offsets = [0, 256], sizes = [8, 128], strides = [1, 1]} : vector<8x384xf32> to vector<8x128xf32>
    %344 = vector.extract_strided_slice %332 {offsets = [0, 384], sizes = [8, 128], strides = [1, 1]} : vector<8x512xf32> to vector<8x128xf32>
    %345 = math.tanh %344 : vector<8x128xf32>
    %346 = arith.mulf %342, %268 : vector<8x128xf32>
    %347 = arith.mulf %341, %345 : vector<8x128xf32>
    %348 = arith.addf %346, %347 : vector<8x128xf32>
    %349 = math.tanh %348 : vector<8x128xf32>
    %350 = arith.mulf %343, %349 : vector<8x128xf32>
    %c4_i32_135 = arith.constant 4 : i32
    %c8_i32_136 = arith.constant 8 : i32
    %351 = arith.muli %c4_i32_135, %c8_i32_136 : i32
    %352 = tpu.assume_multiple %351, 8 : i32
    %353 = arith.index_cast %352 : i32 to index
    %c0_137 = arith.constant 0 : index
    %354 = vector.load %arg18[%353, %c0_137] : memref<64x512xf32, #tpu.memory_space<vmem>>, vector<8x512xf32>
    %355 = arith.truncf %296 : vector<8x128xf32> to vector<8x128xbf16>
    %c0_138 = arith.constant 0 : index
    %c0_139 = arith.constant 0 : index
    %356 = vector.load %arg3[%c0_138, %c0_139] : memref<128x512xbf16, #tpu.memory_space<vmem>>, vector<128x512xbf16>
    %cst_140 = arith.constant dense<0.000000e+00> : vector<8x512xf32>
    %357 = tpu.matmul %355, %356, %cst_140 {dimension_numbers = #tpu.dot_dimension_numbers<[1], [0], [0], [1], [0, 0, 1, 1], [], []>} : vector<8x128xbf16>, vector<128x512xbf16>, vector<8x512xf32> -> vector<8x512xf32>
    %358 = arith.addf %354, %357 : vector<8x512xf32>
    %359 = vector.extract_strided_slice %358 {offsets = [0, 0], sizes = [8, 384], strides = [1, 1]} : vector<8x512xf32> to vector<8x384xf32>
    %cst_141 = arith.constant 5.000000e-01 : f32
    %360 = vector.broadcast %cst_141 : f32 to vector<8x384xf32>
    %361 = arith.mulf %360, %359 : vector<8x384xf32>
    %362 = math.tanh %361 : vector<8x384xf32>
    %cst_142 = arith.constant 5.000000e-01 : f32
    %363 = vector.broadcast %cst_142 : f32 to vector<8x384xf32>
    %364 = arith.mulf %363, %362 : vector<8x384xf32>
    %cst_143 = arith.constant 5.000000e-01 : f32
    %365 = vector.broadcast %cst_143 : f32 to vector<8x384xf32>
    %366 = arith.addf %364, %365 : vector<8x384xf32>
    %367 = vector.extract_strided_slice %366 {offsets = [0, 0], sizes = [8, 128], strides = [1, 1]} : vector<8x384xf32> to vector<8x128xf32>
    %368 = vector.extract_strided_slice %366 {offsets = [0, 128], sizes = [8, 128], strides = [1, 1]} : vector<8x384xf32> to vector<8x128xf32>
    %369 = vector.extract_strided_slice %366 {offsets = [0, 256], sizes = [8, 128], strides = [1, 1]} : vector<8x384xf32> to vector<8x128xf32>
    %370 = vector.extract_strided_slice %358 {offsets = [0, 384], sizes = [8, 128], strides = [1, 1]} : vector<8x512xf32> to vector<8x128xf32>
    %371 = math.tanh %370 : vector<8x128xf32>
    %372 = arith.mulf %368, %294 : vector<8x128xf32>
    %373 = arith.mulf %367, %371 : vector<8x128xf32>
    %374 = arith.addf %372, %373 : vector<8x128xf32>
    %375 = math.tanh %374 : vector<8x128xf32>
    %376 = arith.mulf %369, %375 : vector<8x128xf32>
    %377 = arith.truncf %376 : vector<8x128xf32> to vector<8x128xbf16>
    %c0_144 = arith.constant 0 : index
    %c0_145 = arith.constant 0 : index
    %378 = vector.load %arg19[%c0_144, %c0_145] : memref<128x512xbf16, #tpu.memory_space<vmem>>, vector<128x512xbf16>
    %cst_146 = arith.constant dense<0.000000e+00> : vector<8x512xf32>
    %379 = tpu.matmul %377, %378, %cst_146 {dimension_numbers = #tpu.dot_dimension_numbers<[1], [0], [0], [1], [0, 0, 1, 1], [], []>} : vector<8x128xbf16>, vector<128x512xbf16>, vector<8x512xf32> -> vector<8x512xf32>
    %380 = arith.truncf %323 : vector<8x128xf32> to vector<8x128xbf16>
    %c0_147 = arith.constant 0 : index
    %c0_148 = arith.constant 0 : index
    %381 = vector.load %arg20[%c0_147, %c0_148] : memref<128x512xbf16, #tpu.memory_space<vmem>>, vector<128x512xbf16>
    %cst_149 = arith.constant dense<0.000000e+00> : vector<8x512xf32>
    %382 = tpu.matmul %380, %381, %cst_149 {dimension_numbers = #tpu.dot_dimension_numbers<[1], [0], [0], [1], [0, 0, 1, 1], [], []>} : vector<8x128xbf16>, vector<128x512xbf16>, vector<8x512xf32> -> vector<8x512xf32>
    %383 = arith.addf %379, %382 : vector<8x512xf32>
    %c0_150 = arith.constant 0 : index
    %c0_151 = arith.constant 0 : index
    %384 = vector.load %arg5[%c0_150, %c0_151] : memref<8x512xf32, #tpu.memory_space<vmem>>, vector<8x512xf32>
    %385 = arith.addf %383, %384 : vector<8x512xf32>
    %386 = vector.extract_strided_slice %385 {offsets = [0, 0], sizes = [8, 384], strides = [1, 1]} : vector<8x512xf32> to vector<8x384xf32>
    %cst_152 = arith.constant 5.000000e-01 : f32
    %387 = vector.broadcast %cst_152 : f32 to vector<8x384xf32>
    %388 = arith.mulf %387, %386 : vector<8x384xf32>
    %389 = math.tanh %388 : vector<8x384xf32>
    %cst_153 = arith.constant 5.000000e-01 : f32
    %390 = vector.broadcast %cst_153 : f32 to vector<8x384xf32>
    %391 = arith.mulf %390, %389 : vector<8x384xf32>
    %cst_154 = arith.constant 5.000000e-01 : f32
    %392 = vector.broadcast %cst_154 : f32 to vector<8x384xf32>
    %393 = arith.addf %391, %392 : vector<8x384xf32>
    %394 = vector.extract_strided_slice %393 {offsets = [0, 0], sizes = [8, 128], strides = [1, 1]} : vector<8x384xf32> to vector<8x128xf32>
    %395 = vector.extract_strided_slice %393 {offsets = [0, 128], sizes = [8, 128], strides = [1, 1]} : vector<8x384xf32> to vector<8x128xf32>
    %396 = vector.extract_strided_slice %393 {offsets = [0, 256], sizes = [8, 128], strides = [1, 1]} : vector<8x384xf32> to vector<8x128xf32>
    %397 = vector.extract_strided_slice %385 {offsets = [0, 384], sizes = [8, 128], strides = [1, 1]} : vector<8x512xf32> to vector<8x128xf32>
    %398 = math.tanh %397 : vector<8x128xf32>
    %399 = arith.mulf %395, %321 : vector<8x128xf32>
    %400 = arith.mulf %394, %398 : vector<8x128xf32>
    %401 = arith.addf %399, %400 : vector<8x128xf32>
    %402 = math.tanh %401 : vector<8x128xf32>
    %403 = arith.mulf %396, %402 : vector<8x128xf32>
    %404 = arith.truncf %403 : vector<8x128xf32> to vector<8x128xbf16>
    %c0_155 = arith.constant 0 : index
    %c0_156 = arith.constant 0 : index
    %405 = vector.load %arg21[%c0_155, %c0_156] : memref<128x512xbf16, #tpu.memory_space<vmem>>, vector<128x512xbf16>
    %cst_157 = arith.constant dense<0.000000e+00> : vector<8x512xf32>
    %406 = tpu.matmul %404, %405, %cst_157 {dimension_numbers = #tpu.dot_dimension_numbers<[1], [0], [0], [1], [0, 0, 1, 1], [], []>} : vector<8x128xbf16>, vector<128x512xbf16>, vector<8x512xf32> -> vector<8x512xf32>
    %407 = arith.truncf %350 : vector<8x128xf32> to vector<8x128xbf16>
    %c0_158 = arith.constant 0 : index
    %c0_159 = arith.constant 0 : index
    %408 = vector.load %arg22[%c0_158, %c0_159] : memref<128x512xbf16, #tpu.memory_space<vmem>>, vector<128x512xbf16>
    %cst_160 = arith.constant dense<0.000000e+00> : vector<8x512xf32>
    %409 = tpu.matmul %407, %408, %cst_160 {dimension_numbers = #tpu.dot_dimension_numbers<[1], [0], [0], [1], [0, 0, 1, 1], [], []>} : vector<8x128xbf16>, vector<128x512xbf16>, vector<8x512xf32> -> vector<8x512xf32>
    %410 = arith.addf %406, %409 : vector<8x512xf32>
    %c0_161 = arith.constant 0 : index
    %c0_162 = arith.constant 0 : index
    %411 = vector.load %arg6[%c0_161, %c0_162] : memref<8x512xf32, #tpu.memory_space<vmem>>, vector<8x512xf32>
    %412 = arith.addf %410, %411 : vector<8x512xf32>
    %413 = vector.extract_strided_slice %412 {offsets = [0, 0], sizes = [8, 384], strides = [1, 1]} : vector<8x512xf32> to vector<8x384xf32>
    %cst_163 = arith.constant 5.000000e-01 : f32
    %414 = vector.broadcast %cst_163 : f32 to vector<8x384xf32>
    %415 = arith.mulf %414, %413 : vector<8x384xf32>
    %416 = math.tanh %415 : vector<8x384xf32>
    %cst_164 = arith.constant 5.000000e-01 : f32
    %417 = vector.broadcast %cst_164 : f32 to vector<8x384xf32>
    %418 = arith.mulf %417, %416 : vector<8x384xf32>
    %cst_165 = arith.constant 5.000000e-01 : f32
    %419 = vector.broadcast %cst_165 : f32 to vector<8x384xf32>
    %420 = arith.addf %418, %419 : vector<8x384xf32>
    %421 = vector.extract_strided_slice %420 {offsets = [0, 0], sizes = [8, 128], strides = [1, 1]} : vector<8x384xf32> to vector<8x128xf32>
    %422 = vector.extract_strided_slice %420 {offsets = [0, 128], sizes = [8, 128], strides = [1, 1]} : vector<8x384xf32> to vector<8x128xf32>
    %423 = vector.extract_strided_slice %420 {offsets = [0, 256], sizes = [8, 128], strides = [1, 1]} : vector<8x384xf32> to vector<8x128xf32>
    %424 = vector.extract_strided_slice %412 {offsets = [0, 384], sizes = [8, 128], strides = [1, 1]} : vector<8x512xf32> to vector<8x128xf32>
    %425 = math.tanh %424 : vector<8x128xf32>
    %426 = arith.mulf %422, %348 : vector<8x128xf32>
    %427 = arith.mulf %421, %425 : vector<8x128xf32>
    %428 = arith.addf %426, %427 : vector<8x128xf32>
    %429 = math.tanh %428 : vector<8x128xf32>
    %430 = arith.mulf %423, %429 : vector<8x128xf32>
    %c5_i32_166 = arith.constant 5 : i32
    %c8_i32_167 = arith.constant 8 : i32
    %431 = arith.muli %c5_i32_166, %c8_i32_167 : i32
    %432 = tpu.assume_multiple %431, 8 : i32
    %433 = arith.index_cast %432 : i32 to index
    %c0_168 = arith.constant 0 : index
    %434 = vector.load %arg18[%433, %c0_168] : memref<64x512xf32, #tpu.memory_space<vmem>>, vector<8x512xf32>
    %435 = arith.truncf %376 : vector<8x128xf32> to vector<8x128xbf16>
    %c0_169 = arith.constant 0 : index
    %c0_170 = arith.constant 0 : index
    %436 = vector.load %arg3[%c0_169, %c0_170] : memref<128x512xbf16, #tpu.memory_space<vmem>>, vector<128x512xbf16>
    %cst_171 = arith.constant dense<0.000000e+00> : vector<8x512xf32>
    %437 = tpu.matmul %435, %436, %cst_171 {dimension_numbers = #tpu.dot_dimension_numbers<[1], [0], [0], [1], [0, 0, 1, 1], [], []>} : vector<8x128xbf16>, vector<128x512xbf16>, vector<8x512xf32> -> vector<8x512xf32>
    %438 = arith.addf %434, %437 : vector<8x512xf32>
    %439 = vector.extract_strided_slice %438 {offsets = [0, 0], sizes = [8, 384], strides = [1, 1]} : vector<8x512xf32> to vector<8x384xf32>
    %cst_172 = arith.constant 5.000000e-01 : f32
    %440 = vector.broadcast %cst_172 : f32 to vector<8x384xf32>
    %441 = arith.mulf %440, %439 : vector<8x384xf32>
    %442 = math.tanh %441 : vector<8x384xf32>
    %cst_173 = arith.constant 5.000000e-01 : f32
    %443 = vector.broadcast %cst_173 : f32 to vector<8x384xf32>
    %444 = arith.mulf %443, %442 : vector<8x384xf32>
    %cst_174 = arith.constant 5.000000e-01 : f32
    %445 = vector.broadcast %cst_174 : f32 to vector<8x384xf32>
    %446 = arith.addf %444, %445 : vector<8x384xf32>
    %447 = vector.extract_strided_slice %446 {offsets = [0, 0], sizes = [8, 128], strides = [1, 1]} : vector<8x384xf32> to vector<8x128xf32>
    %448 = vector.extract_strided_slice %446 {offsets = [0, 128], sizes = [8, 128], strides = [1, 1]} : vector<8x384xf32> to vector<8x128xf32>
    %449 = vector.extract_strided_slice %446 {offsets = [0, 256], sizes = [8, 128], strides = [1, 1]} : vector<8x384xf32> to vector<8x128xf32>
    %450 = vector.extract_strided_slice %438 {offsets = [0, 384], sizes = [8, 128], strides = [1, 1]} : vector<8x512xf32> to vector<8x128xf32>
    %451 = math.tanh %450 : vector<8x128xf32>
    %452 = arith.mulf %448, %374 : vector<8x128xf32>
    %453 = arith.mulf %447, %451 : vector<8x128xf32>
    %454 = arith.addf %452, %453 : vector<8x128xf32>
    %455 = math.tanh %454 : vector<8x128xf32>
    %456 = arith.mulf %449, %455 : vector<8x128xf32>
    %457 = arith.truncf %456 : vector<8x128xf32> to vector<8x128xbf16>
    %c0_175 = arith.constant 0 : index
    %c0_176 = arith.constant 0 : index
    %458 = vector.load %arg19[%c0_175, %c0_176] : memref<128x512xbf16, #tpu.memory_space<vmem>>, vector<128x512xbf16>
    %cst_177 = arith.constant dense<0.000000e+00> : vector<8x512xf32>
    %459 = tpu.matmul %457, %458, %cst_177 {dimension_numbers = #tpu.dot_dimension_numbers<[1], [0], [0], [1], [0, 0, 1, 1], [], []>} : vector<8x128xbf16>, vector<128x512xbf16>, vector<8x512xf32> -> vector<8x512xf32>
    %460 = arith.truncf %403 : vector<8x128xf32> to vector<8x128xbf16>
    %c0_178 = arith.constant 0 : index
    %c0_179 = arith.constant 0 : index
    %461 = vector.load %arg20[%c0_178, %c0_179] : memref<128x512xbf16, #tpu.memory_space<vmem>>, vector<128x512xbf16>
    %cst_180 = arith.constant dense<0.000000e+00> : vector<8x512xf32>
    %462 = tpu.matmul %460, %461, %cst_180 {dimension_numbers = #tpu.dot_dimension_numbers<[1], [0], [0], [1], [0, 0, 1, 1], [], []>} : vector<8x128xbf16>, vector<128x512xbf16>, vector<8x512xf32> -> vector<8x512xf32>
    %463 = arith.addf %459, %462 : vector<8x512xf32>
    %c0_181 = arith.constant 0 : index
    %c0_182 = arith.constant 0 : index
    %464 = vector.load %arg5[%c0_181, %c0_182] : memref<8x512xf32, #tpu.memory_space<vmem>>, vector<8x512xf32>
    %465 = arith.addf %463, %464 : vector<8x512xf32>
    %466 = vector.extract_strided_slice %465 {offsets = [0, 0], sizes = [8, 384], strides = [1, 1]} : vector<8x512xf32> to vector<8x384xf32>
    %cst_183 = arith.constant 5.000000e-01 : f32
    %467 = vector.broadcast %cst_183 : f32 to vector<8x384xf32>
    %468 = arith.mulf %467, %466 : vector<8x384xf32>
    %469 = math.tanh %468 : vector<8x384xf32>
    %cst_184 = arith.constant 5.000000e-01 : f32
    %470 = vector.broadcast %cst_184 : f32 to vector<8x384xf32>
    %471 = arith.mulf %470, %469 : vector<8x384xf32>
    %cst_185 = arith.constant 5.000000e-01 : f32
    %472 = vector.broadcast %cst_185 : f32 to vector<8x384xf32>
    %473 = arith.addf %471, %472 : vector<8x384xf32>
    %474 = vector.extract_strided_slice %473 {offsets = [0, 0], sizes = [8, 128], strides = [1, 1]} : vector<8x384xf32> to vector<8x128xf32>
    %475 = vector.extract_strided_slice %473 {offsets = [0, 128], sizes = [8, 128], strides = [1, 1]} : vector<8x384xf32> to vector<8x128xf32>
    %476 = vector.extract_strided_slice %473 {offsets = [0, 256], sizes = [8, 128], strides = [1, 1]} : vector<8x384xf32> to vector<8x128xf32>
    %477 = vector.extract_strided_slice %465 {offsets = [0, 384], sizes = [8, 128], strides = [1, 1]} : vector<8x512xf32> to vector<8x128xf32>
    %478 = math.tanh %477 : vector<8x128xf32>
    %479 = arith.mulf %475, %401 : vector<8x128xf32>
    %480 = arith.mulf %474, %478 : vector<8x128xf32>
    %481 = arith.addf %479, %480 : vector<8x128xf32>
    %482 = math.tanh %481 : vector<8x128xf32>
    %483 = arith.mulf %476, %482 : vector<8x128xf32>
    %484 = arith.truncf %483 : vector<8x128xf32> to vector<8x128xbf16>
    %c0_186 = arith.constant 0 : index
    %c0_187 = arith.constant 0 : index
    %485 = vector.load %arg21[%c0_186, %c0_187] : memref<128x512xbf16, #tpu.memory_space<vmem>>, vector<128x512xbf16>
    %cst_188 = arith.constant dense<0.000000e+00> : vector<8x512xf32>
    %486 = tpu.matmul %484, %485, %cst_188 {dimension_numbers = #tpu.dot_dimension_numbers<[1], [0], [0], [1], [0, 0, 1, 1], [], []>} : vector<8x128xbf16>, vector<128x512xbf16>, vector<8x512xf32> -> vector<8x512xf32>
    %487 = arith.truncf %430 : vector<8x128xf32> to vector<8x128xbf16>
    %c0_189 = arith.constant 0 : index
    %c0_190 = arith.constant 0 : index
    %488 = vector.load %arg22[%c0_189, %c0_190] : memref<128x512xbf16, #tpu.memory_space<vmem>>, vector<128x512xbf16>
    %cst_191 = arith.constant dense<0.000000e+00> : vector<8x512xf32>
    %489 = tpu.matmul %487, %488, %cst_191 {dimension_numbers = #tpu.dot_dimension_numbers<[1], [0], [0], [1], [0, 0, 1, 1], [], []>} : vector<8x128xbf16>, vector<128x512xbf16>, vector<8x512xf32> -> vector<8x512xf32>
    %490 = arith.addf %486, %489 : vector<8x512xf32>
    %c0_192 = arith.constant 0 : index
    %c0_193 = arith.constant 0 : index
    %491 = vector.load %arg6[%c0_192, %c0_193] : memref<8x512xf32, #tpu.memory_space<vmem>>, vector<8x512xf32>
    %492 = arith.addf %490, %491 : vector<8x512xf32>
    %493 = vector.extract_strided_slice %492 {offsets = [0, 0], sizes = [8, 384], strides = [1, 1]} : vector<8x512xf32> to vector<8x384xf32>
    %cst_194 = arith.constant 5.000000e-01 : f32
    %494 = vector.broadcast %cst_194 : f32 to vector<8x384xf32>
    %495 = arith.mulf %494, %493 : vector<8x384xf32>
    %496 = math.tanh %495 : vector<8x384xf32>
    %cst_195 = arith.constant 5.000000e-01 : f32
    %497 = vector.broadcast %cst_195 : f32 to vector<8x384xf32>
    %498 = arith.mulf %497, %496 : vector<8x384xf32>
    %cst_196 = arith.constant 5.000000e-01 : f32
    %499 = vector.broadcast %cst_196 : f32 to vector<8x384xf32>
    %500 = arith.addf %498, %499 : vector<8x384xf32>
    %501 = vector.extract_strided_slice %500 {offsets = [0, 0], sizes = [8, 128], strides = [1, 1]} : vector<8x384xf32> to vector<8x128xf32>
    %502 = vector.extract_strided_slice %500 {offsets = [0, 128], sizes = [8, 128], strides = [1, 1]} : vector<8x384xf32> to vector<8x128xf32>
    %503 = vector.extract_strided_slice %500 {offsets = [0, 256], sizes = [8, 128], strides = [1, 1]} : vector<8x384xf32> to vector<8x128xf32>
    %504 = vector.extract_strided_slice %492 {offsets = [0, 384], sizes = [8, 128], strides = [1, 1]} : vector<8x512xf32> to vector<8x128xf32>
    %505 = math.tanh %504 : vector<8x128xf32>
    %506 = arith.mulf %502, %428 : vector<8x128xf32>
    %507 = arith.mulf %501, %505 : vector<8x128xf32>
    %508 = arith.addf %506, %507 : vector<8x128xf32>
    %509 = math.tanh %508 : vector<8x128xf32>
    %510 = arith.mulf %503, %509 : vector<8x128xf32>
    %c6_i32_197 = arith.constant 6 : i32
    %c8_i32_198 = arith.constant 8 : i32
    %511 = arith.muli %c6_i32_197, %c8_i32_198 : i32
    %512 = tpu.assume_multiple %511, 8 : i32
    %513 = arith.index_cast %512 : i32 to index
    %c0_199 = arith.constant 0 : index
    %514 = vector.load %arg18[%513, %c0_199] : memref<64x512xf32, #tpu.memory_space<vmem>>, vector<8x512xf32>
    %515 = arith.truncf %456 : vector<8x128xf32> to vector<8x128xbf16>
    %c0_200 = arith.constant 0 : index
    %c0_201 = arith.constant 0 : index
    %516 = vector.load %arg3[%c0_200, %c0_201] : memref<128x512xbf16, #tpu.memory_space<vmem>>, vector<128x512xbf16>
    %cst_202 = arith.constant dense<0.000000e+00> : vector<8x512xf32>
    %517 = tpu.matmul %515, %516, %cst_202 {dimension_numbers = #tpu.dot_dimension_numbers<[1], [0], [0], [1], [0, 0, 1, 1], [], []>} : vector<8x128xbf16>, vector<128x512xbf16>, vector<8x512xf32> -> vector<8x512xf32>
    %518 = arith.addf %514, %517 : vector<8x512xf32>
    %519 = vector.extract_strided_slice %518 {offsets = [0, 0], sizes = [8, 384], strides = [1, 1]} : vector<8x512xf32> to vector<8x384xf32>
    %cst_203 = arith.constant 5.000000e-01 : f32
    %520 = vector.broadcast %cst_203 : f32 to vector<8x384xf32>
    %521 = arith.mulf %520, %519 : vector<8x384xf32>
    %522 = math.tanh %521 : vector<8x384xf32>
    %cst_204 = arith.constant 5.000000e-01 : f32
    %523 = vector.broadcast %cst_204 : f32 to vector<8x384xf32>
    %524 = arith.mulf %523, %522 : vector<8x384xf32>
    %cst_205 = arith.constant 5.000000e-01 : f32
    %525 = vector.broadcast %cst_205 : f32 to vector<8x384xf32>
    %526 = arith.addf %524, %525 : vector<8x384xf32>
    %527 = vector.extract_strided_slice %526 {offsets = [0, 0], sizes = [8, 128], strides = [1, 1]} : vector<8x384xf32> to vector<8x128xf32>
    %528 = vector.extract_strided_slice %526 {offsets = [0, 128], sizes = [8, 128], strides = [1, 1]} : vector<8x384xf32> to vector<8x128xf32>
    %529 = vector.extract_strided_slice %526 {offsets = [0, 256], sizes = [8, 128], strides = [1, 1]} : vector<8x384xf32> to vector<8x128xf32>
    %530 = vector.extract_strided_slice %518 {offsets = [0, 384], sizes = [8, 128], strides = [1, 1]} : vector<8x512xf32> to vector<8x128xf32>
    %531 = math.tanh %530 : vector<8x128xf32>
    %532 = arith.mulf %528, %454 : vector<8x128xf32>
    %533 = arith.mulf %527, %531 : vector<8x128xf32>
    %534 = arith.addf %532, %533 : vector<8x128xf32>
    %535 = math.tanh %534 : vector<8x128xf32>
    %536 = arith.mulf %529, %535 : vector<8x128xf32>
    %537 = arith.truncf %536 : vector<8x128xf32> to vector<8x128xbf16>
    %c0_206 = arith.constant 0 : index
    %c0_207 = arith.constant 0 : index
    %538 = vector.load %arg19[%c0_206, %c0_207] : memref<128x512xbf16, #tpu.memory_space<vmem>>, vector<128x512xbf16>
    %cst_208 = arith.constant dense<0.000000e+00> : vector<8x512xf32>
    %539 = tpu.matmul %537, %538, %cst_208 {dimension_numbers = #tpu.dot_dimension_numbers<[1], [0], [0], [1], [0, 0, 1, 1], [], []>} : vector<8x128xbf16>, vector<128x512xbf16>, vector<8x512xf32> -> vector<8x512xf32>
    %540 = arith.truncf %483 : vector<8x128xf32> to vector<8x128xbf16>
    %c0_209 = arith.constant 0 : index
    %c0_210 = arith.constant 0 : index
    %541 = vector.load %arg20[%c0_209, %c0_210] : memref<128x512xbf16, #tpu.memory_space<vmem>>, vector<128x512xbf16>
    %cst_211 = arith.constant dense<0.000000e+00> : vector<8x512xf32>
    %542 = tpu.matmul %540, %541, %cst_211 {dimension_numbers = #tpu.dot_dimension_numbers<[1], [0], [0], [1], [0, 0, 1, 1], [], []>} : vector<8x128xbf16>, vector<128x512xbf16>, vector<8x512xf32> -> vector<8x512xf32>
    %543 = arith.addf %539, %542 : vector<8x512xf32>
    %c0_212 = arith.constant 0 : index
    %c0_213 = arith.constant 0 : index
    %544 = vector.load %arg5[%c0_212, %c0_213] : memref<8x512xf32, #tpu.memory_space<vmem>>, vector<8x512xf32>
    %545 = arith.addf %543, %544 : vector<8x512xf32>
    %546 = vector.extract_strided_slice %545 {offsets = [0, 0], sizes = [8, 384], strides = [1, 1]} : vector<8x512xf32> to vector<8x384xf32>
    %cst_214 = arith.constant 5.000000e-01 : f32
    %547 = vector.broadcast %cst_214 : f32 to vector<8x384xf32>
    %548 = arith.mulf %547, %546 : vector<8x384xf32>
    %549 = math.tanh %548 : vector<8x384xf32>
    %cst_215 = arith.constant 5.000000e-01 : f32
    %550 = vector.broadcast %cst_215 : f32 to vector<8x384xf32>
    %551 = arith.mulf %550, %549 : vector<8x384xf32>
    %cst_216 = arith.constant 5.000000e-01 : f32
    %552 = vector.broadcast %cst_216 : f32 to vector<8x384xf32>
    %553 = arith.addf %551, %552 : vector<8x384xf32>
    %554 = vector.extract_strided_slice %553 {offsets = [0, 0], sizes = [8, 128], strides = [1, 1]} : vector<8x384xf32> to vector<8x128xf32>
    %555 = vector.extract_strided_slice %553 {offsets = [0, 128], sizes = [8, 128], strides = [1, 1]} : vector<8x384xf32> to vector<8x128xf32>
    %556 = vector.extract_strided_slice %553 {offsets = [0, 256], sizes = [8, 128], strides = [1, 1]} : vector<8x384xf32> to vector<8x128xf32>
    %557 = vector.extract_strided_slice %545 {offsets = [0, 384], sizes = [8, 128], strides = [1, 1]} : vector<8x512xf32> to vector<8x128xf32>
    %558 = math.tanh %557 : vector<8x128xf32>
    %559 = arith.mulf %555, %481 : vector<8x128xf32>
    %560 = arith.mulf %554, %558 : vector<8x128xf32>
    %561 = arith.addf %559, %560 : vector<8x128xf32>
    %562 = math.tanh %561 : vector<8x128xf32>
    %563 = arith.mulf %556, %562 : vector<8x128xf32>
    %564 = arith.truncf %563 : vector<8x128xf32> to vector<8x128xbf16>
    %c0_217 = arith.constant 0 : index
    %c0_218 = arith.constant 0 : index
    %565 = vector.load %arg21[%c0_217, %c0_218] : memref<128x512xbf16, #tpu.memory_space<vmem>>, vector<128x512xbf16>
    %cst_219 = arith.constant dense<0.000000e+00> : vector<8x512xf32>
    %566 = tpu.matmul %564, %565, %cst_219 {dimension_numbers = #tpu.dot_dimension_numbers<[1], [0], [0], [1], [0, 0, 1, 1], [], []>} : vector<8x128xbf16>, vector<128x512xbf16>, vector<8x512xf32> -> vector<8x512xf32>
    %567 = arith.truncf %510 : vector<8x128xf32> to vector<8x128xbf16>
    %c0_220 = arith.constant 0 : index
    %c0_221 = arith.constant 0 : index
    %568 = vector.load %arg22[%c0_220, %c0_221] : memref<128x512xbf16, #tpu.memory_space<vmem>>, vector<128x512xbf16>
    %cst_222 = arith.constant dense<0.000000e+00> : vector<8x512xf32>
    %569 = tpu.matmul %567, %568, %cst_222 {dimension_numbers = #tpu.dot_dimension_numbers<[1], [0], [0], [1], [0, 0, 1, 1], [], []>} : vector<8x128xbf16>, vector<128x512xbf16>, vector<8x512xf32> -> vector<8x512xf32>
    %570 = arith.addf %566, %569 : vector<8x512xf32>
    %c0_223 = arith.constant 0 : index
    %c0_224 = arith.constant 0 : index
    %571 = vector.load %arg6[%c0_223, %c0_224] : memref<8x512xf32, #tpu.memory_space<vmem>>, vector<8x512xf32>
    %572 = arith.addf %570, %571 : vector<8x512xf32>
    %573 = vector.extract_strided_slice %572 {offsets = [0, 0], sizes = [8, 384], strides = [1, 1]} : vector<8x512xf32> to vector<8x384xf32>
    %cst_225 = arith.constant 5.000000e-01 : f32
    %574 = vector.broadcast %cst_225 : f32 to vector<8x384xf32>
    %575 = arith.mulf %574, %573 : vector<8x384xf32>
    %576 = math.tanh %575 : vector<8x384xf32>
    %cst_226 = arith.constant 5.000000e-01 : f32
    %577 = vector.broadcast %cst_226 : f32 to vector<8x384xf32>
    %578 = arith.mulf %577, %576 : vector<8x384xf32>
    %cst_227 = arith.constant 5.000000e-01 : f32
    %579 = vector.broadcast %cst_227 : f32 to vector<8x384xf32>
    %580 = arith.addf %578, %579 : vector<8x384xf32>
    %581 = vector.extract_strided_slice %580 {offsets = [0, 0], sizes = [8, 128], strides = [1, 1]} : vector<8x384xf32> to vector<8x128xf32>
    %582 = vector.extract_strided_slice %580 {offsets = [0, 128], sizes = [8, 128], strides = [1, 1]} : vector<8x384xf32> to vector<8x128xf32>
    %583 = vector.extract_strided_slice %580 {offsets = [0, 256], sizes = [8, 128], strides = [1, 1]} : vector<8x384xf32> to vector<8x128xf32>
    %584 = vector.extract_strided_slice %572 {offsets = [0, 384], sizes = [8, 128], strides = [1, 1]} : vector<8x512xf32> to vector<8x128xf32>
    %585 = math.tanh %584 : vector<8x128xf32>
    %586 = arith.mulf %582, %508 : vector<8x128xf32>
    %587 = arith.mulf %581, %585 : vector<8x128xf32>
    %588 = arith.addf %586, %587 : vector<8x128xf32>
    %589 = math.tanh %588 : vector<8x128xf32>
    %590 = arith.mulf %583, %589 : vector<8x128xf32>
    %c7_i32 = arith.constant 7 : i32
    %c8_i32_228 = arith.constant 8 : i32
    %591 = arith.muli %c7_i32, %c8_i32_228 : i32
    %592 = tpu.assume_multiple %591, 8 : i32
    %593 = arith.index_cast %592 : i32 to index
    %c0_229 = arith.constant 0 : index
    %594 = vector.load %arg18[%593, %c0_229] : memref<64x512xf32, #tpu.memory_space<vmem>>, vector<8x512xf32>
    %595 = arith.truncf %536 : vector<8x128xf32> to vector<8x128xbf16>
    %c0_230 = arith.constant 0 : index
    %c0_231 = arith.constant 0 : index
    %596 = vector.load %arg3[%c0_230, %c0_231] : memref<128x512xbf16, #tpu.memory_space<vmem>>, vector<128x512xbf16>
    %cst_232 = arith.constant dense<0.000000e+00> : vector<8x512xf32>
    %597 = tpu.matmul %595, %596, %cst_232 {dimension_numbers = #tpu.dot_dimension_numbers<[1], [0], [0], [1], [0, 0, 1, 1], [], []>} : vector<8x128xbf16>, vector<128x512xbf16>, vector<8x512xf32> -> vector<8x512xf32>
    %598 = arith.addf %594, %597 : vector<8x512xf32>
    %599 = vector.extract_strided_slice %598 {offsets = [0, 0], sizes = [8, 384], strides = [1, 1]} : vector<8x512xf32> to vector<8x384xf32>
    %cst_233 = arith.constant 5.000000e-01 : f32
    %600 = vector.broadcast %cst_233 : f32 to vector<8x384xf32>
    %601 = arith.mulf %600, %599 : vector<8x384xf32>
    %602 = math.tanh %601 : vector<8x384xf32>
    %cst_234 = arith.constant 5.000000e-01 : f32
    %603 = vector.broadcast %cst_234 : f32 to vector<8x384xf32>
    %604 = arith.mulf %603, %602 : vector<8x384xf32>
    %cst_235 = arith.constant 5.000000e-01 : f32
    %605 = vector.broadcast %cst_235 : f32 to vector<8x384xf32>
    %606 = arith.addf %604, %605 : vector<8x384xf32>
    %607 = vector.extract_strided_slice %606 {offsets = [0, 0], sizes = [8, 128], strides = [1, 1]} : vector<8x384xf32> to vector<8x128xf32>
    %608 = vector.extract_strided_slice %606 {offsets = [0, 128], sizes = [8, 128], strides = [1, 1]} : vector<8x384xf32> to vector<8x128xf32>
    %609 = vector.extract_strided_slice %606 {offsets = [0, 256], sizes = [8, 128], strides = [1, 1]} : vector<8x384xf32> to vector<8x128xf32>
    %610 = vector.extract_strided_slice %598 {offsets = [0, 384], sizes = [8, 128], strides = [1, 1]} : vector<8x512xf32> to vector<8x128xf32>
    %611 = math.tanh %610 : vector<8x128xf32>
    %612 = arith.mulf %608, %534 : vector<8x128xf32>
    %613 = arith.mulf %607, %611 : vector<8x128xf32>
    %614 = arith.addf %612, %613 : vector<8x128xf32>
    %615 = math.tanh %614 : vector<8x128xf32>
    %616 = arith.mulf %609, %615 : vector<8x128xf32>
    %617 = arith.truncf %616 : vector<8x128xf32> to vector<8x128xbf16>
    %c0_236 = arith.constant 0 : index
    %c0_237 = arith.constant 0 : index
    %618 = vector.load %arg19[%c0_236, %c0_237] : memref<128x512xbf16, #tpu.memory_space<vmem>>, vector<128x512xbf16>
    %cst_238 = arith.constant dense<0.000000e+00> : vector<8x512xf32>
    %619 = tpu.matmul %617, %618, %cst_238 {dimension_numbers = #tpu.dot_dimension_numbers<[1], [0], [0], [1], [0, 0, 1, 1], [], []>} : vector<8x128xbf16>, vector<128x512xbf16>, vector<8x512xf32> -> vector<8x512xf32>
    %620 = arith.truncf %563 : vector<8x128xf32> to vector<8x128xbf16>
    %c0_239 = arith.constant 0 : index
    %c0_240 = arith.constant 0 : index
    %621 = vector.load %arg20[%c0_239, %c0_240] : memref<128x512xbf16, #tpu.memory_space<vmem>>, vector<128x512xbf16>
    %cst_241 = arith.constant dense<0.000000e+00> : vector<8x512xf32>
    %622 = tpu.matmul %620, %621, %cst_241 {dimension_numbers = #tpu.dot_dimension_numbers<[1], [0], [0], [1], [0, 0, 1, 1], [], []>} : vector<8x128xbf16>, vector<128x512xbf16>, vector<8x512xf32> -> vector<8x512xf32>
    %623 = arith.addf %619, %622 : vector<8x512xf32>
    %c0_242 = arith.constant 0 : index
    %c0_243 = arith.constant 0 : index
    %624 = vector.load %arg5[%c0_242, %c0_243] : memref<8x512xf32, #tpu.memory_space<vmem>>, vector<8x512xf32>
    %625 = arith.addf %623, %624 : vector<8x512xf32>
    %626 = vector.extract_strided_slice %625 {offsets = [0, 0], sizes = [8, 384], strides = [1, 1]} : vector<8x512xf32> to vector<8x384xf32>
    %cst_244 = arith.constant 5.000000e-01 : f32
    %627 = vector.broadcast %cst_244 : f32 to vector<8x384xf32>
    %628 = arith.mulf %627, %626 : vector<8x384xf32>
    %629 = math.tanh %628 : vector<8x384xf32>
    %cst_245 = arith.constant 5.000000e-01 : f32
    %630 = vector.broadcast %cst_245 : f32 to vector<8x384xf32>
    %631 = arith.mulf %630, %629 : vector<8x384xf32>
    %cst_246 = arith.constant 5.000000e-01 : f32
    %632 = vector.broadcast %cst_246 : f32 to vector<8x384xf32>
    %633 = arith.addf %631, %632 : vector<8x384xf32>
    %634 = vector.extract_strided_slice %633 {offsets = [0, 0], sizes = [8, 128], strides = [1, 1]} : vector<8x384xf32> to vector<8x128xf32>
    %635 = vector.extract_strided_slice %633 {offsets = [0, 128], sizes = [8, 128], strides = [1, 1]} : vector<8x384xf32> to vector<8x128xf32>
    %636 = vector.extract_strided_slice %633 {offsets = [0, 256], sizes = [8, 128], strides = [1, 1]} : vector<8x384xf32> to vector<8x128xf32>
    %637 = vector.extract_strided_slice %625 {offsets = [0, 384], sizes = [8, 128], strides = [1, 1]} : vector<8x512xf32> to vector<8x128xf32>
    %638 = math.tanh %637 : vector<8x128xf32>
    %639 = arith.mulf %635, %561 : vector<8x128xf32>
    %640 = arith.mulf %634, %638 : vector<8x128xf32>
    %641 = arith.addf %639, %640 : vector<8x128xf32>
    %642 = math.tanh %641 : vector<8x128xf32>
    %643 = arith.mulf %636, %642 : vector<8x128xf32>
    %644 = arith.truncf %643 : vector<8x128xf32> to vector<8x128xbf16>
    %c0_247 = arith.constant 0 : index
    %c0_248 = arith.constant 0 : index
    %645 = vector.load %arg21[%c0_247, %c0_248] : memref<128x512xbf16, #tpu.memory_space<vmem>>, vector<128x512xbf16>
    %cst_249 = arith.constant dense<0.000000e+00> : vector<8x512xf32>
    %646 = tpu.matmul %644, %645, %cst_249 {dimension_numbers = #tpu.dot_dimension_numbers<[1], [0], [0], [1], [0, 0, 1, 1], [], []>} : vector<8x128xbf16>, vector<128x512xbf16>, vector<8x512xf32> -> vector<8x512xf32>
    %647 = arith.truncf %590 : vector<8x128xf32> to vector<8x128xbf16>
    %c0_250 = arith.constant 0 : index
    %c0_251 = arith.constant 0 : index
    %648 = vector.load %arg22[%c0_250, %c0_251] : memref<128x512xbf16, #tpu.memory_space<vmem>>, vector<128x512xbf16>
    %cst_252 = arith.constant dense<0.000000e+00> : vector<8x512xf32>
    %649 = tpu.matmul %647, %648, %cst_252 {dimension_numbers = #tpu.dot_dimension_numbers<[1], [0], [0], [1], [0, 0, 1, 1], [], []>} : vector<8x128xbf16>, vector<128x512xbf16>, vector<8x512xf32> -> vector<8x512xf32>
    %650 = arith.addf %646, %649 : vector<8x512xf32>
    %c0_253 = arith.constant 0 : index
    %c0_254 = arith.constant 0 : index
    %651 = vector.load %arg6[%c0_253, %c0_254] : memref<8x512xf32, #tpu.memory_space<vmem>>, vector<8x512xf32>
    %652 = arith.addf %650, %651 : vector<8x512xf32>
    %653 = vector.extract_strided_slice %652 {offsets = [0, 0], sizes = [8, 384], strides = [1, 1]} : vector<8x512xf32> to vector<8x384xf32>
    %cst_255 = arith.constant 5.000000e-01 : f32
    %654 = vector.broadcast %cst_255 : f32 to vector<8x384xf32>
    %655 = arith.mulf %654, %653 : vector<8x384xf32>
    %656 = math.tanh %655 : vector<8x384xf32>
    %cst_256 = arith.constant 5.000000e-01 : f32
    %657 = vector.broadcast %cst_256 : f32 to vector<8x384xf32>
    %658 = arith.mulf %657, %656 : vector<8x384xf32>
    %cst_257 = arith.constant 5.000000e-01 : f32
    %659 = vector.broadcast %cst_257 : f32 to vector<8x384xf32>
    %660 = arith.addf %658, %659 : vector<8x384xf32>
    %661 = vector.extract_strided_slice %660 {offsets = [0, 0], sizes = [8, 128], strides = [1, 1]} : vector<8x384xf32> to vector<8x128xf32>
    %662 = vector.extract_strided_slice %660 {offsets = [0, 128], sizes = [8, 128], strides = [1, 1]} : vector<8x384xf32> to vector<8x128xf32>
    %663 = vector.extract_strided_slice %660 {offsets = [0, 256], sizes = [8, 128], strides = [1, 1]} : vector<8x384xf32> to vector<8x128xf32>
    %664 = vector.extract_strided_slice %652 {offsets = [0, 384], sizes = [8, 128], strides = [1, 1]} : vector<8x512xf32> to vector<8x128xf32>
    %665 = math.tanh %664 : vector<8x128xf32>
    %666 = arith.mulf %662, %588 : vector<8x128xf32>
    %667 = arith.mulf %661, %665 : vector<8x128xf32>
    %668 = arith.addf %666, %667 : vector<8x128xf32>
    %669 = math.tanh %668 : vector<8x128xf32>
    %670 = arith.mulf %663, %669 : vector<8x128xf32>
    %c8_i32_258 = arith.constant 8 : i32
    %c4_i32_259 = arith.constant 4 : i32
    %671 = tpu.memref_slice %arg26[%c4_i32_259] : memref<7x!tpu.dma_semaphore, #tpu.memory_space<semaphore_mem>> -> memref<1x!tpu.dma_semaphore, #tpu.memory_space<semaphore_mem>>
    %672 = tpu.memref_squeeze %671 : memref<1x!tpu.dma_semaphore, #tpu.memory_space<semaphore_mem>> -> memref<!tpu.dma_semaphore, #tpu.memory_space<semaphore_mem>>
    tpu.wait_dma2 semaphore(%672 : memref<!tpu.dma_semaphore, #tpu.memory_space<semaphore_mem>>) src(%arg14 : memref<128x128xbf16, #tpu.memory_space<any>>) dst(%arg23 : memref<128x128xbf16, #tpu.memory_space<vmem>>)
    %c5_i32_260 = arith.constant 5 : i32
    %673 = tpu.memref_slice %arg26[%c5_i32_260] : memref<7x!tpu.dma_semaphore, #tpu.memory_space<semaphore_mem>> -> memref<1x!tpu.dma_semaphore, #tpu.memory_space<semaphore_mem>>
    %674 = tpu.memref_squeeze %673 : memref<1x!tpu.dma_semaphore, #tpu.memory_space<semaphore_mem>> -> memref<!tpu.dma_semaphore, #tpu.memory_space<semaphore_mem>>
    tpu.wait_dma2 semaphore(%674 : memref<!tpu.dma_semaphore, #tpu.memory_space<semaphore_mem>>) src(%arg15 : memref<128x128xbf16, #tpu.memory_space<any>>) dst(%arg24 : memref<128x128xbf16, #tpu.memory_space<vmem>>)
    %c6_i32_261 = arith.constant 6 : i32
    %675 = tpu.memref_slice %arg26[%c6_i32_261] : memref<7x!tpu.dma_semaphore, #tpu.memory_space<semaphore_mem>> -> memref<1x!tpu.dma_semaphore, #tpu.memory_space<semaphore_mem>>
    %676 = tpu.memref_squeeze %675 : memref<1x!tpu.dma_semaphore, #tpu.memory_space<semaphore_mem>> -> memref<!tpu.dma_semaphore, #tpu.memory_space<semaphore_mem>>
    tpu.wait_dma2 semaphore(%676 : memref<!tpu.dma_semaphore, #tpu.memory_space<semaphore_mem>>) src(%arg16 : memref<128x128xbf16, #tpu.memory_space<any>>) dst(%arg25 : memref<128x128xbf16, #tpu.memory_space<vmem>>)
    %677 = arith.truncf %670 : vector<8x128xf32> to vector<8x128xbf16>
    %c0_262 = arith.constant 0 : index
    %c0_263 = arith.constant 0 : index
    %678 = vector.load %arg23[%c0_262, %c0_263] : memref<128x128xbf16, #tpu.memory_space<vmem>>, vector<128x128xbf16>
    %cst_264 = arith.constant dense<0.000000e+00> : vector<8x128xf32>
    %679 = tpu.matmul %677, %678, %cst_264 {dimension_numbers = #tpu.dot_dimension_numbers<[1], [0], [0], [1], [0, 0, 1, 1], [], []>} : vector<8x128xbf16>, vector<128x128xbf16>, vector<8x128xf32> -> vector<8x128xf32>
    %c0_265 = arith.constant 0 : index
    %c0_266 = arith.constant 0 : index
    %680 = vector.load %arg7[%c0_265, %c0_266] : memref<8x128xf32, #tpu.memory_space<vmem>>, vector<8x128xf32>
    %681 = arith.addf %679, %680 : vector<8x128xf32>
    %682 = math.tanh %681 : vector<8x128xf32>
    %683 = arith.truncf %682 : vector<8x128xf32> to vector<8x128xbf16>
    %c0_267 = arith.constant 0 : index
    %c0_268 = arith.constant 0 : index
    %684 = vector.load %arg24[%c0_267, %c0_268] : memref<128x128xbf16, #tpu.memory_space<vmem>>, vector<128x128xbf16>
    %cst_269 = arith.constant dense<0.000000e+00> : vector<8x128xf32>
    %685 = tpu.matmul %683, %684, %cst_269 {dimension_numbers = #tpu.dot_dimension_numbers<[1], [0], [0], [1], [0, 0, 1, 1], [], []>} : vector<8x128xbf16>, vector<128x128xbf16>, vector<8x128xf32> -> vector<8x128xf32>
    %c0_270 = arith.constant 0 : index
    %c0_271 = arith.constant 0 : index
    %686 = vector.load %arg8[%c0_270, %c0_271] : memref<8x128xf32, #tpu.memory_space<vmem>>, vector<8x128xf32>
    %687 = arith.addf %685, %686 : vector<8x128xf32>
    %688 = math.tanh %687 : vector<8x128xf32>
    %689 = arith.truncf %688 : vector<8x128xf32> to vector<8x128xbf16>
    %c0_272 = arith.constant 0 : index
    %c0_273 = arith.constant 0 : index
    %690 = vector.load %arg25[%c0_272, %c0_273] : memref<128x128xbf16, #tpu.memory_space<vmem>>, vector<128x128xbf16>
    %cst_274 = arith.constant dense<0.000000e+00> : vector<8x128xf32>
    %691 = tpu.matmul %689, %690, %cst_274 {dimension_numbers = #tpu.dot_dimension_numbers<[1], [0], [0], [1], [0, 0, 1, 1], [], []>} : vector<8x128xbf16>, vector<128x128xbf16>, vector<8x128xf32> -> vector<8x128xf32>
    %c0_275 = arith.constant 0 : index
    %c0_276 = arith.constant 0 : index
    %692 = vector.load %arg9[%c0_275, %c0_276] : memref<8x128xf32, #tpu.memory_space<vmem>>, vector<8x128xf32>
    %693 = arith.addf %691, %692 : vector<8x128xf32>
    %cst_277 = arith.constant 5.000000e-01 : f32
    %694 = vector.broadcast %cst_277 : f32 to vector<8x128xf32>
    %695 = arith.mulf %694, %693 : vector<8x128xf32>
    %696 = math.tanh %695 : vector<8x128xf32>
    %cst_278 = arith.constant 5.000000e-01 : f32
    %697 = vector.broadcast %cst_278 : f32 to vector<8x128xf32>
    %698 = arith.mulf %697, %696 : vector<8x128xf32>
    %cst_279 = arith.constant 5.000000e-01 : f32
    %699 = vector.broadcast %cst_279 : f32 to vector<8x128xf32>
    %700 = arith.addf %698, %699 : vector<8x128xf32>
    %c0_280 = arith.constant 0 : index
    %c0_281 = arith.constant 0 : index
    %701 = vector.load %arg17[%c0_280, %c0_281] : memref<8x128xf32, #tpu.memory_space<vmem>>, vector<8x128xf32>
    tpu.vector_store %arg17[%c0_280, %c0_281], %700 {strides = array<i32>} : memref<8x128xf32, #tpu.memory_space<vmem>>, vector<8x128xf32>,
    return
  }
  func.func @transform_0(%arg0: i32) -> (i32, i32) {
    %c0_i32 = arith.constant 0 : i32
    %c0_i32_0 = arith.constant 0 : i32
    %c0_i32_1 = arith.constant 0 : i32
    return %c0_i32, %c0_i32_0 : i32, i32
  }
  func.func @transform_1(%arg0: i32) -> (i32, i32) {
    %c0_i32 = arith.constant 0 : i32
    %c0_i32_0 = arith.constant 0 : i32
    %c0_i32_1 = arith.constant 0 : i32
    return %c0_i32, %c0_i32_0 : i32, i32
  }
  func.func @transform_2(%arg0: i32) -> (i32, i32) {
    %c0_i32 = arith.constant 0 : i32
    %c0_i32_0 = arith.constant 0 : i32
    %c0_i32_1 = arith.constant 0 : i32
    return %c0_i32, %c0_i32_0 : i32, i32
  }
  func.func @transform_3(%arg0: i32) -> (i32, i32) {
    %c0_i32 = arith.constant 0 : i32
    %c0_i32_0 = arith.constant 0 : i32
    %c0_i32_1 = arith.constant 0 : i32
    return %c0_i32, %c0_i32_0 : i32, i32
  }
  func.func @transform_4(%arg0: i32) -> (i32, i32) {
    %c0_i32 = arith.constant 0 : i32
    %c0_i32_0 = arith.constant 0 : i32
    %c0_i32_1 = arith.constant 0 : i32
    return %c0_i32, %c0_i32_0 : i32, i32
  }
  func.func @transform_5(%arg0: i32) -> (i32, i32) {
    %c0_i32 = arith.constant 0 : i32
    %c0_i32_0 = arith.constant 0 : i32
    %c0_i32_1 = arith.constant 0 : i32
    return %c0_i32, %c0_i32_0 : i32, i32
  }
  func.func @transform_6(%arg0: i32) -> (i32, i32) {
    %c0_i32 = arith.constant 0 : i32
    %c0_i32_0 = arith.constant 0 : i32
    %c0_i32_1 = arith.constant 0 : i32
    return %c0_i32, %c0_i32_0 : i32, i32
  }
  func.func @transform_7(%arg0: i32) -> (i32, i32) {
    %c0_i32 = arith.constant 0 : i32
    %c0_i32_0 = arith.constant 0 : i32
    %c0_i32_1 = arith.constant 0 : i32
    return %c0_i32, %c0_i32_0 : i32, i32
  }
  func.func @transform_8(%arg0: i32) -> (i32, i32) {
    %c0_i32 = arith.constant 0 : i32
    %c0_i32_0 = arith.constant 0 : i32
    %c0_i32_1 = arith.constant 0 : i32
    return %c0_i32, %c0_i32_0 : i32, i32
  }
  func.func @transform_16(%arg0: i32) -> (i32, i32) {
    %c0_i32 = arith.constant 0 : i32
    %c0_i32_0 = arith.constant 0 : i32
    %c0_i32_1 = arith.constant 0 : i32
    return %c0_i32, %c0_i32_0 : i32, i32
  }
}

</mosaic_0001>

<llo_original>
// kernel: disk_lstm_forward.1
$region0: #{disk_lstm_forward.1}
  #allocation0 [shape = 'u32[]', space=smem, size = 0x4, offset = 0x4, fixed_abs, tag = 'smem constant byte address 0x4 - core index']
  #allocation1 [shape = 'u32[144,128]{1,0:T(1,128)}', space=vmem, size = 0x12000, scoped, tag = 'internal scratch']
  #allocation2 [shape = 'f32[64,512]{1,0:T(8,128)}', space=vmem, size = 0x20000, scoped, tag = 'scratch operand']
  #allocation3 [shape = 'bf16[128,512]{1,0:T(16,128)(2,1)}', space=vmem, size = 0x20000, scoped, tag = 'scratch operand']
  #allocation4 [shape = 'bf16[128,512]{1,0:T(16,128)(2,1)}', space=vmem, size = 0x20000, scoped, tag = 'scratch operand']
  #allocation5 [shape = 'bf16[128,512]{1,0:T(16,128)(2,1)}', space=vmem, size = 0x20000, scoped, tag = 'scratch operand']
  #allocation6 [shape = 'bf16[128,512]{1,0:T(16,128)(2,1)}', space=vmem, size = 0x20000, scoped, tag = 'scratch operand']
  #allocation7 [shape = 'bf16[128,128]{1,0:T(16,128)(2,1)}', space=vmem, size = 0x8000, scoped, tag = 'scratch operand']
  #allocation8 [shape = 'bf16[128,128]{1,0:T(16,128)(2,1)}', space=vmem, size = 0x8000, scoped, tag = 'scratch operand']
  #allocation9 [shape = 'bf16[128,128]{1,0:T(16,128)(2,1)}', space=vmem, size = 0x8000, scoped, tag = 'scratch operand']
  #allocation10 [shape = 's32[7]{0}', space=sflag, size = 0x1c, scoped, tag = 'scratch operand']
  #allocation24 [shape = 's32[]', space=sflag, size = 0x4, offset = 0, fixed_abs, tag = 'sflag constant byte address 0x0 - dummy sync flag']
  #allocation26 [shape = 's32[]', space=sflag, size = 0x4, offset = 0, fixed_abs, tag = 'sflag constant byte address 0x0 - dummy sync flag']
  #allocation28 [shape = 's32[]', space=sflag, size = 0x4, offset = 0, fixed_abs, tag = 'sflag constant byte address 0x0 - dummy sync flag']
  #allocation30 [shape = 's32[]', space=sflag, size = 0x4, offset = 0, fixed_abs, tag = 'sflag constant byte address 0x0 - dummy sync flag']
  #allocation32 [shape = 's32[]', space=sflag, size = 0x4, offset = 0, fixed_abs, tag = 'sflag constant byte address 0x0 - dummy sync flag']
  #allocation33 [shape = 's32[]', space=sflag, size = 0x4, offset = 0, fixed_abs, tag = 'sflag constant byte address 0x0 - dummy sync flag']
  #allocation34 [shape = 's32[]', space=sflag, size = 0x4, offset = 0, fixed_abs, tag = 'sflag constant byte address 0x0 - dummy sync flag']
  #allocation35 [shape = 's32[]', space=sflag, size = 0x4, offset = 0, fixed_abs, tag = 'sflag constant byte address 0x0 - dummy sync flag']
  #allocation36 [shape = 'u32[]', space=smem, size = 0x4, offset = 0x44, fixed_abs, tag = 'smem constant byte address 0x44 - assertion arg 0']
  #allocation37 [shape = 'u32[]', space=smem, size = 0x4, offset = 0x48, fixed_abs, tag = 'smem constant byte address 0x48 - assertion arg 1']
  %s0 = inlined_call_operand.vmem [shape: f32[64,8], index: 0, kind: input, shape index: {}]
  %s1 = inlined_call_operand.hbm [shape: bf16[8,512], index: 1, kind: input, shape index: {}]
  %s2 = inlined_call_operand.hbm [shape: bf16[128,512], index: 2, kind: input, shape index: {}]
  %s3 = inlined_call_operand.hbm [shape: f32[1,512], index: 3, kind: input, shape index: {}]
  %s4 = inlined_call_operand.hbm [shape: f32[8,512], index: 4, kind: input, shape index: {}]
  %s5 = inlined_call_operand.hbm [shape: f32[8,512], index: 5, kind: input, shape index: {}]
  %s6 = inlined_call_operand.hbm [shape: f32[8,128], index: 6, kind: input, shape index: {}]
  %s7 = inlined_call_operand.hbm [shape: f32[8,128], index: 7, kind: input, shape index: {}]
  %s8 = inlined_call_operand.hbm [shape: f32[8,128], index: 8, kind: input, shape index: {}]
  %s9 = inlined_call_operand.hbm [shape: bf16[128,512], index: 9, kind: input, shape index: {}]
  %s10 = inlined_call_operand.hbm [shape: bf16[128,512], index: 10, kind: input, shape index: {}]
  %s11 = inlined_call_operand.hbm [shape: bf16[128,512], index: 11, kind: input, shape index: {}]
  %s12 = inlined_call_operand.hbm [shape: bf16[128,512], index: 12, kind: input, shape index: {}]
  %s13 = inlined_call_operand.vmem [shape: bf16[128,128], index: 13, kind: input, shape index: {}]
  %s14 = inlined_call_operand.vmem [shape: bf16[128,128], index: 14, kind: input, shape index: {}]
  %s15 = inlined_call_operand.hbm [shape: bf16[128,128], index: 15, kind: input, shape index: {}]
  %s16 = inlined_call_operand.vmem [shape: f32[8,128], index: 16, kind: output, shape index: {}]
  %s17 = sld [smem:[#allocation0]]
  $region150: #{disk_lstm_forward.1} parent=0
    _
  %s19 = ssub.s32 1, %s17
  %s20 = scalar_select 0, %s19, %s17
  $region1: #{disk_lstm_forward.1} parent=0
    #allocation11 [shape = 'u8[8192]{0}', space=vmem, size = 0x2000, scoped, tag = 'input window, operand 1, single buffered']
    #allocation12 [shape = 's32[1]{0}', space=sflag, size = 0x4, scoped, tag = 'scoped memory for disk_lstm_forward.1']
    #allocation13 [shape = 'u8[131072]{0}', space=vmem, size = 0x20000, scoped, tag = 'input window, operand 2, single buffered']
    #allocation14 [shape = 's32[1]{0}', space=sflag, size = 0x4, scoped, tag = 'scoped memory for disk_lstm_forward.1']
    #allocation15 [shape = 'u8[2048]{0}', space=vmem, size = 0x800, scoped, tag = 'input window, operand 3, single buffered']
    #allocation16 [shape = 'u8[16384]{0}', space=vmem, size = 0x4000, scoped, tag = 'input window, operand 4, single buffered']
    #allocation17 [shape = 's32[1]{0}', space=sflag, size = 0x4, scoped, tag = 'scoped memory for disk_lstm_forward.1']
    #allocation18 [shape = 'u8[16384]{0}', space=vmem, size = 0x4000, scoped, tag = 'input window, operand 5, single buffered']
    #allocation19 [shape = 'u8[4096]{0}', space=vmem, size = 0x1000, scoped, tag = 'input window, operand 6, single buffered']
    #allocation20 [shape = 's32[1]{0}', space=sflag, size = 0x4, scoped, tag = 'scoped memory for disk_lstm_forward.1']
    #allocation21 [shape = 'u8[4096]{0}', space=vmem, size = 0x1000, scoped, tag = 'input window, operand 7, single buffered']
    #allocation22 [shape = 'u8[4096]{0}', space=vmem, size = 0x1000, scoped, tag = 'input window, operand 8, single buffered']
    #allocation23 [shape = 's32[1]{0}', space=sflag, size = 0x4, scoped, tag = 'scoped memory for disk_lstm_forward.1']
    #allocation25 [shape = 'u32[9]{0}', space=smem, size = 0x24, scoped, tag = 'DMA stride descriptor']
    #allocation27 [shape = 'u32[9]{0}', space=smem, size = 0x24, scoped, tag = 'DMA stride descriptor']
    #allocation29 [shape = 'u32[9]{0}', space=smem, size = 0x24, scoped, tag = 'DMA stride descriptor']
    #allocation31 [shape = 'u32[9]{0}', space=smem, size = 0x24, scoped, tag = 'DMA stride descriptor']
    %21 = vsyncpa [#allocation12], 0
    %22 = vsyncpa [#allocation14], 0
    %23 = vsyncpa [#allocation17], 0
    %24 = vsyncpa [#allocation20], 0
    %25 = vsyncpa [#allocation23], 0
    // Predicated region
    $region2: #{disk_lstm_forward.1} parent=1 // pred_check
      _
    $region3: #{disk_lstm_forward.1} parent=1 // pred_check_branch
      %27 = sbr.rel (0) target = $region5
    $region4: #{disk_lstm_forward.1} parent=1 // pred_region
      _
    $region5: #{disk_lstm_forward.1} parent=1 // pred_fallthru
      _
    // Predicated region
    $region6: #{disk_lstm_forward.1} parent=1 // pred_check
      _
    $region7: #{disk_lstm_forward.1} parent=1 // pred_check_branch
      %29 = sbr.rel (0) target = $region9
    $region8: #{disk_lstm_forward.1} parent=1 // pred_region
      %s31 = ssub.s32 256, 256
      %32 = vsyncadd [#allocation12], %s31
      %s34 = sshll.u32 [#allocation11], 4
      %s35 = int_to_ptr.vmem [resolvable:$true] %s34
      %37 = dma.hbm_to_vmem [thread:$0]  %s1, 256, %s35, [#allocation12]
    $region9: #{disk_lstm_forward.1} parent=1 // pred_fallthru
      _
    // Predicated region
    $region10: #{disk_lstm_forward.1} parent=1 // pred_check
      _
    $region11: #{disk_lstm_forward.1} parent=1 // pred_check_branch
      %39 = sbr.rel (0) target = $region13
    $region12: #{disk_lstm_forward.1} parent=1 // pred_region
      %s41 = ssub.s32 4096, 4096
      %42 = vsyncadd [#allocation14], %s41
      %s43 = sshll.u32 [#allocation13], 4
      %s44 = int_to_ptr.vmem [resolvable:$true] %s43
      %49 = dma.hbm_to_vmem [thread:$0]  %s2, 4096, %s44, [#allocation14], 256, 256, 16
    $region13: #{disk_lstm_forward.1} parent=1 // pred_fallthru
      _
    // Predicated region
    $region14: #{disk_lstm_forward.1} parent=1 // pred_check
      _
    $region15: #{disk_lstm_forward.1} parent=1 // pred_check_branch
      %51 = sbr.rel (0) target = $region17
    $region16: #{disk_lstm_forward.1} parent=1 // pred_region
      %s53 = ssub.s32 64, 64
      %54 = vsyncadd [#allocation14], %s53
      %s56 = sshll.u32 [#allocation15], 4
      %s57 = int_to_ptr.vmem [resolvable:$true] %s56
      %59 = dma.hbm_to_vmem [thread:$0]  %s3, 64, %s57, [#allocation14]
    $region17: #{disk_lstm_forward.1} parent=1 // pred_fallthru
      _
    // Predicated region
    $region18: #{disk_lstm_forward.1} parent=1 // pred_check
      _
    $region19: #{disk_lstm_forward.1} parent=1 // pred_check_branch
      %61 = sbr.rel (0) target = $region21
    $region20: #{disk_lstm_forward.1} parent=1 // pred_region
      %s63 = ssub.s32 512, 512
      %64 = vsyncadd [#allocation17], %s63
      %s66 = sshll.u32 [#allocation16], 4
      %s67 = int_to_ptr.vmem [resolvable:$true] %s66
      %69 = dma.hbm_to_vmem [thread:$0]  %s4, 512, %s67, [#allocation17]
    $region21: #{disk_lstm_forward.1} parent=1 // pred_fallthru
      _
    // Predicated region
    $region22: #{disk_lstm_forward.1} parent=1 // pred_check
      _
    $region23: #{disk_lstm_forward.1} parent=1 // pred_check_branch
      %71 = sbr.rel (0) target = $region25
    $region24: #{disk_lstm_forward.1} parent=1 // pred_region
      %s73 = ssub.s32 512, 512
      %74 = vsyncadd [#allocation17], %s73
      %s76 = sshll.u32 [#allocation18], 4
      %s77 = int_to_ptr.vmem [resolvable:$true] %s76
      %79 = dma.hbm_to_vmem [thread:$0]  %s5, 512, %s77, [#allocation17]
    $region25: #{disk_lstm_forward.1} parent=1 // pred_fallthru
      _
    // Predicated region
    $region26: #{disk_lstm_forward.1} parent=1 // pred_check
      _
    $region27: #{disk_lstm_forward.1} parent=1 // pred_check_branch
      %81 = sbr.rel (0) target = $region29
    $region28: #{disk_lstm_forward.1} parent=1 // pred_region
      %s83 = ssub.s32 128, 128
      %84 = vsyncadd [#allocation20], %s83
      %s86 = sshll.u32 [#allocation19], 4
      %s87 = int_to_ptr.vmem [resolvable:$true] %s86
      %89 = dma.hbm_to_vmem [thread:$0]  %s6, 128, %s87, [#allocation20]
    $region29: #{disk_lstm_forward.1} parent=1 // pred_fallthru
      _
    // Predicated region
    $region30: #{disk_lstm_forward.1} parent=1 // pred_check
      _
    $region31: #{disk_lstm_forward.1} parent=1 // pred_check_branch
      %91 = sbr.rel (0) target = $region33
    $region32: #{disk_lstm_forward.1} parent=1 // pred_region
      %s93 = ssub.s32 128, 128
      %94 = vsyncadd [#allocation20], %s93
      %s96 = sshll.u32 [#allocation21], 4
      %s97 = int_to_ptr.vmem [resolvable:$true] %s96
      %99 = dma.hbm_to_vmem [thread:$0]  %s7, 128, %s97, [#allocation20]
    $region33: #{disk_lstm_forward.1} parent=1 // pred_fallthru
      _
    // Predicated region
    $region34: #{disk_lstm_forward.1} parent=1 // pred_check
      _
    $region35: #{disk_lstm_forward.1} parent=1 // pred_check_branch
      %101 = sbr.rel (0) target = $region37
    $region36: #{disk_lstm_forward.1} parent=1 // pred_region
      %s103 = ssub.s32 128, 128
      %104 = vsyncadd [#allocation23], %s103
      %s106 = sshll.u32 [#allocation22], 4
      %s107 = int_to_ptr.vmem [resolvable:$true] %s106
      %109 = dma.hbm_to_vmem [thread:$0]  %s8, 128, %s107, [#allocation23]
    $region37: #{disk_lstm_forward.1} parent=1 // pred_fallthru
      _
    // Predicated region
    $region38: #{disk_lstm_forward.1} parent=1 // pred_check
      _
    $region39: #{disk_lstm_forward.1} parent=1 // pred_check_branch
      %111 = sbr.rel (0) target = $region41
    $region40: #{disk_lstm_forward.1} parent=1 // pred_region
      %112 = dma.done [#allocation12], 256
    $region41: #{disk_lstm_forward.1} parent=1 // pred_fallthru
      _
    // Predicated region
    $region42: #{disk_lstm_forward.1} parent=1 // pred_check
      _
    $region43: #{disk_lstm_forward.1} parent=1 // pred_check_branch
      %114 = sbr.rel (0) target = $region45
    $region44: #{disk_lstm_forward.1} parent=1 // pred_region
      %115 = dma.done [#allocation14], 4096
    $region45: #{disk_lstm_forward.1} parent=1 // pred_fallthru
      _
    // Predicated region
    $region46: #{disk_lstm_forward.1} parent=1 // pred_check
      _
    $region47: #{disk_lstm_forward.1} parent=1 // pred_check_branch
      %117 = sbr.rel (0) target = $region49
    $region48: #{disk_lstm_forward.1} parent=1 // pred_region
      %118 = dma.done [#allocation14], 64
    $region49: #{disk_lstm_forward.1} parent=1 // pred_fallthru
      _
    // Predicated region
    $region50: #{disk_lstm_forward.1} parent=1 // pred_check
      _
    $region51: #{disk_lstm_forward.1} parent=1 // pred_check_branch
      %120 = sbr.rel (0) target = $region53
    $region52: #{disk_lstm_forward.1} parent=1 // pred_region
      %121 = dma.done [#allocation17], 512
    $region53: #{disk_lstm_forward.1} parent=1 // pred_fallthru
      _
    // Predicated region
    $region54: #{disk_lstm_forward.1} parent=1 // pred_check
      _
    $region55: #{disk_lstm_forward.1} parent=1 // pred_check_branch
      %123 = sbr.rel (0) target = $region57
    $region56: #{disk_lstm_forward.1} parent=1 // pred_region
      %124 = dma.done [#allocation17], 512
    $region57: #{disk_lstm_forward.1} parent=1 // pred_fallthru
      _
    // Predicated region
    $region58: #{disk_lstm_forward.1} parent=1 // pred_check
      _
    $region59: #{disk_lstm_forward.1} parent=1 // pred_check_branch
      %126 = sbr.rel (0) target = $region61
    $region60: #{disk_lstm_forward.1} parent=1 // pred_region
      %127 = dma.done [#allocation20], 128
    $region61: #{disk_lstm_forward.1} parent=1 // pred_fallthru
      _
    // Predicated region
    $region62: #{disk_lstm_forward.1} parent=1 // pred_check
      _
    $region63: #{disk_lstm_forward.1} parent=1 // pred_check_branch
      %129 = sbr.rel (0) target = $region65
    $region64: #{disk_lstm_forward.1} parent=1 // pred_region
      %130 = dma.done [#allocation20], 128
    $region65: #{disk_lstm_forward.1} parent=1 // pred_fallthru
      _
    // Predicated region
    $region66: #{disk_lstm_forward.1} parent=1 // pred_check
      _
    $region67: #{disk_lstm_forward.1} parent=1 // pred_check_branch
      %132 = sbr.rel (0) target = $region69
    $region68: #{disk_lstm_forward.1} parent=1 // pred_region
      %133 = dma.done [#allocation23], 128
    $region69: #{disk_lstm_forward.1} parent=1 // pred_fallthru
      _
    %s136 = sshll.u32 1, 14
    %s137 = sxor.u32 4294967295, %s136
    %s139 = sld [smem:[#allocation0]]
    %s140 = sadd.s32 2, %s139
    %s142 = sshll.u32 7, 26
    %s143 = sxor.u32 4294967295, %s142
    %s144 = sand.u32 0, %s143
    %s145 = sshll.u32 %s140, 26
    %s146 = sor.u32 %s144, %s145
    %s147 = sshll.u32 [#allocation3], 4
    %s148 = int_to_ptr.vmem [resolvable:$true] %s147
    %151 = sst [smem:[#allocation25]] 512
    %s152 = scalar_lea.smem [#allocation25], 1
    %153 = sst [smem:[%s152]] 512
    %s154 = scalar_lea.smem [#allocation25], 2
    %155 = sst [smem:[%s154]] 4
    %s156 = scalar_lea.smem [#allocation25], 3
    %157 = sst [smem:[%s156]] 64
    %s158 = scalar_lea.smem [#allocation25], 4
    %159 = sst [smem:[%s158]] 128
    %s160 = scalar_lea.smem [#allocation25], 5
    %161 = sst [smem:[%s160]] 2
    %s162 = scalar_lea.smem [#allocation25], 6
    %163 = sst [smem:[%s162]] 256
    %s164 = scalar_lea.smem [#allocation25], 7
    %165 = sst [smem:[%s164]] 64
    %s166 = scalar_lea.smem [#allocation25], 8
    %167 = sst [smem:[%s166]] 4
    %169 = dma.general %s9, 4096, %s148, [#allocation10], [#allocation24], [#allocation25], %s146, 0
    %s170 = scalar_lea.sflag [#allocation10], 1
    %s172 = sshll.u32 1, 14
    %s173 = sxor.u32 4294967295, %s172
    %s175 = sadd.s32 2, %s139
    %s177 = sshll.u32 7, 26
    %s178 = sxor.u32 4294967295, %s177
    %s179 = sand.u32 0, %s178
    %s180 = sshll.u32 %s175, 26
    %s181 = sor.u32 %s179, %s180
    %s182 = sshll.u32 [#allocation4], 4
    %s183 = int_to_ptr.vmem [resolvable:$true] %s182
    %186 = sst [smem:[#allocation27]] 512
    %s187 = scalar_lea.smem [#allocation27], 1
    %188 = sst [smem:[%s187]] 512
    %s189 = scalar_lea.smem [#allocation27], 2
    %190 = sst [smem:[%s189]] 4
    %s191 = scalar_lea.smem [#allocation27], 3
    %192 = sst [smem:[%s191]] 64
    %s193 = scalar_lea.smem [#allocation27], 4
    %194 = sst [smem:[%s193]] 128
    %s195 = scalar_lea.smem [#allocation27], 5
    %196 = sst [smem:[%s195]] 2
    %s197 = scalar_lea.smem [#allocation27], 6
    %198 = sst [smem:[%s197]] 256
    %s199 = scalar_lea.smem [#allocation27], 7
    %200 = sst [smem:[%s199]] 64
    %s201 = scalar_lea.smem [#allocation27], 8
    %202 = sst [smem:[%s201]] 4
    %204 = dma.general %s10, 4096, %s183, %s170, [#allocation26], [#allocation27], %s181, 0
    %s205 = scalar_lea.sflag [#allocation10], 2
    %s207 = sshll.u32 1, 14
    %s208 = sxor.u32 4294967295, %s207
    %s210 = sadd.s32 2, %s139
    %s212 = sshll.u32 7, 26
    %s213 = sxor.u32 4294967295, %s212
    %s214 = sand.u32 0, %s213
    %s215 = sshll.u32 %s210, 26
    %s216 = sor.u32 %s214, %s215
    %s217 = sshll.u32 [#allocation5], 4
    %s218 = int_to_ptr.vmem [resolvable:$true] %s217
    %221 = sst [smem:[#allocation29]] 512
    %s222 = scalar_lea.smem [#allocation29], 1
    %223 = sst [smem:[%s222]] 512
    %s224 = scalar_lea.smem [#allocation29], 2
    %225 = sst [smem:[%s224]] 4
    %s226 = scalar_lea.smem [#allocation29], 3
    %227 = sst [smem:[%s226]] 64
    %s228 = scalar_lea.smem [#allocation29], 4
    %229 = sst [smem:[%s228]] 128
    %s230 = scalar_lea.smem [#allocation29], 5
    %231 = sst [smem:[%s230]] 2
    %s232 = scalar_lea.smem [#allocation29], 6
    %233 = sst [smem:[%s232]] 256
    %s234 = scalar_lea.smem [#allocation29], 7
    %235 = sst [smem:[%s234]] 64
    %s236 = scalar_lea.smem [#allocation29], 8
    %237 = sst [smem:[%s236]] 4
    %239 = dma.general %s11, 4096, %s218, %s205, [#allocation28], [#allocation29], %s216, 0
    %s240 = scalar_lea.sflag [#allocation10], 3
    %s242 = sshll.u32 1, 14
    %s243 = sxor.u32 4294967295, %s242
    %s245 = sadd.s32 2, %s139
    %s247 = sshll.u32 7, 26
    %s248 = sxor.u32 4294967295, %s247
    %s249 = sand.u32 0, %s248
    %s250 = sshll.u32 %s245, 26
    %s251 = sor.u32 %s249, %s250
    %s252 = sshll.u32 [#allocation6], 4
    %s253 = int_to_ptr.vmem [resolvable:$true] %s252
    %256 = sst [smem:[#allocation31]] 512
    %s257 = scalar_lea.smem [#allocation31], 1
    %258 = sst [smem:[%s257]] 512
    %s259 = scalar_lea.smem [#allocation31], 2
    %260 = sst [smem:[%s259]] 4
    %s261 = scalar_lea.smem [#allocation31], 3
    %262 = sst [smem:[%s261]] 64
    %s263 = scalar_lea.smem [#allocation31], 4
    %264 = sst [smem:[%s263]] 128
    %s265 = scalar_lea.smem [#allocation31], 5
    %266 = sst [smem:[%s265]] 2
    %s267 = scalar_lea.smem [#allocation31], 6
    %268 = sst [smem:[%s267]] 256
    %s269 = scalar_lea.smem [#allocation31], 7
    %270 = sst [smem:[%s269]] 64
    %s271 = scalar_lea.smem [#allocation31], 8
    %272 = sst [smem:[%s271]] 4
    %274 = dma.general %s12, 4096, %s253, %s240, [#allocation30], [#allocation31], %s251, 0
    %s275 = scalar_lea.sflag [#allocation10], 4
    %p277 = scmp.lt.u32.totalorder 64, 8
    %p278 = pneg %p277
    // Predicated region
    $region70: #{disk_lstm_forward.1} parent=1 // pred_check
      _
    $region71: #{disk_lstm_forward.1} parent=1 // pred_check_branch
      %280 = sbr.rel (%p277) target = $region73
    $region72: #{disk_lstm_forward.1} parent=1 // pred_region
      %s295 = sand.u32 64, 7
      %p296 = scmp.eq.s32.totalorder %s295, 0
      // Predicated region
      $region85: #{disk_lstm_forward.1} parent=72 // pred_check
        %p297 = pneg %p296
      $region86: #{disk_lstm_forward.1} parent=72 // pred_check_branch
        %299 = sbr.rel (%p297) target = $region88
      $region87: #{disk_lstm_forward.1} parent=72 // pred_region
        loop: start=0, step=1, limit=1
        $region89: #{disk_lstm_forward.1} parent=87 // loop_pre_header
          _
        $region90: #{disk_lstm_forward.1} parent=87 // loop_header
          %s301 = sphi 0, %s305
          %p302 = scmp.ge.s32.totalorder %s301, 1
          %s306 = sphi %s13, %s13
          %s307 = sphi [#allocation7], [#allocation7]
        $region91: #{disk_lstm_forward.1} parent=87 // loop_header_branch
          %304 = sbr.rel (%p302) target = $region95
        $region92: #{disk_lstm_forward.1} parent=87 // loop_body
          %v308 = vld [vmem:[%s306] sm:$0xff]
          %309 = vst [vmem:[%s307] sm:$0xff] %v308
          %v310 = vld [vmem:[%s306 + $0x8] sm:$0xff]
          %311 = vst [vmem:[%s307 + $0x8] sm:$0xff] %v310
          %v312 = vld [vmem:[%s306 + $0x10] sm:$0xff]
          %313 = vst [vmem:[%s307 + $0x10] sm:$0xff] %v312
          %v314 = vld [vmem:[%s306 + $0x18] sm:$0xff]
          %315 = vst [vmem:[%s307 + $0x18] sm:$0xff] %v314
          %v316 = vld [vmem:[%s306 + $0x20] sm:$0xff]
          %317 = vst [vmem:[%s307 + $0x20] sm:$0xff] %v316
          %v318 = vld [vmem:[%s306 + $0x28] sm:$0xff]
          %319 = vst [vmem:[%s307 + $0x28] sm:$0xff] %v318
          %v320 = vld [vmem:[%s306 + $0x30] sm:$0xff]
          %321 = vst [vmem:[%s307 + $0x30] sm:$0xff] %v320
          %v322 = vld [vmem:[%s306 + $0x38] sm:$0xff]
          %323 = vst [vmem:[%s307 + $0x38] sm:$0xff] %v322
        $region93: #{disk_lstm_forward.1} parent=87 // loop_footer
          %s305 = sadd.s32 1, %s301
        $region94: #{disk_lstm_forward.1} parent=87 // loop_footer_branch
          %300 = sbr.rel target = $region90
        $region95: #{disk_lstm_forward.1} parent=87 // loop_exit
          _
      $region88: #{disk_lstm_forward.1} parent=72 // pred_fallthru
        _
      %p324 = pneg %p296
      // Predicated region
      $region96: #{disk_lstm_forward.1} parent=72 // pred_check
        _
      $region97: #{disk_lstm_forward.1} parent=72 // pred_check_branch
        %326 = sbr.rel (%p296) target = $region99
      $region98: #{disk_lstm_forward.1} parent=72 // pred_region
        %s327 = sand.u32 64, 7
      $region99: #{disk_lstm_forward.1} parent=72 // pred_fallthru
        _
    $region73: #{disk_lstm_forward.1} parent=1 // pred_fallthru
      _
    // Predicated region
    $region74: #{disk_lstm_forward.1} parent=1 // pred_check
      %p281 = pneg %p277
    $region75: #{disk_lstm_forward.1} parent=1 // pred_check_branch
      %283 = sbr.rel (%p281) target = $region77
    $region76: #{disk_lstm_forward.1} parent=1 // pred_region
      %s284 = sshllo.u32 0, 64
      loop: start=0, step=1, limit=1
      $region78: #{disk_lstm_forward.1} parent=76 // loop_pre_header
        _
      $region79: #{disk_lstm_forward.1} parent=76 // loop_header
        %s286 = sphi 0, %s290
        %p287 = scmp.ge.s32.totalorder %s286, 1
        %s291 = sphi %s13, %s13
        %s292 = sphi [#allocation7], [#allocation7]
      $region80: #{disk_lstm_forward.1} parent=76 // loop_header_branch
        %289 = sbr.rel (%p287) target = $region84
      $region81: #{disk_lstm_forward.1} parent=76 // loop_body
        %v293 = vld [vmem:[%s291] sm:%s284]
        %294 = vst [vmem:[%s292] sm:%s284] %v293
      $region82: #{disk_lstm_forward.1} parent=76 // loop_footer
        %s290 = sadd.s32 1, %s286
      $region83: #{disk_lstm_forward.1} parent=76 // loop_footer_branch
        %285 = sbr.rel target = $region79
      $region84: #{disk_lstm_forward.1} parent=76 // loop_exit
        _
    $region77: #{disk_lstm_forward.1} parent=1 // pred_fallthru
      _
    // Predicated region
    $region100: #{disk_lstm_forward.1} parent=1 // pred_check
      _
    $region101: #{disk_lstm_forward.1} parent=1 // pred_check_branch
      %330 = sbr.rel (0) target = $region103
    $region102: #{disk_lstm_forward.1} parent=1 // pred_region
      %331 = vsyncadd %s275, 1024
    $region103: #{disk_lstm_forward.1} parent=1 // pred_fallthru
      _
    %s332 = scalar_lea.sflag [#allocation10], 5
    %p334 = scmp.lt.u32.totalorder 64, 8
    %p335 = pneg %p334
    // Predicated region
    $region104: #{disk_lstm_forward.1} parent=1 // pred_check
      _
    $region105: #{disk_lstm_forward.1} parent=1 // pred_check_branch
      %337 = sbr.rel (%p334) target = $region107
    $region106: #{disk_lstm_forward.1} parent=1 // pred_region
      %s352 = sand.u32 64, 7
      %p353 = scmp.eq.s32.totalorder %s352, 0
      // Predicated region
      $region119: #{disk_lstm_forward.1} parent=106 // pred_check
        %p354 = pneg %p353
      $region120: #{disk_lstm_forward.1} parent=106 // pred_check_branch
        %356 = sbr.rel (%p354) target = $region122
      $region121: #{disk_lstm_forward.1} parent=106 // pred_region
        loop: start=0, step=1, limit=1
        $region123: #{disk_lstm_forward.1} parent=121 // loop_pre_header
          _
        $region124: #{disk_lstm_forward.1} parent=121 // loop_header
          %s358 = sphi 0, %s362
          %p359 = scmp.ge.s32.totalorder %s358, 1
          %s363 = sphi %s14, %s14
          %s364 = sphi [#allocation8], [#allocation8]
        $region125: #{disk_lstm_forward.1} parent=121 // loop_header_branch
          %361 = sbr.rel (%p359) target = $region129
        $region126: #{disk_lstm_forward.1} parent=121 // loop_body
          %v365 = vld [vmem:[%s363] sm:$0xff]
          %366 = vst [vmem:[%s364] sm:$0xff] %v365
          %v367 = vld [vmem:[%s363 + $0x8] sm:$0xff]
          %368 = vst [vmem:[%s364 + $0x8] sm:$0xff] %v367
          %v369 = vld [vmem:[%s363 + $0x10] sm:$0xff]
          %370 = vst [vmem:[%s364 + $0x10] sm:$0xff] %v369
          %v371 = vld [vmem:[%s363 + $0x18] sm:$0xff]
          %372 = vst [vmem:[%s364 + $0x18] sm:$0xff] %v371
          %v373 = vld [vmem:[%s363 + $0x20] sm:$0xff]
          %374 = vst [vmem:[%s364 + $0x20] sm:$0xff] %v373
          %v375 = vld [vmem:[%s363 + $0x28] sm:$0xff]
          %376 = vst [vmem:[%s364 + $0x28] sm:$0xff] %v375
          %v377 = vld [vmem:[%s363 + $0x30] sm:$0xff]
          %378 = vst [vmem:[%s364 + $0x30] sm:$0xff] %v377
          %v379 = vld [vmem:[%s363 + $0x38] sm:$0xff]
          %380 = vst [vmem:[%s364 + $0x38] sm:$0xff] %v379
        $region127: #{disk_lstm_forward.1} parent=121 // loop_footer
          %s362 = sadd.s32 1, %s358
        $region128: #{disk_lstm_forward.1} parent=121 // loop_footer_branch
          %357 = sbr.rel target = $region124
        $region129: #{disk_lstm_forward.1} parent=121 // loop_exit
          _
      $region122: #{disk_lstm_forward.1} parent=106 // pred_fallthru
        _
      %p381 = pneg %p353
      // Predicated region
      $region130: #{disk_lstm_forward.1} parent=106 // pred_check
        _
      $region131: #{disk_lstm_forward.1} parent=106 // pred_check_branch
        %383 = sbr.rel (%p353) target = $region133
      $region132: #{disk_lstm_forward.1} parent=106 // pred_region
        %s384 = sand.u32 64, 7
      $region133: #{disk_lstm_forward.1} parent=106 // pred_fallthru
        _
    $region107: #{disk_lstm_forward.1} parent=1 // pred_fallthru
      _
    // Predicated region
    $region108: #{disk_lstm_forward.1} parent=1 // pred_check
      %p338 = pneg %p334
    $region109: #{disk_lstm_forward.1} parent=1 // pred_check_branch
      %340 = sbr.rel (%p338) target = $region111
    $region110: #{disk_lstm_forward.1} parent=1 // pred_region
      %s341 = sshllo.u32 0, 64
      loop: start=0, step=1, limit=1
      $region112: #{disk_lstm_forward.1} parent=110 // loop_pre_header
        _
      $region113: #{disk_lstm_forward.1} parent=110 // loop_header
        %s343 = sphi 0, %s347
        %p344 = scmp.ge.s32.totalorder %s343, 1
        %s348 = sphi %s14, %s14
        %s349 = sphi [#allocation8], [#allocation8]
      $region114: #{disk_lstm_forward.1} parent=110 // loop_header_branch
        %346 = sbr.rel (%p344) target = $region118
      $region115: #{disk_lstm_forward.1} parent=110 // loop_body
        %v350 = vld [vmem:[%s348] sm:%s341]
        %351 = vst [vmem:[%s349] sm:%s341] %v350
      $region116: #{disk_lstm_forward.1} parent=110 // loop_footer
        %s347 = sadd.s32 1, %s343
      $region117: #{disk_lstm_forward.1} parent=110 // loop_footer_branch
        %342 = sbr.rel target = $region113
      $region118: #{disk_lstm_forward.1} parent=110 // loop_exit
        _
    $region111: #{disk_lstm_forward.1} parent=1 // pred_fallthru
      _
    // Predicated region
    $region134: #{disk_lstm_forward.1} parent=1 // pred_check
      _
    $region135: #{disk_lstm_forward.1} parent=1 // pred_check_branch
      %387 = sbr.rel (0) target = $region137
    $region136: #{disk_lstm_forward.1} parent=1 // pred_region
      %388 = vsyncadd %s332, 1024
    $region137: #{disk_lstm_forward.1} parent=1 // pred_fallthru
      _
    %s389 = scalar_lea.sflag [#allocation10], 6
    // Predicated region
    $region138: #{disk_lstm_forward.1} parent=1 // pred_check
      _
    $region139: #{disk_lstm_forward.1} parent=1 // pred_check_branch
      %391 = sbr.rel target = $region141
    $region140: #{disk_lstm_forward.1} parent=1 // pred_region
      %392 = sst [smem:[#allocation36]] [#allocation35]
      %393 = sst [smem:[#allocation37]] [#allocation34]
    $region141: #{disk_lstm_forward.1} parent=1 // pred_fallthru
      _
    %395 = shalt.err (0)
    %s397 = sshll.u32 [#allocation9], 4
    %s398 = int_to_ptr.vmem [resolvable:$true] %s397
    %400 = dma.hbm_to_vmem [thread:$0]  %s15, 1024, %s398, %s389
    %v401 = vld [vmem:[%s0] sm:$0xff]
    %v402 = vld [vmem:[%s0 + $0x8] sm:$0xff]
    %v403 = vld [vmem:[%s0 + $0x10] sm:$0xff]
    %v404 = vld [vmem:[%s0 + $0x18] sm:$0xff]
    %v405 = vld [vmem:[%s0 + $0x20] sm:$0xff]
    %v406 = vld [vmem:[%s0 + $0x28] sm:$0xff]
    %v407 = vld [vmem:[%s0 + $0x30] sm:$0xff]
    %v408 = vld [vmem:[%s0 + $0x38] sm:$0xff]
    %v409 = vpack.c.bf16 %v402, %v401
    %v410 = vpack.c.bf16 %v404, %v403
    %v411 = vpack.c.bf16 %v406, %v405
    %v412 = vpack.c.bf16 %v408, %v407
    %v413 = vld [vmem:[#allocation11] sm:$0xff]
    %v414 = vld [vmem:[#allocation11 + $0x8] sm:$0xff]
    %v415 = vld [vmem:[#allocation15] sm:$0xf]
    %v417 = vlaneseq
    %v418 = vshrl.u32 %v417, 7
    %v419 = vsub.s32 0, %v418
    %v420 = vrot.slane %v415, %v419
    %v421 = vlaneseq
    %v422 = vshrl.u32 %v421, 7
    %v423 = vsub.s32 1, %v422
    %v424 = vrot.slane %v415, %v423
    %v425 = vlaneseq
    %v426 = vshrl.u32 %v425, 7
    %v427 = vsub.s32 2, %v426
    %v428 = vrot.slane %v415, %v427
    %v429 = vlaneseq
    %v430 = vshrl.u32 %v429, 7
    %v431 = vsub.s32 3, %v430
    %v432 = vrot.slane %v415, %v431
    %v439 = vunpack.c.l.b16 %v413
    %v440 = vunpack.c.h.b16 %v413
    %v441 = vunpack.c.l.b16 %v414
    %v442 = vunpack.c.h.b16 %v414
    %v443 = vpack.c.b16 %v439, %v439
    %v444 = vpack.c.b16 %v440, %v440
    %v445 = vpack.c.b16 %v441, %v441
    %v446 = vpack.c.b16 %v442, %v442
    %vm447 = vcmask 64512
    %v449 = vsel %vm447, %v409, 0
    %v452 = vsel %vm447, %v410, 0
    %v455 = vsel %vm447, %v411, 0
    %v458 = vsel %vm447, %v412, 0
    %vm460 = vcmask 1043456
    %v462 = vsel %vm460, %v443, 0
    %v465 = vsel %vm460, %v444, 0
    %v468 = vsel %vm460, %v445, 0
    %v471 = vsel %vm460, %v446, 0
    %473 = vmatprep.subr.bf16.mxu0 %v465
    %474 = vmatpush1.bf16.msra.mxu0 %v462
    %475 = vmatprep.subr.bf16.mxu0 0
    %476 = vmatpush1.bf16.msra.mxu0 0
    %477 = vmatprep.subr.bf16.mxu0 0
    %478 = vmatpush1.bf16.msra.mxu0 0
    %479 = vmatprep.subr.bf16.mxu0 0
    %480 = vmatpush1.bf16.msra.mxu0 0
    %481 = vmatprep.subr.bf16.mxu0 0
    %482 = vmatpush1.bf16.msra.mxu0 0
    %483 = vmatprep.subr.bf16.mxu0 0
    %484 = vmatpush1.bf16.msra.mxu0 0
    %485 = vmatprep.subr.bf16.mxu0 0
    %486 = vmatpush1.bf16.msra.mxu0 0
    %487 = vmatprep.subr.bf16.mxu0 0
    %488 = vmatpush1.bf16.msra.mxu0 0
    %489 = vmatprep.subr.bf16.mxu0 0
    %490 = vmatpush1.bf16.msra.mxu0 0
    %491 = vmatprep.subr.bf16.mxu0 0
    %492 = vmatpush1.bf16.msra.mxu0 0
    %493 = vmatprep.subr.bf16.mxu0 0
    %494 = vmatpush1.bf16.msra.mxu0 0
    %495 = vmatprep.subr.bf16.mxu0 0
    %496 = vmatpush1.bf16.msra.mxu0 0
    %497 = vmatprep.subr.bf16.mxu0 0
    %498 = vmatpush1.bf16.msra.mxu0 0
    %499 = vmatprep.subr.bf16.mxu0 0
    %500 = vmatpush1.bf16.msra.mxu0 0
    %501 = vmatprep.subr.bf16.mxu0 0
    %502 = vmatpush1.bf16.msra.mxu0 0
    %503 = vmatprep.subr.bf16.mxu0 0
    %504 = vmatpush1.bf16.msra.mxu0 0
    %505 = vmatprep.mubr.bf16.mxu0 0
    %506 = vmatmul.mubr.bf16.gmra.mrb[0].mxu0 %v449
    %v507 = vpop.f32.mrb[0].mxu0
    %v508 = vadd.f32 %v420, %v507
    %v509 = vpop.f32.mrb[0].mxu0
    %v510 = vadd.f32 %v424, %v509
    %v511 = vpop.f32.mrb[0].mxu0
    %v512 = vadd.f32 %v420, %v511
    %v513 = vpop.f32.mrb[0].mxu0
    %v514 = vadd.f32 %v424, %v513
    %515 = vmatprep.mubr.bf16.mxu0 0
    %516 = vmatmul.mubr.bf16.gmra.mrb[0].mxu0 %v452
    %v517 = vpop.f32.mrb[0].mxu0
    %v518 = vadd.f32 %v420, %v517
    %v519 = vpop.f32.mrb[0].mxu0
    %v520 = vadd.f32 %v424, %v519
    %v521 = vpop.f32.mrb[0].mxu0
    %v522 = vadd.f32 %v420, %v521
    %v523 = vpop.f32.mrb[0].mxu0
    %v524 = vadd.f32 %v424, %v523
    %525 = vmatprep.mubr.bf16.mxu0 0
    %526 = vmatmul.mubr.bf16.gmra.mrb[0].mxu0 %v455
    %v527 = vpop.f32.mrb[0].mxu0
    %v528 = vadd.f32 %v420, %v527
    %v529 = vpop.f32.mrb[0].mxu0
    %v530 = vadd.f32 %v424, %v529
    %v531 = vpop.f32.mrb[0].mxu0
    %v532 = vadd.f32 %v420, %v531
    %v533 = vpop.f32.mrb[0].mxu0
    %v534 = vadd.f32 %v424, %v533
    %535 = vmatprep.mubr.bf16.mxu0 0
    %536 = vmatmul.mubr.bf16.gmra.mrb[0].mxu0 %v458
    %v537 = vpop.f32.mrb[0].mxu0
    %v538 = vadd.f32 %v420, %v537
    %v539 = vpop.f32.mrb[0].mxu0
    %v540 = vadd.f32 %v424, %v539
    %v541 = vpop.f32.mrb[0].mxu0
    %v542 = vadd.f32 %v420, %v541
    %v543 = vpop.f32.mrb[0].mxu0
    %v544 = vadd.f32 %v424, %v543
    %545 = vdwg.mxu0
    %546 = vmatprep.subr.bf16.mxu0 %v471
    %547 = vmatpush1.bf16.msra.mxu0 %v468
    %548 = vmatprep.subr.bf16.mxu0 0
    %549 = vmatpush1.bf16.msra.mxu0 0
    %550 = vmatprep.subr.bf16.mxu0 0
    %551 = vmatpush1.bf16.msra.mxu0 0
    %552 = vmatprep.subr.bf16.mxu0 0
    %553 = vmatpush1.bf16.msra.mxu0 0
    %554 = vmatprep.subr.bf16.mxu0 0
    %555 = vmatpush1.bf16.msra.mxu0 0
    %556 = vmatprep.subr.bf16.mxu0 0
    %557 = vmatpush1.bf16.msra.mxu0 0
    %558 = vmatprep.subr.bf16.mxu0 0
    %559 = vmatpush1.bf16.msra.mxu0 0
    %560 = vmatprep.subr.bf16.mxu0 0
    %561 = vmatpush1.bf16.msra.mxu0 0
    %562 = vmatprep.subr.bf16.mxu0 0
    %563 = vmatpush1.bf16.msra.mxu0 0
    %564 = vmatprep.subr.bf16.mxu0 0
    %565 = vmatpush1.bf16.msra.mxu0 0
    %566 = vmatprep.subr.bf16.mxu0 0
    %567 = vmatpush1.bf16.msra.mxu0 0
    %568 = vmatprep.subr.bf16.mxu0 0
    %569 = vmatpush1.bf16.msra.mxu0 0
    %570 = vmatprep.subr.bf16.mxu0 0
    %571 = vmatpush1.bf16.msra.mxu0 0
    %572 = vmatprep.subr.bf16.mxu0 0
    %573 = vmatpush1.bf16.msra.mxu0 0
    %574 = vmatprep.subr.bf16.mxu0 0
    %575 = vmatpush1.bf16.msra.mxu0 0
    %576 = vmatprep.subr.bf16.mxu0 0
    %577 = vmatpush1.bf16.msra.mxu0 0
    %578 = vmatprep.mubr.bf16.mxu0 0
    %579 = vmatmul.mubr.bf16.gmra.mrb[0].mxu0 %v449
    %v580 = vpop.f32.mrb[0].mxu0
    %v581 = vadd.f32 %v428, %v580
    %v582 = vpop.f32.mrb[0].mxu0
    %v583 = vadd.f32 %v432, %v582
    %v584 = vpop.f32.mrb[0].mxu0
    %v585 = vadd.f32 %v428, %v584
    %v586 = vpop.f32.mrb[0].mxu0
    %v587 = vadd.f32 %v432, %v586
    %588 = vmatprep.mubr.bf16.mxu0 0
    %589 = vmatmul.mubr.bf16.gmra.mrb[0].mxu0 %v452
    %v590 = vpop.f32.mrb[0].mxu0
    %v591 = vadd.f32 %v428, %v590
    %v592 = vpop.f32.mrb[0].mxu0
    %v593 = vadd.f32 %v432, %v592
    %v594 = vpop.f32.mrb[0].mxu0
    %v595 = vadd.f32 %v428, %v594
    %v596 = vpop.f32.mrb[0].mxu0
    %v597 = vadd.f32 %v432, %v596
    %598 = vmatprep.mubr.bf16.mxu0 0
    %599 = vmatmul.mubr.bf16.gmra.mrb[0].mxu0 %v455
    %v600 = vpop.f32.mrb[0].mxu0
    %v601 = vadd.f32 %v428, %v600
    %v602 = vpop.f32.mrb[0].mxu0
    %v603 = vadd.f32 %v432, %v602
    %v604 = vpop.f32.mrb[0].mxu0
    %v605 = vadd.f32 %v428, %v604
    %v606 = vpop.f32.mrb[0].mxu0
    %v607 = vadd.f32 %v432, %v606
    %608 = vmatprep.mubr.bf16.mxu0 0
    %609 = vmatmul.mubr.bf16.gmra.mrb[0].mxu0 %v458
    %v610 = vpop.f32.mrb[0].mxu0
    %v611 = vadd.f32 %v428, %v610
    %v612 = vpop.f32.mrb[0].mxu0
    %v613 = vadd.f32 %v432, %v612
    %v614 = vpop.f32.mrb[0].mxu0
    %v615 = vadd.f32 %v428, %v614
    %v616 = vpop.f32.mrb[0].mxu0
    %v617 = vadd.f32 %v432, %v616
    %618 = vdwg.mxu0
    %619 = vst [vmem:[#allocation2] sm:$0xff] %v508
    %620 = vst [vmem:[#allocation2 + $0x8] sm:$0xff] %v510
    %621 = vst [vmem:[#allocation2 + $0x10] sm:$0xff] %v581
    %622 = vst [vmem:[#allocation2 + $0x18] sm:$0xff] %v583
    %623 = vst [vmem:[#allocation2 + $0x20] sm:$0xff] %v512
    %624 = vst [vmem:[#allocation2 + $0x28] sm:$0xff] %v514
    %625 = vst [vmem:[#allocation2 + $0x30] sm:$0xff] %v585
    %626 = vst [vmem:[#allocation2 + $0x38] sm:$0xff] %v587
    %627 = vst [vmem:[#allocation2 + $0x40] sm:$0xff] %v518
    %628 = vst [vmem:[#allocation2 + $0x48] sm:$0xff] %v520
    %629 = vst [vmem:[#allocation2 + $0x50] sm:$0xff] %v591
    %630 = vst [vmem:[#allocation2 + $0x58] sm:$0xff] %v593
    %631 = vst [vmem:[#allocation2 + $0x60] sm:$0xff] %v522
    %632 = vst [vmem:[#allocation2 + $0x68] sm:$0xff] %v524
    %633 = vst [vmem:[#allocation2 + $0x70] sm:$0xff] %v595
    %634 = vst [vmem:[#allocation2 + $0x78] sm:$0xff] %v597
    %635 = vst [vmem:[#allocation2 + $0x80] sm:$0xff] %v528
    %636 = vst [vmem:[#allocation2 + $0x88] sm:$0xff] %v530
    %637 = vst [vmem:[#allocation2 + $0x90] sm:$0xff] %v601
    %638 = vst [vmem:[#allocation2 + $0x98] sm:$0xff] %v603
    %639 = vst [vmem:[#allocation2 + $0xa0] sm:$0xff] %v532
    %640 = vst [vmem:[#allocation2 + $0xa8] sm:$0xff] %v534
    %641 = vst [vmem:[#allocation2 + $0xb0] sm:$0xff] %v605
    %642 = vst [vmem:[#allocation2 + $0xb8] sm:$0xff] %v607
    %643 = vst [vmem:[#allocation2 + $0xc0] sm:$0xff] %v538
    %644 = vst [vmem:[#allocation2 + $0xc8] sm:$0xff] %v540
    %645 = vst [vmem:[#allocation2 + $0xd0] sm:$0xff] %v611
    %646 = vst [vmem:[#allocation2 + $0xd8] sm:$0xff] %v613
    %647 = vst [vmem:[#allocation2 + $0xe0] sm:$0xff] %v542
    %648 = vst [vmem:[#allocation2 + $0xe8] sm:$0xff] %v544
    %649 = vst [vmem:[#allocation2 + $0xf0] sm:$0xff] %v615
    %650 = vst [vmem:[#allocation2 + $0xf8] sm:$0xff] %v617
    %s651 = smul.u32 4, 16
    %s652 = smul.u32 %s651, 4
    %s653 = sshll.u32 %s652, 4
    %654 = dma.done [#allocation10], %s653
    %s655 = sshll.u32 %s652, 4
    %656 = dma.done %s170, %s655
    %s657 = sshll.u32 %s652, 4
    %658 = dma.done %s205, %s657
    %s659 = sshll.u32 %s652, 4
    %660 = dma.done %s240, %s659
    %s661 = smul.u32 0, 4
    %s662 = smul.addr %s661, 8
    %s663 = scalar_lea.vmem [#allocation2], %s662
    %v664 = vld [vmem:[%s663] sm:$0xff]
    %v665 = vld [vmem:[%s663 + $0x8] sm:$0xff]
    %v666 = vld [vmem:[%s663 + $0x10] sm:$0xff]
    %v667 = vld [vmem:[%s663 + $0x18] sm:$0xff]
    %v668 = vld [vmem:[#allocation13] sm:$0xff]
    %v669 = vld [vmem:[#allocation13 + $0x8] sm:$0xff]
    %v670 = vld [vmem:[#allocation13 + $0x10] sm:$0xff]
    %v671 = vld [vmem:[#allocation13 + $0x18] sm:$0xff]
    %v672 = vld [vmem:[#allocation13 + $0x20] sm:$0xff]
    %v673 = vld [vmem:[#allocation13 + $0x28] sm:$0xff]
    %v674 = vld [vmem:[#allocation13 + $0x30] sm:$0xff]
    %v675 = vld [vmem:[#allocation13 + $0x38] sm:$0xff]
    %v676 = vld [vmem:[#allocation13 + $0x40] sm:$0xff]
    %v677 = vld [vmem:[#allocation13 + $0x48] sm:$0xff]
    %v678 = vld [vmem:[#allocation13 + $0x50] sm:$0xff]
    %v679 = vld [vmem:[#allocation13 + $0x58] sm:$0xff]
    %v680 = vld [vmem:[#allocation13 + $0x60] sm:$0xff]
    %v681 = vld [vmem:[#allocation13 + $0x68] sm:$0xff]
    %v682 = vld [vmem:[#allocation13 + $0x70] sm:$0xff]
    %v683 = vld [vmem:[#allocation13 + $0x78] sm:$0xff]
    %v684 = vld [vmem:[#allocation13 + $0x80] sm:$0xff]
    %v685 = vld [vmem:[#allocation13 + $0x88] sm:$0xff]
    %v686 = vld [vmem:[#allocation13 + $0x90] sm:$0xff]
    %v687 = vld [vmem:[#allocation13 + $0x98] sm:$0xff]
    %v688 = vld [vmem:[#allocation13 + $0xa0] sm:$0xff]
    %v689 = vld [vmem:[#allocation13 + $0xa8] sm:$0xff]
    %v690 = vld [vmem:[#allocation13 + $0xb0] sm:$0xff]
    %v691 = vld [vmem:[#allocation13 + $0xb8] sm:$0xff]
    %v692 = vld [vmem:[#allocation13 + $0xc0] sm:$0xff]
    %v693 = vld [vmem:[#allocation13 + $0xc8] sm:$0xff]
    %v694 = vld [vmem:[#allocation13 + $0xd0] sm:$0xff]
    %v695 = vld [vmem:[#allocation13 + $0xd8] sm:$0xff]
    %v696 = vld [vmem:[#allocation13 + $0xe0] sm:$0xff]
    %v697 = vld [vmem:[#allocation13 + $0xe8] sm:$0xff]
    %v698 = vld [vmem:[#allocation13 + $0xf0] sm:$0xff]
    %v699 = vld [vmem:[#allocation13 + $0xf8] sm:$0xff]
    %v732 = vunpack.c.l.b16 %v668
    %v733 = vunpack.c.h.b16 %v668
    %v734 = vunpack.c.l.b16 %v669
    %v735 = vunpack.c.h.b16 %v669
    %v736 = vunpack.c.l.b16 %v670
    %v737 = vunpack.c.h.b16 %v670
    %v738 = vunpack.c.l.b16 %v671
    %v739 = vunpack.c.h.b16 %v671
    %v740 = vunpack.c.l.b16 %v672
    %v741 = vunpack.c.h.b16 %v672
    %v742 = vunpack.c.l.b16 %v673
    %v743 = vunpack.c.h.b16 %v673
    %v744 = vunpack.c.l.b16 %v674
    %v745 = vunpack.c.h.b16 %v674
    %v746 = vunpack.c.l.b16 %v675
    %v747 = vunpack.c.h.b16 %v675
    %v748 = vunpack.c.l.b16 %v676
    %v749 = vunpack.c.h.b16 %v676
    %v750 = vunpack.c.l.b16 %v677
    %v751 = vunpack.c.h.b16 %v677
    %v752 = vunpack.c.l.b16 %v678
    %v753 = vunpack.c.h.b16 %v678
    %v754 = vunpack.c.l.b16 %v679
    %v755 = vunpack.c.h.b16 %v679
    %v756 = vunpack.c.l.b16 %v680
    %v757 = vunpack.c.h.b16 %v680
    %v758 = vunpack.c.l.b16 %v681
    %v759 = vunpack.c.h.b16 %v681
    %v760 = vunpack.c.l.b16 %v682
    %v761 = vunpack.c.h.b16 %v682
    %v762 = vunpack.c.l.b16 %v683
    %v763 = vunpack.c.h.b16 %v683
    %v764 = vunpack.c.l.b16 %v684
    %v765 = vunpack.c.h.b16 %v684
    %v766 = vunpack.c.l.b16 %v685
    %v767 = vunpack.c.h.b16 %v685
    %v768 = vunpack.c.l.b16 %v686
    %v769 = vunpack.c.h.b16 %v686
    %v770 = vunpack.c.l.b16 %v687
    %v771 = vunpack.c.h.b16 %v687
    %v772 = vunpack.c.l.b16 %v688
    %v773 = vunpack.c.h.b16 %v688
    %v774 = vunpack.c.l.b16 %v689
    %v775 = vunpack.c.h.b16 %v689
    %v776 = vunpack.c.l.b16 %v690
    %v777 = vunpack.c.h.b16 %v690
    %v778 = vunpack.c.l.b16 %v691
    %v779 = vunpack.c.h.b16 %v691
    %v780 = vunpack.c.l.b16 %v692
    %v781 = vunpack.c.h.b16 %v692
    %v782 = vunpack.c.l.b16 %v693
    %v783 = vunpack.c.h.b16 %v693
    %v784 = vunpack.c.l.b16 %v694
    %v785 = vunpack.c.h.b16 %v694
    %v786 = vunpack.c.l.b16 %v695
    %v787 = vunpack.c.h.b16 %v695
    %v788 = vunpack.c.l.b16 %v696
    %v789 = vunpack.c.h.b16 %v696
    %v790 = vunpack.c.l.b16 %v697
    %v791 = vunpack.c.h.b16 %v697
    %v792 = vunpack.c.l.b16 %v698
    %v793 = vunpack.c.h.b16 %v698
    %v794 = vunpack.c.l.b16 %v699
    %v795 = vunpack.c.h.b16 %v699
    %v796 = vpack.c.b16 %v736, %v732
    %v797 = vpack.c.b16 %v737, %v733
    %v798 = vpack.c.b16 %v738, %v734
    %v799 = vpack.c.b16 %v739, %v735
    %v800 = vpack.c.b16 %v744, %v740
    %v801 = vpack.c.b16 %v745, %v741
    %v802 = vpack.c.b16 %v746, %v742
    %v803 = vpack.c.b16 %v747, %v743
    %v804 = vpack.c.b16 %v752, %v748
    %v805 = vpack.c.b16 %v753, %v749
    %v806 = vpack.c.b16 %v754, %v750
    %v807 = vpack.c.b16 %v755, %v751
    %v808 = vpack.c.b16 %v760, %v756
    %v809 = vpack.c.b16 %v761, %v757
    %v810 = vpack.c.b16 %v762, %v758
    %v811 = vpack.c.b16 %v763, %v759
    %v812 = vpack.c.b16 %v768, %v764
    %v813 = vpack.c.b16 %v769, %v765
    %v814 = vpack.c.b16 %v770, %v766
    %v815 = vpack.c.b16 %v771, %v767
    %v816 = vpack.c.b16 %v776, %v772
    %v817 = vpack.c.b16 %v777, %v773
    %v818 = vpack.c.b16 %v778, %v774
    %v819 = vpack.c.b16 %v779, %v775
    %v820 = vpack.c.b16 %v784, %v780
    %v821 = vpack.c.b16 %v785, %v781
    %v822 = vpack.c.b16 %v786, %v782
    %v823 = vpack.c.b16 %v787, %v783
    %v824 = vpack.c.b16 %v792, %v788
    %v825 = vpack.c.b16 %v793, %v789
    %v826 = vpack.c.b16 %v794, %v790
    %v827 = vpack.c.b16 %v795, %v791
    %860 = vmatprep.subr.bf16.mxu0 %v797
    %861 = vmatpush1.bf16.msra.mxu0 %v796
    %862 = vmatprep.subr.bf16.mxu0 %v801
    %863 = vmatpush1.bf16.msra.mxu0 %v800
    %864 = vmatprep.subr.bf16.mxu0 %v805
    %865 = vmatpush1.bf16.msra.mxu0 %v804
    %866 = vmatprep.subr.bf16.mxu0 %v809
    %867 = vmatpush1.bf16.msra.mxu0 %v808
    %868 = vmatprep.subr.bf16.mxu0 %v813
    %869 = vmatpush1.bf16.msra.mxu0 %v812
    %870 = vmatprep.subr.bf16.mxu0 %v817
    %871 = vmatpush1.bf16.msra.mxu0 %v816
    %872 = vmatprep.subr.bf16.mxu0 %v821
    %873 = vmatpush1.bf16.msra.mxu0 %v820
    %874 = vmatprep.subr.bf16.mxu0 %v825
    %875 = vmatpush1.bf16.msra.mxu0 %v824
    %876 = vmatprep.subr.bf16.mxu0 0
    %877 = vmatpush1.bf16.msra.mxu0 0
    %878 = vmatprep.subr.bf16.mxu0 0
    %879 = vmatpush1.bf16.msra.mxu0 0
    %880 = vmatprep.subr.bf16.mxu0 0
    %881 = vmatpush1.bf16.msra.mxu0 0
    %882 = vmatprep.subr.bf16.mxu0 0
    %883 = vmatpush1.bf16.msra.mxu0 0
    %884 = vmatprep.subr.bf16.mxu0 0
    %885 = vmatpush1.bf16.msra.mxu0 0
    %886 = vmatprep.subr.bf16.mxu0 0
    %887 = vmatpush1.bf16.msra.mxu0 0
    %888 = vmatprep.subr.bf16.mxu0 0
    %889 = vmatpush1.bf16.msra.mxu0 0
    %890 = vmatprep.subr.bf16.mxu0 0
    %891 = vmatpush1.bf16.msra.mxu0 0
    %892 = vmatprep.mubr.bf16.mxu0 0
    %893 = vmatmul.mubr.bf16.gmra.mrb[0].mxu0 0
    %v894 = vpop.f32.mrb[0].mxu0
    %v895 = vadd.f32 0.0, %v894
    %v896 = vpop.f32.mrb[0].mxu0
    %v897 = vadd.f32 0.0, %v896
    %v898 = vpop.f32.mrb[0].mxu0
    %v899 = vpop.f32.mrb[0].mxu0
    %900 = vdwg.mxu0
    %901 = vmatprep.subr.bf16.mxu0 %v799
    %902 = vmatpush1.bf16.msra.mxu0 %v798
    %903 = vmatprep.subr.bf16.mxu0 %v803
    %904 = vmatpush1.bf16.msra.mxu0 %v802
    %905 = vmatprep.subr.bf16.mxu0 %v807
    %906 = vmatpush1.bf16.msra.mxu0 %v806
    %907 = vmatprep.subr.bf16.mxu0 %v811
    %908 = vmatpush1.bf16.msra.mxu0 %v810
    %909 = vmatprep.subr.bf16.mxu0 %v815
    %910 = vmatpush1.bf16.msra.mxu0 %v814
    %911 = vmatprep.subr.bf16.mxu0 %v819
    %912 = vmatpush1.bf16.msra.mxu0 %v818
    %913 = vmatprep.subr.bf16.mxu0 %v823
    %914 = vmatpush1.bf16.msra.mxu0 %v822
    %915 = vmatprep.subr.bf16.mxu0 %v827
    %916 = vmatpush1.bf16.msra.mxu0 %v826
    %917 = vmatprep.subr.bf16.mxu0 0
    %918 = vmatpush1.bf16.msra.mxu0 0
    %919 = vmatprep.subr.bf16.mxu0 0
    %920 = vmatpush1.bf16.msra.mxu0 0
    %921 = vmatprep.subr.bf16.mxu0 0
    %922 = vmatpush1.bf16.msra.mxu0 0
    %923 = vmatprep.subr.bf16.mxu0 0
    %924 = vmatpush1.bf16.msra.mxu0 0
    %925 = vmatprep.subr.bf16.mxu0 0
    %926 = vmatpush1.bf16.msra.mxu0 0
    %927 = vmatprep.subr.bf16.mxu0 0
    %928 = vmatpush1.bf16.msra.mxu0 0
    %929 = vmatprep.subr.bf16.mxu0 0
    %930 = vmatpush1.bf16.msra.mxu0 0
    %931 = vmatprep.subr.bf16.mxu0 0
    %932 = vmatpush1.bf16.msra.mxu0 0
    %933 = vmatprep.mubr.bf16.mxu0 0
    %934 = vmatmul.mubr.bf16.gmra.mrb[0].mxu0 0
    %v935 = vpop.f32.mrb[0].mxu0
    %v936 = vadd.f32 0.0, %v935
    %v937 = vpop.f32.mrb[0].mxu0
    %v938 = vadd.f32 0.0, %v937
    %v939 = vpop.f32.mrb[0].mxu0
    %v940 = vpop.f32.mrb[0].mxu0
    %941 = vdwg.mxu0
    %v942 = vadd.f32 %v664, %v895
    %v943 = vadd.f32 %v665, %v897
    %v944 = vadd.f32 %v666, %v936
    %v945 = vadd.f32 %v667, %v938
    %v946 = vmul.f32 %v942, 0.5
    %v947 = vmul.f32 %v943, 0.5
    %v948 = vmul.f32 %v944, 0.5
    %v949 = vtanh.pop %v946
    %v950 = vtanh.pop %v947
    %v951 = vtanh.pop %v948
    %v952 = vmul.f32 %v949, 0.5
    %v953 = vmul.f32 %v950, 0.5
    %v954 = vmul.f32 %v951, 0.5
    %v955 = vadd.f32 %v952, 0.5
    %v956 = vadd.f32 %v953, 0.5
    %v957 = vadd.f32 %v954, 0.5
    %v958 = vtanh.pop %v945
    %v959 = vmul.f32 %v956, 0.0
    %v960 = vmul.f32 %v955, %v958
    %v961 = vadd.f32 %v959, %v960
    %v962 = vtanh.pop %v961
    %v963 = vmul.f32 %v957, %v962
    %v964 = vpack.c.bf16 %v963, %v963
    %v965 = vld [vmem:[#allocation3] sm:$0xff]
    %v966 = vld [vmem:[#allocation3 + $0x8] sm:$0xff]
    %v967 = vld [vmem:[#allocation3 + $0x10] sm:$0xff]
    %v968 = vld [vmem:[#allocation3 + $0x18] sm:$0xff]
    %v969 = vld [vmem:[#allocation3 + $0x20] sm:$0xff]
    %v970 = vld [vmem:[#allocation3 + $0x28] sm:$0xff]
    %v971 = vld [vmem:[#allocation3 + $0x30] sm:$0xff]
    %v972 = vld [vmem:[#allocation3 + $0x38] sm:$0xff]
    %v973 = vld [vmem:[#allocation3 + $0x40] sm:$0xff]
    %v974 = vld [vmem:[#allocation3 + $0x48] sm:$0xff]
    %v975 = vld [vmem:[#allocation3 + $0x50] sm:$0xff]
    %v976 = vld [vmem:[#allocation3 + $0x58] sm:$0xff]
    %v977 = vld [vmem:[#allocation3 + $0x60] sm:$0xff]
    %v978 = vld [vmem:[#allocation3 + $0x68] sm:$0xff]
    %v979 = vld [vmem:[#allocation3 + $0x70] sm:$0xff]
    %v980 = vld [vmem:[#allocation3 + $0x78] sm:$0xff]
    %v981 = vld [vmem:[#allocation3 + $0x80] sm:$0xff]
    %v982 = vld [vmem:[#allocation3 + $0x88] sm:$0xff]
    %v983 = vld [vmem:[#allocation3 + $0x90] sm:$0xff]
    %v984 = vld [vmem:[#allocation3 + $0x98] sm:$0xff]
    %v985 = vld [vmem:[#allocation3 + $0xa0] sm:$0xff]
    %v986 = vld [vmem:[#allocation3 + $0xa8] sm:$0xff]
    %v987 = vld [vmem:[#allocation3 + $0xb0] sm:$0xff]
    %v988 = vld [vmem:[#allocation3 + $0xb8] sm:$0xff]
    %v989 = vld [vmem:[#allocation3 + $0xc0] sm:$0xff]
    %v990 = vld [vmem:[#allocation3 + $0xc8] sm:$0xff]
    %v991 = vld [vmem:[#allocation3 + $0xd0] sm:$0xff]
    %v992 = vld [vmem:[#allocation3 + $0xd8] sm:$0xff]
    %v993 = vld [vmem:[#allocation3 + $0xe0] sm:$0xff]
    %v994 = vld [vmem:[#allocation3 + $0xe8] sm:$0xff]
    %v995 = vld [vmem:[#allocation3 + $0xf0] sm:$0xff]
    %v996 = vld [vmem:[#allocation3 + $0xf8] sm:$0xff]
    %v997 = vld [vmem:[#allocation4] sm:$0xff]
    %v998 = vld [vmem:[#allocation4 + $0x8] sm:$0xff]
    %v999 = vld [vmem:[#allocation4 + $0x10] sm:$0xff]
    %v1000 = vld [vmem:[#allocation4 + $0x18] sm:$0xff]
    %v1001 = vld [vmem:[#allocation4 + $0x20] sm:$0xff]
    %v1002 = vld [vmem:[#allocation4 + $0x28] sm:$0xff]
    %v1003 = vld [vmem:[#allocation4 + $0x30] sm:$0xff]
    %v1004 = vld [vmem:[#allocation4 + $0x38] sm:$0xff]
    %v1005 = vld [vmem:[#allocation4 + $0x40] sm:$0xff]
    %v1006 = vld [vmem:[#allocation4 + $0x48] sm:$0xff]
    %v1007 = vld [vmem:[#allocation4 + $0x50] sm:$0xff]
    %v1008 = vld [vmem:[#allocation4 + $0x58] sm:$0xff]
    %v1009 = vld [vmem:[#allocation4 + $0x60] sm:$0xff]
    %v1010 = vld [vmem:[#allocation4 + $0x68] sm:$0xff]
    %v1011 = vld [vmem:[#allocation4 + $0x70] sm:$0xff]
    %v1012 = vld [vmem:[#allocation4 + $0x78] sm:$0xff]
    %v1013 = vld [vmem:[#allocation4 + $0x80] sm:$0xff]
    %v1014 = vld [vmem:[#allocation4 + $0x88] sm:$0xff]
    %v1015 = vld [vmem:[#allocation4 + $0x90] sm:$0xff]
    %v1016 = vld [vmem:[#allocation4 + $0x98] sm:$0xff]
    %v1017 = vld [vmem:[#allocation4 + $0xa0] sm:$0xff]
    %v1018 = vld [vmem:[#allocation4 + $0xa8] sm:$0xff]
    %v1019 = vld [vmem:[#allocation4 + $0xb0] sm:$0xff]
    %v1020 = vld [vmem:[#allocation4 + $0xb8] sm:$0xff]
    %v1021 = vld [vmem:[#allocation4 + $0xc0] sm:$0xff]
    %v1022 = vld [vmem:[#allocation4 + $0xc8] sm:$0xff]
    %v1023 = vld [vmem:[#allocation4 + $0xd0] sm:$0xff]
    %v1024 = vld [vmem:[#allocation4 + $0xd8] sm:$0xff]
    %v1025 = vld [vmem:[#allocation4 + $0xe0] sm:$0xff]
    %v1026 = vld [vmem:[#allocation4 + $0xe8] sm:$0xff]
    %v1027 = vld [vmem:[#allocation4 + $0xf0] sm:$0xff]
    %v1028 = vld [vmem:[#allocation4 + $0xf8] sm:$0xff]
    %1029 = vmatprep.subr.bf16.mxu0 %v998
    %1030 = vmatpush1.bf16.msra.mxu0 %v997
    %1031 = vmatprep.subr.bf16.mxu0 %v1002
    %1032 = vmatpush1.bf16.msra.mxu0 %v1001
    %1033 = vmatprep.subr.bf16.mxu0 %v1006
    %1034 = vmatpush1.bf16.msra.mxu0 %v1005
    %1035 = vmatprep.subr.bf16.mxu0 %v1010
    %1036 = vmatpush1.bf16.msra.mxu0 %v1009
    %1037 = vmatprep.subr.bf16.mxu0 %v1014
    %1038 = vmatpush1.bf16.msra.mxu0 %v1013
    %1039 = vmatprep.subr.bf16.mxu0 %v1018
    %1040 = vmatpush1.bf16.msra.mxu0 %v1017
    %1041 = vmatprep.subr.bf16.mxu0 %v1022
    %1042 = vmatpush1.bf16.msra.mxu0 %v1021
    %1043 = vmatprep.subr.bf16.mxu0 %v1026
    %1044 = vmatpush1.bf16.msra.mxu0 %v1025
    %1045 = vmatprep.subr.bf16.mxu0 0
    %1046 = vmatpush1.bf16.msra.mxu0 0
    %1047 = vmatprep.subr.bf16.mxu0 0
    %1048 = vmatpush1.bf16.msra.mxu0 0
    %1049 = vmatprep.subr.bf16.mxu0 0
    %1050 = vmatpush1.bf16.msra.mxu0 0
    %1051 = vmatprep.subr.bf16.mxu0 0
    %1052 = vmatpush1.bf16.msra.mxu0 0
    %1053 = vmatprep.subr.bf16.mxu0 0
    %1054 = vmatpush1.bf16.msra.mxu0 0
    %1055 = vmatprep.subr.bf16.mxu0 0
    %1056 = vmatpush1.bf16.msra.mxu0 0
    %1057 = vmatprep.subr.bf16.mxu0 0
    %1058 = vmatpush1.bf16.msra.mxu0 0
    %1059 = vmatprep.subr.bf16.mxu0 0
    %1060 = vmatpush1.bf16.msra.mxu0 0
    %1061 = vmatprep.mubr.bf16.mxu0 0
    %1062 = vmatmul.mubr.bf16.gmra.mrb[0].mxu0 0
    %v1063 = vpop.f32.mrb[0].mxu0
    %v1064 = vadd.f32 0.0, %v1063
    %v1065 = vpop.f32.mrb[0].mxu0
    %v1066 = vadd.f32 0.0, %v1065
    %v1067 = vpop.f32.mrb[0].mxu0
    %v1068 = vpop.f32.mrb[0].mxu0
    %1069 = vdwg.mxu0
    %1070 = vmatprep.subr.bf16.mxu0 %v1000
    %1071 = vmatpush1.bf16.msra.mxu0 %v999
    %1072 = vmatprep.subr.bf16.mxu0 %v1004
    %1073 = vmatpush1.bf16.msra.mxu0 %v1003
    %1074 = vmatprep.subr.bf16.mxu0 %v1008
    %1075 = vmatpush1.bf16.msra.mxu0 %v1007
    %1076 = vmatprep.subr.bf16.mxu0 %v1012
    %1077 = vmatpush1.bf16.msra.mxu0 %v1011
    %1078 = vmatprep.subr.bf16.mxu0 %v1016
    %1079 = vmatpush1.bf16.msra.mxu0 %v1015
    %1080 = vmatprep.subr.bf16.mxu0 %v1020
    %1081 = vmatpush1.bf16.msra.mxu0 %v1019
    %1082 = vmatprep.subr.bf16.mxu0 %v1024
    %1083 = vmatpush1.bf16.msra.mxu0 %v1023
    %1084 = vmatprep.subr.bf16.mxu0 %v1028
    %1085 = vmatpush1.bf16.msra.mxu0 %v1027
    %1086 = vmatprep.subr.bf16.mxu0 0
    %1087 = vmatpush1.bf16.msra.mxu0 0
    %1088 = vmatprep.subr.bf16.mxu0 0
    %1089 = vmatpush1.bf16.msra.mxu0 0
    %1090 = vmatprep.subr.bf16.mxu0 0
    %1091 = vmatpush1.bf16.msra.mxu0 0
    %1092 = vmatprep.subr.bf16.mxu0 0
    %1093 = vmatpush1.bf16.msra.mxu0 0
    %1094 = vmatprep.subr.bf16.mxu0 0
    %1095 = vmatpush1.bf16.msra.mxu0 0
    %1096 = vmatprep.subr.bf16.mxu0 0
    %1097 = vmatpush1.bf16.msra.mxu0 0
    %1098 = vmatprep.subr.bf16.mxu0 0
    %1099 = vmatpush1.bf16.msra.mxu0 0
    %1100 = vmatprep.subr.bf16.mxu0 0
    %1101 = vmatpush1.bf16.msra.mxu0 0
    %1102 = vmatprep.mubr.bf16.mxu0 0
    %1103 = vmatmul.mubr.bf16.gmra.mrb[0].mxu0 0
    %v1104 = vpop.f32.mrb[0].mxu0
    %v1105 = vadd.f32 0.0, %v1104
    %v1106 = vpop.f32.mrb[0].mxu0
    %v1107 = vadd.f32 0.0, %v1106
    %v1108 = vpop.f32.mrb[0].mxu0
    %v1109 = vpop.f32.mrb[0].mxu0
    %1110 = vdwg.mxu0
    %1111 = vmatprep.subr.bf16.mxu0 %v966
    %1112 = vmatpush1.bf16.msra.mxu0 %v965
    %1113 = vmatprep.subr.bf16.mxu0 %v970
    %1114 = vmatpush1.bf16.msra.mxu0 %v969
    %1115 = vmatprep.subr.bf16.mxu0 %v974
    %1116 = vmatpush1.bf16.msra.mxu0 %v973
    %1117 = vmatprep.subr.bf16.mxu0 %v978
    %1118 = vmatpush1.bf16.msra.mxu0 %v977
    %1119 = vmatprep.subr.bf16.mxu0 %v982
    %1120 = vmatpush1.bf16.msra.mxu0 %v981
    %1121 = vmatprep.subr.bf16.mxu0 %v986
    %1122 = vmatpush1.bf16.msra.mxu0 %v985
    %1123 = vmatprep.subr.bf16.mxu0 %v990
    %1124 = vmatpush1.bf16.msra.mxu0 %v989
    %1125 = vmatprep.subr.bf16.mxu0 %v994
    %1126 = vmatpush1.bf16.msra.mxu0 %v993
    %1127 = vmatprep.subr.bf16.mxu0 0
    %1128 = vmatpush1.bf16.msra.mxu0 0
    %1129 = vmatprep.subr.bf16.mxu0 0
    %1130 = vmatpush1.bf16.msra.mxu0 0
    %1131 = vmatprep.subr.bf16.mxu0 0
    %1132 = vmatpush1.bf16.msra.mxu0 0
    %1133 = vmatprep.subr.bf16.mxu0 0
    %1134 = vmatpush1.bf16.msra.mxu0 0
    %1135 = vmatprep.subr.bf16.mxu0 0
    %1136 = vmatpush1.bf16.msra.mxu0 0
    %1137 = vmatprep.subr.bf16.mxu0 0
    %1138 = vmatpush1.bf16.msra.mxu0 0
    %1139 = vmatprep.subr.bf16.mxu0 0
    %1140 = vmatpush1.bf16.msra.mxu0 0
    %1141 = vmatprep.subr.bf16.mxu0 0
    %1142 = vmatpush1.bf16.msra.mxu0 0
    %1143 = vmatprep.mubr.bf16.mxu0 0
    %1144 = vmatmul.mubr.bf16.gmra.mrb[0].mxu0 %v964
    %v1145 = vpop.f32.mrb[0].mxu0
    %v1146 = vadd.f32 %v1064, %v1145
    %v1147 = vpop.f32.mrb[0].mxu0
    %v1148 = vadd.f32 %v1066, %v1147
    %v1149 = vpop.f32.mrb[0].mxu0
    %v1150 = vpop.f32.mrb[0].mxu0
    %1151 = vdwg.mxu0
    %1152 = vmatprep.subr.bf16.mxu0 %v968
    %1153 = vmatpush1.bf16.msra.mxu0 %v967
    %1154 = vmatprep.subr.bf16.mxu0 %v972
    %1155 = vmatpush1.bf16.msra.mxu0 %v971
    %1156 = vmatprep.subr.bf16.mxu0 %v976
    %1157 = vmatpush1.bf16.msra.mxu0 %v975
    %1158 = vmatprep.subr.bf16.mxu0 %v980
    %1159 = vmatpush1.bf16.msra.mxu0 %v979
    %1160 = vmatprep.subr.bf16.mxu0 %v984
    %1161 = vmatpush1.bf16.msra.mxu0 %v983
    %1162 = vmatprep.subr.bf16.mxu0 %v988
    %1163 = vmatpush1.bf16.msra.mxu0 %v987
    %1164 = vmatprep.subr.bf16.mxu0 %v992
    %1165 = vmatpush1.bf16.msra.mxu0 %v991
    %1166 = vmatprep.subr.bf16.mxu0 %v996
    %1167 = vmatpush1.bf16.msra.mxu0 %v995
    %1168 = vmatprep.subr.bf16.mxu0 0
    %1169 = vmatpush1.bf16.msra.mxu0 0
    %1170 = vmatprep.subr.bf16.mxu0 0
    %1171 = vmatpush1.bf16.msra.mxu0 0
    %1172 = vmatprep.subr.bf16.mxu0 0
    %1173 = vmatpush1.bf16.msra.mxu0 0
    %1174 = vmatprep.subr.bf16.mxu0 0
    %1175 = vmatpush1.bf16.msra.mxu0 0
    %1176 = vmatprep.subr.bf16.mxu0 0
    %1177 = vmatpush1.bf16.msra.mxu0 0
    %1178 = vmatprep.subr.bf16.mxu0 0
    %1179 = vmatpush1.bf16.msra.mxu0 0
    %1180 = vmatprep.subr.bf16.mxu0 0
    %1181 = vmatpush1.bf16.msra.mxu0 0
    %1182 = vmatprep.subr.bf16.mxu0 0
    %1183 = vmatpush1.bf16.msra.mxu0 0
    %1184 = vmatprep.mubr.bf16.mxu0 0
    %1185 = vmatmul.mubr.bf16.gmra.mrb[0].mxu0 %v964
    %v1186 = vpop.f32.mrb[0].mxu0
    %v1187 = vadd.f32 %v1105, %v1186
    %v1188 = vpop.f32.mrb[0].mxu0
    %v1189 = vadd.f32 %v1107, %v1188
    %v1190 = vpop.f32.mrb[0].mxu0
    %v1191 = vpop.f32.mrb[0].mxu0
    %1192 = vdwg.mxu0
    %v1193 = vld [vmem:[#allocation16] sm:$0xff]
    %v1194 = vld [vmem:[#allocation16 + $0x8] sm:$0xff]
    %v1195 = vld [vmem:[#allocation16 + $0x10] sm:$0xff]
    %v1196 = vld [vmem:[#allocation16 + $0x18] sm:$0xff]
    %v1197 = vadd.f32 %v1146, %v1193
    %v1198 = vadd.f32 %v1148, %v1194
    %v1199 = vadd.f32 %v1187, %v1195
    %v1200 = vadd.f32 %v1189, %v1196
    %v1201 = vmul.f32 %v1197, 0.5
    %v1202 = vmul.f32 %v1198, 0.5
    %v1203 = vmul.f32 %v1199, 0.5
    %v1204 = vtanh.pop %v1201
    %v1205 = vtanh.pop %v1202
    %v1206 = vtanh.pop %v1203
    %v1207 = vmul.f32 %v1204, 0.5
    %v1208 = vmul.f32 %v1205, 0.5
    %v1209 = vmul.f32 %v1206, 0.5
    %v1210 = vadd.f32 %v1207, 0.5
    %v1211 = vadd.f32 %v1208, 0.5
    %v1212 = vadd.f32 %v1209, 0.5
    %v1213 = vtanh.pop %v1200
    %v1214 = vmul.f32 %v1211, 0.0
    %v1215 = vmul.f32 %v1210, %v1213
    %v1216 = vadd.f32 %v1214, %v1215
    %v1217 = vtanh.pop %v1216
    %v1218 = vmul.f32 %v1212, %v1217
    %v1219 = vpack.c.bf16 %v1218, %v1218
    %v1220 = vld [vmem:[#allocation5] sm:$0xff]
    %v1221 = vld [vmem:[#allocation5 + $0x8] sm:$0xff]
    %v1222 = vld [vmem:[#allocation5 + $0x10] sm:$0xff]
    %v1223 = vld [vmem:[#allocation5 + $0x18] sm:$0xff]
    %v1224 = vld [vmem:[#allocation5 + $0x20] sm:$0xff]
    %v1225 = vld [vmem:[#allocation5 + $0x28] sm:$0xff]
    %v1226 = vld [vmem:[#allocation5 + $0x30] sm:$0xff]
    %v1227 = vld [vmem:[#allocation5 + $0x38] sm:$0xff]
    %v1228 = vld [vmem:[#allocation5 + $0x40] sm:$0xff]
    %v1229 = vld [vmem:[#allocation5 + $0x48] sm:$0xff]
    %v1230 = vld [vmem:[#allocation5 + $0x50] sm:$0xff]
    %v1231 = vld [vmem:[#allocation5 + $0x58] sm:$0xff]
    %v1232 = vld [vmem:[#allocation5 + $0x60] sm:$0xff]
    %v1233 = vld [vmem:[#allocation5 + $0x68] sm:$0xff]
    %v1234 = vld [vmem:[#allocation5 + $0x70] sm:$0xff]
    %v1235 = vld [vmem:[#allocation5 + $0x78] sm:$0xff]
    %v1236 = vld [vmem:[#allocation5 + $0x80] sm:$0xff]
    %v1237 = vld [vmem:[#allocation5 + $0x88] sm:$0xff]
    %v1238 = vld [vmem:[#allocation5 + $0x90] sm:$0xff]
    %v1239 = vld [vmem:[#allocation5 + $0x98] sm:$0xff]
    %v1240 = vld [vmem:[#allocation5 + $0xa0] sm:$0xff]
    %v1241 = vld [vmem:[#allocation5 + $0xa8] sm:$0xff]
    %v1242 = vld [vmem:[#allocation5 + $0xb0] sm:$0xff]
    %v1243 = vld [vmem:[#allocation5 + $0xb8] sm:$0xff]
    %v1244 = vld [vmem:[#allocation5 + $0xc0] sm:$0xff]
    %v1245 = vld [vmem:[#allocation5 + $0xc8] sm:$0xff]
    %v1246 = vld [vmem:[#allocation5 + $0xd0] sm:$0xff]
    %v1247 = vld [vmem:[#allocation5 + $0xd8] sm:$0xff]
    %v1248 = vld [vmem:[#allocation5 + $0xe0] sm:$0xff]
    %v1249 = vld [vmem:[#allocation5 + $0xe8] sm:$0xff]
    %v1250 = vld [vmem:[#allocation5 + $0xf0] sm:$0xff]
    %v1251 = vld [vmem:[#allocation5 + $0xf8] sm:$0xff]
    %v1252 = vld [vmem:[#allocation6] sm:$0xff]
    %v1253 = vld [vmem:[#allocation6 + $0x8] sm:$0xff]
    %v1254 = vld [vmem:[#allocation6 + $0x10] sm:$0xff]
    %v1255 = vld [vmem:[#allocation6 + $0x18] sm:$0xff]
    %v1256 = vld [vmem:[#allocation6 + $0x20] sm:$0xff]
    %v1257 = vld [vmem:[#allocation6 + $0x28] sm:$0xff]
    %v1258 = vld [vmem:[#allocation6 + $0x30] sm:$0xff]
    %v1259 = vld [vmem:[#allocation6 + $0x38] sm:$0xff]
    %v1260 = vld [vmem:[#allocation6 + $0x40] sm:$0xff]
    %v1261 = vld [vmem:[#allocation6 + $0x48] sm:$0xff]
    %v1262 = vld [vmem:[#allocation6 + $0x50] sm:$0xff]
    %v1263 = vld [vmem:[#allocation6 + $0x58] sm:$0xff]
    %v1264 = vld [vmem:[#allocation6 + $0x60] sm:$0xff]
    %v1265 = vld [vmem:[#allocation6 + $0x68] sm:$0xff]
    %v1266 = vld [vmem:[#allocation6 + $0x70] sm:$0xff]
    %v1267 = vld [vmem:[#allocation6 + $0x78] sm:$0xff]
    %v1268 = vld [vmem:[#allocation6 + $0x80] sm:$0xff]
    %v1269 = vld [vmem:[#allocation6 + $0x88] sm:$0xff]
    %v1270 = vld [vmem:[#allocation6 + $0x90] sm:$0xff]
    %v1271 = vld [vmem:[#allocation6 + $0x98] sm:$0xff]
    %v1272 = vld [vmem:[#allocation6 + $0xa0] sm:$0xff]
    %v1273 = vld [vmem:[#allocation6 + $0xa8] sm:$0xff]
    %v1274 = vld [vmem:[#allocation6 + $0xb0] sm:$0xff]
    %v1275 = vld [vmem:[#allocation6 + $0xb8] sm:$0xff]
    %v1276 = vld [vmem:[#allocation6 + $0xc0] sm:$0xff]
    %v1277 = vld [vmem:[#allocation6 + $0xc8] sm:$0xff]
    %v1278 = vld [vmem:[#allocation6 + $0xd0] sm:$0xff]
    %v1279 = vld [vmem:[#allocation6 + $0xd8] sm:$0xff]
    %v1280 = vld [vmem:[#allocation6 + $0xe0] sm:$0xff]
    %v1281 = vld [vmem:[#allocation6 + $0xe8] sm:$0xff]
    %v1282 = vld [vmem:[#allocation6 + $0xf0] sm:$0xff]
    %v1283 = vld [vmem:[#allocation6 + $0xf8] sm:$0xff]
    %1284 = vmatprep.subr.bf16.mxu0 %v1253
    %1285 = vmatpush1.bf16.msra.mxu0 %v1252
    %1286 = vmatprep.subr.bf16.mxu0 %v1257
    %1287 = vmatpush1.bf16.msra.mxu0 %v1256
    %1288 = vmatprep.subr.bf16.mxu0 %v1261
    %1289 = vmatpush1.bf16.msra.mxu0 %v1260
    %1290 = vmatprep.subr.bf16.mxu0 %v1265
    %1291 = vmatpush1.bf16.msra.mxu0 %v1264
    %1292 = vmatprep.subr.bf16.mxu0 %v1269
    %1293 = vmatpush1.bf16.msra.mxu0 %v1268
    %1294 = vmatprep.subr.bf16.mxu0 %v1273
    %1295 = vmatpush1.bf16.msra.mxu0 %v1272
    %1296 = vmatprep.subr.bf16.mxu0 %v1277
    %1297 = vmatpush1.bf16.msra.mxu0 %v1276
    %1298 = vmatprep.subr.bf16.mxu0 %v1281
    %1299 = vmatpush1.bf16.msra.mxu0 %v1280
    %1300 = vmatprep.subr.bf16.mxu0 0
    %1301 = vmatpush1.bf16.msra.mxu0 0
    %1302 = vmatprep.subr.bf16.mxu0 0
    %1303 = vmatpush1.bf16.msra.mxu0 0
    %1304 = vmatprep.subr.bf16.mxu0 0
    %1305 = vmatpush1.bf16.msra.mxu0 0
    %1306 = vmatprep.subr.bf16.mxu0 0
    %1307 = vmatpush1.bf16.msra.mxu0 0
    %1308 = vmatprep.subr.bf16.mxu0 0
    %1309 = vmatpush1.bf16.msra.mxu0 0
    %1310 = vmatprep.subr.bf16.mxu0 0
    %1311 = vmatpush1.bf16.msra.mxu0 0
    %1312 = vmatprep.subr.bf16.mxu0 0
    %1313 = vmatpush1.bf16.msra.mxu0 0
    %1314 = vmatprep.subr.bf16.mxu0 0
    %1315 = vmatpush1.bf16.msra.mxu0 0
    %1316 = vmatprep.mubr.bf16.mxu0 0
    %1317 = vmatmul.mubr.bf16.gmra.mrb[0].mxu0 0
    %v1318 = vpop.f32.mrb[0].mxu0
    %v1319 = vadd.f32 0.0, %v1318
    %v1320 = vpop.f32.mrb[0].mxu0
    %v1321 = vadd.f32 0.0, %v1320
    %v1322 = vpop.f32.mrb[0].mxu0
    %v1323 = vpop.f32.mrb[0].mxu0
    %1324 = vdwg.mxu0
    %1325 = vmatprep.subr.bf16.mxu0 %v1255
    %1326 = vmatpush1.bf16.msra.mxu0 %v1254
    %1327 = vmatprep.subr.bf16.mxu0 %v1259
    %1328 = vmatpush1.bf16.msra.mxu0 %v1258
    %1329 = vmatprep.subr.bf16.mxu0 %v1263
    %1330 = vmatpush1.bf16.msra.mxu0 %v1262
    %1331 = vmatprep.subr.bf16.mxu0 %v1267
    %1332 = vmatpush1.bf16.msra.mxu0 %v1266
    %1333 = vmatprep.subr.bf16.mxu0 %v1271
    %1334 = vmatpush1.bf16.msra.mxu0 %v1270
    %1335 = vmatprep.subr.bf16.mxu0 %v1275
    %1336 = vmatpush1.bf16.msra.mxu0 %v1274
    %1337 = vmatprep.subr.bf16.mxu0 %v1279
    %1338 = vmatpush1.bf16.msra.mxu0 %v1278
    %1339 = vmatprep.subr.bf16.mxu0 %v1283
    %1340 = vmatpush1.bf16.msra.mxu0 %v1282
    %1341 = vmatprep.subr.bf16.mxu0 0
    %1342 = vmatpush1.bf16.msra.mxu0 0
    %1343 = vmatprep.subr.bf16.mxu0 0
    %1344 = vmatpush1.bf16.msra.mxu0 0
    %1345 = vmatprep.subr.bf16.mxu0 0
    %1346 = vmatpush1.bf16.msra.mxu0 0
    %1347 = vmatprep.subr.bf16.mxu0 0
    %1348 = vmatpush1.bf16.msra.mxu0 0
    %1349 = vmatprep.subr.bf16.mxu0 0
    %1350 = vmatpush1.bf16.msra.mxu0 0
    %1351 = vmatprep.subr.bf16.mxu0 0
    %1352 = vmatpush1.bf16.msra.mxu0 0
    %1353 = vmatprep.subr.bf16.mxu0 0
    %1354 = vmatpush1.bf16.msra.mxu0 0
    %1355 = vmatprep.subr.bf16.mxu0 0
    %1356 = vmatpush1.bf16.msra.mxu0 0
    %1357 = vmatprep.mubr.bf16.mxu0 0
    %1358 = vmatmul.mubr.bf16.gmra.mrb[0].mxu0 0
    %v1359 = vpop.f32.mrb[0].mxu0
    %v1360 = vadd.f32 0.0, %v1359
    %v1361 = vpop.f32.mrb[0].mxu0
    %v1362 = vadd.f32 0.0, %v1361
    %v1363 = vpop.f32.mrb[0].mxu0
    %v1364 = vpop.f32.mrb[0].mxu0
    %1365 = vdwg.mxu0
    %1366 = vmatprep.subr.bf16.mxu0 %v1221
    %1367 = vmatpush1.bf16.msra.mxu0 %v1220
    %1368 = vmatprep.subr.bf16.mxu0 %v1225
    %1369 = vmatpush1.bf16.msra.mxu0 %v1224
    %1370 = vmatprep.subr.bf16.mxu0 %v1229
    %1371 = vmatpush1.bf16.msra.mxu0 %v1228
    %1372 = vmatprep.subr.bf16.mxu0 %v1233
    %1373 = vmatpush1.bf16.msra.mxu0 %v1232
    %1374 = vmatprep.subr.bf16.mxu0 %v1237
    %1375 = vmatpush1.bf16.msra.mxu0 %v1236
    %1376 = vmatprep.subr.bf16.mxu0 %v1241
    %1377 = vmatpush1.bf16.msra.mxu0 %v1240
    %1378 = vmatprep.subr.bf16.mxu0 %v1245
    %1379 = vmatpush1.bf16.msra.mxu0 %v1244
    %1380 = vmatprep.subr.bf16.mxu0 %v1249
    %1381 = vmatpush1.bf16.msra.mxu0 %v1248
    %1382 = vmatprep.subr.bf16.mxu0 0
    %1383 = vmatpush1.bf16.msra.mxu0 0
    %1384 = vmatprep.subr.bf16.mxu0 0
    %1385 = vmatpush1.bf16.msra.mxu0 0
    %1386 = vmatprep.subr.bf16.mxu0 0
    %1387 = vmatpush1.bf16.msra.mxu0 0
    %1388 = vmatprep.subr.bf16.mxu0 0
    %1389 = vmatpush1.bf16.msra.mxu0 0
    %1390 = vmatprep.subr.bf16.mxu0 0
    %1391 = vmatpush1.bf16.msra.mxu0 0
    %1392 = vmatprep.subr.bf16.mxu0 0
    %1393 = vmatpush1.bf16.msra.mxu0 0
    %1394 = vmatprep.subr.bf16.mxu0 0
    %1395 = vmatpush1.bf16.msra.mxu0 0
    %1396 = vmatprep.subr.bf16.mxu0 0
    %1397 = vmatpush1.bf16.msra.mxu0 0
    %1398 = vmatprep.mubr.bf16.mxu0 0
    %1399 = vmatmul.mubr.bf16.gmra.mrb[0].mxu0 %v1219
    %v1400 = vpop.f32.mrb[0].mxu0
    %v1401 = vadd.f32 %v1319, %v1400
    %v1402 = vpop.f32.mrb[0].mxu0
    %v1403 = vadd.f32 %v1321, %v1402
    %v1404 = vpop.f32.mrb[0].mxu0
    %v1405 = vpop.f32.mrb[0].mxu0
    %1406 = vdwg.mxu0
    %1407 = vmatprep.subr.bf16.mxu0 %v1223
    %1408 = vmatpush1.bf16.msra.mxu0 %v1222
    %1409 = vmatprep.subr.bf16.mxu0 %v1227
    %1410 = vmatpush1.bf16.msra.mxu0 %v1226
    %1411 = vmatprep.subr.bf16.mxu0 %v1231
    %1412 = vmatpush1.bf16.msra.mxu0 %v1230
    %1413 = vmatprep.subr.bf16.mxu0 %v1235
    %1414 = vmatpush1.bf16.msra.mxu0 %v1234
    %1415 = vmatprep.subr.bf16.mxu0 %v1239
    %1416 = vmatpush1.bf16.msra.mxu0 %v1238
    %1417 = vmatprep.subr.bf16.mxu0 %v1243
    %1418 = vmatpush1.bf16.msra.mxu0 %v1242
    %1419 = vmatprep.subr.bf16.mxu0 %v1247
    %1420 = vmatpush1.bf16.msra.mxu0 %v1246
    %1421 = vmatprep.subr.bf16.mxu0 %v1251
    %1422 = vmatpush1.bf16.msra.mxu0 %v1250
    %1423 = vmatprep.subr.bf16.mxu0 0
    %1424 = vmatpush1.bf16.msra.mxu0 0
    %1425 = vmatprep.subr.bf16.mxu0 0
    %1426 = vmatpush1.bf16.msra.mxu0 0
    %1427 = vmatprep.subr.bf16.mxu0 0
    %1428 = vmatpush1.bf16.msra.mxu0 0
    %1429 = vmatprep.subr.bf16.mxu0 0
    %1430 = vmatpush1.bf16.msra.mxu0 0
    %1431 = vmatprep.subr.bf16.mxu0 0
    %1432 = vmatpush1.bf16.msra.mxu0 0
    %1433 = vmatprep.subr.bf16.mxu0 0
    %1434 = vmatpush1.bf16.msra.mxu0 0
    %1435 = vmatprep.subr.bf16.mxu0 0
    %1436 = vmatpush1.bf16.msra.mxu0 0
    %1437 = vmatprep.subr.bf16.mxu0 0
    %1438 = vmatpush1.bf16.msra.mxu0 0
    %1439 = vmatprep.mubr.bf16.mxu0 0
    %1440 = vmatmul.mubr.bf16.gmra.mrb[0].mxu0 %v1219
    %v1441 = vpop.f32.mrb[0].mxu0
    %v1442 = vadd.f32 %v1360, %v1441
    %v1443 = vpop.f32.mrb[0].mxu0
    %v1444 = vadd.f32 %v1362, %v1443
    %v1445 = vpop.f32.mrb[0].mxu0
    %v1446 = vpop.f32.mrb[0].mxu0
    %1447 = vdwg.mxu0
    %v1448 = vld [vmem:[#allocation18] sm:$0xff]
    %v1449 = vld [vmem:[#allocation18 + $0x8] sm:$0xff]
    %v1450 = vld [vmem:[#allocation18 + $0x10] sm:$0xff]
    %v1451 = vld [vmem:[#allocation18 + $0x18] sm:$0xff]
    %v1452 = vadd.f32 %v1401, %v1448
    %v1453 = vadd.f32 %v1403, %v1449
    %v1454 = vadd.f32 %v1442, %v1450
    %v1455 = vadd.f32 %v1444, %v1451
    %v1456 = vmul.f32 %v1452, 0.5
    %v1457 = vmul.f32 %v1453, 0.5
    %v1458 = vmul.f32 %v1454, 0.5
    %v1459 = vtanh.pop %v1456
    %v1460 = vtanh.pop %v1457
    %v1461 = vtanh.pop %v1458
    %v1462 = vmul.f32 %v1459, 0.5
    %v1463 = vmul.f32 %v1460, 0.5
    %v1464 = vmul.f32 %v1461, 0.5
    %v1465 = vadd.f32 %v1462, 0.5
    %v1466 = vadd.f32 %v1463, 0.5
    %v1467 = vadd.f32 %v1464, 0.5
    %v1468 = vtanh.pop %v1455
    %v1469 = vmul.f32 %v1466, 0.0
    %v1470 = vmul.f32 %v1465, %v1468
    %v1471 = vadd.f32 %v1469, %v1470
    %v1472 = vtanh.pop %v1471
    %v1473 = vmul.f32 %v1467, %v1472
    %s1474 = smul.u32 1, 4
    %s1475 = smul.addr %s1474, 8
    %s1476 = scalar_lea.vmem [#allocation2], %s1475
    %v1477 = vld [vmem:[%s1476] sm:$0xff]
    %v1478 = vld [vmem:[%s1476 + $0x8] sm:$0xff]
    %v1479 = vld [vmem:[%s1476 + $0x10] sm:$0xff]
    %v1480 = vld [vmem:[%s1476 + $0x18] sm:$0xff]
    %1481 = vmatprep.subr.bf16.mxu0 %v797
    %1482 = vmatpush1.bf16.msra.mxu0 %v796
    %1483 = vmatprep.subr.bf16.mxu0 %v801
    %1484 = vmatpush1.bf16.msra.mxu0 %v800
    %1485 = vmatprep.subr.bf16.mxu0 %v805
    %1486 = vmatpush1.bf16.msra.mxu0 %v804
    %1487 = vmatprep.subr.bf16.mxu0 %v809
    %1488 = vmatpush1.bf16.msra.mxu0 %v808
    %1489 = vmatprep.subr.bf16.mxu0 %v813
    %1490 = vmatpush1.bf16.msra.mxu0 %v812
    %1491 = vmatprep.subr.bf16.mxu0 %v817
    %1492 = vmatpush1.bf16.msra.mxu0 %v816
    %1493 = vmatprep.subr.bf16.mxu0 %v821
    %1494 = vmatpush1.bf16.msra.mxu0 %v820
    %1495 = vmatprep.subr.bf16.mxu0 %v825
    %1496 = vmatpush1.bf16.msra.mxu0 %v824
    %1497 = vmatprep.subr.bf16.mxu0 0
    %1498 = vmatpush1.bf16.msra.mxu0 0
    %1499 = vmatprep.subr.bf16.mxu0 0
    %1500 = vmatpush1.bf16.msra.mxu0 0
    %1501 = vmatprep.subr.bf16.mxu0 0
    %1502 = vmatpush1.bf16.msra.mxu0 0
    %1503 = vmatprep.subr.bf16.mxu0 0
    %1504 = vmatpush1.bf16.msra.mxu0 0
    %1505 = vmatprep.subr.bf16.mxu0 0
    %1506 = vmatpush1.bf16.msra.mxu0 0
    %1507 = vmatprep.subr.bf16.mxu0 0
    %1508 = vmatpush1.bf16.msra.mxu0 0
    %1509 = vmatprep.subr.bf16.mxu0 0
    %1510 = vmatpush1.bf16.msra.mxu0 0
    %1511 = vmatprep.subr.bf16.mxu0 0
    %1512 = vmatpush1.bf16.msra.mxu0 0
    %1513 = vmatprep.mubr.bf16.mxu0 0
    %1514 = vmatmul.mubr.bf16.gmra.mrb[0].mxu0 %v964
    %v1515 = vpop.f32.mrb[0].mxu0
    %v1516 = vadd.f32 0.0, %v1515
    %v1517 = vpop.f32.mrb[0].mxu0
    %v1518 = vadd.f32 0.0, %v1517
    %v1519 = vpop.f32.mrb[0].mxu0
    %v1520 = vpop.f32.mrb[0].mxu0
    %1521 = vdwg.mxu0
    %1522 = vmatprep.subr.bf16.mxu0 %v799
    %1523 = vmatpush1.bf16.msra.mxu0 %v798
    %1524 = vmatprep.subr.bf16.mxu0 %v803
    %1525 = vmatpush1.bf16.msra.mxu0 %v802
    %1526 = vmatprep.subr.bf16.mxu0 %v807
    %1527 = vmatpush1.bf16.msra.mxu0 %v806
    %1528 = vmatprep.subr.bf16.mxu0 %v811
    %1529 = vmatpush1.bf16.msra.mxu0 %v810
    %1530 = vmatprep.subr.bf16.mxu0 %v815
    %1531 = vmatpush1.bf16.msra.mxu0 %v814
    %1532 = vmatprep.subr.bf16.mxu0 %v819
    %1533 = vmatpush1.bf16.msra.mxu0 %v818
    %1534 = vmatprep.subr.bf16.mxu0 %v823
    %1535 = vmatpush1.bf16.msra.mxu0 %v822
    %1536 = vmatprep.subr.bf16.mxu0 %v827
    %1537 = vmatpush1.bf16.msra.mxu0 %v826
    %1538 = vmatprep.subr.bf16.mxu0 0
    %1539 = vmatpush1.bf16.msra.mxu0 0
    %1540 = vmatprep.subr.bf16.mxu0 0
    %1541 = vmatpush1.bf16.msra.mxu0 0
    %1542 = vmatprep.subr.bf16.mxu0 0
    %1543 = vmatpush1.bf16.msra.mxu0 0
    %1544 = vmatprep.subr.bf16.mxu0 0
    %1545 = vmatpush1.bf16.msra.mxu0 0
    %1546 = vmatprep.subr.bf16.mxu0 0
    %1547 = vmatpush1.bf16.msra.mxu0 0
    %1548 = vmatprep.subr.bf16.mxu0 0
    %1549 = vmatpush1.bf16.msra.mxu0 0
    %1550 = vmatprep.subr.bf16.mxu0 0
    %1551 = vmatpush1.bf16.msra.mxu0 0
    %1552 = vmatprep.subr.bf16.mxu0 0
    %1553 = vmatpush1.bf16.msra.mxu0 0
    %1554 = vmatprep.mubr.bf16.mxu0 0
    %1555 = vmatmul.mubr.bf16.gmra.mrb[0].mxu0 %v964
    %v1556 = vpop.f32.mrb[0].mxu0
    %v1557 = vadd.f32 0.0, %v1556
    %v1558 = vpop.f32.mrb[0].mxu0
    %v1559 = vadd.f32 0.0, %v1558
    %v1560 = vpop.f32.mrb[0].mxu0
    %v1561 = vpop.f32.mrb[0].mxu0
    %1562 = vdwg.mxu0
    %v1563 = vadd.f32 %v1477, %v1516
    %v1564 = vadd.f32 %v1478, %v1518
    %v1565 = vadd.f32 %v1479, %v1557
    %v1566 = vadd.f32 %v1480, %v1559
    %v1567 = vmul.f32 %v1563, 0.5
    %v1568 = vmul.f32 %v1564, 0.5
    %v1569 = vmul.f32 %v1565, 0.5
    %v1570 = vtanh.pop %v1567
    %v1571 = vtanh.pop %v1568
    %v1572 = vtanh.pop %v1569
    %v1573 = vmul.f32 %v1570, 0.5
    %v1574 = vmul.f32 %v1571, 0.5
    %v1575 = vmul.f32 %v1572, 0.5
    %v1576 = vadd.f32 %v1573, 0.5
    %v1577 = vadd.f32 %v1574, 0.5
    %v1578 = vadd.f32 %v1575, 0.5
    %v1579 = vtanh.pop %v1566
    %v1580 = vmul.f32 %v1577, %v961
    %v1581 = vmul.f32 %v1576, %v1579
    %v1582 = vadd.f32 %v1580, %v1581
    %v1583 = vtanh.pop %v1582
    %v1584 = vmul.f32 %v1578, %v1583
    %v1585 = vpack.c.bf16 %v1584, %v1584
    %1586 = vmatprep.subr.bf16.mxu0 %v998
    %1587 = vmatpush1.bf16.msra.mxu0 %v997
    %1588 = vmatprep.subr.bf16.mxu0 %v1002
    %1589 = vmatpush1.bf16.msra.mxu0 %v1001
    %1590 = vmatprep.subr.bf16.mxu0 %v1006
    %1591 = vmatpush1.bf16.msra.mxu0 %v1005
    %1592 = vmatprep.subr.bf16.mxu0 %v1010
    %1593 = vmatpush1.bf16.msra.mxu0 %v1009
    %1594 = vmatprep.subr.bf16.mxu0 %v1014
    %1595 = vmatpush1.bf16.msra.mxu0 %v1013
    %1596 = vmatprep.subr.bf16.mxu0 %v1018
    %1597 = vmatpush1.bf16.msra.mxu0 %v1017
    %1598 = vmatprep.subr.bf16.mxu0 %v1022
    %1599 = vmatpush1.bf16.msra.mxu0 %v1021
    %1600 = vmatprep.subr.bf16.mxu0 %v1026
    %1601 = vmatpush1.bf16.msra.mxu0 %v1025
    %1602 = vmatprep.subr.bf16.mxu0 0
    %1603 = vmatpush1.bf16.msra.mxu0 0
    %1604 = vmatprep.subr.bf16.mxu0 0
    %1605 = vmatpush1.bf16.msra.mxu0 0
    %1606 = vmatprep.subr.bf16.mxu0 0
    %1607 = vmatpush1.bf16.msra.mxu0 0
    %1608 = vmatprep.subr.bf16.mxu0 0
    %1609 = vmatpush1.bf16.msra.mxu0 0
    %1610 = vmatprep.subr.bf16.mxu0 0
    %1611 = vmatpush1.bf16.msra.mxu0 0
    %1612 = vmatprep.subr.bf16.mxu0 0
    %1613 = vmatpush1.bf16.msra.mxu0 0
    %1614 = vmatprep.subr.bf16.mxu0 0
    %1615 = vmatpush1.bf16.msra.mxu0 0
    %1616 = vmatprep.subr.bf16.mxu0 0
    %1617 = vmatpush1.bf16.msra.mxu0 0
    %1618 = vmatprep.mubr.bf16.mxu0 0
    %1619 = vmatmul.mubr.bf16.gmra.mrb[0].mxu0 %v1219
    %v1620 = vpop.f32.mrb[0].mxu0
    %v1621 = vadd.f32 0.0, %v1620
    %v1622 = vpop.f32.mrb[0].mxu0
    %v1623 = vadd.f32 0.0, %v1622
    %v1624 = vpop.f32.mrb[0].mxu0
    %v1625 = vpop.f32.mrb[0].mxu0
    %1626 = vdwg.mxu0
    %1627 = vmatprep.subr.bf16.mxu0 %v1000
    %1628 = vmatpush1.bf16.msra.mxu0 %v999
    %1629 = vmatprep.subr.bf16.mxu0 %v1004
    %1630 = vmatpush1.bf16.msra.mxu0 %v1003
    %1631 = vmatprep.subr.bf16.mxu0 %v1008
    %1632 = vmatpush1.bf16.msra.mxu0 %v1007
    %1633 = vmatprep.subr.bf16.mxu0 %v1012
    %1634 = vmatpush1.bf16.msra.mxu0 %v1011
    %1635 = vmatprep.subr.bf16.mxu0 %v1016
    %1636 = vmatpush1.bf16.msra.mxu0 %v1015
    %1637 = vmatprep.subr.bf16.mxu0 %v1020
    %1638 = vmatpush1.bf16.msra.mxu0 %v1019
    %1639 = vmatprep.subr.bf16.mxu0 %v1024
    %1640 = vmatpush1.bf16.msra.mxu0 %v1023
    %1641 = vmatprep.subr.bf16.mxu0 %v1028
    %1642 = vmatpush1.bf16.msra.mxu0 %v1027
    %1643 = vmatprep.subr.bf16.mxu0 0
    %1644 = vmatpush1.bf16.msra.mxu0 0
    %1645 = vmatprep.subr.bf16.mxu0 0
    %1646 = vmatpush1.bf16.msra.mxu0 0
    %1647 = vmatprep.subr.bf16.mxu0 0
    %1648 = vmatpush1.bf16.msra.mxu0 0
    %1649 = vmatprep.subr.bf16.mxu0 0
    %1650 = vmatpush1.bf16.msra.mxu0 0
    %1651 = vmatprep.subr.bf16.mxu0 0
    %1652 = vmatpush1.bf16.msra.mxu0 0
    %1653 = vmatprep.subr.bf16.mxu0 0
    %1654 = vmatpush1.bf16.msra.mxu0 0
    %1655 = vmatprep.subr.bf16.mxu0 0
    %1656 = vmatpush1.bf16.msra.mxu0 0
    %1657 = vmatprep.subr.bf16.mxu0 0
    %1658 = vmatpush1.bf16.msra.mxu0 0
    %1659 = vmatprep.mubr.bf16.mxu0 0
    %1660 = vmatmul.mubr.bf16.gmra.mrb[0].mxu0 %v1219
    %v1661 = vpop.f32.mrb[0].mxu0
    %v1662 = vadd.f32 0.0, %v1661
    %v1663 = vpop.f32.mrb[0].mxu0
    %v1664 = vadd.f32 0.0, %v1663
    %v1665 = vpop.f32.mrb[0].mxu0
    %v1666 = vpop.f32.mrb[0].mxu0
    %1667 = vdwg.mxu0
    %1668 = vmatprep.subr.bf16.mxu0 %v966
    %1669 = vmatpush1.bf16.msra.mxu0 %v965
    %1670 = vmatprep.subr.bf16.mxu0 %v970
    %1671 = vmatpush1.bf16.msra.mxu0 %v969
    %1672 = vmatprep.subr.bf16.mxu0 %v974
    %1673 = vmatpush1.bf16.msra.mxu0 %v973
    %1674 = vmatprep.subr.bf16.mxu0 %v978
    %1675 = vmatpush1.bf16.msra.mxu0 %v977
    %1676 = vmatprep.subr.bf16.mxu0 %v982
    %1677 = vmatpush1.bf16.msra.mxu0 %v981
    %1678 = vmatprep.subr.bf16.mxu0 %v986
    %1679 = vmatpush1.bf16.msra.mxu0 %v985
    %1680 = vmatprep.subr.bf16.mxu0 %v990
    %1681 = vmatpush1.bf16.msra.mxu0 %v989
    %1682 = vmatprep.subr.bf16.mxu0 %v994
    %1683 = vmatpush1.bf16.msra.mxu0 %v993
    %1684 = vmatprep.subr.bf16.mxu0 0
    %1685 = vmatpush1.bf16.msra.mxu0 0
    %1686 = vmatprep.subr.bf16.mxu0 0
    %1687 = vmatpush1.bf16.msra.mxu0 0
    %1688 = vmatprep.subr.bf16.mxu0 0
    %1689 = vmatpush1.bf16.msra.mxu0 0
    %1690 = vmatprep.subr.bf16.mxu0 0
    %1691 = vmatpush1.bf16.msra.mxu0 0
    %1692 = vmatprep.subr.bf16.mxu0 0
    %1693 = vmatpush1.bf16.msra.mxu0 0
    %1694 = vmatprep.subr.bf16.mxu0 0
    %1695 = vmatpush1.bf16.msra.mxu0 0
    %1696 = vmatprep.subr.bf16.mxu0 0
    %1697 = vmatpush1.bf16.msra.mxu0 0
    %1698 = vmatprep.subr.bf16.mxu0 0
    %1699 = vmatpush1.bf16.msra.mxu0 0
    %1700 = vmatprep.mubr.bf16.mxu0 0
    %1701 = vmatmul.mubr.bf16.gmra.mrb[0].mxu0 %v1585
    %v1702 = vpop.f32.mrb[0].mxu0
    %v1703 = vadd.f32 %v1621, %v1702
    %v1704 = vpop.f32.mrb[0].mxu0
    %v1705 = vadd.f32 %v1623, %v1704
    %v1706 = vpop.f32.mrb[0].mxu0
    %v1707 = vpop.f32.mrb[0].mxu0
    %1708 = vdwg.mxu0
    %1709 = vmatprep.subr.bf16.mxu0 %v968
    %1710 = vmatpush1.bf16.msra.mxu0 %v967
    %1711 = vmatprep.subr.bf16.mxu0 %v972
    %1712 = vmatpush1.bf16.msra.mxu0 %v971
    %1713 = vmatprep.subr.bf16.mxu0 %v976
    %1714 = vmatpush1.bf16.msra.mxu0 %v975
    %1715 = vmatprep.subr.bf16.mxu0 %v980
    %1716 = vmatpush1.bf16.msra.mxu0 %v979
    %1717 = vmatprep.subr.bf16.mxu0 %v984
    %1718 = vmatpush1.bf16.msra.mxu0 %v983
    %1719 = vmatprep.subr.bf16.mxu0 %v988
    %1720 = vmatpush1.bf16.msra.mxu0 %v987
    %1721 = vmatprep.subr.bf16.mxu0 %v992
    %1722 = vmatpush1.bf16.msra.mxu0 %v991
    %1723 = vmatprep.subr.bf16.mxu0 %v996
    %1724 = vmatpush1.bf16.msra.mxu0 %v995
    %1725 = vmatprep.subr.bf16.mxu0 0
    %1726 = vmatpush1.bf16.msra.mxu0 0
    %1727 = vmatprep.subr.bf16.mxu0 0
    %1728 = vmatpush1.bf16.msra.mxu0 0
    %1729 = vmatprep.subr.bf16.mxu0 0
    %1730 = vmatpush1.bf16.msra.mxu0 0
    %1731 = vmatprep.subr.bf16.mxu0 0
    %1732 = vmatpush1.bf16.msra.mxu0 0
    %1733 = vmatprep.subr.bf16.mxu0 0
    %1734 = vmatpush1.bf16.msra.mxu0 0
    %1735 = vmatprep.subr.bf16.mxu0 0
    %1736 = vmatpush1.bf16.msra.mxu0 0
    %1737 = vmatprep.subr.bf16.mxu0 0
    %1738 = vmatpush1.bf16.msra.mxu0 0
    %1739 = vmatprep.subr.bf16.mxu0 0
    %1740 = vmatpush1.bf16.msra.mxu0 0
    %1741 = vmatprep.mubr.bf16.mxu0 0
    %1742 = vmatmul.mubr.bf16.gmra.mrb[0].mxu0 %v1585
    %v1743 = vpop.f32.mrb[0].mxu0
    %v1744 = vadd.f32 %v1662, %v1743
    %v1745 = vpop.f32.mrb[0].mxu0
    %v1746 = vadd.f32 %v1664, %v1745
    %v1747 = vpop.f32.mrb[0].mxu0
    %v1748 = vpop.f32.mrb[0].mxu0
    %1749 = vdwg.mxu0
    %v1750 = vadd.f32 %v1703, %v1193
    %v1751 = vadd.f32 %v1705, %v1194
    %v1752 = vadd.f32 %v1744, %v1195
    %v1753 = vadd.f32 %v1746, %v1196
    %v1754 = vmul.f32 %v1750, 0.5
    %v1755 = vmul.f32 %v1751, 0.5
    %v1756 = vmul.f32 %v1752, 0.5
    %v1757 = vtanh.pop %v1754
    %v1758 = vtanh.pop %v1755
    %v1759 = vtanh.pop %v1756
    %v1760 = vmul.f32 %v1757, 0.5
    %v1761 = vmul.f32 %v1758, 0.5
    %v1762 = vmul.f32 %v1759, 0.5
    %v1763 = vadd.f32 %v1760, 0.5
    %v1764 = vadd.f32 %v1761, 0.5
    %v1765 = vadd.f32 %v1762, 0.5
    %v1766 = vtanh.pop %v1753
    %v1767 = vmul.f32 %v1764, %v1216
    %v1768 = vmul.f32 %v1763, %v1766
    %v1769 = vadd.f32 %v1767, %v1768
    %v1770 = vtanh.pop %v1769
    %v1771 = vmul.f32 %v1765, %v1770
    %v1772 = vpack.c.bf16 %v1771, %v1771
    %v1773 = vpack.c.bf16 %v1473, %v1473
    %1774 = vmatprep.subr.bf16.mxu0 %v1253
    %1775 = vmatpush1.bf16.msra.mxu0 %v1252
    %1776 = vmatprep.subr.bf16.mxu0 %v1257
    %1777 = vmatpush1.bf16.msra.mxu0 %v1256
    %1778 = vmatprep.subr.bf16.mxu0 %v1261
    %1779 = vmatpush1.bf16.msra.mxu0 %v1260
    %1780 = vmatprep.subr.bf16.mxu0 %v1265
    %1781 = vmatpush1.bf16.msra.mxu0 %v1264
    %1782 = vmatprep.subr.bf16.mxu0 %v1269
    %1783 = vmatpush1.bf16.msra.mxu0 %v1268
    %1784 = vmatprep.subr.bf16.mxu0 %v1273
    %1785 = vmatpush1.bf16.msra.mxu0 %v1272
    %1786 = vmatprep.subr.bf16.mxu0 %v1277
    %1787 = vmatpush1.bf16.msra.mxu0 %v1276
    %1788 = vmatprep.subr.bf16.mxu0 %v1281
    %1789 = vmatpush1.bf16.msra.mxu0 %v1280
    %1790 = vmatprep.subr.bf16.mxu0 0
    %1791 = vmatpush1.bf16.msra.mxu0 0
    %1792 = vmatprep.subr.bf16.mxu0 0
    %1793 = vmatpush1.bf16.msra.mxu0 0
    %1794 = vmatprep.subr.bf16.mxu0 0
    %1795 = vmatpush1.bf16.msra.mxu0 0
    %1796 = vmatprep.subr.bf16.mxu0 0
    %1797 = vmatpush1.bf16.msra.mxu0 0
    %1798 = vmatprep.subr.bf16.mxu0 0
    %1799 = vmatpush1.bf16.msra.mxu0 0
    %1800 = vmatprep.subr.bf16.mxu0 0
    %1801 = vmatpush1.bf16.msra.mxu0 0
    %1802 = vmatprep.subr.bf16.mxu0 0
    %1803 = vmatpush1.bf16.msra.mxu0 0
    %1804 = vmatprep.subr.bf16.mxu0 0
    %1805 = vmatpush1.bf16.msra.mxu0 0
    %1806 = vmatprep.mubr.bf16.mxu0 0
    %1807 = vmatmul.mubr.bf16.gmra.mrb[0].mxu0 %v1773
    %v1808 = vpop.f32.mrb[0].mxu0
    %v1809 = vadd.f32 0.0, %v1808
    %v1810 = vpop.f32.mrb[0].mxu0
    %v1811 = vadd.f32 0.0, %v1810
    %v1812 = vpop.f32.mrb[0].mxu0
    %v1813 = vpop.f32.mrb[0].mxu0
    %1814 = vdwg.mxu0
    %1815 = vmatprep.subr.bf16.mxu0 %v1255
    %1816 = vmatpush1.bf16.msra.mxu0 %v1254
    %1817 = vmatprep.subr.bf16.mxu0 %v1259
    %1818 = vmatpush1.bf16.msra.mxu0 %v1258
    %1819 = vmatprep.subr.bf16.mxu0 %v1263
    %1820 = vmatpush1.bf16.msra.mxu0 %v1262
    %1821 = vmatprep.subr.bf16.mxu0 %v1267
    %1822 = vmatpush1.bf16.msra.mxu0 %v1266
    %1823 = vmatprep.subr.bf16.mxu0 %v1271
    %1824 = vmatpush1.bf16.msra.mxu0 %v1270
    %1825 = vmatprep.subr.bf16.mxu0 %v1275
    %1826 = vmatpush1.bf16.msra.mxu0 %v1274
    %1827 = vmatprep.subr.bf16.mxu0 %v1279
    %1828 = vmatpush1.bf16.msra.mxu0 %v1278
    %1829 = vmatprep.subr.bf16.mxu0 %v1283
    %1830 = vmatpush1.bf16.msra.mxu0 %v1282
    %1831 = vmatprep.subr.bf16.mxu0 0
    %1832 = vmatpush1.bf16.msra.mxu0 0
    %1833 = vmatprep.subr.bf16.mxu0 0
    %1834 = vmatpush1.bf16.msra.mxu0 0
    %1835 = vmatprep.subr.bf16.mxu0 0
    %1836 = vmatpush1.bf16.msra.mxu0 0
    %1837 = vmatprep.subr.bf16.mxu0 0
    %1838 = vmatpush1.bf16.msra.mxu0 0
    %1839 = vmatprep.subr.bf16.mxu0 0
    %1840 = vmatpush1.bf16.msra.mxu0 0
    %1841 = vmatprep.subr.bf16.mxu0 0
    %1842 = vmatpush1.bf16.msra.mxu0 0
    %1843 = vmatprep.subr.bf16.mxu0 0
    %1844 = vmatpush1.bf16.msra.mxu0 0
    %1845 = vmatprep.subr.bf16.mxu0 0
    %1846 = vmatpush1.bf16.msra.mxu0 0
    %1847 = vmatprep.mubr.bf16.mxu0 0
    %1848 = vmatmul.mubr.bf16.gmra.mrb[0].mxu0 %v1773
    %v1849 = vpop.f32.mrb[0].mxu0
    %v1850 = vadd.f32 0.0, %v1849
    %v1851 = vpop.f32.mrb[0].mxu0
    %v1852 = vadd.f32 0.0, %v1851
    %v1853 = vpop.f32.mrb[0].mxu0
    %v1854 = vpop.f32.mrb[0].mxu0
    %1855 = vdwg.mxu0
    %1856 = vmatprep.subr.bf16.mxu0 %v1221
    %1857 = vmatpush1.bf16.msra.mxu0 %v1220
    %1858 = vmatprep.subr.bf16.mxu0 %v1225
    %1859 = vmatpush1.bf16.msra.mxu0 %v1224
    %1860 = vmatprep.subr.bf16.mxu0 %v1229
    %1861 = vmatpush1.bf16.msra.mxu0 %v1228
    %1862 = vmatprep.subr.bf16.mxu0 %v1233
    %1863 = vmatpush1.bf16.msra.mxu0 %v1232
    %1864 = vmatprep.subr.bf16.mxu0 %v1237
    %1865 = vmatpush1.bf16.msra.mxu0 %v1236
    %1866 = vmatprep.subr.bf16.mxu0 %v1241
    %1867 = vmatpush1.bf16.msra.mxu0 %v1240
    %1868 = vmatprep.subr.bf16.mxu0 %v1245
    %1869 = vmatpush1.bf16.msra.mxu0 %v1244
    %1870 = vmatprep.subr.bf16.mxu0 %v1249
    %1871 = vmatpush1.bf16.msra.mxu0 %v1248
    %1872 = vmatprep.subr.bf16.mxu0 0
    %1873 = vmatpush1.bf16.msra.mxu0 0
    %1874 = vmatprep.subr.bf16.mxu0 0
    %1875 = vmatpush1.bf16.msra.mxu0 0
    %1876 = vmatprep.subr.bf16.mxu0 0
    %1877 = vmatpush1.bf16.msra.mxu0 0
    %1878 = vmatprep.subr.bf16.mxu0 0
    %1879 = vmatpush1.bf16.msra.mxu0 0
    %1880 = vmatprep.subr.bf16.mxu0 0
    %1881 = vmatpush1.bf16.msra.mxu0 0
    %1882 = vmatprep.subr.bf16.mxu0 0
    %1883 = vmatpush1.bf16.msra.mxu0 0
    %1884 = vmatprep.subr.bf16.mxu0 0
    %1885 = vmatpush1.bf16.msra.mxu0 0
    %1886 = vmatprep.subr.bf16.mxu0 0
    %1887 = vmatpush1.bf16.msra.mxu0 0
    %1888 = vmatprep.mubr.bf16.mxu0 0
    %1889 = vmatmul.mubr.bf16.gmra.mrb[0].mxu0 %v1772
    %v1890 = vpop.f32.mrb[0].mxu0
    %v1891 = vadd.f32 %v1809, %v1890
    %v1892 = vpop.f32.mrb[0].mxu0
    %v1893 = vadd.f32 %v1811, %v1892
    %v1894 = vpop.f32.mrb[0].mxu0
    %v1895 = vpop.f32.mrb[0].mxu0
    %1896 = vdwg.mxu0
    %1897 = vmatprep.subr.bf16.mxu0 %v1223
    %1898 = vmatpush1.bf16.msra.mxu0 %v1222
    %1899 = vmatprep.subr.bf16.mxu0 %v1227
    %1900 = vmatpush1.bf16.msra.mxu0 %v1226
    %1901 = vmatprep.subr.bf16.mxu0 %v1231
    %1902 = vmatpush1.bf16.msra.mxu0 %v1230
    %1903 = vmatprep.subr.bf16.mxu0 %v1235
    %1904 = vmatpush1.bf16.msra.mxu0 %v1234
    %1905 = vmatprep.subr.bf16.mxu0 %v1239
    %1906 = vmatpush1.bf16.msra.mxu0 %v1238
    %1907 = vmatprep.subr.bf16.mxu0 %v1243
    %1908 = vmatpush1.bf16.msra.mxu0 %v1242
    %1909 = vmatprep.subr.bf16.mxu0 %v1247
    %1910 = vmatpush1.bf16.msra.mxu0 %v1246
    %1911 = vmatprep.subr.bf16.mxu0 %v1251
    %1912 = vmatpush1.bf16.msra.mxu0 %v1250
    %1913 = vmatprep.subr.bf16.mxu0 0
    %1914 = vmatpush1.bf16.msra.mxu0 0
    %1915 = vmatprep.subr.bf16.mxu0 0
    %1916 = vmatpush1.bf16.msra.mxu0 0
    %1917 = vmatprep.subr.bf16.mxu0 0
    %1918 = vmatpush1.bf16.msra.mxu0 0
    %1919 = vmatprep.subr.bf16.mxu0 0
    %1920 = vmatpush1.bf16.msra.mxu0 0
    %1921 = vmatprep.subr.bf16.mxu0 0
    %1922 = vmatpush1.bf16.msra.mxu0 0
    %1923 = vmatprep.subr.bf16.mxu0 0
    %1924 = vmatpush1.bf16.msra.mxu0 0
    %1925 = vmatprep.subr.bf16.mxu0 0
    %1926 = vmatpush1.bf16.msra.mxu0 0
    %1927 = vmatprep.subr.bf16.mxu0 0
    %1928 = vmatpush1.bf16.msra.mxu0 0
    %1929 = vmatprep.mubr.bf16.mxu0 0
    %1930 = vmatmul.mubr.bf16.gmra.mrb[0].mxu0 %v1772
    %v1931 = vpop.f32.mrb[0].mxu0
    %v1932 = vadd.f32 %v1850, %v1931
    %v1933 = vpop.f32.mrb[0].mxu0
    %v1934 = vadd.f32 %v1852, %v1933
    %v1935 = vpop.f32.mrb[0].mxu0
    %v1936 = vpop.f32.mrb[0].mxu0
    %1937 = vdwg.mxu0
    %v1938 = vadd.f32 %v1891, %v1448
    %v1939 = vadd.f32 %v1893, %v1449
    %v1940 = vadd.f32 %v1932, %v1450
    %v1941 = vadd.f32 %v1934, %v1451
    %v1942 = vmul.f32 %v1938, 0.5
    %v1943 = vmul.f32 %v1939, 0.5
    %v1944 = vmul.f32 %v1940, 0.5
    %v1945 = vtanh.pop %v1942
    %v1946 = vtanh.pop %v1943
    %v1947 = vtanh.pop %v1944
    %v1948 = vmul.f32 %v1945, 0.5
    %v1949 = vmul.f32 %v1946, 0.5
    %v1950 = vmul.f32 %v1947, 0.5
    %v1951 = vadd.f32 %v1948, 0.5
    %v1952 = vadd.f32 %v1949, 0.5
    %v1953 = vadd.f32 %v1950, 0.5
    %v1954 = vtanh.pop %v1941
    %v1955 = vmul.f32 %v1952, %v1471
    %v1956 = vmul.f32 %v1951, %v1954
    %v1957 = vadd.f32 %v1955, %v1956
    %v1958 = vtanh.pop %v1957
    %v1959 = vmul.f32 %v1953, %v1958
    %s1960 = smul.u32 2, 4
    %s1961 = smul.addr %s1960, 8
    %s1962 = scalar_lea.vmem [#allocation2], %s1961
    %v1963 = vld [vmem:[%s1962] sm:$0xff]
    %v1964 = vld [vmem:[%s1962 + $0x8] sm:$0xff]
    %v1965 = vld [vmem:[%s1962 + $0x10] sm:$0xff]
    %v1966 = vld [vmem:[%s1962 + $0x18] sm:$0xff]
    %1967 = vmatprep.subr.bf16.mxu0 %v797
    %1968 = vmatpush1.bf16.msra.mxu0 %v796
    %1969 = vmatprep.subr.bf16.mxu0 %v801
    %1970 = vmatpush1.bf16.msra.mxu0 %v800
    %1971 = vmatprep.subr.bf16.mxu0 %v805
    %1972 = vmatpush1.bf16.msra.mxu0 %v804
    %1973 = vmatprep.subr.bf16.mxu0 %v809
    %1974 = vmatpush1.bf16.msra.mxu0 %v808
    %1975 = vmatprep.subr.bf16.mxu0 %v813
    %1976 = vmatpush1.bf16.msra.mxu0 %v812
    %1977 = vmatprep.subr.bf16.mxu0 %v817
    %1978 = vmatpush1.bf16.msra.mxu0 %v816
    %1979 = vmatprep.subr.bf16.mxu0 %v821
    %1980 = vmatpush1.bf16.msra.mxu0 %v820
    %1981 = vmatprep.subr.bf16.mxu0 %v825
    %1982 = vmatpush1.bf16.msra.mxu0 %v824
    %1983 = vmatprep.subr.bf16.mxu0 0
    %1984 = vmatpush1.bf16.msra.mxu0 0
    %1985 = vmatprep.subr.bf16.mxu0 0
    %1986 = vmatpush1.bf16.msra.mxu0 0
    %1987 = vmatprep.subr.bf16.mxu0 0
    %1988 = vmatpush1.bf16.msra.mxu0 0
    %1989 = vmatprep.subr.bf16.mxu0 0
    %1990 = vmatpush1.bf16.msra.mxu0 0
    %1991 = vmatprep.subr.bf16.mxu0 0
    %1992 = vmatpush1.bf16.msra.mxu0 0
    %1993 = vmatprep.subr.bf16.mxu0 0
    %1994 = vmatpush1.bf16.msra.mxu0 0
    %1995 = vmatprep.subr.bf16.mxu0 0
    %1996 = vmatpush1.bf16.msra.mxu0 0
    %1997 = vmatprep.subr.bf16.mxu0 0
    %1998 = vmatpush1.bf16.msra.mxu0 0
    %1999 = vmatprep.mubr.bf16.mxu0 0
    %2000 = vmatmul.mubr.bf16.gmra.mrb[0].mxu0 %v1585
    %v2001 = vpop.f32.mrb[0].mxu0
    %v2002 = vadd.f32 0.0, %v2001
    %v2003 = vpop.f32.mrb[0].mxu0
    %v2004 = vadd.f32 0.0, %v2003
    %v2005 = vpop.f32.mrb[0].mxu0
    %v2006 = vpop.f32.mrb[0].mxu0
    %2007 = vdwg.mxu0
    %2008 = vmatprep.subr.bf16.mxu0 %v799
    %2009 = vmatpush1.bf16.msra.mxu0 %v798
    %2010 = vmatprep.subr.bf16.mxu0 %v803
    %2011 = vmatpush1.bf16.msra.mxu0 %v802
    %2012 = vmatprep.subr.bf16.mxu0 %v807
    %2013 = vmatpush1.bf16.msra.mxu0 %v806
    %2014 = vmatprep.subr.bf16.mxu0 %v811
    %2015 = vmatpush1.bf16.msra.mxu0 %v810
    %2016 = vmatprep.subr.bf16.mxu0 %v815
    %2017 = vmatpush1.bf16.msra.mxu0 %v814
    %2018 = vmatprep.subr.bf16.mxu0 %v819
    %2019 = vmatpush1.bf16.msra.mxu0 %v818
    %2020 = vmatprep.subr.bf16.mxu0 %v823
    %2021 = vmatpush1.bf16.msra.mxu0 %v822
    %2022 = vmatprep.subr.bf16.mxu0 %v827
    %2023 = vmatpush1.bf16.msra.mxu0 %v826
    %2024 = vmatprep.subr.bf16.mxu0 0
    %2025 = vmatpush1.bf16.msra.mxu0 0
    %2026 = vmatprep.subr.bf16.mxu0 0
    %2027 = vmatpush1.bf16.msra.mxu0 0
    %2028 = vmatprep.subr.bf16.mxu0 0
    %2029 = vmatpush1.bf16.msra.mxu0 0
    %2030 = vmatprep.subr.bf16.mxu0 0
    %2031 = vmatpush1.bf16.msra.mxu0 0
    %2032 = vmatprep.subr.bf16.mxu0 0
    %2033 = vmatpush1.bf16.msra.mxu0 0
    %2034 = vmatprep.subr.bf16.mxu0 0
    %2035 = vmatpush1.bf16.msra.mxu0 0
    %2036 = vmatprep.subr.bf16.mxu0 0
    %2037 = vmatpush1.bf16.msra.mxu0 0
    %2038 = vmatprep.subr.bf16.mxu0 0
    %2039 = vmatpush1.bf16.msra.mxu0 0
    %2040 = vmatprep.mubr.bf16.mxu0 0
    %2041 = vmatmul.mubr.bf16.gmra.mrb[0].mxu0 %v1585
    %v2042 = vpop.f32.mrb[0].mxu0
    %v2043 = vadd.f32 0.0, %v2042
    %v2044 = vpop.f32.mrb[0].mxu0
    %v2045 = vadd.f32 0.0, %v2044
    %v2046 = vpop.f32.mrb[0].mxu0
    %v2047 = vpop.f32.mrb[0].mxu0
    %2048 = vdwg.mxu0
    %v2049 = vadd.f32 %v1963, %v2002
    %v2050 = vadd.f32 %v1964, %v2004
    %v2051 = vadd.f32 %v1965, %v2043
    %v2052 = vadd.f32 %v1966, %v2045
    %v2053 = vmul.f32 %v2049, 0.5
    %v2054 = vmul.f32 %v2050, 0.5
    %v2055 = vmul.f32 %v2051, 0.5
    %v2056 = vtanh.pop %v2053
    %v2057 = vtanh.pop %v2054
    %v2058 = vtanh.pop %v2055
    %v2059 = vmul.f32 %v2056, 0.5
    %v2060 = vmul.f32 %v2057, 0.5
    %v2061 = vmul.f32 %v2058, 0.5
    %v2062 = vadd.f32 %v2059, 0.5
    %v2063 = vadd.f32 %v2060, 0.5
    %v2064 = vadd.f32 %v2061, 0.5
    %v2065 = vtanh.pop %v2052
    %v2066 = vmul.f32 %v2063, %v1582
    %v2067 = vmul.f32 %v2062, %v2065
    %v2068 = vadd.f32 %v2066, %v2067
    %v2069 = vtanh.pop %v2068
    %v2070 = vmul.f32 %v2064, %v2069
    %v2071 = vpack.c.bf16 %v2070, %v2070
    %2072 = vmatprep.subr.bf16.mxu0 %v998
    %2073 = vmatpush1.bf16.msra.mxu0 %v997
    %2074 = vmatprep.subr.bf16.mxu0 %v1002
    %2075 = vmatpush1.bf16.msra.mxu0 %v1001
    %2076 = vmatprep.subr.bf16.mxu0 %v1006
    %2077 = vmatpush1.bf16.msra.mxu0 %v1005
    %2078 = vmatprep.subr.bf16.mxu0 %v1010
    %2079 = vmatpush1.bf16.msra.mxu0 %v1009
    %2080 = vmatprep.subr.bf16.mxu0 %v1014
    %2081 = vmatpush1.bf16.msra.mxu0 %v1013
    %2082 = vmatprep.subr.bf16.mxu0 %v1018
    %2083 = vmatpush1.bf16.msra.mxu0 %v1017
    %2084 = vmatprep.subr.bf16.mxu0 %v1022
    %2085 = vmatpush1.bf16.msra.mxu0 %v1021
    %2086 = vmatprep.subr.bf16.mxu0 %v1026
    %2087 = vmatpush1.bf16.msra.mxu0 %v1025
    %2088 = vmatprep.subr.bf16.mxu0 0
    %2089 = vmatpush1.bf16.msra.mxu0 0
    %2090 = vmatprep.subr.bf16.mxu0 0
    %2091 = vmatpush1.bf16.msra.mxu0 0
    %2092 = vmatprep.subr.bf16.mxu0 0
    %2093 = vmatpush1.bf16.msra.mxu0 0
    %2094 = vmatprep.subr.bf16.mxu0 0
    %2095 = vmatpush1.bf16.msra.mxu0 0
    %2096 = vmatprep.subr.bf16.mxu0 0
    %2097 = vmatpush1.bf16.msra.mxu0 0
    %2098 = vmatprep.subr.bf16.mxu0 0
    %2099 = vmatpush1.bf16.msra.mxu0 0
    %2100 = vmatprep.subr.bf16.mxu0 0
    %2101 = vmatpush1.bf16.msra.mxu0 0
    %2102 = vmatprep.subr.bf16.mxu0 0
    %2103 = vmatpush1.bf16.msra.mxu0 0
    %2104 = vmatprep.mubr.bf16.mxu0 0
    %2105 = vmatmul.mubr.bf16.gmra.mrb[0].mxu0 %v1772
    %v2106 = vpop.f32.mrb[0].mxu0
    %v2107 = vadd.f32 0.0, %v2106
    %v2108 = vpop.f32.mrb[0].mxu0
    %v2109 = vadd.f32 0.0, %v2108
    %v2110 = vpop.f32.mrb[0].mxu0
    %v2111 = vpop.f32.mrb[0].mxu0
    %2112 = vdwg.mxu0
    %2113 = vmatprep.subr.bf16.mxu0 %v1000
    %2114 = vmatpush1.bf16.msra.mxu0 %v999
    %2115 = vmatprep.subr.bf16.mxu0 %v1004
    %2116 = vmatpush1.bf16.msra.mxu0 %v1003
    %2117 = vmatprep.subr.bf16.mxu0 %v1008
    %2118 = vmatpush1.bf16.msra.mxu0 %v1007
    %2119 = vmatprep.subr.bf16.mxu0 %v1012
    %2120 = vmatpush1.bf16.msra.mxu0 %v1011
    %2121 = vmatprep.subr.bf16.mxu0 %v1016
    %2122 = vmatpush1.bf16.msra.mxu0 %v1015
    %2123 = vmatprep.subr.bf16.mxu0 %v1020
    %2124 = vmatpush1.bf16.msra.mxu0 %v1019
    %2125 = vmatprep.subr.bf16.mxu0 %v1024
    %2126 = vmatpush1.bf16.msra.mxu0 %v1023
    %2127 = vmatprep.subr.bf16.mxu0 %v1028
    %2128 = vmatpush1.bf16.msra.mxu0 %v1027
    %2129 = vmatprep.subr.bf16.mxu0 0
    %2130 = vmatpush1.bf16.msra.mxu0 0
    %2131 = vmatprep.subr.bf16.mxu0 0
    %2132 = vmatpush1.bf16.msra.mxu0 0
    %2133 = vmatprep.subr.bf16.mxu0 0
    %2134 = vmatpush1.bf16.msra.mxu0 0
    %2135 = vmatprep.subr.bf16.mxu0 0
    %2136 = vmatpush1.bf16.msra.mxu0 0
    %2137 = vmatprep.subr.bf16.mxu0 0
    %2138 = vmatpush1.bf16.msra.mxu0 0
    %2139 = vmatprep.subr.bf16.mxu0 0
    %2140 = vmatpush1.bf16.msra.mxu0 0
    %2141 = vmatprep.subr.bf16.mxu0 0
    %2142 = vmatpush1.bf16.msra.mxu0 0
    %2143 = vmatprep.subr.bf16.mxu0 0
    %2144 = vmatpush1.bf16.msra.mxu0 0
    %2145 = vmatprep.mubr.bf16.mxu0 0
    %2146 = vmatmul.mubr.bf16.gmra.mrb[0].mxu0 %v1772
    %v2147 = vpop.f32.mrb[0].mxu0
    %v2148 = vadd.f32 0.0, %v2147
    %v2149 = vpop.f32.mrb[0].mxu0
    %v2150 = vadd.f32 0.0, %v2149
    %v2151 = vpop.f32.mrb[0].mxu0
    %v2152 = vpop.f32.mrb[0].mxu0
    %2153 = vdwg.mxu0
    %2154 = vmatprep.subr.bf16.mxu0 %v966
    %2155 = vmatpush1.bf16.msra.mxu0 %v965
    %2156 = vmatprep.subr.bf16.mxu0 %v970
    %2157 = vmatpush1.bf16.msra.mxu0 %v969
    %2158 = vmatprep.subr.bf16.mxu0 %v974
    %2159 = vmatpush1.bf16.msra.mxu0 %v973
    %2160 = vmatprep.subr.bf16.mxu0 %v978
    %2161 = vmatpush1.bf16.msra.mxu0 %v977
    %2162 = vmatprep.subr.bf16.mxu0 %v982
    %2163 = vmatpush1.bf16.msra.mxu0 %v981
    %2164 = vmatprep.subr.bf16.mxu0 %v986
    %2165 = vmatpush1.bf16.msra.mxu0 %v985
    %2166 = vmatprep.subr.bf16.mxu0 %v990
    %2167 = vmatpush1.bf16.msra.mxu0 %v989
    %2168 = vmatprep.subr.bf16.mxu0 %v994
    %2169 = vmatpush1.bf16.msra.mxu0 %v993
    %2170 = vmatprep.subr.bf16.mxu0 0
    %2171 = vmatpush1.bf16.msra.mxu0 0
    %2172 = vmatprep.subr.bf16.mxu0 0
    %2173 = vmatpush1.bf16.msra.mxu0 0
    %2174 = vmatprep.subr.bf16.mxu0 0
    %2175 = vmatpush1.bf16.msra.mxu0 0
    %2176 = vmatprep.subr.bf16.mxu0 0
    %2177 = vmatpush1.bf16.msra.mxu0 0
    %2178 = vmatprep.subr.bf16.mxu0 0
    %2179 = vmatpush1.bf16.msra.mxu0 0
    %2180 = vmatprep.subr.bf16.mxu0 0
    %2181 = vmatpush1.bf16.msra.mxu0 0
    %2182 = vmatprep.subr.bf16.mxu0 0
    %2183 = vmatpush1.bf16.msra.mxu0 0
    %2184 = vmatprep.subr.bf16.mxu0 0
    %2185 = vmatpush1.bf16.msra.mxu0 0
    %2186 = vmatprep.mubr.bf16.mxu0 0
    %2187 = vmatmul.mubr.bf16.gmra.mrb[0].mxu0 %v2071
    %v2188 = vpop.f32.mrb[0].mxu0
    %v2189 = vadd.f32 %v2107, %v2188
    %v2190 = vpop.f32.mrb[0].mxu0
    %v2191 = vadd.f32 %v2109, %v2190
    %v2192 = vpop.f32.mrb[0].mxu0
    %v2193 = vpop.f32.mrb[0].mxu0
    %2194 = vdwg.mxu0
    %2195 = vmatprep.subr.bf16.mxu0 %v968
    %2196 = vmatpush1.bf16.msra.mxu0 %v967
    %2197 = vmatprep.subr.bf16.mxu0 %v972
    %2198 = vmatpush1.bf16.msra.mxu0 %v971
    %2199 = vmatprep.subr.bf16.mxu0 %v976
    %2200 = vmatpush1.bf16.msra.mxu0 %v975
    %2201 = vmatprep.subr.bf16.mxu0 %v980
    %2202 = vmatpush1.bf16.msra.mxu0 %v979
    %2203 = vmatprep.subr.bf16.mxu0 %v984
    %2204 = vmatpush1.bf16.msra.mxu0 %v983
    %2205 = vmatprep.subr.bf16.mxu0 %v988
    %2206 = vmatpush1.bf16.msra.mxu0 %v987
    %2207 = vmatprep.subr.bf16.mxu0 %v992
    %2208 = vmatpush1.bf16.msra.mxu0 %v991
    %2209 = vmatprep.subr.bf16.mxu0 %v996
    %2210 = vmatpush1.bf16.msra.mxu0 %v995
    %2211 = vmatprep.subr.bf16.mxu0 0
    %2212 = vmatpush1.bf16.msra.mxu0 0
    %2213 = vmatprep.subr.bf16.mxu0 0
    %2214 = vmatpush1.bf16.msra.mxu0 0
    %2215 = vmatprep.subr.bf16.mxu0 0
    %2216 = vmatpush1.bf16.msra.mxu0 0
    %2217 = vmatprep.subr.bf16.mxu0 0
    %2218 = vmatpush1.bf16.msra.mxu0 0
    %2219 = vmatprep.subr.bf16.mxu0 0
    %2220 = vmatpush1.bf16.msra.mxu0 0
    %2221 = vmatprep.subr.bf16.mxu0 0
    %2222 = vmatpush1.bf16.msra.mxu0 0
    %2223 = vmatprep.subr.bf16.mxu0 0
    %2224 = vmatpush1.bf16.msra.mxu0 0
    %2225 = vmatprep.subr.bf16.mxu0 0
    %2226 = vmatpush1.bf16.msra.mxu0 0
    %2227 = vmatprep.mubr.bf16.mxu0 0
    %2228 = vmatmul.mubr.bf16.gmra.mrb[0].mxu0 %v2071
    %v2229 = vpop.f32.mrb[0].mxu0
    %v2230 = vadd.f32 %v2148, %v2229
    %v2231 = vpop.f32.mrb[0].mxu0
    %v2232 = vadd.f32 %v2150, %v2231
    %v2233 = vpop.f32.mrb[0].mxu0
    %v2234 = vpop.f32.mrb[0].mxu0
    %2235 = vdwg.mxu0
    %v2236 = vadd.f32 %v2189, %v1193
    %v2237 = vadd.f32 %v2191, %v1194
    %v2238 = vadd.f32 %v2230, %v1195
    %v2239 = vadd.f32 %v2232, %v1196
    %v2240 = vmul.f32 %v2236, 0.5
    %v2241 = vmul.f32 %v2237, 0.5
    %v2242 = vmul.f32 %v2238, 0.5
    %v2243 = vtanh.pop %v2240
    %v2244 = vtanh.pop %v2241
    %v2245 = vtanh.pop %v2242
    %v2246 = vmul.f32 %v2243, 0.5
    %v2247 = vmul.f32 %v2244, 0.5
    %v2248 = vmul.f32 %v2245, 0.5
    %v2249 = vadd.f32 %v2246, 0.5
    %v2250 = vadd.f32 %v2247, 0.5
    %v2251 = vadd.f32 %v2248, 0.5
    %v2252 = vtanh.pop %v2239
    %v2253 = vmul.f32 %v2250, %v1769
    %v2254 = vmul.f32 %v2249, %v2252
    %v2255 = vadd.f32 %v2253, %v2254
    %v2256 = vtanh.pop %v2255
    %v2257 = vmul.f32 %v2251, %v2256
    %v2258 = vpack.c.bf16 %v2257, %v2257
    %v2259 = vpack.c.bf16 %v1959, %v1959
    %2260 = vmatprep.subr.bf16.mxu0 %v1253
    %2261 = vmatpush1.bf16.msra.mxu0 %v1252
    %2262 = vmatprep.subr.bf16.mxu0 %v1257
    %2263 = vmatpush1.bf16.msra.mxu0 %v1256
    %2264 = vmatprep.subr.bf16.mxu0 %v1261
    %2265 = vmatpush1.bf16.msra.mxu0 %v1260
    %2266 = vmatprep.subr.bf16.mxu0 %v1265
    %2267 = vmatpush1.bf16.msra.mxu0 %v1264
    %2268 = vmatprep.subr.bf16.mxu0 %v1269
    %2269 = vmatpush1.bf16.msra.mxu0 %v1268
    %2270 = vmatprep.subr.bf16.mxu0 %v1273
    %2271 = vmatpush1.bf16.msra.mxu0 %v1272
    %2272 = vmatprep.subr.bf16.mxu0 %v1277
    %2273 = vmatpush1.bf16.msra.mxu0 %v1276
    %2274 = vmatprep.subr.bf16.mxu0 %v1281
    %2275 = vmatpush1.bf16.msra.mxu0 %v1280
    %2276 = vmatprep.subr.bf16.mxu0 0
    %2277 = vmatpush1.bf16.msra.mxu0 0
    %2278 = vmatprep.subr.bf16.mxu0 0
    %2279 = vmatpush1.bf16.msra.mxu0 0
    %2280 = vmatprep.subr.bf16.mxu0 0
    %2281 = vmatpush1.bf16.msra.mxu0 0
    %2282 = vmatprep.subr.bf16.mxu0 0
    %2283 = vmatpush1.bf16.msra.mxu0 0
    %2284 = vmatprep.subr.bf16.mxu0 0
    %2285 = vmatpush1.bf16.msra.mxu0 0
    %2286 = vmatprep.subr.bf16.mxu0 0
    %2287 = vmatpush1.bf16.msra.mxu0 0
    %2288 = vmatprep.subr.bf16.mxu0 0
    %2289 = vmatpush1.bf16.msra.mxu0 0
    %2290 = vmatprep.subr.bf16.mxu0 0
    %2291 = vmatpush1.bf16.msra.mxu0 0
    %2292 = vmatprep.mubr.bf16.mxu0 0
    %2293 = vmatmul.mubr.bf16.gmra.mrb[0].mxu0 %v2259
    %v2294 = vpop.f32.mrb[0].mxu0
    %v2295 = vadd.f32 0.0, %v2294
    %v2296 = vpop.f32.mrb[0].mxu0
    %v2297 = vadd.f32 0.0, %v2296
    %v2298 = vpop.f32.mrb[0].mxu0
    %v2299 = vpop.f32.mrb[0].mxu0
    %2300 = vdwg.mxu0
    %2301 = vmatprep.subr.bf16.mxu0 %v1255
    %2302 = vmatpush1.bf16.msra.mxu0 %v1254
    %2303 = vmatprep.subr.bf16.mxu0 %v1259
    %2304 = vmatpush1.bf16.msra.mxu0 %v1258
    %2305 = vmatprep.subr.bf16.mxu0 %v1263
    %2306 = vmatpush1.bf16.msra.mxu0 %v1262
    %2307 = vmatprep.subr.bf16.mxu0 %v1267
    %2308 = vmatpush1.bf16.msra.mxu0 %v1266
    %2309 = vmatprep.subr.bf16.mxu0 %v1271
    %2310 = vmatpush1.bf16.msra.mxu0 %v1270
    %2311 = vmatprep.subr.bf16.mxu0 %v1275
    %2312 = vmatpush1.bf16.msra.mxu0 %v1274
    %2313 = vmatprep.subr.bf16.mxu0 %v1279
    %2314 = vmatpush1.bf16.msra.mxu0 %v1278
    %2315 = vmatprep.subr.bf16.mxu0 %v1283
    %2316 = vmatpush1.bf16.msra.mxu0 %v1282
    %2317 = vmatprep.subr.bf16.mxu0 0
    %2318 = vmatpush1.bf16.msra.mxu0 0
    %2319 = vmatprep.subr.bf16.mxu0 0
    %2320 = vmatpush1.bf16.msra.mxu0 0
    %2321 = vmatprep.subr.bf16.mxu0 0
    %2322 = vmatpush1.bf16.msra.mxu0 0
    %2323 = vmatprep.subr.bf16.mxu0 0
    %2324 = vmatpush1.bf16.msra.mxu0 0
    %2325 = vmatprep.subr.bf16.mxu0 0
    %2326 = vmatpush1.bf16.msra.mxu0 0
    %2327 = vmatprep.subr.bf16.mxu0 0
    %2328 = vmatpush1.bf16.msra.mxu0 0
    %2329 = vmatprep.subr.bf16.mxu0 0
    %2330 = vmatpush1.bf16.msra.mxu0 0
    %2331 = vmatprep.subr.bf16.mxu0 0
    %2332 = vmatpush1.bf16.msra.mxu0 0
    %2333 = vmatprep.mubr.bf16.mxu0 0
    %2334 = vmatmul.mubr.bf16.gmra.mrb[0].mxu0 %v2259
    %v2335 = vpop.f32.mrb[0].mxu0
    %v2336 = vadd.f32 0.0, %v2335
    %v2337 = vpop.f32.mrb[0].mxu0
    %v2338 = vadd.f32 0.0, %v2337
    %v2339 = vpop.f32.mrb[0].mxu0
    %v2340 = vpop.f32.mrb[0].mxu0
    %2341 = vdwg.mxu0
    %2342 = vmatprep.subr.bf16.mxu0 %v1221
    %2343 = vmatpush1.bf16.msra.mxu0 %v1220
    %2344 = vmatprep.subr.bf16.mxu0 %v1225
    %2345 = vmatpush1.bf16.msra.mxu0 %v1224
    %2346 = vmatprep.subr.bf16.mxu0 %v1229
    %2347 = vmatpush1.bf16.msra.mxu0 %v1228
    %2348 = vmatprep.subr.bf16.mxu0 %v1233
    %2349 = vmatpush1.bf16.msra.mxu0 %v1232
    %2350 = vmatprep.subr.bf16.mxu0 %v1237
    %2351 = vmatpush1.bf16.msra.mxu0 %v1236
    %2352 = vmatprep.subr.bf16.mxu0 %v1241
    %2353 = vmatpush1.bf16.msra.mxu0 %v1240
    %2354 = vmatprep.subr.bf16.mxu0 %v1245
    %2355 = vmatpush1.bf16.msra.mxu0 %v1244
    %2356 = vmatprep.subr.bf16.mxu0 %v1249
    %2357 = vmatpush1.bf16.msra.mxu0 %v1248
    %2358 = vmatprep.subr.bf16.mxu0 0
    %2359 = vmatpush1.bf16.msra.mxu0 0
    %2360 = vmatprep.subr.bf16.mxu0 0
    %2361 = vmatpush1.bf16.msra.mxu0 0
    %2362 = vmatprep.subr.bf16.mxu0 0
    %2363 = vmatpush1.bf16.msra.mxu0 0
    %2364 = vmatprep.subr.bf16.mxu0 0
    %2365 = vmatpush1.bf16.msra.mxu0 0
    %2366 = vmatprep.subr.bf16.mxu0 0
    %2367 = vmatpush1.bf16.msra.mxu0 0
    %2368 = vmatprep.subr.bf16.mxu0 0
    %2369 = vmatpush1.bf16.msra.mxu0 0
    %2370 = vmatprep.subr.bf16.mxu0 0
    %2371 = vmatpush1.bf16.msra.mxu0 0
    %2372 = vmatprep.subr.bf16.mxu0 0
    %2373 = vmatpush1.bf16.msra.mxu0 0
    %2374 = vmatprep.mubr.bf16.mxu0 0
    %2375 = vmatmul.mubr.bf16.gmra.mrb[0].mxu0 %v2258
    %v2376 = vpop.f32.mrb[0].mxu0
    %v2377 = vadd.f32 %v2295, %v2376
    %v2378 = vpop.f32.mrb[0].mxu0
    %v2379 = vadd.f32 %v2297, %v2378
    %v2380 = vpop.f32.mrb[0].mxu0
    %v2381 = vpop.f32.mrb[0].mxu0
    %2382 = vdwg.mxu0
    %2383 = vmatprep.subr.bf16.mxu0 %v1223
    %2384 = vmatpush1.bf16.msra.mxu0 %v1222
    %2385 = vmatprep.subr.bf16.mxu0 %v1227
    %2386 = vmatpush1.bf16.msra.mxu0 %v1226
    %2387 = vmatprep.subr.bf16.mxu0 %v1231
    %2388 = vmatpush1.bf16.msra.mxu0 %v1230
    %2389 = vmatprep.subr.bf16.mxu0 %v1235
    %2390 = vmatpush1.bf16.msra.mxu0 %v1234
    %2391 = vmatprep.subr.bf16.mxu0 %v1239
    %2392 = vmatpush1.bf16.msra.mxu0 %v1238
    %2393 = vmatprep.subr.bf16.mxu0 %v1243
    %2394 = vmatpush1.bf16.msra.mxu0 %v1242
    %2395 = vmatprep.subr.bf16.mxu0 %v1247
    %2396 = vmatpush1.bf16.msra.mxu0 %v1246
    %2397 = vmatprep.subr.bf16.mxu0 %v1251
    %2398 = vmatpush1.bf16.msra.mxu0 %v1250
    %2399 = vmatprep.subr.bf16.mxu0 0
    %2400 = vmatpush1.bf16.msra.mxu0 0
    %2401 = vmatprep.subr.bf16.mxu0 0
    %2402 = vmatpush1.bf16.msra.mxu0 0
    %2403 = vmatprep.subr.bf16.mxu0 0
    %2404 = vmatpush1.bf16.msra.mxu0 0
    %2405 = vmatprep.subr.bf16.mxu0 0
    %2406 = vmatpush1.bf16.msra.mxu0 0
    %2407 = vmatprep.subr.bf16.mxu0 0
    %2408 = vmatpush1.bf16.msra.mxu0 0
    %2409 = vmatprep.subr.bf16.mxu0 0
    %2410 = vmatpush1.bf16.msra.mxu0 0
    %2411 = vmatprep.subr.bf16.mxu0 0
    %2412 = vmatpush1.bf16.msra.mxu0 0
    %2413 = vmatprep.subr.bf16.mxu0 0
    %2414 = vmatpush1.bf16.msra.mxu0 0
    %2415 = vmatprep.mubr.bf16.mxu0 0
    %2416 = vmatmul.mubr.bf16.gmra.mrb[0].mxu0 %v2258
    %v2417 = vpop.f32.mrb[0].mxu0
    %v2418 = vadd.f32 %v2336, %v2417
    %v2419 = vpop.f32.mrb[0].mxu0
    %v2420 = vadd.f32 %v2338, %v2419
    %v2421 = vpop.f32.mrb[0].mxu0
    %v2422 = vpop.f32.mrb[0].mxu0
    %2423 = vdwg.mxu0
    %v2424 = vadd.f32 %v2377, %v1448
    %v2425 = vadd.f32 %v2379, %v1449
    %v2426 = vadd.f32 %v2418, %v1450
    %v2427 = vadd.f32 %v2420, %v1451
    %v2428 = vmul.f32 %v2424, 0.5
    %v2429 = vmul.f32 %v2425, 0.5
    %v2430 = vmul.f32 %v2426, 0.5
    %v2431 = vtanh.pop %v2428
    %v2432 = vtanh.pop %v2429
    %v2433 = vtanh.pop %v2430
    %v2434 = vmul.f32 %v2431, 0.5
    %v2435 = vmul.f32 %v2432, 0.5
    %v2436 = vmul.f32 %v2433, 0.5
    %v2437 = vadd.f32 %v2434, 0.5
    %v2438 = vadd.f32 %v2435, 0.5
    %v2439 = vadd.f32 %v2436, 0.5
    %v2440 = vtanh.pop %v2427
    %v2441 = vmul.f32 %v2438, %v1957
    %v2442 = vmul.f32 %v2437, %v2440
    %v2443 = vadd.f32 %v2441, %v2442
    %v2444 = vtanh.pop %v2443
    %v2445 = vmul.f32 %v2439, %v2444
    %s2446 = smul.u32 3, 4
    %s2447 = smul.addr %s2446, 8
    %s2448 = scalar_lea.vmem [#allocation2], %s2447
    %v2449 = vld [vmem:[%s2448] sm:$0xff]
    %v2450 = vld [vmem:[%s2448 + $0x8] sm:$0xff]
    %v2451 = vld [vmem:[%s2448 + $0x10] sm:$0xff]
    %v2452 = vld [vmem:[%s2448 + $0x18] sm:$0xff]
    %2453 = vmatprep.subr.bf16.mxu0 %v797
    %2454 = vmatpush1.bf16.msra.mxu0 %v796
    %2455 = vmatprep.subr.bf16.mxu0 %v801
    %2456 = vmatpush1.bf16.msra.mxu0 %v800
    %2457 = vmatprep.subr.bf16.mxu0 %v805
    %2458 = vmatpush1.bf16.msra.mxu0 %v804
    %2459 = vmatprep.subr.bf16.mxu0 %v809
    %2460 = vmatpush1.bf16.msra.mxu0 %v808
    %2461 = vmatprep.subr.bf16.mxu0 %v813
    %2462 = vmatpush1.bf16.msra.mxu0 %v812
    %2463 = vmatprep.subr.bf16.mxu0 %v817
    %2464 = vmatpush1.bf16.msra.mxu0 %v816
    %2465 = vmatprep.subr.bf16.mxu0 %v821
    %2466 = vmatpush1.bf16.msra.mxu0 %v820
    %2467 = vmatprep.subr.bf16.mxu0 %v825
    %2468 = vmatpush1.bf16.msra.mxu0 %v824
    %2469 = vmatprep.subr.bf16.mxu0 0
    %2470 = vmatpush1.bf16.msra.mxu0 0
    %2471 = vmatprep.subr.bf16.mxu0 0
    %2472 = vmatpush1.bf16.msra.mxu0 0
    %2473 = vmatprep.subr.bf16.mxu0 0
    %2474 = vmatpush1.bf16.msra.mxu0 0
    %2475 = vmatprep.subr.bf16.mxu0 0
    %2476 = vmatpush1.bf16.msra.mxu0 0
    %2477 = vmatprep.subr.bf16.mxu0 0
    %2478 = vmatpush1.bf16.msra.mxu0 0
    %2479 = vmatprep.subr.bf16.mxu0 0
    %2480 = vmatpush1.bf16.msra.mxu0 0
    %2481 = vmatprep.subr.bf16.mxu0 0
    %2482 = vmatpush1.bf16.msra.mxu0 0
    %2483 = vmatprep.subr.bf16.mxu0 0
    %2484 = vmatpush1.bf16.msra.mxu0 0
    %2485 = vmatprep.mubr.bf16.mxu0 0
    %2486 = vmatmul.mubr.bf16.gmra.mrb[0].mxu0 %v2071
    %v2487 = vpop.f32.mrb[0].mxu0
    %v2488 = vadd.f32 0.0, %v2487
    %v2489 = vpop.f32.mrb[0].mxu0
    %v2490 = vadd.f32 0.0, %v2489
    %v2491 = vpop.f32.mrb[0].mxu0
    %v2492 = vpop.f32.mrb[0].mxu0
    %2493 = vdwg.mxu0
    %2494 = vmatprep.subr.bf16.mxu0 %v799
    %2495 = vmatpush1.bf16.msra.mxu0 %v798
    %2496 = vmatprep.subr.bf16.mxu0 %v803
    %2497 = vmatpush1.bf16.msra.mxu0 %v802
    %2498 = vmatprep.subr.bf16.mxu0 %v807
    %2499 = vmatpush1.bf16.msra.mxu0 %v806
    %2500 = vmatprep.subr.bf16.mxu0 %v811
    %2501 = vmatpush1.bf16.msra.mxu0 %v810
    %2502 = vmatprep.subr.bf16.mxu0 %v815
    %2503 = vmatpush1.bf16.msra.mxu0 %v814
    %2504 = vmatprep.subr.bf16.mxu0 %v819
    %2505 = vmatpush1.bf16.msra.mxu0 %v818
    %2506 = vmatprep.subr.bf16.mxu0 %v823
    %2507 = vmatpush1.bf16.msra.mxu0 %v822
    %2508 = vmatprep.subr.bf16.mxu0 %v827
    %2509 = vmatpush1.bf16.msra.mxu0 %v826
    %2510 = vmatprep.subr.bf16.mxu0 0
    %2511 = vmatpush1.bf16.msra.mxu0 0
    %2512 = vmatprep.subr.bf16.mxu0 0
    %2513 = vmatpush1.bf16.msra.mxu0 0
    %2514 = vmatprep.subr.bf16.mxu0 0
    %2515 = vmatpush1.bf16.msra.mxu0 0
    %2516 = vmatprep.subr.bf16.mxu0 0
    %2517 = vmatpush1.bf16.msra.mxu0 0
    %2518 = vmatprep.subr.bf16.mxu0 0
    %2519 = vmatpush1.bf16.msra.mxu0 0
    %2520 = vmatprep.subr.bf16.mxu0 0
    %2521 = vmatpush1.bf16.msra.mxu0 0
    %2522 = vmatprep.subr.bf16.mxu0 0
    %2523 = vmatpush1.bf16.msra.mxu0 0
    %2524 = vmatprep.subr.bf16.mxu0 0
    %2525 = vmatpush1.bf16.msra.mxu0 0
    %2526 = vmatprep.mubr.bf16.mxu0 0
    %2527 = vmatmul.mubr.bf16.gmra.mrb[0].mxu0 %v2071
    %v2528 = vpop.f32.mrb[0].mxu0
    %v2529 = vadd.f32 0.0, %v2528
    %v2530 = vpop.f32.mrb[0].mxu0
    %v2531 = vadd.f32 0.0, %v2530
    %v2532 = vpop.f32.mrb[0].mxu0
    %v2533 = vpop.f32.mrb[0].mxu0
    %2534 = vdwg.mxu0
    %v2535 = vadd.f32 %v2449, %v2488
    %v2536 = vadd.f32 %v2450, %v2490
    %v2537 = vadd.f32 %v2451, %v2529
    %v2538 = vadd.f32 %v2452, %v2531
    %v2539 = vmul.f32 %v2535, 0.5
    %v2540 = vmul.f32 %v2536, 0.5
    %v2541 = vmul.f32 %v2537, 0.5
    %v2542 = vtanh.pop %v2539
    %v2543 = vtanh.pop %v2540
    %v2544 = vtanh.pop %v2541
    %v2545 = vmul.f32 %v2542, 0.5
    %v2546 = vmul.f32 %v2543, 0.5
    %v2547 = vmul.f32 %v2544, 0.5
    %v2548 = vadd.f32 %v2545, 0.5
    %v2549 = vadd.f32 %v2546, 0.5
    %v2550 = vadd.f32 %v2547, 0.5
    %v2551 = vtanh.pop %v2538
    %v2552 = vmul.f32 %v2549, %v2068
    %v2553 = vmul.f32 %v2548, %v2551
    %v2554 = vadd.f32 %v2552, %v2553
    %v2555 = vtanh.pop %v2554
    %v2556 = vmul.f32 %v2550, %v2555
    %v2557 = vpack.c.bf16 %v2556, %v2556
    %2558 = vmatprep.subr.bf16.mxu0 %v998
    %2559 = vmatpush1.bf16.msra.mxu0 %v997
    %2560 = vmatprep.subr.bf16.mxu0 %v1002
    %2561 = vmatpush1.bf16.msra.mxu0 %v1001
    %2562 = vmatprep.subr.bf16.mxu0 %v1006
    %2563 = vmatpush1.bf16.msra.mxu0 %v1005
    %2564 = vmatprep.subr.bf16.mxu0 %v1010
    %2565 = vmatpush1.bf16.msra.mxu0 %v1009
    %2566 = vmatprep.subr.bf16.mxu0 %v1014
    %2567 = vmatpush1.bf16.msra.mxu0 %v1013
    %2568 = vmatprep.subr.bf16.mxu0 %v1018
    %2569 = vmatpush1.bf16.msra.mxu0 %v1017
    %2570 = vmatprep.subr.bf16.mxu0 %v1022
    %2571 = vmatpush1.bf16.msra.mxu0 %v1021
    %2572 = vmatprep.subr.bf16.mxu0 %v1026
    %2573 = vmatpush1.bf16.msra.mxu0 %v1025
    %2574 = vmatprep.subr.bf16.mxu0 0
    %2575 = vmatpush1.bf16.msra.mxu0 0
    %2576 = vmatprep.subr.bf16.mxu0 0
    %2577 = vmatpush1.bf16.msra.mxu0 0
    %2578 = vmatprep.subr.bf16.mxu0 0
    %2579 = vmatpush1.bf16.msra.mxu0 0
    %2580 = vmatprep.subr.bf16.mxu0 0
    %2581 = vmatpush1.bf16.msra.mxu0 0
    %2582 = vmatprep.subr.bf16.mxu0 0
    %2583 = vmatpush1.bf16.msra.mxu0 0
    %2584 = vmatprep.subr.bf16.mxu0 0
    %2585 = vmatpush1.bf16.msra.mxu0 0
    %2586 = vmatprep.subr.bf16.mxu0 0
    %2587 = vmatpush1.bf16.msra.mxu0 0
    %2588 = vmatprep.subr.bf16.mxu0 0
    %2589 = vmatpush1.bf16.msra.mxu0 0
    %2590 = vmatprep.mubr.bf16.mxu0 0
    %2591 = vmatmul.mubr.bf16.gmra.mrb[0].mxu0 %v2258
    %v2592 = vpop.f32.mrb[0].mxu0
    %v2593 = vadd.f32 0.0, %v2592
    %v2594 = vpop.f32.mrb[0].mxu0
    %v2595 = vadd.f32 0.0, %v2594
    %v2596 = vpop.f32.mrb[0].mxu0
    %v2597 = vpop.f32.mrb[0].mxu0
    %2598 = vdwg.mxu0
    %2599 = vmatprep.subr.bf16.mxu0 %v1000
    %2600 = vmatpush1.bf16.msra.mxu0 %v999
    %2601 = vmatprep.subr.bf16.mxu0 %v1004
    %2602 = vmatpush1.bf16.msra.mxu0 %v1003
    %2603 = vmatprep.subr.bf16.mxu0 %v1008
    %2604 = vmatpush1.bf16.msra.mxu0 %v1007
    %2605 = vmatprep.subr.bf16.mxu0 %v1012
    %2606 = vmatpush1.bf16.msra.mxu0 %v1011
    %2607 = vmatprep.subr.bf16.mxu0 %v1016
    %2608 = vmatpush1.bf16.msra.mxu0 %v1015
    %2609 = vmatprep.subr.bf16.mxu0 %v1020
    %2610 = vmatpush1.bf16.msra.mxu0 %v1019
    %2611 = vmatprep.subr.bf16.mxu0 %v1024
    %2612 = vmatpush1.bf16.msra.mxu0 %v1023
    %2613 = vmatprep.subr.bf16.mxu0 %v1028
    %2614 = vmatpush1.bf16.msra.mxu0 %v1027
    %2615 = vmatprep.subr.bf16.mxu0 0
    %2616 = vmatpush1.bf16.msra.mxu0 0
    %2617 = vmatprep.subr.bf16.mxu0 0
    %2618 = vmatpush1.bf16.msra.mxu0 0
    %2619 = vmatprep.subr.bf16.mxu0 0
    %2620 = vmatpush1.bf16.msra.mxu0 0
    %2621 = vmatprep.subr.bf16.mxu0 0
    %2622 = vmatpush1.bf16.msra.mxu0 0
    %2623 = vmatprep.subr.bf16.mxu0 0
    %2624 = vmatpush1.bf16.msra.mxu0 0
    %2625 = vmatprep.subr.bf16.mxu0 0
    %2626 = vmatpush1.bf16.msra.mxu0 0
    %2627 = vmatprep.subr.bf16.mxu0 0
    %2628 = vmatpush1.bf16.msra.mxu0 0
    %2629 = vmatprep.subr.bf16.mxu0 0
    %2630 = vmatpush1.bf16.msra.mxu0 0
    %2631 = vmatprep.mubr.bf16.mxu0 0
    %2632 = vmatmul.mubr.bf16.gmra.mrb[0].mxu0 %v2258
    %v2633 = vpop.f32.mrb[0].mxu0
    %v2634 = vadd.f32 0.0, %v2633
    %v2635 = vpop.f32.mrb[0].mxu0
    %v2636 = vadd.f32 0.0, %v2635
    %v2637 = vpop.f32.mrb[0].mxu0
    %v2638 = vpop.f32.mrb[0].mxu0
    %2639 = vdwg.mxu0
    %2640 = vmatprep.subr.bf16.mxu0 %v966
    %2641 = vmatpush1.bf16.msra.mxu0 %v965
    %2642 = vmatprep.subr.bf16.mxu0 %v970
    %2643 = vmatpush1.bf16.msra.mxu0 %v969
    %2644 = vmatprep.subr.bf16.mxu0 %v974
    %2645 = vmatpush1.bf16.msra.mxu0 %v973
    %2646 = vmatprep.subr.bf16.mxu0 %v978
    %2647 = vmatpush1.bf16.msra.mxu0 %v977
    %2648 = vmatprep.subr.bf16.mxu0 %v982
    %2649 = vmatpush1.bf16.msra.mxu0 %v981
    %2650 = vmatprep.subr.bf16.mxu0 %v986
    %2651 = vmatpush1.bf16.msra.mxu0 %v985
    %2652 = vmatprep.subr.bf16.mxu0 %v990
    %2653 = vmatpush1.bf16.msra.mxu0 %v989
    %2654 = vmatprep.subr.bf16.mxu0 %v994
    %2655 = vmatpush1.bf16.msra.mxu0 %v993
    %2656 = vmatprep.subr.bf16.mxu0 0
    %2657 = vmatpush1.bf16.msra.mxu0 0
    %2658 = vmatprep.subr.bf16.mxu0 0
    %2659 = vmatpush1.bf16.msra.mxu0 0
    %2660 = vmatprep.subr.bf16.mxu0 0
    %2661 = vmatpush1.bf16.msra.mxu0 0
    %2662 = vmatprep.subr.bf16.mxu0 0
    %2663 = vmatpush1.bf16.msra.mxu0 0
    %2664 = vmatprep.subr.bf16.mxu0 0
    %2665 = vmatpush1.bf16.msra.mxu0 0
    %2666 = vmatprep.subr.bf16.mxu0 0
    %2667 = vmatpush1.bf16.msra.mxu0 0
    %2668 = vmatprep.subr.bf16.mxu0 0
    %2669 = vmatpush1.bf16.msra.mxu0 0
    %2670 = vmatprep.subr.bf16.mxu0 0
    %2671 = vmatpush1.bf16.msra.mxu0 0
    %2672 = vmatprep.mubr.bf16.mxu0 0
    %2673 = vmatmul.mubr.bf16.gmra.mrb[0].mxu0 %v2557
    %v2674 = vpop.f32.mrb[0].mxu0
    %v2675 = vadd.f32 %v2593, %v2674
    %v2676 = vpop.f32.mrb[0].mxu0
    %v2677 = vadd.f32 %v2595, %v2676
    %v2678 = vpop.f32.mrb[0].mxu0
    %v2679 = vpop.f32.mrb[0].mxu0
    %2680 = vdwg.mxu0
    %2681 = vmatprep.subr.bf16.mxu0 %v968
    %2682 = vmatpush1.bf16.msra.mxu0 %v967
    %2683 = vmatprep.subr.bf16.mxu0 %v972
    %2684 = vmatpush1.bf16.msra.mxu0 %v971
    %2685 = vmatprep.subr.bf16.mxu0 %v976
    %2686 = vmatpush1.bf16.msra.mxu0 %v975
    %2687 = vmatprep.subr.bf16.mxu0 %v980
    %2688 = vmatpush1.bf16.msra.mxu0 %v979
    %2689 = vmatprep.subr.bf16.mxu0 %v984
    %2690 = vmatpush1.bf16.msra.mxu0 %v983
    %2691 = vmatprep.subr.bf16.mxu0 %v988
    %2692 = vmatpush1.bf16.msra.mxu0 %v987
    %2693 = vmatprep.subr.bf16.mxu0 %v992
    %2694 = vmatpush1.bf16.msra.mxu0 %v991
    %2695 = vmatprep.subr.bf16.mxu0 %v996
    %2696 = vmatpush1.bf16.msra.mxu0 %v995
    %2697 = vmatprep.subr.bf16.mxu0 0
    %2698 = vmatpush1.bf16.msra.mxu0 0
    %2699 = vmatprep.subr.bf16.mxu0 0
    %2700 = vmatpush1.bf16.msra.mxu0 0
    %2701 = vmatprep.subr.bf16.mxu0 0
    %2702 = vmatpush1.bf16.msra.mxu0 0
    %2703 = vmatprep.subr.bf16.mxu0 0
    %2704 = vmatpush1.bf16.msra.mxu0 0
    %2705 = vmatprep.subr.bf16.mxu0 0
    %2706 = vmatpush1.bf16.msra.mxu0 0
    %2707 = vmatprep.subr.bf16.mxu0 0
    %2708 = vmatpush1.bf16.msra.mxu0 0
    %2709 = vmatprep.subr.bf16.mxu0 0
    %2710 = vmatpush1.bf16.msra.mxu0 0
    %2711 = vmatprep.subr.bf16.mxu0 0
    %2712 = vmatpush1.bf16.msra.mxu0 0
    %2713 = vmatprep.mubr.bf16.mxu0 0
    %2714 = vmatmul.mubr.bf16.gmra.mrb[0].mxu0 %v2557
    %v2715 = vpop.f32.mrb[0].mxu0
    %v2716 = vadd.f32 %v2634, %v2715
    %v2717 = vpop.f32.mrb[0].mxu0
    %v2718 = vadd.f32 %v2636, %v2717
    %v2719 = vpop.f32.mrb[0].mxu0
    %v2720 = vpop.f32.mrb[0].mxu0
    %2721 = vdwg.mxu0
    %v2722 = vadd.f32 %v2675, %v1193
    %v2723 = vadd.f32 %v2677, %v1194
    %v2724 = vadd.f32 %v2716, %v1195
    %v2725 = vadd.f32 %v2718, %v1196
    %v2726 = vmul.f32 %v2722, 0.5
    %v2727 = vmul.f32 %v2723, 0.5
    %v2728 = vmul.f32 %v2724, 0.5
    %v2729 = vtanh.pop %v2726
    %v2730 = vtanh.pop %v2727
    %v2731 = vtanh.pop %v2728
    %v2732 = vmul.f32 %v2729, 0.5
    %v2733 = vmul.f32 %v2730, 0.5
    %v2734 = vmul.f32 %v2731, 0.5
    %v2735 = vadd.f32 %v2732, 0.5
    %v2736 = vadd.f32 %v2733, 0.5
    %v2737 = vadd.f32 %v2734, 0.5
    %v2738 = vtanh.pop %v2725
    %v2739 = vmul.f32 %v2736, %v2255
    %v2740 = vmul.f32 %v2735, %v2738
    %v2741 = vadd.f32 %v2739, %v2740
    %v2742 = vtanh.pop %v2741
    %v2743 = vmul.f32 %v2737, %v2742
    %v2744 = vpack.c.bf16 %v2743, %v2743
    %v2745 = vpack.c.bf16 %v2445, %v2445
    %2746 = vmatprep.subr.bf16.mxu0 %v1253
    %2747 = vmatpush1.bf16.msra.mxu0 %v1252
    %2748 = vmatprep.subr.bf16.mxu0 %v1257
    %2749 = vmatpush1.bf16.msra.mxu0 %v1256
    %2750 = vmatprep.subr.bf16.mxu0 %v1261
    %2751 = vmatpush1.bf16.msra.mxu0 %v1260
    %2752 = vmatprep.subr.bf16.mxu0 %v1265
    %2753 = vmatpush1.bf16.msra.mxu0 %v1264
    %2754 = vmatprep.subr.bf16.mxu0 %v1269
    %2755 = vmatpush1.bf16.msra.mxu0 %v1268
    %2756 = vmatprep.subr.bf16.mxu0 %v1273
    %2757 = vmatpush1.bf16.msra.mxu0 %v1272
    %2758 = vmatprep.subr.bf16.mxu0 %v1277
    %2759 = vmatpush1.bf16.msra.mxu0 %v1276
    %2760 = vmatprep.subr.bf16.mxu0 %v1281
    %2761 = vmatpush1.bf16.msra.mxu0 %v1280
    %2762 = vmatprep.subr.bf16.mxu0 0
    %2763 = vmatpush1.bf16.msra.mxu0 0
    %2764 = vmatprep.subr.bf16.mxu0 0
    %2765 = vmatpush1.bf16.msra.mxu0 0
    %2766 = vmatprep.subr.bf16.mxu0 0
    %2767 = vmatpush1.bf16.msra.mxu0 0
    %2768 = vmatprep.subr.bf16.mxu0 0
    %2769 = vmatpush1.bf16.msra.mxu0 0
    %2770 = vmatprep.subr.bf16.mxu0 0
    %2771 = vmatpush1.bf16.msra.mxu0 0
    %2772 = vmatprep.subr.bf16.mxu0 0
    %2773 = vmatpush1.bf16.msra.mxu0 0
    %2774 = vmatprep.subr.bf16.mxu0 0
    %2775 = vmatpush1.bf16.msra.mxu0 0
    %2776 = vmatprep.subr.bf16.mxu0 0
    %2777 = vmatpush1.bf16.msra.mxu0 0
    %2778 = vmatprep.mubr.bf16.mxu0 0
    %2779 = vmatmul.mubr.bf16.gmra.mrb[0].mxu0 %v2745
    %v2780 = vpop.f32.mrb[0].mxu0
    %v2781 = vadd.f32 0.0, %v2780
    %v2782 = vpop.f32.mrb[0].mxu0
    %v2783 = vadd.f32 0.0, %v2782
    %v2784 = vpop.f32.mrb[0].mxu0
    %v2785 = vpop.f32.mrb[0].mxu0
    %2786 = vdwg.mxu0
    %2787 = vmatprep.subr.bf16.mxu0 %v1255
    %2788 = vmatpush1.bf16.msra.mxu0 %v1254
    %2789 = vmatprep.subr.bf16.mxu0 %v1259
    %2790 = vmatpush1.bf16.msra.mxu0 %v1258
    %2791 = vmatprep.subr.bf16.mxu0 %v1263
    %2792 = vmatpush1.bf16.msra.mxu0 %v1262
    %2793 = vmatprep.subr.bf16.mxu0 %v1267
    %2794 = vmatpush1.bf16.msra.mxu0 %v1266
    %2795 = vmatprep.subr.bf16.mxu0 %v1271
    %2796 = vmatpush1.bf16.msra.mxu0 %v1270
    %2797 = vmatprep.subr.bf16.mxu0 %v1275
    %2798 = vmatpush1.bf16.msra.mxu0 %v1274
    %2799 = vmatprep.subr.bf16.mxu0 %v1279
    %2800 = vmatpush1.bf16.msra.mxu0 %v1278
    %2801 = vmatprep.subr.bf16.mxu0 %v1283
    %2802 = vmatpush1.bf16.msra.mxu0 %v1282
    %2803 = vmatprep.subr.bf16.mxu0 0
    %2804 = vmatpush1.bf16.msra.mxu0 0
    %2805 = vmatprep.subr.bf16.mxu0 0
    %2806 = vmatpush1.bf16.msra.mxu0 0
    %2807 = vmatprep.subr.bf16.mxu0 0
    %2808 = vmatpush1.bf16.msra.mxu0 0
    %2809 = vmatprep.subr.bf16.mxu0 0
    %2810 = vmatpush1.bf16.msra.mxu0 0
    %2811 = vmatprep.subr.bf16.mxu0 0
    %2812 = vmatpush1.bf16.msra.mxu0 0
    %2813 = vmatprep.subr.bf16.mxu0 0
    %2814 = vmatpush1.bf16.msra.mxu0 0
    %2815 = vmatprep.subr.bf16.mxu0 0
    %2816 = vmatpush1.bf16.msra.mxu0 0
    %2817 = vmatprep.subr.bf16.mxu0 0
    %2818 = vmatpush1.bf16.msra.mxu0 0
    %2819 = vmatprep.mubr.bf16.mxu0 0
    %2820 = vmatmul.mubr.bf16.gmra.mrb[0].mxu0 %v2745
    %v2821 = vpop.f32.mrb[0].mxu0
    %v2822 = vadd.f32 0.0, %v2821
    %v2823 = vpop.f32.mrb[0].mxu0
    %v2824 = vadd.f32 0.0, %v2823
    %v2825 = vpop.f32.mrb[0].mxu0
    %v2826 = vpop.f32.mrb[0].mxu0
    %2827 = vdwg.mxu0
    %2828 = vmatprep.subr.bf16.mxu0 %v1221
    %2829 = vmatpush1.bf16.msra.mxu0 %v1220
    %2830 = vmatprep.subr.bf16.mxu0 %v1225
    %2831 = vmatpush1.bf16.msra.mxu0 %v1224
    %2832 = vmatprep.subr.bf16.mxu0 %v1229
    %2833 = vmatpush1.bf16.msra.mxu0 %v1228
    %2834 = vmatprep.subr.bf16.mxu0 %v1233
    %2835 = vmatpush1.bf16.msra.mxu0 %v1232
    %2836 = vmatprep.subr.bf16.mxu0 %v1237
    %2837 = vmatpush1.bf16.msra.mxu0 %v1236
    %2838 = vmatprep.subr.bf16.mxu0 %v1241
    %2839 = vmatpush1.bf16.msra.mxu0 %v1240
    %2840 = vmatprep.subr.bf16.mxu0 %v1245
    %2841 = vmatpush1.bf16.msra.mxu0 %v1244
    %2842 = vmatprep.subr.bf16.mxu0 %v1249
    %2843 = vmatpush1.bf16.msra.mxu0 %v1248
    %2844 = vmatprep.subr.bf16.mxu0 0
    %2845 = vmatpush1.bf16.msra.mxu0 0
    %2846 = vmatprep.subr.bf16.mxu0 0
    %2847 = vmatpush1.bf16.msra.mxu0 0
    %2848 = vmatprep.subr.bf16.mxu0 0
    %2849 = vmatpush1.bf16.msra.mxu0 0
    %2850 = vmatprep.subr.bf16.mxu0 0
    %2851 = vmatpush1.bf16.msra.mxu0 0
    %2852 = vmatprep.subr.bf16.mxu0 0
    %2853 = vmatpush1.bf16.msra.mxu0 0
    %2854 = vmatprep.subr.bf16.mxu0 0
    %2855 = vmatpush1.bf16.msra.mxu0 0
    %2856 = vmatprep.subr.bf16.mxu0 0
    %2857 = vmatpush1.bf16.msra.mxu0 0
    %2858 = vmatprep.subr.bf16.mxu0 0
    %2859 = vmatpush1.bf16.msra.mxu0 0
    %2860 = vmatprep.mubr.bf16.mxu0 0
    %2861 = vmatmul.mubr.bf16.gmra.mrb[0].mxu0 %v2744
    %v2862 = vpop.f32.mrb[0].mxu0
    %v2863 = vadd.f32 %v2781, %v2862
    %v2864 = vpop.f32.mrb[0].mxu0
    %v2865 = vadd.f32 %v2783, %v2864
    %v2866 = vpop.f32.mrb[0].mxu0
    %v2867 = vpop.f32.mrb[0].mxu0
    %2868 = vdwg.mxu0
    %2869 = vmatprep.subr.bf16.mxu0 %v1223
    %2870 = vmatpush1.bf16.msra.mxu0 %v1222
    %2871 = vmatprep.subr.bf16.mxu0 %v1227
    %2872 = vmatpush1.bf16.msra.mxu0 %v1226
    %2873 = vmatprep.subr.bf16.mxu0 %v1231
    %2874 = vmatpush1.bf16.msra.mxu0 %v1230
    %2875 = vmatprep.subr.bf16.mxu0 %v1235
    %2876 = vmatpush1.bf16.msra.mxu0 %v1234
    %2877 = vmatprep.subr.bf16.mxu0 %v1239
    %2878 = vmatpush1.bf16.msra.mxu0 %v1238
    %2879 = vmatprep.subr.bf16.mxu0 %v1243
    %2880 = vmatpush1.bf16.msra.mxu0 %v1242
    %2881 = vmatprep.subr.bf16.mxu0 %v1247
    %2882 = vmatpush1.bf16.msra.mxu0 %v1246
    %2883 = vmatprep.subr.bf16.mxu0 %v1251
    %2884 = vmatpush1.bf16.msra.mxu0 %v1250
    %2885 = vmatprep.subr.bf16.mxu0 0
    %2886 = vmatpush1.bf16.msra.mxu0 0
    %2887 = vmatprep.subr.bf16.mxu0 0
    %2888 = vmatpush1.bf16.msra.mxu0 0
    %2889 = vmatprep.subr.bf16.mxu0 0
    %2890 = vmatpush1.bf16.msra.mxu0 0
    %2891 = vmatprep.subr.bf16.mxu0 0
    %2892 = vmatpush1.bf16.msra.mxu0 0
    %2893 = vmatprep.subr.bf16.mxu0 0
    %2894 = vmatpush1.bf16.msra.mxu0 0
    %2895 = vmatprep.subr.bf16.mxu0 0
    %2896 = vmatpush1.bf16.msra.mxu0 0
    %2897 = vmatprep.subr.bf16.mxu0 0
    %2898 = vmatpush1.bf16.msra.mxu0 0
    %2899 = vmatprep.subr.bf16.mxu0 0
    %2900 = vmatpush1.bf16.msra.mxu0 0
    %2901 = vmatprep.mubr.bf16.mxu0 0
    %2902 = vmatmul.mubr.bf16.gmra.mrb[0].mxu0 %v2744
    %v2903 = vpop.f32.mrb[0].mxu0
    %v2904 = vadd.f32 %v2822, %v2903
    %v2905 = vpop.f32.mrb[0].mxu0
    %v2906 = vadd.f32 %v2824, %v2905
    %v2907 = vpop.f32.mrb[0].mxu0
    %v2908 = vpop.f32.mrb[0].mxu0
    %2909 = vdwg.mxu0
    %v2910 = vadd.f32 %v2863, %v1448
    %v2911 = vadd.f32 %v2865, %v1449
    %v2912 = vadd.f32 %v2904, %v1450
    %v2913 = vadd.f32 %v2906, %v1451
    %v2914 = vmul.f32 %v2910, 0.5
    %v2915 = vmul.f32 %v2911, 0.5
    %v2916 = vmul.f32 %v2912, 0.5
    %v2917 = vtanh.pop %v2914
    %v2918 = vtanh.pop %v2915
    %v2919 = vtanh.pop %v2916
    %v2920 = vmul.f32 %v2917, 0.5
    %v2921 = vmul.f32 %v2918, 0.5
    %v2922 = vmul.f32 %v2919, 0.5
    %v2923 = vadd.f32 %v2920, 0.5
    %v2924 = vadd.f32 %v2921, 0.5
    %v2925 = vadd.f32 %v2922, 0.5
    %v2926 = vtanh.pop %v2913
    %v2927 = vmul.f32 %v2924, %v2443
    %v2928 = vmul.f32 %v2923, %v2926
    %v2929 = vadd.f32 %v2927, %v2928
    %v2930 = vtanh.pop %v2929
    %v2931 = vmul.f32 %v2925, %v2930
    %s2932 = smul.u32 4, 4
    %s2933 = smul.addr %s2932, 8
    %s2934 = scalar_lea.vmem [#allocation2], %s2933
    %v2935 = vld [vmem:[%s2934] sm:$0xff]
    %v2936 = vld [vmem:[%s2934 + $0x8] sm:$0xff]
    %v2937 = vld [vmem:[%s2934 + $0x10] sm:$0xff]
    %v2938 = vld [vmem:[%s2934 + $0x18] sm:$0xff]
    %2939 = vmatprep.subr.bf16.mxu0 %v797
    %2940 = vmatpush1.bf16.msra.mxu0 %v796
    %2941 = vmatprep.subr.bf16.mxu0 %v801
    %2942 = vmatpush1.bf16.msra.mxu0 %v800
    %2943 = vmatprep.subr.bf16.mxu0 %v805
    %2944 = vmatpush1.bf16.msra.mxu0 %v804
    %2945 = vmatprep.subr.bf16.mxu0 %v809
    %2946 = vmatpush1.bf16.msra.mxu0 %v808
    %2947 = vmatprep.subr.bf16.mxu0 %v813
    %2948 = vmatpush1.bf16.msra.mxu0 %v812
    %2949 = vmatprep.subr.bf16.mxu0 %v817
    %2950 = vmatpush1.bf16.msra.mxu0 %v816
    %2951 = vmatprep.subr.bf16.mxu0 %v821
    %2952 = vmatpush1.bf16.msra.mxu0 %v820
    %2953 = vmatprep.subr.bf16.mxu0 %v825
    %2954 = vmatpush1.bf16.msra.mxu0 %v824
    %2955 = vmatprep.subr.bf16.mxu0 0
    %2956 = vmatpush1.bf16.msra.mxu0 0
    %2957 = vmatprep.subr.bf16.mxu0 0
    %2958 = vmatpush1.bf16.msra.mxu0 0
    %2959 = vmatprep.subr.bf16.mxu0 0
    %2960 = vmatpush1.bf16.msra.mxu0 0
    %2961 = vmatprep.subr.bf16.mxu0 0
    %2962 = vmatpush1.bf16.msra.mxu0 0
    %2963 = vmatprep.subr.bf16.mxu0 0
    %2964 = vmatpush1.bf16.msra.mxu0 0
    %2965 = vmatprep.subr.bf16.mxu0 0
    %2966 = vmatpush1.bf16.msra.mxu0 0
    %2967 = vmatprep.subr.bf16.mxu0 0
    %2968 = vmatpush1.bf16.msra.mxu0 0
    %2969 = vmatprep.subr.bf16.mxu0 0
    %2970 = vmatpush1.bf16.msra.mxu0 0
    %2971 = vmatprep.mubr.bf16.mxu0 0
    %2972 = vmatmul.mubr.bf16.gmra.mrb[0].mxu0 %v2557
    %v2973 = vpop.f32.mrb[0].mxu0
    %v2974 = vadd.f32 0.0, %v2973
    %v2975 = vpop.f32.mrb[0].mxu0
    %v2976 = vadd.f32 0.0, %v2975
    %v2977 = vpop.f32.mrb[0].mxu0
    %v2978 = vpop.f32.mrb[0].mxu0
    %2979 = vdwg.mxu0
    %2980 = vmatprep.subr.bf16.mxu0 %v799
    %2981 = vmatpush1.bf16.msra.mxu0 %v798
    %2982 = vmatprep.subr.bf16.mxu0 %v803
    %2983 = vmatpush1.bf16.msra.mxu0 %v802
    %2984 = vmatprep.subr.bf16.mxu0 %v807
    %2985 = vmatpush1.bf16.msra.mxu0 %v806
    %2986 = vmatprep.subr.bf16.mxu0 %v811
    %2987 = vmatpush1.bf16.msra.mxu0 %v810
    %2988 = vmatprep.subr.bf16.mxu0 %v815
    %2989 = vmatpush1.bf16.msra.mxu0 %v814
    %2990 = vmatprep.subr.bf16.mxu0 %v819
    %2991 = vmatpush1.bf16.msra.mxu0 %v818
    %2992 = vmatprep.subr.bf16.mxu0 %v823
    %2993 = vmatpush1.bf16.msra.mxu0 %v822
    %2994 = vmatprep.subr.bf16.mxu0 %v827
    %2995 = vmatpush1.bf16.msra.mxu0 %v826
    %2996 = vmatprep.subr.bf16.mxu0 0
    %2997 = vmatpush1.bf16.msra.mxu0 0
    %2998 = vmatprep.subr.bf16.mxu0 0
    %2999 = vmatpush1.bf16.msra.mxu0 0
    %3000 = vmatprep.subr.bf16.mxu0 0
    %3001 = vmatpush1.bf16.msra.mxu0 0
    %3002 = vmatprep.subr.bf16.mxu0 0
    %3003 = vmatpush1.bf16.msra.mxu0 0
    %3004 = vmatprep.subr.bf16.mxu0 0
    %3005 = vmatpush1.bf16.msra.mxu0 0
    %3006 = vmatprep.subr.bf16.mxu0 0
    %3007 = vmatpush1.bf16.msra.mxu0 0
    %3008 = vmatprep.subr.bf16.mxu0 0
    %3009 = vmatpush1.bf16.msra.mxu0 0
    %3010 = vmatprep.subr.bf16.mxu0 0
    %3011 = vmatpush1.bf16.msra.mxu0 0
    %3012 = vmatprep.mubr.bf16.mxu0 0
    %3013 = vmatmul.mubr.bf16.gmra.mrb[0].mxu0 %v2557
    %v3014 = vpop.f32.mrb[0].mxu0
    %v3015 = vadd.f32 0.0, %v3014
    %v3016 = vpop.f32.mrb[0].mxu0
    %v3017 = vadd.f32 0.0, %v3016
    %v3018 = vpop.f32.mrb[0].mxu0
    %v3019 = vpop.f32.mrb[0].mxu0
    %3020 = vdwg.mxu0
    %v3021 = vadd.f32 %v2935, %v2974
    %v3022 = vadd.f32 %v2936, %v2976
    %v3023 = vadd.f32 %v2937, %v3015
    %v3024 = vadd.f32 %v2938, %v3017
    %v3025 = vmul.f32 %v3021, 0.5
    %v3026 = vmul.f32 %v3022, 0.5
    %v3027 = vmul.f32 %v3023, 0.5
    %v3028 = vtanh.pop %v3025
    %v3029 = vtanh.pop %v3026
    %v3030 = vtanh.pop %v3027
    %v3031 = vmul.f32 %v3028, 0.5
    %v3032 = vmul.f32 %v3029, 0.5
    %v3033 = vmul.f32 %v3030, 0.5
    %v3034 = vadd.f32 %v3031, 0.5
    %v3035 = vadd.f32 %v3032, 0.5
    %v3036 = vadd.f32 %v3033, 0.5
    %v3037 = vtanh.pop %v3024
    %v3038 = vmul.f32 %v3035, %v2554
    %v3039 = vmul.f32 %v3034, %v3037
    %v3040 = vadd.f32 %v3038, %v3039
    %v3041 = vtanh.pop %v3040
    %v3042 = vmul.f32 %v3036, %v3041
    %v3043 = vpack.c.bf16 %v3042, %v3042
    %3044 = vmatprep.subr.bf16.mxu0 %v998
    %3045 = vmatpush1.bf16.msra.mxu0 %v997
    %3046 = vmatprep.subr.bf16.mxu0 %v1002
    %3047 = vmatpush1.bf16.msra.mxu0 %v1001
    %3048 = vmatprep.subr.bf16.mxu0 %v1006
    %3049 = vmatpush1.bf16.msra.mxu0 %v1005
    %3050 = vmatprep.subr.bf16.mxu0 %v1010
    %3051 = vmatpush1.bf16.msra.mxu0 %v1009
    %3052 = vmatprep.subr.bf16.mxu0 %v1014
    %3053 = vmatpush1.bf16.msra.mxu0 %v1013
    %3054 = vmatprep.subr.bf16.mxu0 %v1018
    %3055 = vmatpush1.bf16.msra.mxu0 %v1017
    %3056 = vmatprep.subr.bf16.mxu0 %v1022
    %3057 = vmatpush1.bf16.msra.mxu0 %v1021
    %3058 = vmatprep.subr.bf16.mxu0 %v1026
    %3059 = vmatpush1.bf16.msra.mxu0 %v1025
    %3060 = vmatprep.subr.bf16.mxu0 0
    %3061 = vmatpush1.bf16.msra.mxu0 0
    %3062 = vmatprep.subr.bf16.mxu0 0
    %3063 = vmatpush1.bf16.msra.mxu0 0
    %3064 = vmatprep.subr.bf16.mxu0 0
    %3065 = vmatpush1.bf16.msra.mxu0 0
    %3066 = vmatprep.subr.bf16.mxu0 0
    %3067 = vmatpush1.bf16.msra.mxu0 0
    %3068 = vmatprep.subr.bf16.mxu0 0
    %3069 = vmatpush1.bf16.msra.mxu0 0
    %3070 = vmatprep.subr.bf16.mxu0 0
    %3071 = vmatpush1.bf16.msra.mxu0 0
    %3072 = vmatprep.subr.bf16.mxu0 0
    %3073 = vmatpush1.bf16.msra.mxu0 0
    %3074 = vmatprep.subr.bf16.mxu0 0
    %3075 = vmatpush1.bf16.msra.mxu0 0
    %3076 = vmatprep.mubr.bf16.mxu0 0
    %3077 = vmatmul.mubr.bf16.gmra.mrb[0].mxu0 %v2744
    %v3078 = vpop.f32.mrb[0].mxu0
    %v3079 = vadd.f32 0.0, %v3078
    %v3080 = vpop.f32.mrb[0].mxu0
    %v3081 = vadd.f32 0.0, %v3080
    %v3082 = vpop.f32.mrb[0].mxu0
    %v3083 = vpop.f32.mrb[0].mxu0
    %3084 = vdwg.mxu0
    %3085 = vmatprep.subr.bf16.mxu0 %v1000
    %3086 = vmatpush1.bf16.msra.mxu0 %v999
    %3087 = vmatprep.subr.bf16.mxu0 %v1004
    %3088 = vmatpush1.bf16.msra.mxu0 %v1003
    %3089 = vmatprep.subr.bf16.mxu0 %v1008
    %3090 = vmatpush1.bf16.msra.mxu0 %v1007
    %3091 = vmatprep.subr.bf16.mxu0 %v1012
    %3092 = vmatpush1.bf16.msra.mxu0 %v1011
    %3093 = vmatprep.subr.bf16.mxu0 %v1016
    %3094 = vmatpush1.bf16.msra.mxu0 %v1015
    %3095 = vmatprep.subr.bf16.mxu0 %v1020
    %3096 = vmatpush1.bf16.msra.mxu0 %v1019
    %3097 = vmatprep.subr.bf16.mxu0 %v1024
    %3098 = vmatpush1.bf16.msra.mxu0 %v1023
    %3099 = vmatprep.subr.bf16.mxu0 %v1028
    %3100 = vmatpush1.bf16.msra.mxu0 %v1027
    %3101 = vmatprep.subr.bf16.mxu0 0
    %3102 = vmatpush1.bf16.msra.mxu0 0
    %3103 = vmatprep.subr.bf16.mxu0 0
    %3104 = vmatpush1.bf16.msra.mxu0 0
    %3105 = vmatprep.subr.bf16.mxu0 0
    %3106 = vmatpush1.bf16.msra.mxu0 0
    %3107 = vmatprep.subr.bf16.mxu0 0
    %3108 = vmatpush1.bf16.msra.mxu0 0
    %3109 = vmatprep.subr.bf16.mxu0 0
    %3110 = vmatpush1.bf16.msra.mxu0 0
    %3111 = vmatprep.subr.bf16.mxu0 0
    %3112 = vmatpush1.bf16.msra.mxu0 0
    %3113 = vmatprep.subr.bf16.mxu0 0
    %3114 = vmatpush1.bf16.msra.mxu0 0
    %3115 = vmatprep.subr.bf16.mxu0 0
    %3116 = vmatpush1.bf16.msra.mxu0 0
    %3117 = vmatprep.mubr.bf16.mxu0 0
    %3118 = vmatmul.mubr.bf16.gmra.mrb[0].mxu0 %v2744
    %v3119 = vpop.f32.mrb[0].mxu0
    %v3120 = vadd.f32 0.0, %v3119
    %v3121 = vpop.f32.mrb[0].mxu0
    %v3122 = vadd.f32 0.0, %v3121
    %v3123 = vpop.f32.mrb[0].mxu0
    %v3124 = vpop.f32.mrb[0].mxu0
    %3125 = vdwg.mxu0
    %3126 = vmatprep.subr.bf16.mxu0 %v966
    %3127 = vmatpush1.bf16.msra.mxu0 %v965
    %3128 = vmatprep.subr.bf16.mxu0 %v970
    %3129 = vmatpush1.bf16.msra.mxu0 %v969
    %3130 = vmatprep.subr.bf16.mxu0 %v974
    %3131 = vmatpush1.bf16.msra.mxu0 %v973
    %3132 = vmatprep.subr.bf16.mxu0 %v978
    %3133 = vmatpush1.bf16.msra.mxu0 %v977
    %3134 = vmatprep.subr.bf16.mxu0 %v982
    %3135 = vmatpush1.bf16.msra.mxu0 %v981
    %3136 = vmatprep.subr.bf16.mxu0 %v986
    %3137 = vmatpush1.bf16.msra.mxu0 %v985
    %3138 = vmatprep.subr.bf16.mxu0 %v990
    %3139 = vmatpush1.bf16.msra.mxu0 %v989
    %3140 = vmatprep.subr.bf16.mxu0 %v994
    %3141 = vmatpush1.bf16.msra.mxu0 %v993
    %3142 = vmatprep.subr.bf16.mxu0 0
    %3143 = vmatpush1.bf16.msra.mxu0 0
    %3144 = vmatprep.subr.bf16.mxu0 0
    %3145 = vmatpush1.bf16.msra.mxu0 0
    %3146 = vmatprep.subr.bf16.mxu0 0
    %3147 = vmatpush1.bf16.msra.mxu0 0
    %3148 = vmatprep.subr.bf16.mxu0 0
    %3149 = vmatpush1.bf16.msra.mxu0 0
    %3150 = vmatprep.subr.bf16.mxu0 0
    %3151 = vmatpush1.bf16.msra.mxu0 0
    %3152 = vmatprep.subr.bf16.mxu0 0
    %3153 = vmatpush1.bf16.msra.mxu0 0
    %3154 = vmatprep.subr.bf16.mxu0 0
    %3155 = vmatpush1.bf16.msra.mxu0 0
    %3156 = vmatprep.subr.bf16.mxu0 0
    %3157 = vmatpush1.bf16.msra.mxu0 0
    %3158 = vmatprep.mubr.bf16.mxu0 0
    %3159 = vmatmul.mubr.bf16.gmra.mrb[0].mxu0 %v3043
    %v3160 = vpop.f32.mrb[0].mxu0
    %v3161 = vadd.f32 %v3079, %v3160
    %v3162 = vpop.f32.mrb[0].mxu0
    %v3163 = vadd.f32 %v3081, %v3162
    %v3164 = vpop.f32.mrb[0].mxu0
    %v3165 = vpop.f32.mrb[0].mxu0
    %3166 = vdwg.mxu0
    %3167 = vmatprep.subr.bf16.mxu0 %v968
    %3168 = vmatpush1.bf16.msra.mxu0 %v967
    %3169 = vmatprep.subr.bf16.mxu0 %v972
    %3170 = vmatpush1.bf16.msra.mxu0 %v971
    %3171 = vmatprep.subr.bf16.mxu0 %v976
    %3172 = vmatpush1.bf16.msra.mxu0 %v975
    %3173 = vmatprep.subr.bf16.mxu0 %v980
    %3174 = vmatpush1.bf16.msra.mxu0 %v979
    %3175 = vmatprep.subr.bf16.mxu0 %v984
    %3176 = vmatpush1.bf16.msra.mxu0 %v983
    %3177 = vmatprep.subr.bf16.mxu0 %v988
    %3178 = vmatpush1.bf16.msra.mxu0 %v987
    %3179 = vmatprep.subr.bf16.mxu0 %v992
    %3180 = vmatpush1.bf16.msra.mxu0 %v991
    %3181 = vmatprep.subr.bf16.mxu0 %v996
    %3182 = vmatpush1.bf16.msra.mxu0 %v995
    %3183 = vmatprep.subr.bf16.mxu0 0
    %3184 = vmatpush1.bf16.msra.mxu0 0
    %3185 = vmatprep.subr.bf16.mxu0 0
    %3186 = vmatpush1.bf16.msra.mxu0 0
    %3187 = vmatprep.subr.bf16.mxu0 0
    %3188 = vmatpush1.bf16.msra.mxu0 0
    %3189 = vmatprep.subr.bf16.mxu0 0
    %3190 = vmatpush1.bf16.msra.mxu0 0
    %3191 = vmatprep.subr.bf16.mxu0 0
    %3192 = vmatpush1.bf16.msra.mxu0 0
    %3193 = vmatprep.subr.bf16.mxu0 0
    %3194 = vmatpush1.bf16.msra.mxu0 0
    %3195 = vmatprep.subr.bf16.mxu0 0
    %3196 = vmatpush1.bf16.msra.mxu0 0
    %3197 = vmatprep.subr.bf16.mxu0 0
    %3198 = vmatpush1.bf16.msra.mxu0 0
    %3199 = vmatprep.mubr.bf16.mxu0 0
    %3200 = vmatmul.mubr.bf16.gmra.mrb[0].mxu0 %v3043
    %v3201 = vpop.f32.mrb[0].mxu0
    %v3202 = vadd.f32 %v3120, %v3201
    %v3203 = vpop.f32.mrb[0].mxu0
    %v3204 = vadd.f32 %v3122, %v3203
    %v3205 = vpop.f32.mrb[0].mxu0
    %v3206 = vpop.f32.mrb[0].mxu0
    %3207 = vdwg.mxu0
    %v3208 = vadd.f32 %v3161, %v1193
    %v3209 = vadd.f32 %v3163, %v1194
    %v3210 = vadd.f32 %v3202, %v1195
    %v3211 = vadd.f32 %v3204, %v1196
    %v3212 = vmul.f32 %v3208, 0.5
    %v3213 = vmul.f32 %v3209, 0.5
    %v3214 = vmul.f32 %v3210, 0.5
    %v3215 = vtanh.pop %v3212
    %v3216 = vtanh.pop %v3213
    %v3217 = vtanh.pop %v3214
    %v3218 = vmul.f32 %v3215, 0.5
    %v3219 = vmul.f32 %v3216, 0.5
    %v3220 = vmul.f32 %v3217, 0.5
    %v3221 = vadd.f32 %v3218, 0.5
    %v3222 = vadd.f32 %v3219, 0.5
    %v3223 = vadd.f32 %v3220, 0.5
    %v3224 = vtanh.pop %v3211
    %v3225 = vmul.f32 %v3222, %v2741
    %v3226 = vmul.f32 %v3221, %v3224
    %v3227 = vadd.f32 %v3225, %v3226
    %v3228 = vtanh.pop %v3227
    %v3229 = vmul.f32 %v3223, %v3228
    %v3230 = vpack.c.bf16 %v3229, %v3229
    %v3231 = vpack.c.bf16 %v2931, %v2931
    %3232 = vmatprep.subr.bf16.mxu0 %v1253
    %3233 = vmatpush1.bf16.msra.mxu0 %v1252
    %3234 = vmatprep.subr.bf16.mxu0 %v1257
    %3235 = vmatpush1.bf16.msra.mxu0 %v1256
    %3236 = vmatprep.subr.bf16.mxu0 %v1261
    %3237 = vmatpush1.bf16.msra.mxu0 %v1260
    %3238 = vmatprep.subr.bf16.mxu0 %v1265
    %3239 = vmatpush1.bf16.msra.mxu0 %v1264
    %3240 = vmatprep.subr.bf16.mxu0 %v1269
    %3241 = vmatpush1.bf16.msra.mxu0 %v1268
    %3242 = vmatprep.subr.bf16.mxu0 %v1273
    %3243 = vmatpush1.bf16.msra.mxu0 %v1272
    %3244 = vmatprep.subr.bf16.mxu0 %v1277
    %3245 = vmatpush1.bf16.msra.mxu0 %v1276
    %3246 = vmatprep.subr.bf16.mxu0 %v1281
    %3247 = vmatpush1.bf16.msra.mxu0 %v1280
    %3248 = vmatprep.subr.bf16.mxu0 0
    %3249 = vmatpush1.bf16.msra.mxu0 0
    %3250 = vmatprep.subr.bf16.mxu0 0
    %3251 = vmatpush1.bf16.msra.mxu0 0
    %3252 = vmatprep.subr.bf16.mxu0 0
    %3253 = vmatpush1.bf16.msra.mxu0 0
    %3254 = vmatprep.subr.bf16.mxu0 0
    %3255 = vmatpush1.bf16.msra.mxu0 0
    %3256 = vmatprep.subr.bf16.mxu0 0
    %3257 = vmatpush1.bf16.msra.mxu0 0
    %3258 = vmatprep.subr.bf16.mxu0 0
    %3259 = vmatpush1.bf16.msra.mxu0 0
    %3260 = vmatprep.subr.bf16.mxu0 0
    %3261 = vmatpush1.bf16.msra.mxu0 0
    %3262 = vmatprep.subr.bf16.mxu0 0
    %3263 = vmatpush1.bf16.msra.mxu0 0
    %3264 = vmatprep.mubr.bf16.mxu0 0
    %3265 = vmatmul.mubr.bf16.gmra.mrb[0].mxu0 %v3231
    %v3266 = vpop.f32.mrb[0].mxu0
    %v3267 = vadd.f32 0.0, %v3266
    %v3268 = vpop.f32.mrb[0].mxu0
    %v3269 = vadd.f32 0.0, %v3268
    %v3270 = vpop.f32.mrb[0].mxu0
    %v3271 = vpop.f32.mrb[0].mxu0
    %3272 = vdwg.mxu0
    %3273 = vmatprep.subr.bf16.mxu0 %v1255
    %3274 = vmatpush1.bf16.msra.mxu0 %v1254
    %3275 = vmatprep.subr.bf16.mxu0 %v1259
    %3276 = vmatpush1.bf16.msra.mxu0 %v1258
    %3277 = vmatprep.subr.bf16.mxu0 %v1263
    %3278 = vmatpush1.bf16.msra.mxu0 %v1262
    %3279 = vmatprep.subr.bf16.mxu0 %v1267
    %3280 = vmatpush1.bf16.msra.mxu0 %v1266
    %3281 = vmatprep.subr.bf16.mxu0 %v1271
    %3282 = vmatpush1.bf16.msra.mxu0 %v1270
    %3283 = vmatprep.subr.bf16.mxu0 %v1275
    %3284 = vmatpush1.bf16.msra.mxu0 %v1274
    %3285 = vmatprep.subr.bf16.mxu0 %v1279
    %3286 = vmatpush1.bf16.msra.mxu0 %v1278
    %3287 = vmatprep.subr.bf16.mxu0 %v1283
    %3288 = vmatpush1.bf16.msra.mxu0 %v1282
    %3289 = vmatprep.subr.bf16.mxu0 0
    %3290 = vmatpush1.bf16.msra.mxu0 0
    %3291 = vmatprep.subr.bf16.mxu0 0
    %3292 = vmatpush1.bf16.msra.mxu0 0
    %3293 = vmatprep.subr.bf16.mxu0 0
    %3294 = vmatpush1.bf16.msra.mxu0 0
    %3295 = vmatprep.subr.bf16.mxu0 0
    %3296 = vmatpush1.bf16.msra.mxu0 0
    %3297 = vmatprep.subr.bf16.mxu0 0
    %3298 = vmatpush1.bf16.msra.mxu0 0
    %3299 = vmatprep.subr.bf16.mxu0 0
    %3300 = vmatpush1.bf16.msra.mxu0 0
    %3301 = vmatprep.subr.bf16.mxu0 0
    %3302 = vmatpush1.bf16.msra.mxu0 0
    %3303 = vmatprep.subr.bf16.mxu0 0
    %3304 = vmatpush1.bf16.msra.mxu0 0
    %3305 = vmatprep.mubr.bf16.mxu0 0
    %3306 = vmatmul.mubr.bf16.gmra.mrb[0].mxu0 %v3231
    %v3307 = vpop.f32.mrb[0].mxu0
    %v3308 = vadd.f32 0.0, %v3307
    %v3309 = vpop.f32.mrb[0].mxu0
    %v3310 = vadd.f32 0.0, %v3309
    %v3311 = vpop.f32.mrb[0].mxu0
    %v3312 = vpop.f32.mrb[0].mxu0
    %3313 = vdwg.mxu0
    %3314 = vmatprep.subr.bf16.mxu0 %v1221
    %3315 = vmatpush1.bf16.msra.mxu0 %v1220
    %3316 = vmatprep.subr.bf16.mxu0 %v1225
    %3317 = vmatpush1.bf16.msra.mxu0 %v1224
    %3318 = vmatprep.subr.bf16.mxu0 %v1229
    %3319 = vmatpush1.bf16.msra.mxu0 %v1228
    %3320 = vmatprep.subr.bf16.mxu0 %v1233
    %3321 = vmatpush1.bf16.msra.mxu0 %v1232
    %3322 = vmatprep.subr.bf16.mxu0 %v1237
    %3323 = vmatpush1.bf16.msra.mxu0 %v1236
    %3324 = vmatprep.subr.bf16.mxu0 %v1241
    %3325 = vmatpush1.bf16.msra.mxu0 %v1240
    %3326 = vmatprep.subr.bf16.mxu0 %v1245
    %3327 = vmatpush1.bf16.msra.mxu0 %v1244
    %3328 = vmatprep.subr.bf16.mxu0 %v1249
    %3329 = vmatpush1.bf16.msra.mxu0 %v1248
    %3330 = vmatprep.subr.bf16.mxu0 0
    %3331 = vmatpush1.bf16.msra.mxu0 0
    %3332 = vmatprep.subr.bf16.mxu0 0
    %3333 = vmatpush1.bf16.msra.mxu0 0
    %3334 = vmatprep.subr.bf16.mxu0 0
    %3335 = vmatpush1.bf16.msra.mxu0 0
    %3336 = vmatprep.subr.bf16.mxu0 0
    %3337 = vmatpush1.bf16.msra.mxu0 0
    %3338 = vmatprep.subr.bf16.mxu0 0
    %3339 = vmatpush1.bf16.msra.mxu0 0
    %3340 = vmatprep.subr.bf16.mxu0 0
    %3341 = vmatpush1.bf16.msra.mxu0 0
    %3342 = vmatprep.subr.bf16.mxu0 0
    %3343 = vmatpush1.bf16.msra.mxu0 0
    %3344 = vmatprep.subr.bf16.mxu0 0
    %3345 = vmatpush1.bf16.msra.mxu0 0
    %3346 = vmatprep.mubr.bf16.mxu0 0
    %3347 = vmatmul.mubr.bf16.gmra.mrb[0].mxu0 %v3230
    %v3348 = vpop.f32.mrb[0].mxu0
    %v3349 = vadd.f32 %v3267, %v3348
    %v3350 = vpop.f32.mrb[0].mxu0
    %v3351 = vadd.f32 %v3269, %v3350
    %v3352 = vpop.f32.mrb[0].mxu0
    %v3353 = vpop.f32.mrb[0].mxu0
    %3354 = vdwg.mxu0
    %3355 = vmatprep.subr.bf16.mxu0 %v1223
    %3356 = vmatpush1.bf16.msra.mxu0 %v1222
    %3357 = vmatprep.subr.bf16.mxu0 %v1227
    %3358 = vmatpush1.bf16.msra.mxu0 %v1226
    %3359 = vmatprep.subr.bf16.mxu0 %v1231
    %3360 = vmatpush1.bf16.msra.mxu0 %v1230
    %3361 = vmatprep.subr.bf16.mxu0 %v1235
    %3362 = vmatpush1.bf16.msra.mxu0 %v1234
    %3363 = vmatprep.subr.bf16.mxu0 %v1239
    %3364 = vmatpush1.bf16.msra.mxu0 %v1238
    %3365 = vmatprep.subr.bf16.mxu0 %v1243
    %3366 = vmatpush1.bf16.msra.mxu0 %v1242
    %3367 = vmatprep.subr.bf16.mxu0 %v1247
    %3368 = vmatpush1.bf16.msra.mxu0 %v1246
    %3369 = vmatprep.subr.bf16.mxu0 %v1251
    %3370 = vmatpush1.bf16.msra.mxu0 %v1250
    %3371 = vmatprep.subr.bf16.mxu0 0
    %3372 = vmatpush1.bf16.msra.mxu0 0
    %3373 = vmatprep.subr.bf16.mxu0 0
    %3374 = vmatpush1.bf16.msra.mxu0 0
    %3375 = vmatprep.subr.bf16.mxu0 0
    %3376 = vmatpush1.bf16.msra.mxu0 0
    %3377 = vmatprep.subr.bf16.mxu0 0
    %3378 = vmatpush1.bf16.msra.mxu0 0
    %3379 = vmatprep.subr.bf16.mxu0 0
    %3380 = vmatpush1.bf16.msra.mxu0 0
    %3381 = vmatprep.subr.bf16.mxu0 0
    %3382 = vmatpush1.bf16.msra.mxu0 0
    %3383 = vmatprep.subr.bf16.mxu0 0
    %3384 = vmatpush1.bf16.msra.mxu0 0
    %3385 = vmatprep.subr.bf16.mxu0 0
    %3386 = vmatpush1.bf16.msra.mxu0 0
    %3387 = vmatprep.mubr.bf16.mxu0 0
    %3388 = vmatmul.mubr.bf16.gmra.mrb[0].mxu0 %v3230
    %v3389 = vpop.f32.mrb[0].mxu0
    %v3390 = vadd.f32 %v3308, %v3389
    %v3391 = vpop.f32.mrb[0].mxu0
    %v3392 = vadd.f32 %v3310, %v3391
    %v3393 = vpop.f32.mrb[0].mxu0
    %v3394 = vpop.f32.mrb[0].mxu0
    %3395 = vdwg.mxu0
    %v3396 = vadd.f32 %v3349, %v1448
    %v3397 = vadd.f32 %v3351, %v1449
    %v3398 = vadd.f32 %v3390, %v1450
    %v3399 = vadd.f32 %v3392, %v1451
    %v3400 = vmul.f32 %v3396, 0.5
    %v3401 = vmul.f32 %v3397, 0.5
    %v3402 = vmul.f32 %v3398, 0.5
    %v3403 = vtanh.pop %v3400
    %v3404 = vtanh.pop %v3401
    %v3405 = vtanh.pop %v3402
    %v3406 = vmul.f32 %v3403, 0.5
    %v3407 = vmul.f32 %v3404, 0.5
    %v3408 = vmul.f32 %v3405, 0.5
    %v3409 = vadd.f32 %v3406, 0.5
    %v3410 = vadd.f32 %v3407, 0.5
    %v3411 = vadd.f32 %v3408, 0.5
    %v3412 = vtanh.pop %v3399
    %v3413 = vmul.f32 %v3410, %v2929
    %v3414 = vmul.f32 %v3409, %v3412
    %v3415 = vadd.f32 %v3413, %v3414
    %v3416 = vtanh.pop %v3415
    %v3417 = vmul.f32 %v3411, %v3416
    %s3418 = smul.u32 5, 4
    %s3419 = smul.addr %s3418, 8
    %s3420 = scalar_lea.vmem [#allocation2], %s3419
    %v3421 = vld [vmem:[%s3420] sm:$0xff]
    %v3422 = vld [vmem:[%s3420 + $0x8] sm:$0xff]
    %v3423 = vld [vmem:[%s3420 + $0x10] sm:$0xff]
    %v3424 = vld [vmem:[%s3420 + $0x18] sm:$0xff]
    %3425 = vmatprep.subr.bf16.mxu0 %v797
    %3426 = vmatpush1.bf16.msra.mxu0 %v796
    %3427 = vmatprep.subr.bf16.mxu0 %v801
    %3428 = vmatpush1.bf16.msra.mxu0 %v800
    %3429 = vmatprep.subr.bf16.mxu0 %v805
    %3430 = vmatpush1.bf16.msra.mxu0 %v804
    %3431 = vmatprep.subr.bf16.mxu0 %v809
    %3432 = vmatpush1.bf16.msra.mxu0 %v808
    %3433 = vmatprep.subr.bf16.mxu0 %v813
    %3434 = vmatpush1.bf16.msra.mxu0 %v812
    %3435 = vmatprep.subr.bf16.mxu0 %v817
    %3436 = vmatpush1.bf16.msra.mxu0 %v816
    %3437 = vmatprep.subr.bf16.mxu0 %v821
    %3438 = vmatpush1.bf16.msra.mxu0 %v820
    %3439 = vmatprep.subr.bf16.mxu0 %v825
    %3440 = vmatpush1.bf16.msra.mxu0 %v824
    %3441 = vmatprep.subr.bf16.mxu0 0
    %3442 = vmatpush1.bf16.msra.mxu0 0
    %3443 = vmatprep.subr.bf16.mxu0 0
    %3444 = vmatpush1.bf16.msra.mxu0 0
    %3445 = vmatprep.subr.bf16.mxu0 0
    %3446 = vmatpush1.bf16.msra.mxu0 0
    %3447 = vmatprep.subr.bf16.mxu0 0
    %3448 = vmatpush1.bf16.msra.mxu0 0
    %3449 = vmatprep.subr.bf16.mxu0 0
    %3450 = vmatpush1.bf16.msra.mxu0 0
    %3451 = vmatprep.subr.bf16.mxu0 0
    %3452 = vmatpush1.bf16.msra.mxu0 0
    %3453 = vmatprep.subr.bf16.mxu0 0
    %3454 = vmatpush1.bf16.msra.mxu0 0
    %3455 = vmatprep.subr.bf16.mxu0 0
    %3456 = vmatpush1.bf16.msra.mxu0 0
    %3457 = vmatprep.mubr.bf16.mxu0 0
    %3458 = vmatmul.mubr.bf16.gmra.mrb[0].mxu0 %v3043
    %v3459 = vpop.f32.mrb[0].mxu0
    %v3460 = vadd.f32 0.0, %v3459
    %v3461 = vpop.f32.mrb[0].mxu0
    %v3462 = vadd.f32 0.0, %v3461
    %v3463 = vpop.f32.mrb[0].mxu0
    %v3464 = vpop.f32.mrb[0].mxu0
    %3465 = vdwg.mxu0
    %3466 = vmatprep.subr.bf16.mxu0 %v799
    %3467 = vmatpush1.bf16.msra.mxu0 %v798
    %3468 = vmatprep.subr.bf16.mxu0 %v803
    %3469 = vmatpush1.bf16.msra.mxu0 %v802
    %3470 = vmatprep.subr.bf16.mxu0 %v807
    %3471 = vmatpush1.bf16.msra.mxu0 %v806
    %3472 = vmatprep.subr.bf16.mxu0 %v811
    %3473 = vmatpush1.bf16.msra.mxu0 %v810
    %3474 = vmatprep.subr.bf16.mxu0 %v815
    %3475 = vmatpush1.bf16.msra.mxu0 %v814
    %3476 = vmatprep.subr.bf16.mxu0 %v819
    %3477 = vmatpush1.bf16.msra.mxu0 %v818
    %3478 = vmatprep.subr.bf16.mxu0 %v823
    %3479 = vmatpush1.bf16.msra.mxu0 %v822
    %3480 = vmatprep.subr.bf16.mxu0 %v827
    %3481 = vmatpush1.bf16.msra.mxu0 %v826
    %3482 = vmatprep.subr.bf16.mxu0 0
    %3483 = vmatpush1.bf16.msra.mxu0 0
    %3484 = vmatprep.subr.bf16.mxu0 0
    %3485 = vmatpush1.bf16.msra.mxu0 0
    %3486 = vmatprep.subr.bf16.mxu0 0
    %3487 = vmatpush1.bf16.msra.mxu0 0
    %3488 = vmatprep.subr.bf16.mxu0 0
    %3489 = vmatpush1.bf16.msra.mxu0 0
    %3490 = vmatprep.subr.bf16.mxu0 0
    %3491 = vmatpush1.bf16.msra.mxu0 0
    %3492 = vmatprep.subr.bf16.mxu0 0
    %3493 = vmatpush1.bf16.msra.mxu0 0
    %3494 = vmatprep.subr.bf16.mxu0 0
    %3495 = vmatpush1.bf16.msra.mxu0 0
    %3496 = vmatprep.subr.bf16.mxu0 0
    %3497 = vmatpush1.bf16.msra.mxu0 0
    %3498 = vmatprep.mubr.bf16.mxu0 0
    %3499 = vmatmul.mubr.bf16.gmra.mrb[0].mxu0 %v3043
    %v3500 = vpop.f32.mrb[0].mxu0
    %v3501 = vadd.f32 0.0, %v3500
    %v3502 = vpop.f32.mrb[0].mxu0
    %v3503 = vadd.f32 0.0, %v3502
    %v3504 = vpop.f32.mrb[0].mxu0
    %v3505 = vpop.f32.mrb[0].mxu0
    %3506 = vdwg.mxu0
    %v3507 = vadd.f32 %v3421, %v3460
    %v3508 = vadd.f32 %v3422, %v3462
    %v3509 = vadd.f32 %v3423, %v3501
    %v3510 = vadd.f32 %v3424, %v3503
    %v3511 = vmul.f32 %v3507, 0.5
    %v3512 = vmul.f32 %v3508, 0.5
    %v3513 = vmul.f32 %v3509, 0.5
    %v3514 = vtanh.pop %v3511
    %v3515 = vtanh.pop %v3512
    %v3516 = vtanh.pop %v3513
    %v3517 = vmul.f32 %v3514, 0.5
    %v3518 = vmul.f32 %v3515, 0.5
    %v3519 = vmul.f32 %v3516, 0.5
    %v3520 = vadd.f32 %v3517, 0.5
    %v3521 = vadd.f32 %v3518, 0.5
    %v3522 = vadd.f32 %v3519, 0.5
    %v3523 = vtanh.pop %v3510
    %v3524 = vmul.f32 %v3521, %v3040
    %v3525 = vmul.f32 %v3520, %v3523
    %v3526 = vadd.f32 %v3524, %v3525
    %v3527 = vtanh.pop %v3526
    %v3528 = vmul.f32 %v3522, %v3527
    %v3529 = vpack.c.bf16 %v3528, %v3528
    %3530 = vmatprep.subr.bf16.mxu0 %v998
    %3531 = vmatpush1.bf16.msra.mxu0 %v997
    %3532 = vmatprep.subr.bf16.mxu0 %v1002
    %3533 = vmatpush1.bf16.msra.mxu0 %v1001
    %3534 = vmatprep.subr.bf16.mxu0 %v1006
    %3535 = vmatpush1.bf16.msra.mxu0 %v1005
    %3536 = vmatprep.subr.bf16.mxu0 %v1010
    %3537 = vmatpush1.bf16.msra.mxu0 %v1009
    %3538 = vmatprep.subr.bf16.mxu0 %v1014
    %3539 = vmatpush1.bf16.msra.mxu0 %v1013
    %3540 = vmatprep.subr.bf16.mxu0 %v1018
    %3541 = vmatpush1.bf16.msra.mxu0 %v1017
    %3542 = vmatprep.subr.bf16.mxu0 %v1022
    %3543 = vmatpush1.bf16.msra.mxu0 %v1021
    %3544 = vmatprep.subr.bf16.mxu0 %v1026
    %3545 = vmatpush1.bf16.msra.mxu0 %v1025
    %3546 = vmatprep.subr.bf16.mxu0 0
    %3547 = vmatpush1.bf16.msra.mxu0 0
    %3548 = vmatprep.subr.bf16.mxu0 0
    %3549 = vmatpush1.bf16.msra.mxu0 0
    %3550 = vmatprep.subr.bf16.mxu0 0
    %3551 = vmatpush1.bf16.msra.mxu0 0
    %3552 = vmatprep.subr.bf16.mxu0 0
    %3553 = vmatpush1.bf16.msra.mxu0 0
    %3554 = vmatprep.subr.bf16.mxu0 0
    %3555 = vmatpush1.bf16.msra.mxu0 0
    %3556 = vmatprep.subr.bf16.mxu0 0
    %3557 = vmatpush1.bf16.msra.mxu0 0
    %3558 = vmatprep.subr.bf16.mxu0 0
    %3559 = vmatpush1.bf16.msra.mxu0 0
    %3560 = vmatprep.subr.bf16.mxu0 0
    %3561 = vmatpush1.bf16.msra.mxu0 0
    %3562 = vmatprep.mubr.bf16.mxu0 0
    %3563 = vmatmul.mubr.bf16.gmra.mrb[0].mxu0 %v3230
    %v3564 = vpop.f32.mrb[0].mxu0
    %v3565 = vadd.f32 0.0, %v3564
    %v3566 = vpop.f32.mrb[0].mxu0
    %v3567 = vadd.f32 0.0, %v3566
    %v3568 = vpop.f32.mrb[0].mxu0
    %v3569 = vpop.f32.mrb[0].mxu0
    %3570 = vdwg.mxu0
    %3571 = vmatprep.subr.bf16.mxu0 %v1000
    %3572 = vmatpush1.bf16.msra.mxu0 %v999
    %3573 = vmatprep.subr.bf16.mxu0 %v1004
    %3574 = vmatpush1.bf16.msra.mxu0 %v1003
    %3575 = vmatprep.subr.bf16.mxu0 %v1008
    %3576 = vmatpush1.bf16.msra.mxu0 %v1007
    %3577 = vmatprep.subr.bf16.mxu0 %v1012
    %3578 = vmatpush1.bf16.msra.mxu0 %v1011
    %3579 = vmatprep.subr.bf16.mxu0 %v1016
    %3580 = vmatpush1.bf16.msra.mxu0 %v1015
    %3581 = vmatprep.subr.bf16.mxu0 %v1020
    %3582 = vmatpush1.bf16.msra.mxu0 %v1019
    %3583 = vmatprep.subr.bf16.mxu0 %v1024
    %3584 = vmatpush1.bf16.msra.mxu0 %v1023
    %3585 = vmatprep.subr.bf16.mxu0 %v1028
    %3586 = vmatpush1.bf16.msra.mxu0 %v1027
    %3587 = vmatprep.subr.bf16.mxu0 0
    %3588 = vmatpush1.bf16.msra.mxu0 0
    %3589 = vmatprep.subr.bf16.mxu0 0
    %3590 = vmatpush1.bf16.msra.mxu0 0
    %3591 = vmatprep.subr.bf16.mxu0 0
    %3592 = vmatpush1.bf16.msra.mxu0 0
    %3593 = vmatprep.subr.bf16.mxu0 0
    %3594 = vmatpush1.bf16.msra.mxu0 0
    %3595 = vmatprep.subr.bf16.mxu0 0
    %3596 = vmatpush1.bf16.msra.mxu0 0
    %3597 = vmatprep.subr.bf16.mxu0 0
    %3598 = vmatpush1.bf16.msra.mxu0 0
    %3599 = vmatprep.subr.bf16.mxu0 0
    %3600 = vmatpush1.bf16.msra.mxu0 0
    %3601 = vmatprep.subr.bf16.mxu0 0
    %3602 = vmatpush1.bf16.msra.mxu0 0
    %3603 = vmatprep.mubr.bf16.mxu0 0
    %3604 = vmatmul.mubr.bf16.gmra.mrb[0].mxu0 %v3230
    %v3605 = vpop.f32.mrb[0].mxu0
    %v3606 = vadd.f32 0.0, %v3605
    %v3607 = vpop.f32.mrb[0].mxu0
    %v3608 = vadd.f32 0.0, %v3607
    %v3609 = vpop.f32.mrb[0].mxu0
    %v3610 = vpop.f32.mrb[0].mxu0
    %3611 = vdwg.mxu0
    %3612 = vmatprep.subr.bf16.mxu0 %v966
    %3613 = vmatpush1.bf16.msra.mxu0 %v965
    %3614 = vmatprep.subr.bf16.mxu0 %v970
    %3615 = vmatpush1.bf16.msra.mxu0 %v969
    %3616 = vmatprep.subr.bf16.mxu0 %v974
    %3617 = vmatpush1.bf16.msra.mxu0 %v973
    %3618 = vmatprep.subr.bf16.mxu0 %v978
    %3619 = vmatpush1.bf16.msra.mxu0 %v977
    %3620 = vmatprep.subr.bf16.mxu0 %v982
    %3621 = vmatpush1.bf16.msra.mxu0 %v981
    %3622 = vmatprep.subr.bf16.mxu0 %v986
    %3623 = vmatpush1.bf16.msra.mxu0 %v985
    %3624 = vmatprep.subr.bf16.mxu0 %v990
    %3625 = vmatpush1.bf16.msra.mxu0 %v989
    %3626 = vmatprep.subr.bf16.mxu0 %v994
    %3627 = vmatpush1.bf16.msra.mxu0 %v993
    %3628 = vmatprep.subr.bf16.mxu0 0
    %3629 = vmatpush1.bf16.msra.mxu0 0
    %3630 = vmatprep.subr.bf16.mxu0 0
    %3631 = vmatpush1.bf16.msra.mxu0 0
    %3632 = vmatprep.subr.bf16.mxu0 0
    %3633 = vmatpush1.bf16.msra.mxu0 0
    %3634 = vmatprep.subr.bf16.mxu0 0
    %3635 = vmatpush1.bf16.msra.mxu0 0
    %3636 = vmatprep.subr.bf16.mxu0 0
    %3637 = vmatpush1.bf16.msra.mxu0 0
    %3638 = vmatprep.subr.bf16.mxu0 0
    %3639 = vmatpush1.bf16.msra.mxu0 0
    %3640 = vmatprep.subr.bf16.mxu0 0
    %3641 = vmatpush1.bf16.msra.mxu0 0
    %3642 = vmatprep.subr.bf16.mxu0 0
    %3643 = vmatpush1.bf16.msra.mxu0 0
    %3644 = vmatprep.mubr.bf16.mxu0 0
    %3645 = vmatmul.mubr.bf16.gmra.mrb[0].mxu0 %v3529
    %v3646 = vpop.f32.mrb[0].mxu0
    %v3647 = vadd.f32 %v3565, %v3646
    %v3648 = vpop.f32.mrb[0].mxu0
    %v3649 = vadd.f32 %v3567, %v3648
    %v3650 = vpop.f32.mrb[0].mxu0
    %v3651 = vpop.f32.mrb[0].mxu0
    %3652 = vdwg.mxu0
    %3653 = vmatprep.subr.bf16.mxu0 %v968
    %3654 = vmatpush1.bf16.msra.mxu0 %v967
    %3655 = vmatprep.subr.bf16.mxu0 %v972
    %3656 = vmatpush1.bf16.msra.mxu0 %v971
    %3657 = vmatprep.subr.bf16.mxu0 %v976
    %3658 = vmatpush1.bf16.msra.mxu0 %v975
    %3659 = vmatprep.subr.bf16.mxu0 %v980
    %3660 = vmatpush1.bf16.msra.mxu0 %v979
    %3661 = vmatprep.subr.bf16.mxu0 %v984
    %3662 = vmatpush1.bf16.msra.mxu0 %v983
    %3663 = vmatprep.subr.bf16.mxu0 %v988
    %3664 = vmatpush1.bf16.msra.mxu0 %v987
    %3665 = vmatprep.subr.bf16.mxu0 %v992
    %3666 = vmatpush1.bf16.msra.mxu0 %v991
    %3667 = vmatprep.subr.bf16.mxu0 %v996
    %3668 = vmatpush1.bf16.msra.mxu0 %v995
    %3669 = vmatprep.subr.bf16.mxu0 0
    %3670 = vmatpush1.bf16.msra.mxu0 0
    %3671 = vmatprep.subr.bf16.mxu0 0
    %3672 = vmatpush1.bf16.msra.mxu0 0
    %3673 = vmatprep.subr.bf16.mxu0 0
    %3674 = vmatpush1.bf16.msra.mxu0 0
    %3675 = vmatprep.subr.bf16.mxu0 0
    %3676 = vmatpush1.bf16.msra.mxu0 0
    %3677 = vmatprep.subr.bf16.mxu0 0
    %3678 = vmatpush1.bf16.msra.mxu0 0
    %3679 = vmatprep.subr.bf16.mxu0 0
    %3680 = vmatpush1.bf16.msra.mxu0 0
    %3681 = vmatprep.subr.bf16.mxu0 0
    %3682 = vmatpush1.bf16.msra.mxu0 0
    %3683 = vmatprep.subr.bf16.mxu0 0
    %3684 = vmatpush1.bf16.msra.mxu0 0
    %3685 = vmatprep.mubr.bf16.mxu0 0
    %3686 = vmatmul.mubr.bf16.gmra.mrb[0].mxu0 %v3529
    %v3687 = vpop.f32.mrb[0].mxu0
    %v3688 = vadd.f32 %v3606, %v3687
    %v3689 = vpop.f32.mrb[0].mxu0
    %v3690 = vadd.f32 %v3608, %v3689
    %v3691 = vpop.f32.mrb[0].mxu0
    %v3692 = vpop.f32.mrb[0].mxu0
    %3693 = vdwg.mxu0
    %v3694 = vadd.f32 %v3647, %v1193
    %v3695 = vadd.f32 %v3649, %v1194
    %v3696 = vadd.f32 %v3688, %v1195
    %v3697 = vadd.f32 %v3690, %v1196
    %v3698 = vmul.f32 %v3694, 0.5
    %v3699 = vmul.f32 %v3695, 0.5
    %v3700 = vmul.f32 %v3696, 0.5
    %v3701 = vtanh.pop %v3698
    %v3702 = vtanh.pop %v3699
    %v3703 = vtanh.pop %v3700
    %v3704 = vmul.f32 %v3701, 0.5
    %v3705 = vmul.f32 %v3702, 0.5
    %v3706 = vmul.f32 %v3703, 0.5
    %v3707 = vadd.f32 %v3704, 0.5
    %v3708 = vadd.f32 %v3705, 0.5
    %v3709 = vadd.f32 %v3706, 0.5
    %v3710 = vtanh.pop %v3697
    %v3711 = vmul.f32 %v3708, %v3227
    %v3712 = vmul.f32 %v3707, %v3710
    %v3713 = vadd.f32 %v3711, %v3712
    %v3714 = vtanh.pop %v3713
    %v3715 = vmul.f32 %v3709, %v3714
    %v3716 = vpack.c.bf16 %v3715, %v3715
    %v3717 = vpack.c.bf16 %v3417, %v3417
    %3718 = vmatprep.subr.bf16.mxu0 %v1253
    %3719 = vmatpush1.bf16.msra.mxu0 %v1252
    %3720 = vmatprep.subr.bf16.mxu0 %v1257
    %3721 = vmatpush1.bf16.msra.mxu0 %v1256
    %3722 = vmatprep.subr.bf16.mxu0 %v1261
    %3723 = vmatpush1.bf16.msra.mxu0 %v1260
    %3724 = vmatprep.subr.bf16.mxu0 %v1265
    %3725 = vmatpush1.bf16.msra.mxu0 %v1264
    %3726 = vmatprep.subr.bf16.mxu0 %v1269
    %3727 = vmatpush1.bf16.msra.mxu0 %v1268
    %3728 = vmatprep.subr.bf16.mxu0 %v1273
    %3729 = vmatpush1.bf16.msra.mxu0 %v1272
    %3730 = vmatprep.subr.bf16.mxu0 %v1277
    %3731 = vmatpush1.bf16.msra.mxu0 %v1276
    %3732 = vmatprep.subr.bf16.mxu0 %v1281
    %3733 = vmatpush1.bf16.msra.mxu0 %v1280
    %3734 = vmatprep.subr.bf16.mxu0 0
    %3735 = vmatpush1.bf16.msra.mxu0 0
    %3736 = vmatprep.subr.bf16.mxu0 0
    %3737 = vmatpush1.bf16.msra.mxu0 0
    %3738 = vmatprep.subr.bf16.mxu0 0
    %3739 = vmatpush1.bf16.msra.mxu0 0
    %3740 = vmatprep.subr.bf16.mxu0 0
    %3741 = vmatpush1.bf16.msra.mxu0 0
    %3742 = vmatprep.subr.bf16.mxu0 0
    %3743 = vmatpush1.bf16.msra.mxu0 0
    %3744 = vmatprep.subr.bf16.mxu0 0
    %3745 = vmatpush1.bf16.msra.mxu0 0
    %3746 = vmatprep.subr.bf16.mxu0 0
    %3747 = vmatpush1.bf16.msra.mxu0 0
    %3748 = vmatprep.subr.bf16.mxu0 0
    %3749 = vmatpush1.bf16.msra.mxu0 0
    %3750 = vmatprep.mubr.bf16.mxu0 0
    %3751 = vmatmul.mubr.bf16.gmra.mrb[0].mxu0 %v3717
    %v3752 = vpop.f32.mrb[0].mxu0
    %v3753 = vadd.f32 0.0, %v3752
    %v3754 = vpop.f32.mrb[0].mxu0
    %v3755 = vadd.f32 0.0, %v3754
    %v3756 = vpop.f32.mrb[0].mxu0
    %v3757 = vpop.f32.mrb[0].mxu0
    %3758 = vdwg.mxu0
    %3759 = vmatprep.subr.bf16.mxu0 %v1255
    %3760 = vmatpush1.bf16.msra.mxu0 %v1254
    %3761 = vmatprep.subr.bf16.mxu0 %v1259
    %3762 = vmatpush1.bf16.msra.mxu0 %v1258
    %3763 = vmatprep.subr.bf16.mxu0 %v1263
    %3764 = vmatpush1.bf16.msra.mxu0 %v1262
    %3765 = vmatprep.subr.bf16.mxu0 %v1267
    %3766 = vmatpush1.bf16.msra.mxu0 %v1266
    %3767 = vmatprep.subr.bf16.mxu0 %v1271
    %3768 = vmatpush1.bf16.msra.mxu0 %v1270
    %3769 = vmatprep.subr.bf16.mxu0 %v1275
    %3770 = vmatpush1.bf16.msra.mxu0 %v1274
    %3771 = vmatprep.subr.bf16.mxu0 %v1279
    %3772 = vmatpush1.bf16.msra.mxu0 %v1278
    %3773 = vmatprep.subr.bf16.mxu0 %v1283
    %3774 = vmatpush1.bf16.msra.mxu0 %v1282
    %3775 = vmatprep.subr.bf16.mxu0 0
    %3776 = vmatpush1.bf16.msra.mxu0 0
    %3777 = vmatprep.subr.bf16.mxu0 0
    %3778 = vmatpush1.bf16.msra.mxu0 0
    %3779 = vmatprep.subr.bf16.mxu0 0
    %3780 = vmatpush1.bf16.msra.mxu0 0
    %3781 = vmatprep.subr.bf16.mxu0 0
    %3782 = vmatpush1.bf16.msra.mxu0 0
    %3783 = vmatprep.subr.bf16.mxu0 0
    %3784 = vmatpush1.bf16.msra.mxu0 0
    %3785 = vmatprep.subr.bf16.mxu0 0
    %3786 = vmatpush1.bf16.msra.mxu0 0
    %3787 = vmatprep.subr.bf16.mxu0 0
    %3788 = vmatpush1.bf16.msra.mxu0 0
    %3789 = vmatprep.subr.bf16.mxu0 0
    %3790 = vmatpush1.bf16.msra.mxu0 0
    %3791 = vmatprep.mubr.bf16.mxu0 0
    %3792 = vmatmul.mubr.bf16.gmra.mrb[0].mxu0 %v3717
    %v3793 = vpop.f32.mrb[0].mxu0
    %v3794 = vadd.f32 0.0, %v3793
    %v3795 = vpop.f32.mrb[0].mxu0
    %v3796 = vadd.f32 0.0, %v3795
    %v3797 = vpop.f32.mrb[0].mxu0
    %v3798 = vpop.f32.mrb[0].mxu0
    %3799 = vdwg.mxu0
    %3800 = vmatprep.subr.bf16.mxu0 %v1221
    %3801 = vmatpush1.bf16.msra.mxu0 %v1220
    %3802 = vmatprep.subr.bf16.mxu0 %v1225
    %3803 = vmatpush1.bf16.msra.mxu0 %v1224
    %3804 = vmatprep.subr.bf16.mxu0 %v1229
    %3805 = vmatpush1.bf16.msra.mxu0 %v1228
    %3806 = vmatprep.subr.bf16.mxu0 %v1233
    %3807 = vmatpush1.bf16.msra.mxu0 %v1232
    %3808 = vmatprep.subr.bf16.mxu0 %v1237
    %3809 = vmatpush1.bf16.msra.mxu0 %v1236
    %3810 = vmatprep.subr.bf16.mxu0 %v1241
    %3811 = vmatpush1.bf16.msra.mxu0 %v1240
    %3812 = vmatprep.subr.bf16.mxu0 %v1245
    %3813 = vmatpush1.bf16.msra.mxu0 %v1244
    %3814 = vmatprep.subr.bf16.mxu0 %v1249
    %3815 = vmatpush1.bf16.msra.mxu0 %v1248
    %3816 = vmatprep.subr.bf16.mxu0 0
    %3817 = vmatpush1.bf16.msra.mxu0 0
    %3818 = vmatprep.subr.bf16.mxu0 0
    %3819 = vmatpush1.bf16.msra.mxu0 0
    %3820 = vmatprep.subr.bf16.mxu0 0
    %3821 = vmatpush1.bf16.msra.mxu0 0
    %3822 = vmatprep.subr.bf16.mxu0 0
    %3823 = vmatpush1.bf16.msra.mxu0 0
    %3824 = vmatprep.subr.bf16.mxu0 0
    %3825 = vmatpush1.bf16.msra.mxu0 0
    %3826 = vmatprep.subr.bf16.mxu0 0
    %3827 = vmatpush1.bf16.msra.mxu0 0
    %3828 = vmatprep.subr.bf16.mxu0 0
    %3829 = vmatpush1.bf16.msra.mxu0 0
    %3830 = vmatprep.subr.bf16.mxu0 0
    %3831 = vmatpush1.bf16.msra.mxu0 0
    %3832 = vmatprep.mubr.bf16.mxu0 0
    %3833 = vmatmul.mubr.bf16.gmra.mrb[0].mxu0 %v3716
    %v3834 = vpop.f32.mrb[0].mxu0
    %v3835 = vadd.f32 %v3753, %v3834
    %v3836 = vpop.f32.mrb[0].mxu0
    %v3837 = vadd.f32 %v3755, %v3836
    %v3838 = vpop.f32.mrb[0].mxu0
    %v3839 = vpop.f32.mrb[0].mxu0
    %3840 = vdwg.mxu0
    %3841 = vmatprep.subr.bf16.mxu0 %v1223
    %3842 = vmatpush1.bf16.msra.mxu0 %v1222
    %3843 = vmatprep.subr.bf16.mxu0 %v1227
    %3844 = vmatpush1.bf16.msra.mxu0 %v1226
    %3845 = vmatprep.subr.bf16.mxu0 %v1231
    %3846 = vmatpush1.bf16.msra.mxu0 %v1230
    %3847 = vmatprep.subr.bf16.mxu0 %v1235
    %3848 = vmatpush1.bf16.msra.mxu0 %v1234
    %3849 = vmatprep.subr.bf16.mxu0 %v1239
    %3850 = vmatpush1.bf16.msra.mxu0 %v1238
    %3851 = vmatprep.subr.bf16.mxu0 %v1243
    %3852 = vmatpush1.bf16.msra.mxu0 %v1242
    %3853 = vmatprep.subr.bf16.mxu0 %v1247
    %3854 = vmatpush1.bf16.msra.mxu0 %v1246
    %3855 = vmatprep.subr.bf16.mxu0 %v1251
    %3856 = vmatpush1.bf16.msra.mxu0 %v1250
    %3857 = vmatprep.subr.bf16.mxu0 0
    %3858 = vmatpush1.bf16.msra.mxu0 0
    %3859 = vmatprep.subr.bf16.mxu0 0
    %3860 = vmatpush1.bf16.msra.mxu0 0
    %3861 = vmatprep.subr.bf16.mxu0 0
    %3862 = vmatpush1.bf16.msra.mxu0 0
    %3863 = vmatprep.subr.bf16.mxu0 0
    %3864 = vmatpush1.bf16.msra.mxu0 0
    %3865 = vmatprep.subr.bf16.mxu0 0
    %3866 = vmatpush1.bf16.msra.mxu0 0
    %3867 = vmatprep.subr.bf16.mxu0 0
    %3868 = vmatpush1.bf16.msra.mxu0 0
    %3869 = vmatprep.subr.bf16.mxu0 0
    %3870 = vmatpush1.bf16.msra.mxu0 0
    %3871 = vmatprep.subr.bf16.mxu0 0
    %3872 = vmatpush1.bf16.msra.mxu0 0
    %3873 = vmatprep.mubr.bf16.mxu0 0
    %3874 = vmatmul.mubr.bf16.gmra.mrb[0].mxu0 %v3716
    %v3875 = vpop.f32.mrb[0].mxu0
    %v3876 = vadd.f32 %v3794, %v3875
    %v3877 = vpop.f32.mrb[0].mxu0
    %v3878 = vadd.f32 %v3796, %v3877
    %v3879 = vpop.f32.mrb[0].mxu0
    %v3880 = vpop.f32.mrb[0].mxu0
    %3881 = vdwg.mxu0
    %v3882 = vadd.f32 %v3835, %v1448
    %v3883 = vadd.f32 %v3837, %v1449
    %v3884 = vadd.f32 %v3876, %v1450
    %v3885 = vadd.f32 %v3878, %v1451
    %v3886 = vmul.f32 %v3882, 0.5
    %v3887 = vmul.f32 %v3883, 0.5
    %v3888 = vmul.f32 %v3884, 0.5
    %v3889 = vtanh.pop %v3886
    %v3890 = vtanh.pop %v3887
    %v3891 = vtanh.pop %v3888
    %v3892 = vmul.f32 %v3889, 0.5
    %v3893 = vmul.f32 %v3890, 0.5
    %v3894 = vmul.f32 %v3891, 0.5
    %v3895 = vadd.f32 %v3892, 0.5
    %v3896 = vadd.f32 %v3893, 0.5
    %v3897 = vadd.f32 %v3894, 0.5
    %v3898 = vtanh.pop %v3885
    %v3899 = vmul.f32 %v3896, %v3415
    %v3900 = vmul.f32 %v3895, %v3898
    %v3901 = vadd.f32 %v3899, %v3900
    %v3902 = vtanh.pop %v3901
    %v3903 = vmul.f32 %v3897, %v3902
    %s3904 = smul.u32 6, 4
    %s3905 = smul.addr %s3904, 8
    %s3906 = scalar_lea.vmem [#allocation2], %s3905
    %v3907 = vld [vmem:[%s3906] sm:$0xff]
    %v3908 = vld [vmem:[%s3906 + $0x8] sm:$0xff]
    %v3909 = vld [vmem:[%s3906 + $0x10] sm:$0xff]
    %v3910 = vld [vmem:[%s3906 + $0x18] sm:$0xff]
    %3911 = vmatprep.subr.bf16.mxu0 %v797
    %3912 = vmatpush1.bf16.msra.mxu0 %v796
    %3913 = vmatprep.subr.bf16.mxu0 %v801
    %3914 = vmatpush1.bf16.msra.mxu0 %v800
    %3915 = vmatprep.subr.bf16.mxu0 %v805
    %3916 = vmatpush1.bf16.msra.mxu0 %v804
    %3917 = vmatprep.subr.bf16.mxu0 %v809
    %3918 = vmatpush1.bf16.msra.mxu0 %v808
    %3919 = vmatprep.subr.bf16.mxu0 %v813
    %3920 = vmatpush1.bf16.msra.mxu0 %v812
    %3921 = vmatprep.subr.bf16.mxu0 %v817
    %3922 = vmatpush1.bf16.msra.mxu0 %v816
    %3923 = vmatprep.subr.bf16.mxu0 %v821
    %3924 = vmatpush1.bf16.msra.mxu0 %v820
    %3925 = vmatprep.subr.bf16.mxu0 %v825
    %3926 = vmatpush1.bf16.msra.mxu0 %v824
    %3927 = vmatprep.subr.bf16.mxu0 0
    %3928 = vmatpush1.bf16.msra.mxu0 0
    %3929 = vmatprep.subr.bf16.mxu0 0
    %3930 = vmatpush1.bf16.msra.mxu0 0
    %3931 = vmatprep.subr.bf16.mxu0 0
    %3932 = vmatpush1.bf16.msra.mxu0 0
    %3933 = vmatprep.subr.bf16.mxu0 0
    %3934 = vmatpush1.bf16.msra.mxu0 0
    %3935 = vmatprep.subr.bf16.mxu0 0
    %3936 = vmatpush1.bf16.msra.mxu0 0
    %3937 = vmatprep.subr.bf16.mxu0 0
    %3938 = vmatpush1.bf16.msra.mxu0 0
    %3939 = vmatprep.subr.bf16.mxu0 0
    %3940 = vmatpush1.bf16.msra.mxu0 0
    %3941 = vmatprep.subr.bf16.mxu0 0
    %3942 = vmatpush1.bf16.msra.mxu0 0
    %3943 = vmatprep.mubr.bf16.mxu0 0
    %3944 = vmatmul.mubr.bf16.gmra.mrb[0].mxu0 %v3529
    %v3945 = vpop.f32.mrb[0].mxu0
    %v3946 = vadd.f32 0.0, %v3945
    %v3947 = vpop.f32.mrb[0].mxu0
    %v3948 = vadd.f32 0.0, %v3947
    %v3949 = vpop.f32.mrb[0].mxu0
    %v3950 = vpop.f32.mrb[0].mxu0
    %3951 = vdwg.mxu0
    %3952 = vmatprep.subr.bf16.mxu0 %v799
    %3953 = vmatpush1.bf16.msra.mxu0 %v798
    %3954 = vmatprep.subr.bf16.mxu0 %v803
    %3955 = vmatpush1.bf16.msra.mxu0 %v802
    %3956 = vmatprep.subr.bf16.mxu0 %v807
    %3957 = vmatpush1.bf16.msra.mxu0 %v806
    %3958 = vmatprep.subr.bf16.mxu0 %v811
    %3959 = vmatpush1.bf16.msra.mxu0 %v810
    %3960 = vmatprep.subr.bf16.mxu0 %v815
    %3961 = vmatpush1.bf16.msra.mxu0 %v814
    %3962 = vmatprep.subr.bf16.mxu0 %v819
    %3963 = vmatpush1.bf16.msra.mxu0 %v818
    %3964 = vmatprep.subr.bf16.mxu0 %v823
    %3965 = vmatpush1.bf16.msra.mxu0 %v822
    %3966 = vmatprep.subr.bf16.mxu0 %v827
    %3967 = vmatpush1.bf16.msra.mxu0 %v826
    %3968 = vmatprep.subr.bf16.mxu0 0
    %3969 = vmatpush1.bf16.msra.mxu0 0
    %3970 = vmatprep.subr.bf16.mxu0 0
    %3971 = vmatpush1.bf16.msra.mxu0 0
    %3972 = vmatprep.subr.bf16.mxu0 0
    %3973 = vmatpush1.bf16.msra.mxu0 0
    %3974 = vmatprep.subr.bf16.mxu0 0
    %3975 = vmatpush1.bf16.msra.mxu0 0
    %3976 = vmatprep.subr.bf16.mxu0 0
    %3977 = vmatpush1.bf16.msra.mxu0 0
    %3978 = vmatprep.subr.bf16.mxu0 0
    %3979 = vmatpush1.bf16.msra.mxu0 0
    %3980 = vmatprep.subr.bf16.mxu0 0
    %3981 = vmatpush1.bf16.msra.mxu0 0
    %3982 = vmatprep.subr.bf16.mxu0 0
    %3983 = vmatpush1.bf16.msra.mxu0 0
    %3984 = vmatprep.mubr.bf16.mxu0 0
    %3985 = vmatmul.mubr.bf16.gmra.mrb[0].mxu0 %v3529
    %v3986 = vpop.f32.mrb[0].mxu0
    %v3987 = vadd.f32 0.0, %v3986
    %v3988 = vpop.f32.mrb[0].mxu0
    %v3989 = vadd.f32 0.0, %v3988
    %v3990 = vpop.f32.mrb[0].mxu0
    %v3991 = vpop.f32.mrb[0].mxu0
    %3992 = vdwg.mxu0
    %v3993 = vadd.f32 %v3907, %v3946
    %v3994 = vadd.f32 %v3908, %v3948
    %v3995 = vadd.f32 %v3909, %v3987
    %v3996 = vadd.f32 %v3910, %v3989
    %v3997 = vmul.f32 %v3993, 0.5
    %v3998 = vmul.f32 %v3994, 0.5
    %v3999 = vmul.f32 %v3995, 0.5
    %v4000 = vtanh.pop %v3997
    %v4001 = vtanh.pop %v3998
    %v4002 = vtanh.pop %v3999
    %v4003 = vmul.f32 %v4000, 0.5
    %v4004 = vmul.f32 %v4001, 0.5
    %v4005 = vmul.f32 %v4002, 0.5
    %v4006 = vadd.f32 %v4003, 0.5
    %v4007 = vadd.f32 %v4004, 0.5
    %v4008 = vadd.f32 %v4005, 0.5
    %v4009 = vtanh.pop %v3996
    %v4010 = vmul.f32 %v4007, %v3526
    %v4011 = vmul.f32 %v4006, %v4009
    %v4012 = vadd.f32 %v4010, %v4011
    %v4013 = vtanh.pop %v4012
    %v4014 = vmul.f32 %v4008, %v4013
    %v4015 = vpack.c.bf16 %v4014, %v4014
    %4016 = vmatprep.subr.bf16.mxu0 %v998
    %4017 = vmatpush1.bf16.msra.mxu0 %v997
    %4018 = vmatprep.subr.bf16.mxu0 %v1002
    %4019 = vmatpush1.bf16.msra.mxu0 %v1001
    %4020 = vmatprep.subr.bf16.mxu0 %v1006
    %4021 = vmatpush1.bf16.msra.mxu0 %v1005
    %4022 = vmatprep.subr.bf16.mxu0 %v1010
    %4023 = vmatpush1.bf16.msra.mxu0 %v1009
    %4024 = vmatprep.subr.bf16.mxu0 %v1014
    %4025 = vmatpush1.bf16.msra.mxu0 %v1013
    %4026 = vmatprep.subr.bf16.mxu0 %v1018
    %4027 = vmatpush1.bf16.msra.mxu0 %v1017
    %4028 = vmatprep.subr.bf16.mxu0 %v1022
    %4029 = vmatpush1.bf16.msra.mxu0 %v1021
    %4030 = vmatprep.subr.bf16.mxu0 %v1026
    %4031 = vmatpush1.bf16.msra.mxu0 %v1025
    %4032 = vmatprep.subr.bf16.mxu0 0
    %4033 = vmatpush1.bf16.msra.mxu0 0
    %4034 = vmatprep.subr.bf16.mxu0 0
    %4035 = vmatpush1.bf16.msra.mxu0 0
    %4036 = vmatprep.subr.bf16.mxu0 0
    %4037 = vmatpush1.bf16.msra.mxu0 0
    %4038 = vmatprep.subr.bf16.mxu0 0
    %4039 = vmatpush1.bf16.msra.mxu0 0
    %4040 = vmatprep.subr.bf16.mxu0 0
    %4041 = vmatpush1.bf16.msra.mxu0 0
    %4042 = vmatprep.subr.bf16.mxu0 0
    %4043 = vmatpush1.bf16.msra.mxu0 0
    %4044 = vmatprep.subr.bf16.mxu0 0
    %4045 = vmatpush1.bf16.msra.mxu0 0
    %4046 = vmatprep.subr.bf16.mxu0 0
    %4047 = vmatpush1.bf16.msra.mxu0 0
    %4048 = vmatprep.mubr.bf16.mxu0 0
    %4049 = vmatmul.mubr.bf16.gmra.mrb[0].mxu0 %v3716
    %v4050 = vpop.f32.mrb[0].mxu0
    %v4051 = vadd.f32 0.0, %v4050
    %v4052 = vpop.f32.mrb[0].mxu0
    %v4053 = vadd.f32 0.0, %v4052
    %v4054 = vpop.f32.mrb[0].mxu0
    %v4055 = vpop.f32.mrb[0].mxu0
    %4056 = vdwg.mxu0
    %4057 = vmatprep.subr.bf16.mxu0 %v1000
    %4058 = vmatpush1.bf16.msra.mxu0 %v999
    %4059 = vmatprep.subr.bf16.mxu0 %v1004
    %4060 = vmatpush1.bf16.msra.mxu0 %v1003
    %4061 = vmatprep.subr.bf16.mxu0 %v1008
    %4062 = vmatpush1.bf16.msra.mxu0 %v1007
    %4063 = vmatprep.subr.bf16.mxu0 %v1012
    %4064 = vmatpush1.bf16.msra.mxu0 %v1011
    %4065 = vmatprep.subr.bf16.mxu0 %v1016
    %4066 = vmatpush1.bf16.msra.mxu0 %v1015
    %4067 = vmatprep.subr.bf16.mxu0 %v1020
    %4068 = vmatpush1.bf16.msra.mxu0 %v1019
    %4069 = vmatprep.subr.bf16.mxu0 %v1024
    %4070 = vmatpush1.bf16.msra.mxu0 %v1023
    %4071 = vmatprep.subr.bf16.mxu0 %v1028
    %4072 = vmatpush1.bf16.msra.mxu0 %v1027
    %4073 = vmatprep.subr.bf16.mxu0 0
    %4074 = vmatpush1.bf16.msra.mxu0 0
    %4075 = vmatprep.subr.bf16.mxu0 0
    %4076 = vmatpush1.bf16.msra.mxu0 0
    %4077 = vmatprep.subr.bf16.mxu0 0
    %4078 = vmatpush1.bf16.msra.mxu0 0
    %4079 = vmatprep.subr.bf16.mxu0 0
    %4080 = vmatpush1.bf16.msra.mxu0 0
    %4081 = vmatprep.subr.bf16.mxu0 0
    %4082 = vmatpush1.bf16.msra.mxu0 0
    %4083 = vmatprep.subr.bf16.mxu0 0
    %4084 = vmatpush1.bf16.msra.mxu0 0
    %4085 = vmatprep.subr.bf16.mxu0 0
    %4086 = vmatpush1.bf16.msra.mxu0 0
    %4087 = vmatprep.subr.bf16.mxu0 0
    %4088 = vmatpush1.bf16.msra.mxu0 0
    %4089 = vmatprep.mubr.bf16.mxu0 0
    %4090 = vmatmul.mubr.bf16.gmra.mrb[0].mxu0 %v3716
    %v4091 = vpop.f32.mrb[0].mxu0
    %v4092 = vadd.f32 0.0, %v4091
    %v4093 = vpop.f32.mrb[0].mxu0
    %v4094 = vadd.f32 0.0, %v4093
    %v4095 = vpop.f32.mrb[0].mxu0
    %v4096 = vpop.f32.mrb[0].mxu0
    %4097 = vdwg.mxu0
    %4098 = vmatprep.subr.bf16.mxu0 %v966
    %4099 = vmatpush1.bf16.msra.mxu0 %v965
    %4100 = vmatprep.subr.bf16.mxu0 %v970
    %4101 = vmatpush1.bf16.msra.mxu0 %v969
    %4102 = vmatprep.subr.bf16.mxu0 %v974
    %4103 = vmatpush1.bf16.msra.mxu0 %v973
    %4104 = vmatprep.subr.bf16.mxu0 %v978
    %4105 = vmatpush1.bf16.msra.mxu0 %v977
    %4106 = vmatprep.subr.bf16.mxu0 %v982
    %4107 = vmatpush1.bf16.msra.mxu0 %v981
    %4108 = vmatprep.subr.bf16.mxu0 %v986
    %4109 = vmatpush1.bf16.msra.mxu0 %v985
    %4110 = vmatprep.subr.bf16.mxu0 %v990
    %4111 = vmatpush1.bf16.msra.mxu0 %v989
    %4112 = vmatprep.subr.bf16.mxu0 %v994
    %4113 = vmatpush1.bf16.msra.mxu0 %v993
    %4114 = vmatprep.subr.bf16.mxu0 0
    %4115 = vmatpush1.bf16.msra.mxu0 0
    %4116 = vmatprep.subr.bf16.mxu0 0
    %4117 = vmatpush1.bf16.msra.mxu0 0
    %4118 = vmatprep.subr.bf16.mxu0 0
    %4119 = vmatpush1.bf16.msra.mxu0 0
    %4120 = vmatprep.subr.bf16.mxu0 0
    %4121 = vmatpush1.bf16.msra.mxu0 0
    %4122 = vmatprep.subr.bf16.mxu0 0
    %4123 = vmatpush1.bf16.msra.mxu0 0
    %4124 = vmatprep.subr.bf16.mxu0 0
    %4125 = vmatpush1.bf16.msra.mxu0 0
    %4126 = vmatprep.subr.bf16.mxu0 0
    %4127 = vmatpush1.bf16.msra.mxu0 0
    %4128 = vmatprep.subr.bf16.mxu0 0
    %4129 = vmatpush1.bf16.msra.mxu0 0
    %4130 = vmatprep.mubr.bf16.mxu0 0
    %4131 = vmatmul.mubr.bf16.gmra.mrb[0].mxu0 %v4015
    %v4132 = vpop.f32.mrb[0].mxu0
    %v4133 = vadd.f32 %v4051, %v4132
    %v4134 = vpop.f32.mrb[0].mxu0
    %v4135 = vadd.f32 %v4053, %v4134
    %v4136 = vpop.f32.mrb[0].mxu0
    %v4137 = vpop.f32.mrb[0].mxu0
    %4138 = vdwg.mxu0
    %4139 = vmatprep.subr.bf16.mxu0 %v968
    %4140 = vmatpush1.bf16.msra.mxu0 %v967
    %4141 = vmatprep.subr.bf16.mxu0 %v972
    %4142 = vmatpush1.bf16.msra.mxu0 %v971
    %4143 = vmatprep.subr.bf16.mxu0 %v976
    %4144 = vmatpush1.bf16.msra.mxu0 %v975
    %4145 = vmatprep.subr.bf16.mxu0 %v980
    %4146 = vmatpush1.bf16.msra.mxu0 %v979
    %4147 = vmatprep.subr.bf16.mxu0 %v984
    %4148 = vmatpush1.bf16.msra.mxu0 %v983
    %4149 = vmatprep.subr.bf16.mxu0 %v988
    %4150 = vmatpush1.bf16.msra.mxu0 %v987
    %4151 = vmatprep.subr.bf16.mxu0 %v992
    %4152 = vmatpush1.bf16.msra.mxu0 %v991
    %4153 = vmatprep.subr.bf16.mxu0 %v996
    %4154 = vmatpush1.bf16.msra.mxu0 %v995
    %4155 = vmatprep.subr.bf16.mxu0 0
    %4156 = vmatpush1.bf16.msra.mxu0 0
    %4157 = vmatprep.subr.bf16.mxu0 0
    %4158 = vmatpush1.bf16.msra.mxu0 0
    %4159 = vmatprep.subr.bf16.mxu0 0
    %4160 = vmatpush1.bf16.msra.mxu0 0
    %4161 = vmatprep.subr.bf16.mxu0 0
    %4162 = vmatpush1.bf16.msra.mxu0 0
    %4163 = vmatprep.subr.bf16.mxu0 0
    %4164 = vmatpush1.bf16.msra.mxu0 0
    %4165 = vmatprep.subr.bf16.mxu0 0
    %4166 = vmatpush1.bf16.msra.mxu0 0
    %4167 = vmatprep.subr.bf16.mxu0 0
    %4168 = vmatpush1.bf16.msra.mxu0 0
    %4169 = vmatprep.subr.bf16.mxu0 0
    %4170 = vmatpush1.bf16.msra.mxu0 0
    %4171 = vmatprep.mubr.bf16.mxu0 0
    %4172 = vmatmul.mubr.bf16.gmra.mrb[0].mxu0 %v4015
    %v4173 = vpop.f32.mrb[0].mxu0
    %v4174 = vadd.f32 %v4092, %v4173
    %v4175 = vpop.f32.mrb[0].mxu0
    %v4176 = vadd.f32 %v4094, %v4175
    %v4177 = vpop.f32.mrb[0].mxu0
    %v4178 = vpop.f32.mrb[0].mxu0
    %4179 = vdwg.mxu0
    %v4180 = vadd.f32 %v4133, %v1193
    %v4181 = vadd.f32 %v4135, %v1194
    %v4182 = vadd.f32 %v4174, %v1195
    %v4183 = vadd.f32 %v4176, %v1196
    %v4184 = vmul.f32 %v4180, 0.5
    %v4185 = vmul.f32 %v4181, 0.5
    %v4186 = vmul.f32 %v4182, 0.5
    %v4187 = vtanh.pop %v4184
    %v4188 = vtanh.pop %v4185
    %v4189 = vtanh.pop %v4186
    %v4190 = vmul.f32 %v4187, 0.5
    %v4191 = vmul.f32 %v4188, 0.5
    %v4192 = vmul.f32 %v4189, 0.5
    %v4193 = vadd.f32 %v4190, 0.5
    %v4194 = vadd.f32 %v4191, 0.5
    %v4195 = vadd.f32 %v4192, 0.5
    %v4196 = vtanh.pop %v4183
    %v4197 = vmul.f32 %v4194, %v3713
    %v4198 = vmul.f32 %v4193, %v4196
    %v4199 = vadd.f32 %v4197, %v4198
    %v4200 = vtanh.pop %v4199
    %v4201 = vmul.f32 %v4195, %v4200
    %v4202 = vpack.c.bf16 %v4201, %v4201
    %v4203 = vpack.c.bf16 %v3903, %v3903
    %4204 = vmatprep.subr.bf16.mxu0 %v1253
    %4205 = vmatpush1.bf16.msra.mxu0 %v1252
    %4206 = vmatprep.subr.bf16.mxu0 %v1257
    %4207 = vmatpush1.bf16.msra.mxu0 %v1256
    %4208 = vmatprep.subr.bf16.mxu0 %v1261
    %4209 = vmatpush1.bf16.msra.mxu0 %v1260
    %4210 = vmatprep.subr.bf16.mxu0 %v1265
    %4211 = vmatpush1.bf16.msra.mxu0 %v1264
    %4212 = vmatprep.subr.bf16.mxu0 %v1269
    %4213 = vmatpush1.bf16.msra.mxu0 %v1268
    %4214 = vmatprep.subr.bf16.mxu0 %v1273
    %4215 = vmatpush1.bf16.msra.mxu0 %v1272
    %4216 = vmatprep.subr.bf16.mxu0 %v1277
    %4217 = vmatpush1.bf16.msra.mxu0 %v1276
    %4218 = vmatprep.subr.bf16.mxu0 %v1281
    %4219 = vmatpush1.bf16.msra.mxu0 %v1280
    %4220 = vmatprep.subr.bf16.mxu0 0
    %4221 = vmatpush1.bf16.msra.mxu0 0
    %4222 = vmatprep.subr.bf16.mxu0 0
    %4223 = vmatpush1.bf16.msra.mxu0 0
    %4224 = vmatprep.subr.bf16.mxu0 0
    %4225 = vmatpush1.bf16.msra.mxu0 0
    %4226 = vmatprep.subr.bf16.mxu0 0
    %4227 = vmatpush1.bf16.msra.mxu0 0
    %4228 = vmatprep.subr.bf16.mxu0 0
    %4229 = vmatpush1.bf16.msra.mxu0 0
    %4230 = vmatprep.subr.bf16.mxu0 0
    %4231 = vmatpush1.bf16.msra.mxu0 0
    %4232 = vmatprep.subr.bf16.mxu0 0
    %4233 = vmatpush1.bf16.msra.mxu0 0
    %4234 = vmatprep.subr.bf16.mxu0 0
    %4235 = vmatpush1.bf16.msra.mxu0 0
    %4236 = vmatprep.mubr.bf16.mxu0 0
    %4237 = vmatmul.mubr.bf16.gmra.mrb[0].mxu0 %v4203
    %v4238 = vpop.f32.mrb[0].mxu0
    %v4239 = vadd.f32 0.0, %v4238
    %v4240 = vpop.f32.mrb[0].mxu0
    %v4241 = vadd.f32 0.0, %v4240
    %v4242 = vpop.f32.mrb[0].mxu0
    %v4243 = vpop.f32.mrb[0].mxu0
    %4244 = vdwg.mxu0
    %4245 = vmatprep.subr.bf16.mxu0 %v1255
    %4246 = vmatpush1.bf16.msra.mxu0 %v1254
    %4247 = vmatprep.subr.bf16.mxu0 %v1259
    %4248 = vmatpush1.bf16.msra.mxu0 %v1258
    %4249 = vmatprep.subr.bf16.mxu0 %v1263
    %4250 = vmatpush1.bf16.msra.mxu0 %v1262
    %4251 = vmatprep.subr.bf16.mxu0 %v1267
    %4252 = vmatpush1.bf16.msra.mxu0 %v1266
    %4253 = vmatprep.subr.bf16.mxu0 %v1271
    %4254 = vmatpush1.bf16.msra.mxu0 %v1270
    %4255 = vmatprep.subr.bf16.mxu0 %v1275
    %4256 = vmatpush1.bf16.msra.mxu0 %v1274
    %4257 = vmatprep.subr.bf16.mxu0 %v1279
    %4258 = vmatpush1.bf16.msra.mxu0 %v1278
    %4259 = vmatprep.subr.bf16.mxu0 %v1283
    %4260 = vmatpush1.bf16.msra.mxu0 %v1282
    %4261 = vmatprep.subr.bf16.mxu0 0
    %4262 = vmatpush1.bf16.msra.mxu0 0
    %4263 = vmatprep.subr.bf16.mxu0 0
    %4264 = vmatpush1.bf16.msra.mxu0 0
    %4265 = vmatprep.subr.bf16.mxu0 0
    %4266 = vmatpush1.bf16.msra.mxu0 0
    %4267 = vmatprep.subr.bf16.mxu0 0
    %4268 = vmatpush1.bf16.msra.mxu0 0
    %4269 = vmatprep.subr.bf16.mxu0 0
    %4270 = vmatpush1.bf16.msra.mxu0 0
    %4271 = vmatprep.subr.bf16.mxu0 0
    %4272 = vmatpush1.bf16.msra.mxu0 0
    %4273 = vmatprep.subr.bf16.mxu0 0
    %4274 = vmatpush1.bf16.msra.mxu0 0
    %4275 = vmatprep.subr.bf16.mxu0 0
    %4276 = vmatpush1.bf16.msra.mxu0 0
    %4277 = vmatprep.mubr.bf16.mxu0 0
    %4278 = vmatmul.mubr.bf16.gmra.mrb[0].mxu0 %v4203
    %v4279 = vpop.f32.mrb[0].mxu0
    %v4280 = vadd.f32 0.0, %v4279
    %v4281 = vpop.f32.mrb[0].mxu0
    %v4282 = vadd.f32 0.0, %v4281
    %v4283 = vpop.f32.mrb[0].mxu0
    %v4284 = vpop.f32.mrb[0].mxu0
    %4285 = vdwg.mxu0
    %4286 = vmatprep.subr.bf16.mxu0 %v1221
    %4287 = vmatpush1.bf16.msra.mxu0 %v1220
    %4288 = vmatprep.subr.bf16.mxu0 %v1225
    %4289 = vmatpush1.bf16.msra.mxu0 %v1224
    %4290 = vmatprep.subr.bf16.mxu0 %v1229
    %4291 = vmatpush1.bf16.msra.mxu0 %v1228
    %4292 = vmatprep.subr.bf16.mxu0 %v1233
    %4293 = vmatpush1.bf16.msra.mxu0 %v1232
    %4294 = vmatprep.subr.bf16.mxu0 %v1237
    %4295 = vmatpush1.bf16.msra.mxu0 %v1236
    %4296 = vmatprep.subr.bf16.mxu0 %v1241
    %4297 = vmatpush1.bf16.msra.mxu0 %v1240
    %4298 = vmatprep.subr.bf16.mxu0 %v1245
    %4299 = vmatpush1.bf16.msra.mxu0 %v1244
    %4300 = vmatprep.subr.bf16.mxu0 %v1249
    %4301 = vmatpush1.bf16.msra.mxu0 %v1248
    %4302 = vmatprep.subr.bf16.mxu0 0
    %4303 = vmatpush1.bf16.msra.mxu0 0
    %4304 = vmatprep.subr.bf16.mxu0 0
    %4305 = vmatpush1.bf16.msra.mxu0 0
    %4306 = vmatprep.subr.bf16.mxu0 0
    %4307 = vmatpush1.bf16.msra.mxu0 0
    %4308 = vmatprep.subr.bf16.mxu0 0
    %4309 = vmatpush1.bf16.msra.mxu0 0
    %4310 = vmatprep.subr.bf16.mxu0 0
    %4311 = vmatpush1.bf16.msra.mxu0 0
    %4312 = vmatprep.subr.bf16.mxu0 0
    %4313 = vmatpush1.bf16.msra.mxu0 0
    %4314 = vmatprep.subr.bf16.mxu0 0
    %4315 = vmatpush1.bf16.msra.mxu0 0
    %4316 = vmatprep.subr.bf16.mxu0 0
    %4317 = vmatpush1.bf16.msra.mxu0 0
    %4318 = vmatprep.mubr.bf16.mxu0 0
    %4319 = vmatmul.mubr.bf16.gmra.mrb[0].mxu0 %v4202
    %v4320 = vpop.f32.mrb[0].mxu0
    %v4321 = vadd.f32 %v4239, %v4320
    %v4322 = vpop.f32.mrb[0].mxu0
    %v4323 = vadd.f32 %v4241, %v4322
    %v4324 = vpop.f32.mrb[0].mxu0
    %v4325 = vpop.f32.mrb[0].mxu0
    %4326 = vdwg.mxu0
    %4327 = vmatprep.subr.bf16.mxu0 %v1223
    %4328 = vmatpush1.bf16.msra.mxu0 %v1222
    %4329 = vmatprep.subr.bf16.mxu0 %v1227
    %4330 = vmatpush1.bf16.msra.mxu0 %v1226
    %4331 = vmatprep.subr.bf16.mxu0 %v1231
    %4332 = vmatpush1.bf16.msra.mxu0 %v1230
    %4333 = vmatprep.subr.bf16.mxu0 %v1235
    %4334 = vmatpush1.bf16.msra.mxu0 %v1234
    %4335 = vmatprep.subr.bf16.mxu0 %v1239
    %4336 = vmatpush1.bf16.msra.mxu0 %v1238
    %4337 = vmatprep.subr.bf16.mxu0 %v1243
    %4338 = vmatpush1.bf16.msra.mxu0 %v1242
    %4339 = vmatprep.subr.bf16.mxu0 %v1247
    %4340 = vmatpush1.bf16.msra.mxu0 %v1246
    %4341 = vmatprep.subr.bf16.mxu0 %v1251
    %4342 = vmatpush1.bf16.msra.mxu0 %v1250
    %4343 = vmatprep.subr.bf16.mxu0 0
    %4344 = vmatpush1.bf16.msra.mxu0 0
    %4345 = vmatprep.subr.bf16.mxu0 0
    %4346 = vmatpush1.bf16.msra.mxu0 0
    %4347 = vmatprep.subr.bf16.mxu0 0
    %4348 = vmatpush1.bf16.msra.mxu0 0
    %4349 = vmatprep.subr.bf16.mxu0 0
    %4350 = vmatpush1.bf16.msra.mxu0 0
    %4351 = vmatprep.subr.bf16.mxu0 0
    %4352 = vmatpush1.bf16.msra.mxu0 0
    %4353 = vmatprep.subr.bf16.mxu0 0
    %4354 = vmatpush1.bf16.msra.mxu0 0
    %4355 = vmatprep.subr.bf16.mxu0 0
    %4356 = vmatpush1.bf16.msra.mxu0 0
    %4357 = vmatprep.subr.bf16.mxu0 0
    %4358 = vmatpush1.bf16.msra.mxu0 0
    %4359 = vmatprep.mubr.bf16.mxu0 0
    %4360 = vmatmul.mubr.bf16.gmra.mrb[0].mxu0 %v4202
    %v4361 = vpop.f32.mrb[0].mxu0
    %v4362 = vadd.f32 %v4280, %v4361
    %v4363 = vpop.f32.mrb[0].mxu0
    %v4364 = vadd.f32 %v4282, %v4363
    %v4365 = vpop.f32.mrb[0].mxu0
    %v4366 = vpop.f32.mrb[0].mxu0
    %4367 = vdwg.mxu0
    %v4368 = vadd.f32 %v4321, %v1448
    %v4369 = vadd.f32 %v4323, %v1449
    %v4370 = vadd.f32 %v4362, %v1450
    %v4371 = vadd.f32 %v4364, %v1451
    %v4372 = vmul.f32 %v4368, 0.5
    %v4373 = vmul.f32 %v4369, 0.5
    %v4374 = vmul.f32 %v4370, 0.5
    %v4375 = vtanh.pop %v4372
    %v4376 = vtanh.pop %v4373
    %v4377 = vtanh.pop %v4374
    %v4378 = vmul.f32 %v4375, 0.5
    %v4379 = vmul.f32 %v4376, 0.5
    %v4380 = vmul.f32 %v4377, 0.5
    %v4381 = vadd.f32 %v4378, 0.5
    %v4382 = vadd.f32 %v4379, 0.5
    %v4383 = vadd.f32 %v4380, 0.5
    %v4384 = vtanh.pop %v4371
    %v4385 = vmul.f32 %v4382, %v3901
    %v4386 = vmul.f32 %v4381, %v4384
    %v4387 = vadd.f32 %v4385, %v4386
    %v4388 = vtanh.pop %v4387
    %v4389 = vmul.f32 %v4383, %v4388
    %s4390 = smul.u32 7, 4
    %s4391 = smul.addr %s4390, 8
    %s4392 = scalar_lea.vmem [#allocation2], %s4391
    %v4393 = vld [vmem:[%s4392] sm:$0xff]
    %v4394 = vld [vmem:[%s4392 + $0x8] sm:$0xff]
    %v4395 = vld [vmem:[%s4392 + $0x10] sm:$0xff]
    %v4396 = vld [vmem:[%s4392 + $0x18] sm:$0xff]
    %4397 = vmatprep.subr.bf16.mxu0 %v797
    %4398 = vmatpush1.bf16.msra.mxu0 %v796
    %4399 = vmatprep.subr.bf16.mxu0 %v801
    %4400 = vmatpush1.bf16.msra.mxu0 %v800
    %4401 = vmatprep.subr.bf16.mxu0 %v805
    %4402 = vmatpush1.bf16.msra.mxu0 %v804
    %4403 = vmatprep.subr.bf16.mxu0 %v809
    %4404 = vmatpush1.bf16.msra.mxu0 %v808
    %4405 = vmatprep.subr.bf16.mxu0 %v813
    %4406 = vmatpush1.bf16.msra.mxu0 %v812
    %4407 = vmatprep.subr.bf16.mxu0 %v817
    %4408 = vmatpush1.bf16.msra.mxu0 %v816
    %4409 = vmatprep.subr.bf16.mxu0 %v821
    %4410 = vmatpush1.bf16.msra.mxu0 %v820
    %4411 = vmatprep.subr.bf16.mxu0 %v825
    %4412 = vmatpush1.bf16.msra.mxu0 %v824
    %4413 = vmatprep.subr.bf16.mxu0 0
    %4414 = vmatpush1.bf16.msra.mxu0 0
    %4415 = vmatprep.subr.bf16.mxu0 0
    %4416 = vmatpush1.bf16.msra.mxu0 0
    %4417 = vmatprep.subr.bf16.mxu0 0
    %4418 = vmatpush1.bf16.msra.mxu0 0
    %4419 = vmatprep.subr.bf16.mxu0 0
    %4420 = vmatpush1.bf16.msra.mxu0 0
    %4421 = vmatprep.subr.bf16.mxu0 0
    %4422 = vmatpush1.bf16.msra.mxu0 0
    %4423 = vmatprep.subr.bf16.mxu0 0
    %4424 = vmatpush1.bf16.msra.mxu0 0
    %4425 = vmatprep.subr.bf16.mxu0 0
    %4426 = vmatpush1.bf16.msra.mxu0 0
    %4427 = vmatprep.subr.bf16.mxu0 0
    %4428 = vmatpush1.bf16.msra.mxu0 0
    %4429 = vmatprep.mubr.bf16.mxu0 0
    %4430 = vmatmul.mubr.bf16.gmra.mrb[0].mxu0 %v4015
    %v4431 = vpop.f32.mrb[0].mxu0
    %v4432 = vadd.f32 0.0, %v4431
    %v4433 = vpop.f32.mrb[0].mxu0
    %v4434 = vadd.f32 0.0, %v4433
    %v4435 = vpop.f32.mrb[0].mxu0
    %v4436 = vpop.f32.mrb[0].mxu0
    %4437 = vdwg.mxu0
    %4438 = vmatprep.subr.bf16.mxu0 %v799
    %4439 = vmatpush1.bf16.msra.mxu0 %v798
    %4440 = vmatprep.subr.bf16.mxu0 %v803
    %4441 = vmatpush1.bf16.msra.mxu0 %v802
    %4442 = vmatprep.subr.bf16.mxu0 %v807
    %4443 = vmatpush1.bf16.msra.mxu0 %v806
    %4444 = vmatprep.subr.bf16.mxu0 %v811
    %4445 = vmatpush1.bf16.msra.mxu0 %v810
    %4446 = vmatprep.subr.bf16.mxu0 %v815
    %4447 = vmatpush1.bf16.msra.mxu0 %v814
    %4448 = vmatprep.subr.bf16.mxu0 %v819
    %4449 = vmatpush1.bf16.msra.mxu0 %v818
    %4450 = vmatprep.subr.bf16.mxu0 %v823
    %4451 = vmatpush1.bf16.msra.mxu0 %v822
    %4452 = vmatprep.subr.bf16.mxu0 %v827
    %4453 = vmatpush1.bf16.msra.mxu0 %v826
    %4454 = vmatprep.subr.bf16.mxu0 0
    %4455 = vmatpush1.bf16.msra.mxu0 0
    %4456 = vmatprep.subr.bf16.mxu0 0
    %4457 = vmatpush1.bf16.msra.mxu0 0
    %4458 = vmatprep.subr.bf16.mxu0 0
    %4459 = vmatpush1.bf16.msra.mxu0 0
    %4460 = vmatprep.subr.bf16.mxu0 0
    %4461 = vmatpush1.bf16.msra.mxu0 0
    %4462 = vmatprep.subr.bf16.mxu0 0
    %4463 = vmatpush1.bf16.msra.mxu0 0
    %4464 = vmatprep.subr.bf16.mxu0 0
    %4465 = vmatpush1.bf16.msra.mxu0 0
    %4466 = vmatprep.subr.bf16.mxu0 0
    %4467 = vmatpush1.bf16.msra.mxu0 0
    %4468 = vmatprep.subr.bf16.mxu0 0
    %4469 = vmatpush1.bf16.msra.mxu0 0
    %4470 = vmatprep.mubr.bf16.mxu0 0
    %4471 = vmatmul.mubr.bf16.gmra.mrb[0].mxu0 %v4015
    %v4472 = vpop.f32.mrb[0].mxu0
    %v4473 = vadd.f32 0.0, %v4472
    %v4474 = vpop.f32.mrb[0].mxu0
    %v4475 = vadd.f32 0.0, %v4474
    %v4476 = vpop.f32.mrb[0].mxu0
    %v4477 = vpop.f32.mrb[0].mxu0
    %4478 = vdwg.mxu0
    %v4479 = vadd.f32 %v4393, %v4432
    %v4480 = vadd.f32 %v4394, %v4434
    %v4481 = vadd.f32 %v4395, %v4473
    %v4482 = vadd.f32 %v4396, %v4475
    %v4483 = vmul.f32 %v4479, 0.5
    %v4484 = vmul.f32 %v4480, 0.5
    %v4485 = vmul.f32 %v4481, 0.5
    %v4486 = vtanh.pop %v4483
    %v4487 = vtanh.pop %v4484
    %v4488 = vtanh.pop %v4485
    %v4489 = vmul.f32 %v4486, 0.5
    %v4490 = vmul.f32 %v4487, 0.5
    %v4491 = vmul.f32 %v4488, 0.5
    %v4492 = vadd.f32 %v4489, 0.5
    %v4493 = vadd.f32 %v4490, 0.5
    %v4494 = vadd.f32 %v4491, 0.5
    %v4495 = vtanh.pop %v4482
    %v4496 = vmul.f32 %v4493, %v4012
    %v4497 = vmul.f32 %v4492, %v4495
    %v4498 = vadd.f32 %v4496, %v4497
    %v4499 = vtanh.pop %v4498
    %v4500 = vmul.f32 %v4494, %v4499
    %v4501 = vpack.c.bf16 %v4500, %v4500
    %4502 = vmatprep.subr.bf16.mxu0 %v998
    %4503 = vmatpush1.bf16.msra.mxu0 %v997
    %4504 = vmatprep.subr.bf16.mxu0 %v1002
    %4505 = vmatpush1.bf16.msra.mxu0 %v1001
    %4506 = vmatprep.subr.bf16.mxu0 %v1006
    %4507 = vmatpush1.bf16.msra.mxu0 %v1005
    %4508 = vmatprep.subr.bf16.mxu0 %v1010
    %4509 = vmatpush1.bf16.msra.mxu0 %v1009
    %4510 = vmatprep.subr.bf16.mxu0 %v1014
    %4511 = vmatpush1.bf16.msra.mxu0 %v1013
    %4512 = vmatprep.subr.bf16.mxu0 %v1018
    %4513 = vmatpush1.bf16.msra.mxu0 %v1017
    %4514 = vmatprep.subr.bf16.mxu0 %v1022
    %4515 = vmatpush1.bf16.msra.mxu0 %v1021
    %4516 = vmatprep.subr.bf16.mxu0 %v1026
    %4517 = vmatpush1.bf16.msra.mxu0 %v1025
    %4518 = vmatprep.subr.bf16.mxu0 0
    %4519 = vmatpush1.bf16.msra.mxu0 0
    %4520 = vmatprep.subr.bf16.mxu0 0
    %4521 = vmatpush1.bf16.msra.mxu0 0
    %4522 = vmatprep.subr.bf16.mxu0 0
    %4523 = vmatpush1.bf16.msra.mxu0 0
    %4524 = vmatprep.subr.bf16.mxu0 0
    %4525 = vmatpush1.bf16.msra.mxu0 0
    %4526 = vmatprep.subr.bf16.mxu0 0
    %4527 = vmatpush1.bf16.msra.mxu0 0
    %4528 = vmatprep.subr.bf16.mxu0 0
    %4529 = vmatpush1.bf16.msra.mxu0 0
    %4530 = vmatprep.subr.bf16.mxu0 0
    %4531 = vmatpush1.bf16.msra.mxu0 0
    %4532 = vmatprep.subr.bf16.mxu0 0
    %4533 = vmatpush1.bf16.msra.mxu0 0
    %4534 = vmatprep.mubr.bf16.mxu0 0
    %4535 = vmatmul.mubr.bf16.gmra.mrb[0].mxu0 %v4202
    %v4536 = vpop.f32.mrb[0].mxu0
    %v4537 = vadd.f32 0.0, %v4536
    %v4538 = vpop.f32.mrb[0].mxu0
    %v4539 = vadd.f32 0.0, %v4538
    %v4540 = vpop.f32.mrb[0].mxu0
    %v4541 = vpop.f32.mrb[0].mxu0
    %4542 = vdwg.mxu0
    %4543 = vmatprep.subr.bf16.mxu0 %v1000
    %4544 = vmatpush1.bf16.msra.mxu0 %v999
    %4545 = vmatprep.subr.bf16.mxu0 %v1004
    %4546 = vmatpush1.bf16.msra.mxu0 %v1003
    %4547 = vmatprep.subr.bf16.mxu0 %v1008
    %4548 = vmatpush1.bf16.msra.mxu0 %v1007
    %4549 = vmatprep.subr.bf16.mxu0 %v1012
    %4550 = vmatpush1.bf16.msra.mxu0 %v1011
    %4551 = vmatprep.subr.bf16.mxu0 %v1016
    %4552 = vmatpush1.bf16.msra.mxu0 %v1015
    %4553 = vmatprep.subr.bf16.mxu0 %v1020
    %4554 = vmatpush1.bf16.msra.mxu0 %v1019
    %4555 = vmatprep.subr.bf16.mxu0 %v1024
    %4556 = vmatpush1.bf16.msra.mxu0 %v1023
    %4557 = vmatprep.subr.bf16.mxu0 %v1028
    %4558 = vmatpush1.bf16.msra.mxu0 %v1027
    %4559 = vmatprep.subr.bf16.mxu0 0
    %4560 = vmatpush1.bf16.msra.mxu0 0
    %4561 = vmatprep.subr.bf16.mxu0 0
    %4562 = vmatpush1.bf16.msra.mxu0 0
    %4563 = vmatprep.subr.bf16.mxu0 0
    %4564 = vmatpush1.bf16.msra.mxu0 0
    %4565 = vmatprep.subr.bf16.mxu0 0
    %4566 = vmatpush1.bf16.msra.mxu0 0
    %4567 = vmatprep.subr.bf16.mxu0 0
    %4568 = vmatpush1.bf16.msra.mxu0 0
    %4569 = vmatprep.subr.bf16.mxu0 0
    %4570 = vmatpush1.bf16.msra.mxu0 0
    %4571 = vmatprep.subr.bf16.mxu0 0
    %4572 = vmatpush1.bf16.msra.mxu0 0
    %4573 = vmatprep.subr.bf16.mxu0 0
    %4574 = vmatpush1.bf16.msra.mxu0 0
    %4575 = vmatprep.mubr.bf16.mxu0 0
    %4576 = vmatmul.mubr.bf16.gmra.mrb[0].mxu0 %v4202
    %v4577 = vpop.f32.mrb[0].mxu0
    %v4578 = vadd.f32 0.0, %v4577
    %v4579 = vpop.f32.mrb[0].mxu0
    %v4580 = vadd.f32 0.0, %v4579
    %v4581 = vpop.f32.mrb[0].mxu0
    %v4582 = vpop.f32.mrb[0].mxu0
    %4583 = vdwg.mxu0
    %4584 = vmatprep.subr.bf16.mxu0 %v966
    %4585 = vmatpush1.bf16.msra.mxu0 %v965
    %4586 = vmatprep.subr.bf16.mxu0 %v970
    %4587 = vmatpush1.bf16.msra.mxu0 %v969
    %4588 = vmatprep.subr.bf16.mxu0 %v974
    %4589 = vmatpush1.bf16.msra.mxu0 %v973
    %4590 = vmatprep.subr.bf16.mxu0 %v978
    %4591 = vmatpush1.bf16.msra.mxu0 %v977
    %4592 = vmatprep.subr.bf16.mxu0 %v982
    %4593 = vmatpush1.bf16.msra.mxu0 %v981
    %4594 = vmatprep.subr.bf16.mxu0 %v986
    %4595 = vmatpush1.bf16.msra.mxu0 %v985
    %4596 = vmatprep.subr.bf16.mxu0 %v990
    %4597 = vmatpush1.bf16.msra.mxu0 %v989
    %4598 = vmatprep.subr.bf16.mxu0 %v994
    %4599 = vmatpush1.bf16.msra.mxu0 %v993
    %4600 = vmatprep.subr.bf16.mxu0 0
    %4601 = vmatpush1.bf16.msra.mxu0 0
    %4602 = vmatprep.subr.bf16.mxu0 0
    %4603 = vmatpush1.bf16.msra.mxu0 0
    %4604 = vmatprep.subr.bf16.mxu0 0
    %4605 = vmatpush1.bf16.msra.mxu0 0
    %4606 = vmatprep.subr.bf16.mxu0 0
    %4607 = vmatpush1.bf16.msra.mxu0 0
    %4608 = vmatprep.subr.bf16.mxu0 0
    %4609 = vmatpush1.bf16.msra.mxu0 0
    %4610 = vmatprep.subr.bf16.mxu0 0
    %4611 = vmatpush1.bf16.msra.mxu0 0
    %4612 = vmatprep.subr.bf16.mxu0 0
    %4613 = vmatpush1.bf16.msra.mxu0 0
    %4614 = vmatprep.subr.bf16.mxu0 0
    %4615 = vmatpush1.bf16.msra.mxu0 0
    %4616 = vmatprep.mubr.bf16.mxu0 0
    %4617 = vmatmul.mubr.bf16.gmra.mrb[0].mxu0 %v4501
    %v4618 = vpop.f32.mrb[0].mxu0
    %v4619 = vadd.f32 %v4537, %v4618
    %v4620 = vpop.f32.mrb[0].mxu0
    %v4621 = vadd.f32 %v4539, %v4620
    %v4622 = vpop.f32.mrb[0].mxu0
    %v4623 = vpop.f32.mrb[0].mxu0
    %4624 = vdwg.mxu0
    %4625 = vmatprep.subr.bf16.mxu0 %v968
    %4626 = vmatpush1.bf16.msra.mxu0 %v967
    %4627 = vmatprep.subr.bf16.mxu0 %v972
    %4628 = vmatpush1.bf16.msra.mxu0 %v971
    %4629 = vmatprep.subr.bf16.mxu0 %v976
    %4630 = vmatpush1.bf16.msra.mxu0 %v975
    %4631 = vmatprep.subr.bf16.mxu0 %v980
    %4632 = vmatpush1.bf16.msra.mxu0 %v979
    %4633 = vmatprep.subr.bf16.mxu0 %v984
    %4634 = vmatpush1.bf16.msra.mxu0 %v983
    %4635 = vmatprep.subr.bf16.mxu0 %v988
    %4636 = vmatpush1.bf16.msra.mxu0 %v987
    %4637 = vmatprep.subr.bf16.mxu0 %v992
    %4638 = vmatpush1.bf16.msra.mxu0 %v991
    %4639 = vmatprep.subr.bf16.mxu0 %v996
    %4640 = vmatpush1.bf16.msra.mxu0 %v995
    %4641 = vmatprep.subr.bf16.mxu0 0
    %4642 = vmatpush1.bf16.msra.mxu0 0
    %4643 = vmatprep.subr.bf16.mxu0 0
    %4644 = vmatpush1.bf16.msra.mxu0 0
    %4645 = vmatprep.subr.bf16.mxu0 0
    %4646 = vmatpush1.bf16.msra.mxu0 0
    %4647 = vmatprep.subr.bf16.mxu0 0
    %4648 = vmatpush1.bf16.msra.mxu0 0
    %4649 = vmatprep.subr.bf16.mxu0 0
    %4650 = vmatpush1.bf16.msra.mxu0 0
    %4651 = vmatprep.subr.bf16.mxu0 0
    %4652 = vmatpush1.bf16.msra.mxu0 0
    %4653 = vmatprep.subr.bf16.mxu0 0
    %4654 = vmatpush1.bf16.msra.mxu0 0
    %4655 = vmatprep.subr.bf16.mxu0 0
    %4656 = vmatpush1.bf16.msra.mxu0 0
    %4657 = vmatprep.mubr.bf16.mxu0 0
    %4658 = vmatmul.mubr.bf16.gmra.mrb[0].mxu0 %v4501
    %v4659 = vpop.f32.mrb[0].mxu0
    %v4660 = vadd.f32 %v4578, %v4659
    %v4661 = vpop.f32.mrb[0].mxu0
    %v4662 = vadd.f32 %v4580, %v4661
    %v4663 = vpop.f32.mrb[0].mxu0
    %v4664 = vpop.f32.mrb[0].mxu0
    %4665 = vdwg.mxu0
    %v4666 = vadd.f32 %v4619, %v1193
    %v4667 = vadd.f32 %v4621, %v1194
    %v4668 = vadd.f32 %v4660, %v1195
    %v4669 = vadd.f32 %v4662, %v1196
    %v4670 = vmul.f32 %v4666, 0.5
    %v4671 = vmul.f32 %v4667, 0.5
    %v4672 = vmul.f32 %v4668, 0.5
    %v4673 = vtanh.pop %v4670
    %v4674 = vtanh.pop %v4671
    %v4675 = vtanh.pop %v4672
    %v4676 = vmul.f32 %v4673, 0.5
    %v4677 = vmul.f32 %v4674, 0.5
    %v4678 = vmul.f32 %v4675, 0.5
    %v4679 = vadd.f32 %v4676, 0.5
    %v4680 = vadd.f32 %v4677, 0.5
    %v4681 = vadd.f32 %v4678, 0.5
    %v4682 = vtanh.pop %v4669
    %v4683 = vmul.f32 %v4680, %v4199
    %v4684 = vmul.f32 %v4679, %v4682
    %v4685 = vadd.f32 %v4683, %v4684
    %v4686 = vtanh.pop %v4685
    %v4687 = vmul.f32 %v4681, %v4686
    %v4688 = vpack.c.bf16 %v4687, %v4687
    %v4689 = vpack.c.bf16 %v4389, %v4389
    %4690 = vmatprep.subr.bf16.mxu0 %v1253
    %4691 = vmatpush1.bf16.msra.mxu0 %v1252
    %4692 = vmatprep.subr.bf16.mxu0 %v1257
    %4693 = vmatpush1.bf16.msra.mxu0 %v1256
    %4694 = vmatprep.subr.bf16.mxu0 %v1261
    %4695 = vmatpush1.bf16.msra.mxu0 %v1260
    %4696 = vmatprep.subr.bf16.mxu0 %v1265
    %4697 = vmatpush1.bf16.msra.mxu0 %v1264
    %4698 = vmatprep.subr.bf16.mxu0 %v1269
    %4699 = vmatpush1.bf16.msra.mxu0 %v1268
    %4700 = vmatprep.subr.bf16.mxu0 %v1273
    %4701 = vmatpush1.bf16.msra.mxu0 %v1272
    %4702 = vmatprep.subr.bf16.mxu0 %v1277
    %4703 = vmatpush1.bf16.msra.mxu0 %v1276
    %4704 = vmatprep.subr.bf16.mxu0 %v1281
    %4705 = vmatpush1.bf16.msra.mxu0 %v1280
    %4706 = vmatprep.subr.bf16.mxu0 0
    %4707 = vmatpush1.bf16.msra.mxu0 0
    %4708 = vmatprep.subr.bf16.mxu0 0
    %4709 = vmatpush1.bf16.msra.mxu0 0
    %4710 = vmatprep.subr.bf16.mxu0 0
    %4711 = vmatpush1.bf16.msra.mxu0 0
    %4712 = vmatprep.subr.bf16.mxu0 0
    %4713 = vmatpush1.bf16.msra.mxu0 0
    %4714 = vmatprep.subr.bf16.mxu0 0
    %4715 = vmatpush1.bf16.msra.mxu0 0
    %4716 = vmatprep.subr.bf16.mxu0 0
    %4717 = vmatpush1.bf16.msra.mxu0 0
    %4718 = vmatprep.subr.bf16.mxu0 0
    %4719 = vmatpush1.bf16.msra.mxu0 0
    %4720 = vmatprep.subr.bf16.mxu0 0
    %4721 = vmatpush1.bf16.msra.mxu0 0
    %4722 = vmatprep.mubr.bf16.mxu0 0
    %4723 = vmatmul.mubr.bf16.gmra.mrb[0].mxu0 %v4689
    %v4724 = vpop.f32.mrb[0].mxu0
    %v4725 = vadd.f32 0.0, %v4724
    %v4726 = vpop.f32.mrb[0].mxu0
    %v4727 = vadd.f32 0.0, %v4726
    %v4728 = vpop.f32.mrb[0].mxu0
    %v4729 = vpop.f32.mrb[0].mxu0
    %4730 = vdwg.mxu0
    %4731 = vmatprep.subr.bf16.mxu0 %v1255
    %4732 = vmatpush1.bf16.msra.mxu0 %v1254
    %4733 = vmatprep.subr.bf16.mxu0 %v1259
    %4734 = vmatpush1.bf16.msra.mxu0 %v1258
    %4735 = vmatprep.subr.bf16.mxu0 %v1263
    %4736 = vmatpush1.bf16.msra.mxu0 %v1262
    %4737 = vmatprep.subr.bf16.mxu0 %v1267
    %4738 = vmatpush1.bf16.msra.mxu0 %v1266
    %4739 = vmatprep.subr.bf16.mxu0 %v1271
    %4740 = vmatpush1.bf16.msra.mxu0 %v1270
    %4741 = vmatprep.subr.bf16.mxu0 %v1275
    %4742 = vmatpush1.bf16.msra.mxu0 %v1274
    %4743 = vmatprep.subr.bf16.mxu0 %v1279
    %4744 = vmatpush1.bf16.msra.mxu0 %v1278
    %4745 = vmatprep.subr.bf16.mxu0 %v1283
    %4746 = vmatpush1.bf16.msra.mxu0 %v1282
    %4747 = vmatprep.subr.bf16.mxu0 0
    %4748 = vmatpush1.bf16.msra.mxu0 0
    %4749 = vmatprep.subr.bf16.mxu0 0
    %4750 = vmatpush1.bf16.msra.mxu0 0
    %4751 = vmatprep.subr.bf16.mxu0 0
    %4752 = vmatpush1.bf16.msra.mxu0 0
    %4753 = vmatprep.subr.bf16.mxu0 0
    %4754 = vmatpush1.bf16.msra.mxu0 0
    %4755 = vmatprep.subr.bf16.mxu0 0
    %4756 = vmatpush1.bf16.msra.mxu0 0
    %4757 = vmatprep.subr.bf16.mxu0 0
    %4758 = vmatpush1.bf16.msra.mxu0 0
    %4759 = vmatprep.subr.bf16.mxu0 0
    %4760 = vmatpush1.bf16.msra.mxu0 0
    %4761 = vmatprep.subr.bf16.mxu0 0
    %4762 = vmatpush1.bf16.msra.mxu0 0
    %4763 = vmatprep.mubr.bf16.mxu0 0
    %4764 = vmatmul.mubr.bf16.gmra.mrb[0].mxu0 %v4689
    %v4765 = vpop.f32.mrb[0].mxu0
    %v4766 = vadd.f32 0.0, %v4765
    %v4767 = vpop.f32.mrb[0].mxu0
    %v4768 = vadd.f32 0.0, %v4767
    %v4769 = vpop.f32.mrb[0].mxu0
    %v4770 = vpop.f32.mrb[0].mxu0
    %4771 = vdwg.mxu0
    %4772 = vmatprep.subr.bf16.mxu0 %v1221
    %4773 = vmatpush1.bf16.msra.mxu0 %v1220
    %4774 = vmatprep.subr.bf16.mxu0 %v1225
    %4775 = vmatpush1.bf16.msra.mxu0 %v1224
    %4776 = vmatprep.subr.bf16.mxu0 %v1229
    %4777 = vmatpush1.bf16.msra.mxu0 %v1228
    %4778 = vmatprep.subr.bf16.mxu0 %v1233
    %4779 = vmatpush1.bf16.msra.mxu0 %v1232
    %4780 = vmatprep.subr.bf16.mxu0 %v1237
    %4781 = vmatpush1.bf16.msra.mxu0 %v1236
    %4782 = vmatprep.subr.bf16.mxu0 %v1241
    %4783 = vmatpush1.bf16.msra.mxu0 %v1240
    %4784 = vmatprep.subr.bf16.mxu0 %v1245
    %4785 = vmatpush1.bf16.msra.mxu0 %v1244
    %4786 = vmatprep.subr.bf16.mxu0 %v1249
    %4787 = vmatpush1.bf16.msra.mxu0 %v1248
    %4788 = vmatprep.subr.bf16.mxu0 0
    %4789 = vmatpush1.bf16.msra.mxu0 0
    %4790 = vmatprep.subr.bf16.mxu0 0
    %4791 = vmatpush1.bf16.msra.mxu0 0
    %4792 = vmatprep.subr.bf16.mxu0 0
    %4793 = vmatpush1.bf16.msra.mxu0 0
    %4794 = vmatprep.subr.bf16.mxu0 0
    %4795 = vmatpush1.bf16.msra.mxu0 0
    %4796 = vmatprep.subr.bf16.mxu0 0
    %4797 = vmatpush1.bf16.msra.mxu0 0
    %4798 = vmatprep.subr.bf16.mxu0 0
    %4799 = vmatpush1.bf16.msra.mxu0 0
    %4800 = vmatprep.subr.bf16.mxu0 0
    %4801 = vmatpush1.bf16.msra.mxu0 0
    %4802 = vmatprep.subr.bf16.mxu0 0
    %4803 = vmatpush1.bf16.msra.mxu0 0
    %4804 = vmatprep.mubr.bf16.mxu0 0
    %4805 = vmatmul.mubr.bf16.gmra.mrb[0].mxu0 %v4688
    %v4806 = vpop.f32.mrb[0].mxu0
    %v4807 = vadd.f32 %v4725, %v4806
    %v4808 = vpop.f32.mrb[0].mxu0
    %v4809 = vadd.f32 %v4727, %v4808
    %v4810 = vpop.f32.mrb[0].mxu0
    %v4811 = vpop.f32.mrb[0].mxu0
    %4812 = vdwg.mxu0
    %4813 = vmatprep.subr.bf16.mxu0 %v1223
    %4814 = vmatpush1.bf16.msra.mxu0 %v1222
    %4815 = vmatprep.subr.bf16.mxu0 %v1227
    %4816 = vmatpush1.bf16.msra.mxu0 %v1226
    %4817 = vmatprep.subr.bf16.mxu0 %v1231
    %4818 = vmatpush1.bf16.msra.mxu0 %v1230
    %4819 = vmatprep.subr.bf16.mxu0 %v1235
    %4820 = vmatpush1.bf16.msra.mxu0 %v1234
    %4821 = vmatprep.subr.bf16.mxu0 %v1239
    %4822 = vmatpush1.bf16.msra.mxu0 %v1238
    %4823 = vmatprep.subr.bf16.mxu0 %v1243
    %4824 = vmatpush1.bf16.msra.mxu0 %v1242
    %4825 = vmatprep.subr.bf16.mxu0 %v1247
    %4826 = vmatpush1.bf16.msra.mxu0 %v1246
    %4827 = vmatprep.subr.bf16.mxu0 %v1251
    %4828 = vmatpush1.bf16.msra.mxu0 %v1250
    %4829 = vmatprep.subr.bf16.mxu0 0
    %4830 = vmatpush1.bf16.msra.mxu0 0
    %4831 = vmatprep.subr.bf16.mxu0 0
    %4832 = vmatpush1.bf16.msra.mxu0 0
    %4833 = vmatprep.subr.bf16.mxu0 0
    %4834 = vmatpush1.bf16.msra.mxu0 0
    %4835 = vmatprep.subr.bf16.mxu0 0
    %4836 = vmatpush1.bf16.msra.mxu0 0
    %4837 = vmatprep.subr.bf16.mxu0 0
    %4838 = vmatpush1.bf16.msra.mxu0 0
    %4839 = vmatprep.subr.bf16.mxu0 0
    %4840 = vmatpush1.bf16.msra.mxu0 0
    %4841 = vmatprep.subr.bf16.mxu0 0
    %4842 = vmatpush1.bf16.msra.mxu0 0
    %4843 = vmatprep.subr.bf16.mxu0 0
    %4844 = vmatpush1.bf16.msra.mxu0 0
    %4845 = vmatprep.mubr.bf16.mxu0 0
    %4846 = vmatmul.mubr.bf16.gmra.mrb[0].mxu0 %v4688
    %v4847 = vpop.f32.mrb[0].mxu0
    %v4848 = vadd.f32 %v4766, %v4847
    %v4849 = vpop.f32.mrb[0].mxu0
    %v4850 = vadd.f32 %v4768, %v4849
    %v4851 = vpop.f32.mrb[0].mxu0
    %v4852 = vpop.f32.mrb[0].mxu0
    %4853 = vdwg.mxu0
    %v4854 = vadd.f32 %v4807, %v1448
    %v4855 = vadd.f32 %v4809, %v1449
    %v4856 = vadd.f32 %v4848, %v1450
    %v4857 = vadd.f32 %v4850, %v1451
    %v4858 = vmul.f32 %v4854, 0.5
    %v4859 = vmul.f32 %v4855, 0.5
    %v4860 = vmul.f32 %v4856, 0.5
    %v4861 = vtanh.pop %v4858
    %v4862 = vtanh.pop %v4859
    %v4863 = vtanh.pop %v4860
    %v4864 = vmul.f32 %v4861, 0.5
    %v4865 = vmul.f32 %v4862, 0.5
    %v4866 = vmul.f32 %v4863, 0.5
    %v4867 = vadd.f32 %v4864, 0.5
    %v4868 = vadd.f32 %v4865, 0.5
    %v4869 = vadd.f32 %v4866, 0.5
    %v4870 = vtanh.pop %v4857
    %v4871 = vmul.f32 %v4868, %v4387
    %v4872 = vmul.f32 %v4867, %v4870
    %v4873 = vadd.f32 %v4871, %v4872
    %v4874 = vtanh.pop %v4873
    %v4875 = vmul.f32 %v4869, %v4874
    %s4876 = smul.u32 %s651, 1
    %s4877 = sshll.u32 %s4876, 4
    %4878 = dma.done %s275, %s4877
    %s4879 = sshll.u32 %s4876, 4
    %4880 = dma.done %s332, %s4879
    %s4881 = sshll.u32 %s4876, 4
    %4882 = dma.done %s389, %s4881
    %v4883 = vpack.c.bf16 %v4875, %v4875
    %v4884 = vld [vmem:[#allocation7] sm:$0xff]
    %v4885 = vld [vmem:[#allocation7 + $0x8] sm:$0xff]
    %v4886 = vld [vmem:[#allocation7 + $0x10] sm:$0xff]
    %v4887 = vld [vmem:[#allocation7 + $0x18] sm:$0xff]
    %v4888 = vld [vmem:[#allocation7 + $0x20] sm:$0xff]
    %v4889 = vld [vmem:[#allocation7 + $0x28] sm:$0xff]
    %v4890 = vld [vmem:[#allocation7 + $0x30] sm:$0xff]
    %v4891 = vld [vmem:[#allocation7 + $0x38] sm:$0xff]
    %v4892 = vld [vmem:[#allocation19] sm:$0xff]
    %4893 = vmatprep.subr.bf16.mxu0 0
    %4894 = vmatpush1.bf16.msra.mxu0 %v4884
    %4895 = vmatprep.subr.bf16.mxu0 0
    %4896 = vmatpush1.bf16.msra.mxu0 %v4885
    %4897 = vmatprep.subr.bf16.mxu0 0
    %4898 = vmatpush1.bf16.msra.mxu0 %v4886
    %4899 = vmatprep.subr.bf16.mxu0 0
    %4900 = vmatpush1.bf16.msra.mxu0 %v4887
    %4901 = vmatprep.subr.bf16.mxu0 0
    %4902 = vmatpush1.bf16.msra.mxu0 %v4888
    %4903 = vmatprep.subr.bf16.mxu0 0
    %4904 = vmatpush1.bf16.msra.mxu0 %v4889
    %4905 = vmatprep.subr.bf16.mxu0 0
    %4906 = vmatpush1.bf16.msra.mxu0 %v4890
    %4907 = vmatprep.subr.bf16.mxu0 0
    %4908 = vmatpush1.bf16.msra.mxu0 %v4891
    %4909 = vmatprep.subr.bf16.mxu0 0
    %4910 = vmatpush1.bf16.msra.mxu0 0
    %4911 = vmatprep.subr.bf16.mxu0 0
    %4912 = vmatpush1.bf16.msra.mxu0 0
    %4913 = vmatprep.subr.bf16.mxu0 0
    %4914 = vmatpush1.bf16.msra.mxu0 0
    %4915 = vmatprep.subr.bf16.mxu0 0
    %4916 = vmatpush1.bf16.msra.mxu0 0
    %4917 = vmatprep.subr.bf16.mxu0 0
    %4918 = vmatpush1.bf16.msra.mxu0 0
    %4919 = vmatprep.subr.bf16.mxu0 0
    %4920 = vmatpush1.bf16.msra.mxu0 0
    %4921 = vmatprep.subr.bf16.mxu0 0
    %4922 = vmatpush1.bf16.msra.mxu0 0
    %4923 = vmatprep.subr.bf16.mxu0 0
    %4924 = vmatpush1.bf16.msra.mxu0 0
    %4925 = vmatprep.mubr.bf16.mxu0 0
    %4926 = vmatmul.mubr.bf16.gmra.mrb[0].mxu0 %v4883
    %v4927 = vpop.f32.mrb[0].mxu0
    %v4928 = vadd.f32 %v4892, %v4927
    %v4929 = vpop.f32.mrb[0].mxu0
    %v4930 = vpop.f32.mrb[0].mxu0
    %v4931 = vpop.f32.mrb[0].mxu0
    %4932 = vdwg.mxu0
    %v4933 = vtanh.pop %v4928
    %v4934 = vpack.c.bf16 %v4933, %v4933
    %v4935 = vld [vmem:[#allocation8] sm:$0xff]
    %v4936 = vld [vmem:[#allocation8 + $0x8] sm:$0xff]
    %v4937 = vld [vmem:[#allocation8 + $0x10] sm:$0xff]
    %v4938 = vld [vmem:[#allocation8 + $0x18] sm:$0xff]
    %v4939 = vld [vmem:[#allocation8 + $0x20] sm:$0xff]
    %v4940 = vld [vmem:[#allocation8 + $0x28] sm:$0xff]
    %v4941 = vld [vmem:[#allocation8 + $0x30] sm:$0xff]
    %v4942 = vld [vmem:[#allocation8 + $0x38] sm:$0xff]
    %v4943 = vld [vmem:[#allocation21] sm:$0xff]
    %4944 = vmatprep.subr.bf16.mxu0 0
    %4945 = vmatpush1.bf16.msra.mxu0 %v4935
    %4946 = vmatprep.subr.bf16.mxu0 0
    %4947 = vmatpush1.bf16.msra.mxu0 %v4936
    %4948 = vmatprep.subr.bf16.mxu0 0
    %4949 = vmatpush1.bf16.msra.mxu0 %v4937
    %4950 = vmatprep.subr.bf16.mxu0 0
    %4951 = vmatpush1.bf16.msra.mxu0 %v4938
    %4952 = vmatprep.subr.bf16.mxu0 0
    %4953 = vmatpush1.bf16.msra.mxu0 %v4939
    %4954 = vmatprep.subr.bf16.mxu0 0
    %4955 = vmatpush1.bf16.msra.mxu0 %v4940
    %4956 = vmatprep.subr.bf16.mxu0 0
    %4957 = vmatpush1.bf16.msra.mxu0 %v4941
    %4958 = vmatprep.subr.bf16.mxu0 0
    %4959 = vmatpush1.bf16.msra.mxu0 %v4942
    %4960 = vmatprep.subr.bf16.mxu0 0
    %4961 = vmatpush1.bf16.msra.mxu0 0
    %4962 = vmatprep.subr.bf16.mxu0 0
    %4963 = vmatpush1.bf16.msra.mxu0 0
    %4964 = vmatprep.subr.bf16.mxu0 0
    %4965 = vmatpush1.bf16.msra.mxu0 0
    %4966 = vmatprep.subr.bf16.mxu0 0
    %4967 = vmatpush1.bf16.msra.mxu0 0
    %4968 = vmatprep.subr.bf16.mxu0 0
    %4969 = vmatpush1.bf16.msra.mxu0 0
    %4970 = vmatprep.subr.bf16.mxu0 0
    %4971 = vmatpush1.bf16.msra.mxu0 0
    %4972 = vmatprep.subr.bf16.mxu0 0
    %4973 = vmatpush1.bf16.msra.mxu0 0
    %4974 = vmatprep.subr.bf16.mxu0 0
    %4975 = vmatpush1.bf16.msra.mxu0 0
    %4976 = vmatprep.mubr.bf16.mxu0 0
    %4977 = vmatmul.mubr.bf16.gmra.mrb[0].mxu0 %v4934
    %v4978 = vpop.f32.mrb[0].mxu0
    %v4979 = vadd.f32 %v4943, %v4978
    %v4980 = vpop.f32.mrb[0].mxu0
    %v4981 = vpop.f32.mrb[0].mxu0
    %v4982 = vpop.f32.mrb[0].mxu0
    %4983 = vdwg.mxu0
    %v4984 = vtanh.pop %v4979
    %v4985 = vpack.c.bf16 %v4984, %v4984
    %v4986 = vld [vmem:[#allocation9] sm:$0xff]
    %v4987 = vld [vmem:[#allocation9 + $0x8] sm:$0xff]
    %v4988 = vld [vmem:[#allocation9 + $0x10] sm:$0xff]
    %v4989 = vld [vmem:[#allocation9 + $0x18] sm:$0xff]
    %v4990 = vld [vmem:[#allocation9 + $0x20] sm:$0xff]
    %v4991 = vld [vmem:[#allocation9 + $0x28] sm:$0xff]
    %v4992 = vld [vmem:[#allocation9 + $0x30] sm:$0xff]
    %v4993 = vld [vmem:[#allocation9 + $0x38] sm:$0xff]
    %v4994 = vld [vmem:[#allocation22] sm:$0xff]
    %4995 = vmatprep.subr.bf16.mxu0 0
    %4996 = vmatpush1.bf16.msra.mxu0 %v4986
    %4997 = vmatprep.subr.bf16.mxu0 0
    %4998 = vmatpush1.bf16.msra.mxu0 %v4987
    %4999 = vmatprep.subr.bf16.mxu0 0
    %5000 = vmatpush1.bf16.msra.mxu0 %v4988
    %5001 = vmatprep.subr.bf16.mxu0 0
    %5002 = vmatpush1.bf16.msra.mxu0 %v4989
    %5003 = vmatprep.subr.bf16.mxu0 0
    %5004 = vmatpush1.bf16.msra.mxu0 %v4990
    %5005 = vmatprep.subr.bf16.mxu0 0
    %5006 = vmatpush1.bf16.msra.mxu0 %v4991
    %5007 = vmatprep.subr.bf16.mxu0 0
    %5008 = vmatpush1.bf16.msra.mxu0 %v4992
    %5009 = vmatprep.subr.bf16.mxu0 0
    %5010 = vmatpush1.bf16.msra.mxu0 %v4993
    %5011 = vmatprep.subr.bf16.mxu0 0
    %5012 = vmatpush1.bf16.msra.mxu0 0
    %5013 = vmatprep.subr.bf16.mxu0 0
    %5014 = vmatpush1.bf16.msra.mxu0 0
    %5015 = vmatprep.subr.bf16.mxu0 0
    %5016 = vmatpush1.bf16.msra.mxu0 0
    %5017 = vmatprep.subr.bf16.mxu0 0
    %5018 = vmatpush1.bf16.msra.mxu0 0
    %5019 = vmatprep.subr.bf16.mxu0 0
    %5020 = vmatpush1.bf16.msra.mxu0 0
    %5021 = vmatprep.subr.bf16.mxu0 0
    %5022 = vmatpush1.bf16.msra.mxu0 0
    %5023 = vmatprep.subr.bf16.mxu0 0
    %5024 = vmatpush1.bf16.msra.mxu0 0
    %5025 = vmatprep.subr.bf16.mxu0 0
    %5026 = vmatpush1.bf16.msra.mxu0 0
    %5027 = vmatprep.mubr.bf16.mxu0 0
    %5028 = vmatmul.mubr.bf16.gmra.mrb[0].mxu0 %v4985
    %v5029 = vpop.f32.mrb[0].mxu0
    %v5030 = vadd.f32 %v4994, %v5029
    %v5031 = vpop.f32.mrb[0].mxu0
    %v5032 = vpop.f32.mrb[0].mxu0
    %v5033 = vpop.f32.mrb[0].mxu0
    %5034 = vdwg.mxu0
    %v5035 = vmul.f32 %v5030, 0.5
    %v5036 = vtanh.pop %v5035
    %v5037 = vmul.f32 %v5036, 0.5
    %v5038 = vadd.f32 %v5037, 0.5
    %5039 = vst [vmem:[%s16] sm:$0xff] %v5038
    // Predicated region
    $region142: #{disk_lstm_forward.1} parent=1 // pred_check
      _
    $region143: #{disk_lstm_forward.1} parent=1 // pred_check_branch
      %5041 = sbr.rel (0) target = $region145
    $region144: #{disk_lstm_forward.1} parent=1 // pred_region
      _
    $region145: #{disk_lstm_forward.1} parent=1 // pred_fallthru
      _
    // Predicated region
    $region146: #{disk_lstm_forward.1} parent=1 // pred_check
      _
    $region147: #{disk_lstm_forward.1} parent=1 // pred_check_branch
      %5043 = sbr.rel (0) target = $region149
    $region148: #{disk_lstm_forward.1} parent=1 // pred_region
      _
    $region149: #{disk_lstm_forward.1} parent=1 // pred_fallthru
      _
    %5044 = vsyncpa [#allocation12], 1
    %5045 = vsyncpa [#allocation14], 1
    %5046 = vsyncpa [#allocation17], 1
    %5047 = vsyncpa [#allocation20], 1
    %5048 = vsyncpa [#allocation23], 1
  %5049 = vsyncmov [#allocation10]
  %s5050 = vpop.sfrf %5049
  %p5051 = scmp.eq.s32.totalorder %s5050, 0
  %p5052 = pneg %p5051
  %5054 = shalt.err (%p5052)
  %s5055 = scalar_lea.sflag [#allocation10], 1
  %5056 = vsyncmov %s5055
  %s5057 = vpop.sfrf %5056
  %p5058 = scmp.eq.s32.totalorder %s5057, 0
  %p5059 = pneg %p5058
  %5061 = shalt.err (%p5059)
  %s5062 = scalar_lea.sflag [#allocation10], 2
  %5063 = vsyncmov %s5062
  %s5064 = vpop.sfrf %5063
  %p5065 = scmp.eq.s32.totalorder %s5064, 0
  %p5066 = pneg %p5065
  %5068 = shalt.err (%p5066)
  %s5069 = scalar_lea.sflag [#allocation10], 3
  %5070 = vsyncmov %s5069
  %s5071 = vpop.sfrf %5070
  %p5072 = scmp.eq.s32.totalorder %s5071, 0
  %p5073 = pneg %p5072
  %5075 = shalt.err (%p5073)
  %s5076 = scalar_lea.sflag [#allocation10], 4
  %5077 = vsyncmov %s5076
  %s5078 = vpop.sfrf %5077
  %p5079 = scmp.eq.s32.totalorder %s5078, 0
  %p5080 = pneg %p5079
  %5082 = shalt.err (%p5080)
  %s5083 = scalar_lea.sflag [#allocation10], 5
  %5084 = vsyncmov %s5083
  %s5085 = vpop.sfrf %5084
  %p5086 = scmp.eq.s32.totalorder %s5085, 0
  %p5087 = pneg %p5086
  %5089 = shalt.err (%p5087)
  %s5090 = scalar_lea.sflag [#allocation10], 6
  %5091 = vsyncmov %s5090
  %s5092 = vpop.sfrf %5091
  %p5093 = scmp.eq.s32.totalorder %s5092, 0
  %p5094 = pneg %p5093
  %5096 = shalt.err (%p5094)

</llo_original>
